<compile_context>
chip_gen: v7x
topology: tpu7x:2x2x1
jax: 0.10.0
libtpu: 0.0.40
codegen_flags: <defaults>
</compile_context>

<pallas_src>
import functools

import jax
import jax.numpy as jnp
from jax import lax
from jax.experimental import pallas as pl
from jax.experimental.pallas import tpu as pltpu


# ----------------------------------------------------------------------------
# Fused kernel: conv+bn+silu -> p + Linear(p) -> N TransformerLayers -> (C, L)
# ----------------------------------------------------------------------------
def stack_kernel(*refs, num_heads, num_layers, bblk, seq_len, has_conv):
    if has_conv:
        (x_ref, convw_ref, bns_ref, bnb_ref,
         linw_ref, linb_ref,
         wqkv_ref, bqkv_ref, wout_ref, bout_ref, w1_ref, w2_ref,
         o_ref, act_ref) = refs
    else:
        (x_ref,
         linw_ref, linb_ref,
         wqkv_ref, bqkv_ref, wout_ref, bout_ref, w1_ref, w2_ref,
         o_ref, act_ref) = refs
        convw_ref = bns_ref = bnb_ref = None

    layer = pl.program_id(1)
    L = seq_len
    C = act_ref.shape[1]
    d = C // num_heads

    # ---- layer 0: build p from the NCHW input block and apply p + Linear(p).
    # (Relies on the layer axis being the innermost, "arbitrary" grid axis and
    #  the batch axis being the only "parallel" axis, so every batch block runs
    #  all its layers consecutively on one core against the same scratch.)
    @pl.when(layer == 0)
    def _init():
        for b in range(bblk):
            xb = x_ref[b]                                    # (Cin, L), NCHW-major
            if has_conv:
                # 1x1 conv (+ folded BN) + SiLU, computed channels-last on-chip.
                y = jnp.dot(xb.T, convw_ref[...].astype(jnp.float32),
                            preferred_element_type=jnp.float32)          # (L, C)
                y = y * bns_ref[...] + bnb_ref[...]
                y = y * jax.nn.sigmoid(y)                                 # SiLU
            else:
                y = xb.T                                                  # (L, C)
            act_ref[b * L:(b + 1) * L, :] = y
        p = act_ref[...]                                                  # (M, C)
        act_ref[...] = p + jnp.dot(p, linw_ref[...].astype(jnp.float32),
                                   preferred_element_type=jnp.float32) + linb_ref[...]

    # ---- one TransformerLayer on the resident activation (M = bblk*L rows).
    x2 = act_ref[...]                                                     # (M, C)
    wqkv = wqkv_ref[layer].astype(jnp.float32)                            # (C, 3C)
    qkv = jnp.dot(x2, wqkv, preferred_element_type=jnp.float32) + bqkv_ref[layer]
    wout = wout_ref[layer].astype(jnp.float32)                            # (C, C)

    # Per-(batch, head) attention.  Head slices are lane slices of width d:
    # free when d is a multiple of 128 (realistic C/num_heads); for small d a
    # head-major batched dot_general would be preferable but needs a
    # lane-splitting reshape, so it is intentionally not done here.
    attn_rows = []
    for b in range(bblk):
        qkv_b = qkv[b * L:(b + 1) * L]                                    # (L, 3C)
        ao = None
        for h in range(num_heads):
            qh = qkv_b[:, h * d:(h + 1) * d]          # q pre-scaled by 1/sqrt(d)
            kh = qkv_b[:, C + h * d:C + (h + 1) * d]
            vh = qkv_b[:, 2 * C + h * d:2 * C + (h + 1) * d]
            # QK^T without an explicit K transpose (MXU consumes K directly).
            s = lax.dot_general(qh, kh, (((1,), (1,)), ((), ())),
                                preferred_element_type=jnp.float32)       # (L, L)
            s = s - jnp.max(s, axis=-1, keepdims=True)
            pattn = jnp.exp(s)
            pattn = pattn * pl.reciprocal(jnp.sum(pattn, axis=-1, keepdims=True),
                                          approx=True)
            hv = jnp.dot(pattn, vh, preferred_element_type=jnp.float32)   # (L, d)
            # Accumulate the out-projection per head -> full-lane (L, C) result.
            contrib = jnp.dot(hv, wout[h * d:(h + 1) * d, :],
                              preferred_element_type=jnp.float32)
            ao = contrib if ao is None else ao + contrib
        attn_rows.append(ao)
    attn = attn_rows[0] if bblk == 1 else jnp.concatenate(attn_rows, axis=0)

    x1 = attn + bout_ref[layer] + x2                                       # residual
    y = jnp.dot(jnp.dot(x1, w1_ref[layer].astype(jnp.float32),
                        preferred_element_type=jnp.float32),
                w2_ref[layer].astype(jnp.float32),
                preferred_element_type=jnp.float32) + x1
    act_ref[...] = y

    # ---- last layer: emit the NCHW (C, L) layout per batch on-chip.
    @pl.when(layer == num_layers - 1)
    def _final():
        for b in range(bblk):
            o_ref[b] = y[b * L:(b + 1) * L, :].T                           # (C, L)


# ----------------------------------------------------------------------------
# Wrapper around pallas_call
# ----------------------------------------------------------------------------
def _pick_batch_block(B, L, max_rows=1024):
    divs = [n for n in range(1, B + 1) if B % n == 0]
    cands = [n for n in divs if n * L <= max_rows] or [1]
    bblk = max(cands)
    # Prefer >= 2 batch blocks (feeds both TensorCores on v7x) when the matmul
    # M dimension stays reasonably filled.
    two_core = [n for n in cands if B // n >= 2 and n * L >= 256]
    if B // bblk < 2 and two_core:
        bblk = max(two_core)
    return bblk


def _vmem_bytes_estimate(bblk, L, cin, c2, num_layers, has_conv):
    f32, bf16 = 4, 2
    m = bblk * L
    weights = num_layers * 6 * c2 * c2 * bf16 + c2 * c2 * bf16
    if has_conv:
        weights += cin * c2 * bf16
    biases = num_layers * 4 * c2 * f32 + 3 * c2 * f32
    act = m * c2 * f32
    io = 2 * bblk * cin * L * f32 + 2 * bblk * c2 * L * f32
    temps = m * 3 * c2 * f32 + L * L * f32 + 4 * m * c2 * f32
    return weights + biases + act + io + temps


def transformer_block_forward(x, prep, *, c1, c2, num_heads, num_layers):
    B, cin, H, W = x.shape
    L = H * W
    has_conv = (c1 != c2)
    x3 = x.reshape(B, cin, L)                      # free reshape, stays NCHW-major
    bblk = _pick_batch_block(B, L)

    kernel = functools.partial(stack_kernel, num_heads=num_heads,
                               num_layers=num_layers, bblk=bblk,
                               seq_len=L, has_conv=has_conv)

    def full_spec(arr):
        zeros = (0,) * arr.ndim
        return pl.BlockSpec(arr.shape, lambda b, l, _z=zeros: _z)

    in_arrays = [x3]
    in_specs = [pl.BlockSpec((bblk, cin, L), lambda b, l: (b, 0, 0))]
    if has_conv:
        in_arrays += [prep["conv_w_t"], prep["bn_scale"], prep["bn_shift"]]
        in_specs += [full_spec(a) for a in in_arrays[1:]]
    stacked = [prep["lin_w_t"], prep["lin_b"],
               prep["wqkv"], prep["bqkv"], prep["wout_t"], prep["bout"],
               prep["w1_t"], prep["w2_t"]]
    in_arrays += stacked
    in_specs += [full_spec(a) for a in stacked]

    est = _vmem_bytes_estimate(bblk, L, cin, c2, num_layers, has_conv)
    vmem_limit = int(min(64 * 2**20, max(32 * 2**20, 2 * est)))   # v7x-safe cap

    out = pl.pallas_call(
        kernel,
        out_shape=jax.ShapeDtypeStruct((B, c2, L), jnp.float32),
        grid=(B // bblk, num_layers),
        in_specs=in_specs,
        out_specs=pl.BlockSpec((bblk, c2, L), lambda b, l: (b, 0, 0)),
        scratch_shapes=[pltpu.VMEM((bblk * L, c2), jnp.float32)],
        compiler_params=pltpu.CompilerParams(
            dimension_semantics=("parallel", "arbitrary"),
            vmem_limit_bytes=vmem_limit),
    )(*in_arrays)
    return out.reshape(B, c2, H, W)


# ----------------------------------------------------------------------------
# One-time parameter preparation (hoisted out of the forward hot path)
# ----------------------------------------------------------------------------
def prepare_params(params, *, c1, c2, num_heads):
    wdt = jnp.bfloat16                      # weights in bf16, biases/BN in f32
    prep = {}
    if c1 != c2:
        inv_std = 1.0 / jnp.sqrt(params["bn_var"] + 1e-5)
        prep["conv_w_t"] = params["conv_w"].reshape(c2, c1).T.astype(wdt)   # (C1, C2)
        prep["bn_scale"] = (params["bn_gamma"] * inv_std).reshape(1, c2)
        prep["bn_shift"] = (params["bn_beta"]
                            - params["bn_mean"] * params["bn_gamma"] * inv_std
                            ).reshape(1, c2)
    prep["lin_w_t"] = params["lin_w"].T.astype(wdt)
    prep["lin_b"] = params["lin_b"].reshape(1, c2)

    d = c2 // num_heads
    scale = 1.0 / (d ** 0.5)
    wqkv, bqkv, wout_t, bout, w1_t, w2_t = [], [], [], [], [], []
    for lp in params["layers"]:
        win_t = lp["win"].T                                              # (C, 3C)
        # q = ((x @ wq.T) @ win[:C].T + b_q) / sqrt(d): fold the outer Linear
        # into the in-projection and the 1/sqrt(d) scale into wq/b_q.
        wq_eff = (lp["wq"].T @ win_t[:, :c2]) * scale
        wk_eff = lp["wk"].T @ win_t[:, c2:2 * c2]
        wv_eff = lp["wv"].T @ win_t[:, 2 * c2:]
        wqkv.append(jnp.concatenate([wq_eff, wk_eff, wv_eff], axis=1))   # (C, 3C)
        b = lp["bin"]
        bqkv.append(jnp.concatenate([b[:c2] * scale, b[c2:]]).reshape(1, 3 * c2))
        wout_t.append(lp["wout"].T)
        bout.append(lp["bout"].reshape(1, c2))
        w1_t.append(lp["w1"].T)
        w2_t.append(lp["w2"].T)
    prep["wqkv"] = jnp.stack(wqkv).astype(wdt)     # (NL, C, 3C)
    prep["bqkv"] = jnp.stack(bqkv)                 # (NL, 1, 3C)
    prep["wout_t"] = jnp.stack(wout_t).astype(wdt)
    prep["bout"] = jnp.stack(bout)
    prep["w1_t"] = jnp.stack(w1_t).astype(wdt)
    prep["w2_t"] = jnp.stack(w2_t).astype(wdt)
    return prep


# ----------------------------------------------------------------------------
# Pure-JAX reference (mirrors PyTorch semantics, sequence-first (L, B, C))
# ----------------------------------------------------------------------------
def ref_forward(x, params, *, c1, c2, num_heads):
    B, _, H, W = x.shape
    if c1 != c2:
        w = params["conv_w"].reshape(c2, c1)
        y = jnp.einsum("bchw,oc->bohw", x, w)
        inv_std = 1.0 / jnp.sqrt(params["bn_var"] + 1e-5)
        scale = params["bn_gamma"] * inv_std
        shift = params["bn_beta"] - params["bn_mean"] * scale
        y = y * scale[None, :, None, None] + shift[None, :, None, None]
        x = y * jax.nn.sigmoid(y)
    L = H * W
    p = x.reshape(B, c2, L).transpose(2, 0, 1)                 # (L, B, C)
    p = p + p @ params["lin_w"].T + params["lin_b"]
    d = c2 // num_heads
    for lp in params["layers"]:
        xq = p @ lp["wq"].T
        xk = p @ lp["wk"].T
        xv = p @ lp["wv"].T
        q = xq @ lp["win"][:c2].T + lp["bin"][:c2]
        k = xk @ lp["win"][c2:2 * c2].T + lp["bin"][c2:2 * c2]
        v = xv @ lp["win"][2 * c2:].T + lp["bin"][2 * c2:]
        q = q.reshape(L, B, num_heads, d) / jnp.sqrt(float(d))
        k = k.reshape(L, B, num_heads, d)
        v = v.reshape(L, B, num_heads, d)
        s = jnp.einsum("lbhd,mbhd->bhlm", q, k)
        a = jax.nn.softmax(s, axis=-1)
        o = jnp.einsum("bhlm,mbhd->lbhd", a, v).reshape(L, B, c2)
        o = o @ lp["wout"].T + lp["bout"]
        p = o + p
        p = (p @ lp["w1"].T) @ lp["w2"].T + p
    return p.transpose(1, 2, 0).reshape(B, c2, H, W)


# ----------------------------------------------------------------------------
# Deterministic parameter init
# ----------------------------------------------------------------------------
def init_params(key, c1, c2, num_layers):
    n_top = 3
    n_per_layer = 9
    keys = jax.random.split(key, n_top + num_layers * n_per_layer)
    s = 0.1
    params = {}
    if c1 != c2:
        params["conv_w"] = jax.random.normal(keys[0], (c2, c1, 1, 1), jnp.float32) * s
        params["bn_gamma"] = jnp.ones((c2,), jnp.float32)
        params["bn_beta"] = jnp.zeros((c2,), jnp.float32)
        params["bn_mean"] = jnp.zeros((c2,), jnp.float32)
        params["bn_var"] = jnp.ones((c2,), jnp.float32)
    params["lin_w"] = jax.random.normal(keys[1], (c2, c2), jnp.float32) * s
    params["lin_b"] = jax.random.normal(keys[2], (c2,), jnp.float32) * s
    layers = []
    for i in range(num_layers):
        k = keys[n_top + i * n_per_layer: n_top + (i + 1) * n_per_layer]
        layers.append(dict(
            wq=jax.random.normal(k[0], (c2, c2), jnp.float32) * s,
            wk=jax.random.normal(k[1], (c2, c2), jnp.float32) * s,
            wv=jax.random.normal(k[2], (c2, c2), jnp.float32) * s,
            win=jax.random.normal(k[3], (3 * c2, c2), jnp.float32) * s,
            bin=jax.random.normal(k[4], (3 * c2,), jnp.float32) * s,
            wout=jax.random.normal(k[5], (c2, c2), jnp.float32) * s,
            bout=jax.random.normal(k[6], (c2,), jnp.float32) * s,
            w1=jax.random.normal(k[7], (c2, c2), jnp.float32) * s,
            w2=jax.random.normal(k[8], (c2, c2), jnp.float32) * s,
        ))
    params["layers"] = layers
    return params


# ----------------------------------------------------------------------------
if __name__ == "__main__":
    B, C1, C2 = 2, 4, 32
    H = W = 8
    NUM_HEADS, NUM_LAYERS = 4, 2

    key = jax.random.PRNGKey(0)
    kx, kp = jax.random.split(key)
    x = jax.random.normal(kx, (B, C1, H, W), jnp.float32)
    params = init_params(kp, C1, C2, NUM_LAYERS)

    # One-time parameter preparation (transposes, QKV fusion + scale folding,
    # BN folding, bf16 weight cast).
    prep = jax.tree_util.tree_map(jax.block_until_ready,
                                  prepare_params(params, c1=C1, c2=C2,
                                                 num_heads=NUM_HEADS))

    out = transformer_block_forward(x, prep, c1=C1, c2=C2,
                                    num_heads=NUM_HEADS, num_layers=NUM_LAYERS)
    out = jax.block_until_ready(out)

    ref = jax.block_until_ready(ref_forward(x, params, c1=C1, c2=C2,
                                            num_heads=NUM_HEADS))
    assert out.shape == (B, C2, H, W)
    assert bool(jnp.allclose(out, ref, atol=2e-2, rtol=2e-2)), "mismatch vs JAX reference"

    print("KERNEL_OK")
</pallas_src>

<mosaic_0001>
module attributes {stable_mosaic.version = 11 : i64} {
  func.func @stack_kernel(%arg0: i32, %arg1: i32, %arg2: memref<2x4x64xf32, #tpu.memory_space<vmem>>, %arg3: memref<4x32xbf16, #tpu.memory_space<vmem>>, %arg4: memref<1x32xf32, #tpu.memory_space<vmem>>, %arg5: memref<1x32xf32, #tpu.memory_space<vmem>>, %arg6: memref<32x32xbf16, #tpu.memory_space<vmem>>, %arg7: memref<1x32xf32, #tpu.memory_space<vmem>>, %arg8: memref<2x32x96xbf16, #tpu.memory_space<vmem>>, %arg9: memref<2x1x96xf32, #tpu.memory_space<vmem>>, %arg10: memref<2x32x32xbf16, #tpu.memory_space<vmem>>, %arg11: memref<2x1x32xf32, #tpu.memory_space<vmem>>, %arg12: memref<2x32x32xbf16, #tpu.memory_space<vmem>>, %arg13: memref<2x32x32xbf16, #tpu.memory_space<vmem>>, %arg14: memref<2x32x64xf32, #tpu.memory_space<vmem>>, %arg15: memref<128x32xf32, #tpu.memory_space<vmem>>) attributes {dimension_semantics = [#tpu.dimension_semantics<parallel>, #tpu.dimension_semantics<arbitrary>], iteration_bounds = array<i64: 1, 2>, scalar_prefetch = 0 : i64, scratch_operands = 1 : i64, tpu.core_type = #tpu.core_type<tc>, window_params = [{transform_indices = @transform_0, window_bounds = array<i64: 2, 4, 64>}, {pipeline_mode = #tpu.pipeline_mode<synchronous>, transform_indices = @transform_1, window_bounds = array<i64: 4, 32>}, {pipeline_mode = #tpu.pipeline_mode<synchronous>, transform_indices = @transform_2, window_bounds = array<i64: 1, 32>}, {pipeline_mode = #tpu.pipeline_mode<synchronous>, transform_indices = @transform_3, window_bounds = array<i64: 1, 32>}, {pipeline_mode = #tpu.pipeline_mode<synchronous>, transform_indices = @transform_4, window_bounds = array<i64: 32, 32>}, {pipeline_mode = #tpu.pipeline_mode<synchronous>, transform_indices = @transform_5, window_bounds = array<i64: 1, 32>}, {pipeline_mode = #tpu.pipeline_mode<synchronous>, transform_indices = @transform_6, window_bounds = array<i64: 2, 32, 96>}, {pipeline_mode = #tpu.pipeline_mode<synchronous>, transform_indices = @transform_7, window_bounds = array<i64: 2, 1, 96>}, {pipeline_mode = #tpu.pipeline_mode<synchronous>, transform_indices = @transform_8, window_bounds = array<i64: 2, 32, 32>}, {pipeline_mode = #tpu.pipeline_mode<synchronous>, transform_indices = @transform_9, window_bounds = array<i64: 2, 1, 32>}, {pipeline_mode = #tpu.pipeline_mode<synchronous>, transform_indices = @transform_10, window_bounds = array<i64: 2, 32, 32>}, {pipeline_mode = #tpu.pipeline_mode<synchronous>, transform_indices = @transform_11, window_bounds = array<i64: 2, 32, 32>}, {transform_indices = @transform_12, window_bounds = array<i64: 2, 32, 64>}]} {
    %c0_i32 = arith.constant 0 : i32
    %0 = arith.cmpi eq, %arg1, %c0_i32 : i32
    %1 = arith.extui %0 : i1 to i32
    %c0_i32_0 = arith.constant 0 : i32
    %2 = arith.cmpi ne, %1, %c0_i32_0 : i32
    scf.if %2 {
      %c0_59 = arith.constant 0 : index
      %c0_60 = arith.constant 0 : index
      %c0_61 = arith.constant 0 : index
      %184 = vector.load %arg2[%c0_59, %c0_60, %c0_61] : memref<2x4x64xf32, #tpu.memory_space<vmem>>, vector<1x4x64xf32>
      %185 = vector.shape_cast %184 : vector<1x4x64xf32> to vector<4x64xf32>
      %186 = tpu.transpose %185, [1, 0] : vector<4x64xf32> -> vector<64x4xf32>
      %c0_62 = arith.constant 0 : index
      %c0_63 = arith.constant 0 : index
      %187 = vector.load %arg3[%c0_62, %c0_63] : memref<4x32xbf16, #tpu.memory_space<vmem>>, vector<4x32xbf16>
      %188 = arith.extf %187 : vector<4x32xbf16> to vector<4x32xf32>
      %cst_64 = arith.constant dense<0.000000e+00> : vector<64x32xf32>
      %189 = tpu.matmul %186, %188, %cst_64 {dimension_numbers = #tpu.dot_dimension_numbers<[1], [0], [0], [1], [0, 0, 1, 1], [], []>} : vector<64x4xf32>, vector<4x32xf32>, vector<64x32xf32> -> vector<64x32xf32>
      %c0_65 = arith.constant 0 : index
      %c0_66 = arith.constant 0 : index
      %190 = vector.load %arg4[%c0_65, %c0_66] : memref<1x32xf32, #tpu.memory_space<vmem>>, vector<1x32xf32>
      %191 = vector.broadcast %190 : vector<1x32xf32> to vector<64x32xf32>
      %192 = arith.mulf %189, %191 : vector<64x32xf32>
      %c0_67 = arith.constant 0 : index
      %c0_68 = arith.constant 0 : index
      %193 = vector.load %arg5[%c0_67, %c0_68] : memref<1x32xf32, #tpu.memory_space<vmem>>, vector<1x32xf32>
      %194 = vector.broadcast %193 : vector<1x32xf32> to vector<64x32xf32>
      %195 = arith.addf %192, %194 : vector<64x32xf32>
      %196 = arith.negf %195 : vector<64x32xf32>
      %197 = math.exp %196 : vector<64x32xf32>
      %cst_69 = arith.constant 1.000000e+00 : f32
      %198 = vector.broadcast %cst_69 : f32 to vector<64x32xf32>
      %199 = arith.addf %198, %197 : vector<64x32xf32>
      %200 = arith.divf %198, %199 : vector<64x32xf32>
      %201 = arith.mulf %195, %200 : vector<64x32xf32>
      %c0_70 = arith.constant 0 : index
      %c0_71 = arith.constant 0 : index
      %202 = vector.load %arg15[%c0_70, %c0_71] : memref<128x32xf32, #tpu.memory_space<vmem>>, vector<64x32xf32>
      tpu.vector_store %arg15[%c0_70, %c0_71], %201 {strides = array<i32>} : memref<128x32xf32, #tpu.memory_space<vmem>>, vector<64x32xf32>,
      %c1 = arith.constant 1 : index
      %c0_72 = arith.constant 0 : index
      %c0_73 = arith.constant 0 : index
      %203 = vector.load %arg2[%c1, %c0_72, %c0_73] : memref<2x4x64xf32, #tpu.memory_space<vmem>>, vector<1x4x64xf32>
      %204 = vector.shape_cast %203 : vector<1x4x64xf32> to vector<4x64xf32>
      %205 = tpu.transpose %204, [1, 0] : vector<4x64xf32> -> vector<64x4xf32>
      %c0_74 = arith.constant 0 : index
      %c0_75 = arith.constant 0 : index
      %206 = vector.load %arg3[%c0_74, %c0_75] : memref<4x32xbf16, #tpu.memory_space<vmem>>, vector<4x32xbf16>
      %207 = arith.extf %206 : vector<4x32xbf16> to vector<4x32xf32>
      %cst_76 = arith.constant dense<0.000000e+00> : vector<64x32xf32>
      %208 = tpu.matmul %205, %207, %cst_76 {dimension_numbers = #tpu.dot_dimension_numbers<[1], [0], [0], [1], [0, 0, 1, 1], [], []>} : vector<64x4xf32>, vector<4x32xf32>, vector<64x32xf32> -> vector<64x32xf32>
      %c0_77 = arith.constant 0 : index
      %c0_78 = arith.constant 0 : index
      %209 = vector.load %arg4[%c0_77, %c0_78] : memref<1x32xf32, #tpu.memory_space<vmem>>, vector<1x32xf32>
      %210 = vector.broadcast %209 : vector<1x32xf32> to vector<64x32xf32>
      %211 = arith.mulf %208, %210 : vector<64x32xf32>
      %c0_79 = arith.constant 0 : index
      %c0_80 = arith.constant 0 : index
      %212 = vector.load %arg5[%c0_79, %c0_80] : memref<1x32xf32, #tpu.memory_space<vmem>>, vector<1x32xf32>
      %213 = vector.broadcast %212 : vector<1x32xf32> to vector<64x32xf32>
      %214 = arith.addf %211, %213 : vector<64x32xf32>
      %215 = arith.negf %214 : vector<64x32xf32>
      %216 = math.exp %215 : vector<64x32xf32>
      %cst_81 = arith.constant 1.000000e+00 : f32
      %217 = vector.broadcast %cst_81 : f32 to vector<64x32xf32>
      %218 = arith.addf %217, %216 : vector<64x32xf32>
      %219 = arith.divf %217, %218 : vector<64x32xf32>
      %220 = arith.mulf %214, %219 : vector<64x32xf32>
      %c64 = arith.constant 64 : index
      %c0_82 = arith.constant 0 : index
      %221 = vector.load %arg15[%c64, %c0_82] : memref<128x32xf32, #tpu.memory_space<vmem>>, vector<64x32xf32>
      tpu.vector_store %arg15[%c64, %c0_82], %220 {strides = array<i32>} : memref<128x32xf32, #tpu.memory_space<vmem>>, vector<64x32xf32>,
      %c0_83 = arith.constant 0 : index
      %c0_84 = arith.constant 0 : index
      %222 = vector.load %arg15[%c0_83, %c0_84] : memref<128x32xf32, #tpu.memory_space<vmem>>, vector<128x32xf32>
      %c0_85 = arith.constant 0 : index
      %c0_86 = arith.constant 0 : index
      %223 = vector.load %arg6[%c0_85, %c0_86] : memref<32x32xbf16, #tpu.memory_space<vmem>>, vector<32x32xbf16>
      %224 = arith.extf %223 : vector<32x32xbf16> to vector<32x32xf32>
      %cst_87 = arith.constant dense<0.000000e+00> : vector<128x32xf32>
      %225 = tpu.matmul %222, %224, %cst_87 {dimension_numbers = #tpu.dot_dimension_numbers<[1], [0], [0], [1], [0, 0, 1, 1], [], []>} : vector<128x32xf32>, vector<32x32xf32>, vector<128x32xf32> -> vector<128x32xf32>
      %226 = arith.addf %222, %225 : vector<128x32xf32>
      %c0_88 = arith.constant 0 : index
      %c0_89 = arith.constant 0 : index
      %227 = vector.load %arg7[%c0_88, %c0_89] : memref<1x32xf32, #tpu.memory_space<vmem>>, vector<1x32xf32>
      %228 = vector.broadcast %227 : vector<1x32xf32> to vector<128x32xf32>
      %229 = arith.addf %226, %228 : vector<128x32xf32>
      %c0_90 = arith.constant 0 : index
      %c0_91 = arith.constant 0 : index
      %230 = vector.load %arg15[%c0_90, %c0_91] : memref<128x32xf32, #tpu.memory_space<vmem>>, vector<128x32xf32>
      tpu.vector_store %arg15[%c0_90, %c0_91], %229 {strides = array<i32>} : memref<128x32xf32, #tpu.memory_space<vmem>>, vector<128x32xf32>,
    } else {
    }
    %c0 = arith.constant 0 : index
    %c0_1 = arith.constant 0 : index
    %3 = vector.load %arg15[%c0, %c0_1] : memref<128x32xf32, #tpu.memory_space<vmem>>, vector<128x32xf32>
    %4 = arith.index_cast %arg1 : i32 to index
    %c0_2 = arith.constant 0 : index
    %c0_3 = arith.constant 0 : index
    %5 = vector.load %arg8[%4, %c0_2, %c0_3] : memref<2x32x96xbf16, #tpu.memory_space<vmem>>, vector<1x32x96xbf16>
    %6 = vector.shape_cast %5 : vector<1x32x96xbf16> to vector<32x96xbf16>
    %7 = arith.extf %6 : vector<32x96xbf16> to vector<32x96xf32>
    %cst = arith.constant dense<0.000000e+00> : vector<128x96xf32>
    %8 = tpu.matmul %3, %7, %cst {dimension_numbers = #tpu.dot_dimension_numbers<[1], [0], [0], [1], [0, 0, 1, 1], [], []>} : vector<128x32xf32>, vector<32x96xf32>, vector<128x96xf32> -> vector<128x96xf32>
    %9 = arith.index_cast %arg1 : i32 to index
    %c0_4 = arith.constant 0 : index
    %c0_5 = arith.constant 0 : index
    %10 = vector.load %arg9[%9, %c0_4, %c0_5] : memref<2x1x96xf32, #tpu.memory_space<vmem>>, vector<1x1x96xf32>
    %11 = vector.shape_cast %10 : vector<1x1x96xf32> to vector<1x96xf32>
    %12 = vector.broadcast %11 : vector<1x96xf32> to vector<128x96xf32>
    %13 = arith.addf %8, %12 : vector<128x96xf32>
    %14 = arith.index_cast %arg1 : i32 to index
    %c0_6 = arith.constant 0 : index
    %c0_7 = arith.constant 0 : index
    %15 = vector.load %arg10[%14, %c0_6, %c0_7] : memref<2x32x32xbf16, #tpu.memory_space<vmem>>, vector<1x32x32xbf16>
    %16 = vector.shape_cast %15 : vector<1x32x32xbf16> to vector<32x32xbf16>
    %17 = arith.extf %16 : vector<32x32xbf16> to vector<32x32xf32>
    %18 = vector.extract_strided_slice %13 {offsets = [0, 0], sizes = [64, 96], strides = [1, 1]} : vector<128x96xf32> to vector<64x96xf32>
    %19 = vector.extract_strided_slice %18 {offsets = [0, 0], sizes = [64, 8], strides = [1, 1]} : vector<64x96xf32> to vector<64x8xf32>
    %20 = vector.extract_strided_slice %18 {offsets = [0, 32], sizes = [64, 8], strides = [1, 1]} : vector<64x96xf32> to vector<64x8xf32>
    %21 = vector.extract_strided_slice %18 {offsets = [0, 64], sizes = [64, 8], strides = [1, 1]} : vector<64x96xf32> to vector<64x8xf32>
    %cst_8 = arith.constant dense<0.000000e+00> : vector<64x64xf32>
    %22 = tpu.matmul %19, %20, %cst_8 {dimension_numbers = #tpu.dot_dimension_numbers<[1], [1], [0], [0], [0, 0, 1, 0], [], []>} : vector<64x8xf32>, vector<64x8xf32>, vector<64x64xf32> -> vector<64x64xf32>
    %cst_9 = arith.constant dense<0xFF800000> : vector<64xf32>
    %23 = vector.multi_reduction <maximumf>, %22, %cst_9 [1] : vector<64x64xf32> to vector<64xf32>
    %24 = vector.shape_cast %23 : vector<64xf32> to vector<64x1xf32>
    %25 = vector.broadcast %24 : vector<64x1xf32> to vector<64x64xf32>
    %26 = arith.subf %22, %25 : vector<64x64xf32>
    %27 = math.exp %26 : vector<64x64xf32>
    %cst_10 = arith.constant dense<0.000000e+00> : vector<64xf32>
    %28 = vector.multi_reduction <add>, %27, %cst_10 [1] : vector<64x64xf32> to vector<64xf32>
    %29 = vector.shape_cast %28 : vector<64xf32> to vector<64x1xf32>
    %30 = tpu.reciprocal %29 {approx = true} : vector<64x1xf32> -> vector<64x1xf32>
    %31 = vector.broadcast %30 : vector<64x1xf32> to vector<64x64xf32>
    %32 = arith.mulf %27, %31 : vector<64x64xf32>
    %cst_11 = arith.constant dense<0.000000e+00> : vector<64x8xf32>
    %33 = tpu.matmul %32, %21, %cst_11 {dimension_numbers = #tpu.dot_dimension_numbers<[1], [0], [0], [1], [0, 0, 1, 1], [], []>} : vector<64x64xf32>, vector<64x8xf32>, vector<64x8xf32> -> vector<64x8xf32>
    %34 = vector.extract_strided_slice %17 {offsets = [0, 0], sizes = [8, 32], strides = [1, 1]} : vector<32x32xf32> to vector<8x32xf32>
    %cst_12 = arith.constant dense<0.000000e+00> : vector<64x32xf32>
    %35 = tpu.matmul %33, %34, %cst_12 {dimension_numbers = #tpu.dot_dimension_numbers<[1], [0], [0], [1], [0, 0, 1, 1], [], []>} : vector<64x8xf32>, vector<8x32xf32>, vector<64x32xf32> -> vector<64x32xf32>
    %36 = vector.extract_strided_slice %18 {offsets = [0, 8], sizes = [64, 8], strides = [1, 1]} : vector<64x96xf32> to vector<64x8xf32>
    %37 = vector.extract_strided_slice %18 {offsets = [0, 40], sizes = [64, 8], strides = [1, 1]} : vector<64x96xf32> to vector<64x8xf32>
    %38 = vector.extract_strided_slice %18 {offsets = [0, 72], sizes = [64, 8], strides = [1, 1]} : vector<64x96xf32> to vector<64x8xf32>
    %cst_13 = arith.constant dense<0.000000e+00> : vector<64x64xf32>
    %39 = tpu.matmul %36, %37, %cst_13 {dimension_numbers = #tpu.dot_dimension_numbers<[1], [1], [0], [0], [0, 0, 1, 0], [], []>} : vector<64x8xf32>, vector<64x8xf32>, vector<64x64xf32> -> vector<64x64xf32>
    %cst_14 = arith.constant dense<0xFF800000> : vector<64xf32>
    %40 = vector.multi_reduction <maximumf>, %39, %cst_14 [1] : vector<64x64xf32> to vector<64xf32>
    %41 = vector.shape_cast %40 : vector<64xf32> to vector<64x1xf32>
    %42 = vector.broadcast %41 : vector<64x1xf32> to vector<64x64xf32>
    %43 = arith.subf %39, %42 : vector<64x64xf32>
    %44 = math.exp %43 : vector<64x64xf32>
    %cst_15 = arith.constant dense<0.000000e+00> : vector<64xf32>
    %45 = vector.multi_reduction <add>, %44, %cst_15 [1] : vector<64x64xf32> to vector<64xf32>
    %46 = vector.shape_cast %45 : vector<64xf32> to vector<64x1xf32>
    %47 = tpu.reciprocal %46 {approx = true} : vector<64x1xf32> -> vector<64x1xf32>
    %48 = vector.broadcast %47 : vector<64x1xf32> to vector<64x64xf32>
    %49 = arith.mulf %44, %48 : vector<64x64xf32>
    %cst_16 = arith.constant dense<0.000000e+00> : vector<64x8xf32>
    %50 = tpu.matmul %49, %38, %cst_16 {dimension_numbers = #tpu.dot_dimension_numbers<[1], [0], [0], [1], [0, 0, 1, 1], [], []>} : vector<64x64xf32>, vector<64x8xf32>, vector<64x8xf32> -> vector<64x8xf32>
    %51 = vector.extract_strided_slice %17 {offsets = [8, 0], sizes = [8, 32], strides = [1, 1]} : vector<32x32xf32> to vector<8x32xf32>
    %cst_17 = arith.constant dense<0.000000e+00> : vector<64x32xf32>
    %52 = tpu.matmul %50, %51, %cst_17 {dimension_numbers = #tpu.dot_dimension_numbers<[1], [0], [0], [1], [0, 0, 1, 1], [], []>} : vector<64x8xf32>, vector<8x32xf32>, vector<64x32xf32> -> vector<64x32xf32>
    %53 = arith.addf %35, %52 : vector<64x32xf32>
    %54 = vector.extract_strided_slice %18 {offsets = [0, 16], sizes = [64, 8], strides = [1, 1]} : vector<64x96xf32> to vector<64x8xf32>
    %55 = vector.extract_strided_slice %18 {offsets = [0, 48], sizes = [64, 8], strides = [1, 1]} : vector<64x96xf32> to vector<64x8xf32>
    %56 = vector.extract_strided_slice %18 {offsets = [0, 80], sizes = [64, 8], strides = [1, 1]} : vector<64x96xf32> to vector<64x8xf32>
    %cst_18 = arith.constant dense<0.000000e+00> : vector<64x64xf32>
    %57 = tpu.matmul %54, %55, %cst_18 {dimension_numbers = #tpu.dot_dimension_numbers<[1], [1], [0], [0], [0, 0, 1, 0], [], []>} : vector<64x8xf32>, vector<64x8xf32>, vector<64x64xf32> -> vector<64x64xf32>
    %cst_19 = arith.constant dense<0xFF800000> : vector<64xf32>
    %58 = vector.multi_reduction <maximumf>, %57, %cst_19 [1] : vector<64x64xf32> to vector<64xf32>
    %59 = vector.shape_cast %58 : vector<64xf32> to vector<64x1xf32>
    %60 = vector.broadcast %59 : vector<64x1xf32> to vector<64x64xf32>
    %61 = arith.subf %57, %60 : vector<64x64xf32>
    %62 = math.exp %61 : vector<64x64xf32>
    %cst_20 = arith.constant dense<0.000000e+00> : vector<64xf32>
    %63 = vector.multi_reduction <add>, %62, %cst_20 [1] : vector<64x64xf32> to vector<64xf32>
    %64 = vector.shape_cast %63 : vector<64xf32> to vector<64x1xf32>
    %65 = tpu.reciprocal %64 {approx = true} : vector<64x1xf32> -> vector<64x1xf32>
    %66 = vector.broadcast %65 : vector<64x1xf32> to vector<64x64xf32>
    %67 = arith.mulf %62, %66 : vector<64x64xf32>
    %cst_21 = arith.constant dense<0.000000e+00> : vector<64x8xf32>
    %68 = tpu.matmul %67, %56, %cst_21 {dimension_numbers = #tpu.dot_dimension_numbers<[1], [0], [0], [1], [0, 0, 1, 1], [], []>} : vector<64x64xf32>, vector<64x8xf32>, vector<64x8xf32> -> vector<64x8xf32>
    %69 = vector.extract_strided_slice %17 {offsets = [16, 0], sizes = [8, 32], strides = [1, 1]} : vector<32x32xf32> to vector<8x32xf32>
    %cst_22 = arith.constant dense<0.000000e+00> : vector<64x32xf32>
    %70 = tpu.matmul %68, %69, %cst_22 {dimension_numbers = #tpu.dot_dimension_numbers<[1], [0], [0], [1], [0, 0, 1, 1], [], []>} : vector<64x8xf32>, vector<8x32xf32>, vector<64x32xf32> -> vector<64x32xf32>
    %71 = arith.addf %53, %70 : vector<64x32xf32>
    %72 = vector.extract_strided_slice %18 {offsets = [0, 24], sizes = [64, 8], strides = [1, 1]} : vector<64x96xf32> to vector<64x8xf32>
    %73 = vector.extract_strided_slice %18 {offsets = [0, 56], sizes = [64, 8], strides = [1, 1]} : vector<64x96xf32> to vector<64x8xf32>
    %74 = vector.extract_strided_slice %18 {offsets = [0, 88], sizes = [64, 8], strides = [1, 1]} : vector<64x96xf32> to vector<64x8xf32>
    %cst_23 = arith.constant dense<0.000000e+00> : vector<64x64xf32>
    %75 = tpu.matmul %72, %73, %cst_23 {dimension_numbers = #tpu.dot_dimension_numbers<[1], [1], [0], [0], [0, 0, 1, 0], [], []>} : vector<64x8xf32>, vector<64x8xf32>, vector<64x64xf32> -> vector<64x64xf32>
    %cst_24 = arith.constant dense<0xFF800000> : vector<64xf32>
    %76 = vector.multi_reduction <maximumf>, %75, %cst_24 [1] : vector<64x64xf32> to vector<64xf32>
    %77 = vector.shape_cast %76 : vector<64xf32> to vector<64x1xf32>
    %78 = vector.broadcast %77 : vector<64x1xf32> to vector<64x64xf32>
    %79 = arith.subf %75, %78 : vector<64x64xf32>
    %80 = math.exp %79 : vector<64x64xf32>
    %cst_25 = arith.constant dense<0.000000e+00> : vector<64xf32>
    %81 = vector.multi_reduction <add>, %80, %cst_25 [1] : vector<64x64xf32> to vector<64xf32>
    %82 = vector.shape_cast %81 : vector<64xf32> to vector<64x1xf32>
    %83 = tpu.reciprocal %82 {approx = true} : vector<64x1xf32> -> vector<64x1xf32>
    %84 = vector.broadcast %83 : vector<64x1xf32> to vector<64x64xf32>
    %85 = arith.mulf %80, %84 : vector<64x64xf32>
    %cst_26 = arith.constant dense<0.000000e+00> : vector<64x8xf32>
    %86 = tpu.matmul %85, %74, %cst_26 {dimension_numbers = #tpu.dot_dimension_numbers<[1], [0], [0], [1], [0, 0, 1, 1], [], []>} : vector<64x64xf32>, vector<64x8xf32>, vector<64x8xf32> -> vector<64x8xf32>
    %87 = vector.extract_strided_slice %17 {offsets = [24, 0], sizes = [8, 32], strides = [1, 1]} : vector<32x32xf32> to vector<8x32xf32>
    %cst_27 = arith.constant dense<0.000000e+00> : vector<64x32xf32>
    %88 = tpu.matmul %86, %87, %cst_27 {dimension_numbers = #tpu.dot_dimension_numbers<[1], [0], [0], [1], [0, 0, 1, 1], [], []>} : vector<64x8xf32>, vector<8x32xf32>, vector<64x32xf32> -> vector<64x32xf32>
    %89 = arith.addf %71, %88 : vector<64x32xf32>
    %90 = vector.extract_strided_slice %13 {offsets = [64, 0], sizes = [64, 96], strides = [1, 1]} : vector<128x96xf32> to vector<64x96xf32>
    %91 = vector.extract_strided_slice %90 {offsets = [0, 0], sizes = [64, 8], strides = [1, 1]} : vector<64x96xf32> to vector<64x8xf32>
    %92 = vector.extract_strided_slice %90 {offsets = [0, 32], sizes = [64, 8], strides = [1, 1]} : vector<64x96xf32> to vector<64x8xf32>
    %93 = vector.extract_strided_slice %90 {offsets = [0, 64], sizes = [64, 8], strides = [1, 1]} : vector<64x96xf32> to vector<64x8xf32>
    %cst_28 = arith.constant dense<0.000000e+00> : vector<64x64xf32>
    %94 = tpu.matmul %91, %92, %cst_28 {dimension_numbers = #tpu.dot_dimension_numbers<[1], [1], [0], [0], [0, 0, 1, 0], [], []>} : vector<64x8xf32>, vector<64x8xf32>, vector<64x64xf32> -> vector<64x64xf32>
    %cst_29 = arith.constant dense<0xFF800000> : vector<64xf32>
    %95 = vector.multi_reduction <maximumf>, %94, %cst_29 [1] : vector<64x64xf32> to vector<64xf32>
    %96 = vector.shape_cast %95 : vector<64xf32> to vector<64x1xf32>
    %97 = vector.broadcast %96 : vector<64x1xf32> to vector<64x64xf32>
    %98 = arith.subf %94, %97 : vector<64x64xf32>
    %99 = math.exp %98 : vector<64x64xf32>
    %cst_30 = arith.constant dense<0.000000e+00> : vector<64xf32>
    %100 = vector.multi_reduction <add>, %99, %cst_30 [1] : vector<64x64xf32> to vector<64xf32>
    %101 = vector.shape_cast %100 : vector<64xf32> to vector<64x1xf32>
    %102 = tpu.reciprocal %101 {approx = true} : vector<64x1xf32> -> vector<64x1xf32>
    %103 = vector.broadcast %102 : vector<64x1xf32> to vector<64x64xf32>
    %104 = arith.mulf %99, %103 : vector<64x64xf32>
    %cst_31 = arith.constant dense<0.000000e+00> : vector<64x8xf32>
    %105 = tpu.matmul %104, %93, %cst_31 {dimension_numbers = #tpu.dot_dimension_numbers<[1], [0], [0], [1], [0, 0, 1, 1], [], []>} : vector<64x64xf32>, vector<64x8xf32>, vector<64x8xf32> -> vector<64x8xf32>
    %106 = vector.extract_strided_slice %17 {offsets = [0, 0], sizes = [8, 32], strides = [1, 1]} : vector<32x32xf32> to vector<8x32xf32>
    %cst_32 = arith.constant dense<0.000000e+00> : vector<64x32xf32>
    %107 = tpu.matmul %105, %106, %cst_32 {dimension_numbers = #tpu.dot_dimension_numbers<[1], [0], [0], [1], [0, 0, 1, 1], [], []>} : vector<64x8xf32>, vector<8x32xf32>, vector<64x32xf32> -> vector<64x32xf32>
    %108 = vector.extract_strided_slice %90 {offsets = [0, 8], sizes = [64, 8], strides = [1, 1]} : vector<64x96xf32> to vector<64x8xf32>
    %109 = vector.extract_strided_slice %90 {offsets = [0, 40], sizes = [64, 8], strides = [1, 1]} : vector<64x96xf32> to vector<64x8xf32>
    %110 = vector.extract_strided_slice %90 {offsets = [0, 72], sizes = [64, 8], strides = [1, 1]} : vector<64x96xf32> to vector<64x8xf32>
    %cst_33 = arith.constant dense<0.000000e+00> : vector<64x64xf32>
    %111 = tpu.matmul %108, %109, %cst_33 {dimension_numbers = #tpu.dot_dimension_numbers<[1], [1], [0], [0], [0, 0, 1, 0], [], []>} : vector<64x8xf32>, vector<64x8xf32>, vector<64x64xf32> -> vector<64x64xf32>
    %cst_34 = arith.constant dense<0xFF800000> : vector<64xf32>
    %112 = vector.multi_reduction <maximumf>, %111, %cst_34 [1] : vector<64x64xf32> to vector<64xf32>
    %113 = vector.shape_cast %112 : vector<64xf32> to vector<64x1xf32>
    %114 = vector.broadcast %113 : vector<64x1xf32> to vector<64x64xf32>
    %115 = arith.subf %111, %114 : vector<64x64xf32>
    %116 = math.exp %115 : vector<64x64xf32>
    %cst_35 = arith.constant dense<0.000000e+00> : vector<64xf32>
    %117 = vector.multi_reduction <add>, %116, %cst_35 [1] : vector<64x64xf32> to vector<64xf32>
    %118 = vector.shape_cast %117 : vector<64xf32> to vector<64x1xf32>
    %119 = tpu.reciprocal %118 {approx = true} : vector<64x1xf32> -> vector<64x1xf32>
    %120 = vector.broadcast %119 : vector<64x1xf32> to vector<64x64xf32>
    %121 = arith.mulf %116, %120 : vector<64x64xf32>
    %cst_36 = arith.constant dense<0.000000e+00> : vector<64x8xf32>
    %122 = tpu.matmul %121, %110, %cst_36 {dimension_numbers = #tpu.dot_dimension_numbers<[1], [0], [0], [1], [0, 0, 1, 1], [], []>} : vector<64x64xf32>, vector<64x8xf32>, vector<64x8xf32> -> vector<64x8xf32>
    %123 = vector.extract_strided_slice %17 {offsets = [8, 0], sizes = [8, 32], strides = [1, 1]} : vector<32x32xf32> to vector<8x32xf32>
    %cst_37 = arith.constant dense<0.000000e+00> : vector<64x32xf32>
    %124 = tpu.matmul %122, %123, %cst_37 {dimension_numbers = #tpu.dot_dimension_numbers<[1], [0], [0], [1], [0, 0, 1, 1], [], []>} : vector<64x8xf32>, vector<8x32xf32>, vector<64x32xf32> -> vector<64x32xf32>
    %125 = arith.addf %107, %124 : vector<64x32xf32>
    %126 = vector.extract_strided_slice %90 {offsets = [0, 16], sizes = [64, 8], strides = [1, 1]} : vector<64x96xf32> to vector<64x8xf32>
    %127 = vector.extract_strided_slice %90 {offsets = [0, 48], sizes = [64, 8], strides = [1, 1]} : vector<64x96xf32> to vector<64x8xf32>
    %128 = vector.extract_strided_slice %90 {offsets = [0, 80], sizes = [64, 8], strides = [1, 1]} : vector<64x96xf32> to vector<64x8xf32>
    %cst_38 = arith.constant dense<0.000000e+00> : vector<64x64xf32>
    %129 = tpu.matmul %126, %127, %cst_38 {dimension_numbers = #tpu.dot_dimension_numbers<[1], [1], [0], [0], [0, 0, 1, 0], [], []>} : vector<64x8xf32>, vector<64x8xf32>, vector<64x64xf32> -> vector<64x64xf32>
    %cst_39 = arith.constant dense<0xFF800000> : vector<64xf32>
    %130 = vector.multi_reduction <maximumf>, %129, %cst_39 [1] : vector<64x64xf32> to vector<64xf32>
    %131 = vector.shape_cast %130 : vector<64xf32> to vector<64x1xf32>
    %132 = vector.broadcast %131 : vector<64x1xf32> to vector<64x64xf32>
    %133 = arith.subf %129, %132 : vector<64x64xf32>
    %134 = math.exp %133 : vector<64x64xf32>
    %cst_40 = arith.constant dense<0.000000e+00> : vector<64xf32>
    %135 = vector.multi_reduction <add>, %134, %cst_40 [1] : vector<64x64xf32> to vector<64xf32>
    %136 = vector.shape_cast %135 : vector<64xf32> to vector<64x1xf32>
    %137 = tpu.reciprocal %136 {approx = true} : vector<64x1xf32> -> vector<64x1xf32>
    %138 = vector.broadcast %137 : vector<64x1xf32> to vector<64x64xf32>
    %139 = arith.mulf %134, %138 : vector<64x64xf32>
    %cst_41 = arith.constant dense<0.000000e+00> : vector<64x8xf32>
    %140 = tpu.matmul %139, %128, %cst_41 {dimension_numbers = #tpu.dot_dimension_numbers<[1], [0], [0], [1], [0, 0, 1, 1], [], []>} : vector<64x64xf32>, vector<64x8xf32>, vector<64x8xf32> -> vector<64x8xf32>
    %141 = vector.extract_strided_slice %17 {offsets = [16, 0], sizes = [8, 32], strides = [1, 1]} : vector<32x32xf32> to vector<8x32xf32>
    %cst_42 = arith.constant dense<0.000000e+00> : vector<64x32xf32>
    %142 = tpu.matmul %140, %141, %cst_42 {dimension_numbers = #tpu.dot_dimension_numbers<[1], [0], [0], [1], [0, 0, 1, 1], [], []>} : vector<64x8xf32>, vector<8x32xf32>, vector<64x32xf32> -> vector<64x32xf32>
    %143 = arith.addf %125, %142 : vector<64x32xf32>
    %144 = vector.extract_strided_slice %90 {offsets = [0, 24], sizes = [64, 8], strides = [1, 1]} : vector<64x96xf32> to vector<64x8xf32>
    %145 = vector.extract_strided_slice %90 {offsets = [0, 56], sizes = [64, 8], strides = [1, 1]} : vector<64x96xf32> to vector<64x8xf32>
    %146 = vector.extract_strided_slice %90 {offsets = [0, 88], sizes = [64, 8], strides = [1, 1]} : vector<64x96xf32> to vector<64x8xf32>
    %cst_43 = arith.constant dense<0.000000e+00> : vector<64x64xf32>
    %147 = tpu.matmul %144, %145, %cst_43 {dimension_numbers = #tpu.dot_dimension_numbers<[1], [1], [0], [0], [0, 0, 1, 0], [], []>} : vector<64x8xf32>, vector<64x8xf32>, vector<64x64xf32> -> vector<64x64xf32>
    %cst_44 = arith.constant dense<0xFF800000> : vector<64xf32>
    %148 = vector.multi_reduction <maximumf>, %147, %cst_44 [1] : vector<64x64xf32> to vector<64xf32>
    %149 = vector.shape_cast %148 : vector<64xf32> to vector<64x1xf32>
    %150 = vector.broadcast %149 : vector<64x1xf32> to vector<64x64xf32>
    %151 = arith.subf %147, %150 : vector<64x64xf32>
    %152 = math.exp %151 : vector<64x64xf32>
    %cst_45 = arith.constant dense<0.000000e+00> : vector<64xf32>
    %153 = vector.multi_reduction <add>, %152, %cst_45 [1] : vector<64x64xf32> to vector<64xf32>
    %154 = vector.shape_cast %153 : vector<64xf32> to vector<64x1xf32>
    %155 = tpu.reciprocal %154 {approx = true} : vector<64x1xf32> -> vector<64x1xf32>
    %156 = vector.broadcast %155 : vector<64x1xf32> to vector<64x64xf32>
    %157 = arith.mulf %152, %156 : vector<64x64xf32>
    %cst_46 = arith.constant dense<0.000000e+00> : vector<64x8xf32>
    %158 = tpu.matmul %157, %146, %cst_46 {dimension_numbers = #tpu.dot_dimension_numbers<[1], [0], [0], [1], [0, 0, 1, 1], [], []>} : vector<64x64xf32>, vector<64x8xf32>, vector<64x8xf32> -> vector<64x8xf32>
    %159 = vector.extract_strided_slice %17 {offsets = [24, 0], sizes = [8, 32], strides = [1, 1]} : vector<32x32xf32> to vector<8x32xf32>
    %cst_47 = arith.constant dense<0.000000e+00> : vector<64x32xf32>
    %160 = tpu.matmul %158, %159, %cst_47 {dimension_numbers = #tpu.dot_dimension_numbers<[1], [0], [0], [1], [0, 0, 1, 1], [], []>} : vector<64x8xf32>, vector<8x32xf32>, vector<64x32xf32> -> vector<64x32xf32>
    %161 = arith.addf %143, %160 : vector<64x32xf32>
    %162 = tpu.concatenate %89, %161 in 0 : vector<64x32xf32>, vector<64x32xf32> -> vector<128x32xf32>
    %163 = arith.index_cast %arg1 : i32 to index
    %c0_48 = arith.constant 0 : index
    %c0_49 = arith.constant 0 : index
    %164 = vector.load %arg11[%163, %c0_48, %c0_49] : memref<2x1x32xf32, #tpu.memory_space<vmem>>, vector<1x1x32xf32>
    %165 = vector.shape_cast %164 : vector<1x1x32xf32> to vector<1x32xf32>
    %166 = vector.broadcast %165 : vector<1x32xf32> to vector<128x32xf32>
    %167 = arith.addf %162, %166 : vector<128x32xf32>
    %168 = arith.addf %167, %3 : vector<128x32xf32>
    %169 = arith.index_cast %arg1 : i32 to index
    %c0_50 = arith.constant 0 : index
    %c0_51 = arith.constant 0 : index
    %170 = vector.load %arg12[%169, %c0_50, %c0_51] : memref<2x32x32xbf16, #tpu.memory_space<vmem>>, vector<1x32x32xbf16>
    %171 = vector.shape_cast %170 : vector<1x32x32xbf16> to vector<32x32xbf16>
    %172 = arith.extf %171 : vector<32x32xbf16> to vector<32x32xf32>
    %cst_52 = arith.constant dense<0.000000e+00> : vector<128x32xf32>
    %173 = tpu.matmul %168, %172, %cst_52 {dimension_numbers = #tpu.dot_dimension_numbers<[1], [0], [0], [1], [0, 0, 1, 1], [], []>} : vector<128x32xf32>, vector<32x32xf32>, vector<128x32xf32> -> vector<128x32xf32>
    %174 = arith.index_cast %arg1 : i32 to index
    %c0_53 = arith.constant 0 : index
    %c0_54 = arith.constant 0 : index
    %175 = vector.load %arg13[%174, %c0_53, %c0_54] : memref<2x32x32xbf16, #tpu.memory_space<vmem>>, vector<1x32x32xbf16>
    %176 = vector.shape_cast %175 : vector<1x32x32xbf16> to vector<32x32xbf16>
    %177 = arith.extf %176 : vector<32x32xbf16> to vector<32x32xf32>
    %cst_55 = arith.constant dense<0.000000e+00> : vector<128x32xf32>
    %178 = tpu.matmul %173, %177, %cst_55 {dimension_numbers = #tpu.dot_dimension_numbers<[1], [0], [0], [1], [0, 0, 1, 1], [], []>} : vector<128x32xf32>, vector<32x32xf32>, vector<128x32xf32> -> vector<128x32xf32>
    %179 = arith.addf %178, %168 : vector<128x32xf32>
    %c0_56 = arith.constant 0 : index
    %c0_57 = arith.constant 0 : index
    %180 = vector.load %arg15[%c0_56, %c0_57] : memref<128x32xf32, #tpu.memory_space<vmem>>, vector<128x32xf32>
    tpu.vector_store %arg15[%c0_56, %c0_57], %179 {strides = array<i32>} : memref<128x32xf32, #tpu.memory_space<vmem>>, vector<128x32xf32>,
    %c1_i32 = arith.constant 1 : i32
    %181 = arith.cmpi eq, %arg1, %c1_i32 : i32
    %182 = arith.extui %181 : i1 to i32
    %c0_i32_58 = arith.constant 0 : i32
    %183 = arith.cmpi ne, %182, %c0_i32_58 : i32
    scf.if %183 {
      %184 = vector.extract_strided_slice %179 {offsets = [0, 0], sizes = [64, 32], strides = [1, 1]} : vector<128x32xf32> to vector<64x32xf32>
      %185 = tpu.transpose %184, [1, 0] : vector<64x32xf32> -> vector<32x64xf32>
      %c0_59 = arith.constant 0 : index
      %c0_60 = arith.constant 0 : index
      %c0_61 = arith.constant 0 : index
      %186 = vector.load %arg14[%c0_59, %c0_60, %c0_61] : memref<2x32x64xf32, #tpu.memory_space<vmem>>, vector<1x32x64xf32>
      %187 = vector.shape_cast %186 : vector<1x32x64xf32> to vector<32x64xf32>
      %188 = vector.shape_cast %185 : vector<32x64xf32> to vector<1x32x64xf32>
      tpu.vector_store %arg14[%c0_59, %c0_60, %c0_61], %188 {strides = array<i32>} : memref<2x32x64xf32, #tpu.memory_space<vmem>>, vector<1x32x64xf32>,
      %189 = vector.extract_strided_slice %179 {offsets = [64, 0], sizes = [64, 32], strides = [1, 1]} : vector<128x32xf32> to vector<64x32xf32>
      %190 = tpu.transpose %189, [1, 0] : vector<64x32xf32> -> vector<32x64xf32>
      %c1 = arith.constant 1 : index
      %c0_62 = arith.constant 0 : index
      %c0_63 = arith.constant 0 : index
      %191 = vector.load %arg14[%c1, %c0_62, %c0_63] : memref<2x32x64xf32, #tpu.memory_space<vmem>>, vector<1x32x64xf32>
      %192 = vector.shape_cast %191 : vector<1x32x64xf32> to vector<32x64xf32>
      %193 = vector.shape_cast %190 : vector<32x64xf32> to vector<1x32x64xf32>
      tpu.vector_store %arg14[%c1, %c0_62, %c0_63], %193 {strides = array<i32>} : memref<2x32x64xf32, #tpu.memory_space<vmem>>, vector<1x32x64xf32>,
    } else {
    }
    return
  }
  func.func @transform_0(%arg0: i32, %arg1: i32) -> (i32, i32, i32) {
    %c0_i32 = arith.constant 0 : i32
    %c0_i32_0 = arith.constant 0 : i32
    %c0_i32_1 = arith.constant 0 : i32
    return %arg0, %c0_i32, %c0_i32_0 : i32, i32, i32
  }
  func.func @transform_1(%arg0: i32, %arg1: i32) -> (i32, i32) {
    %c0_i32 = arith.constant 0 : i32
    %c0_i32_0 = arith.constant 0 : i32
    %c0_i32_1 = arith.constant 0 : i32
    return %c0_i32, %c0_i32_0 : i32, i32
  }
  func.func @transform_2(%arg0: i32, %arg1: i32) -> (i32, i32) {
    %c0_i32 = arith.constant 0 : i32
    %c0_i32_0 = arith.constant 0 : i32
    %c0_i32_1 = arith.constant 0 : i32
    return %c0_i32, %c0_i32_0 : i32, i32
  }
  func.func @transform_3(%arg0: i32, %arg1: i32) -> (i32, i32) {
    %c0_i32 = arith.constant 0 : i32
    %c0_i32_0 = arith.constant 0 : i32
    %c0_i32_1 = arith.constant 0 : i32
    return %c0_i32, %c0_i32_0 : i32, i32
  }
  func.func @transform_4(%arg0: i32, %arg1: i32) -> (i32, i32) {
    %c0_i32 = arith.constant 0 : i32
    %c0_i32_0 = arith.constant 0 : i32
    %c0_i32_1 = arith.constant 0 : i32
    return %c0_i32, %c0_i32_0 : i32, i32
  }
  func.func @transform_5(%arg0: i32, %arg1: i32) -> (i32, i32) {
    %c0_i32 = arith.constant 0 : i32
    %c0_i32_0 = arith.constant 0 : i32
    %c0_i32_1 = arith.constant 0 : i32
    return %c0_i32, %c0_i32_0 : i32, i32
  }
  func.func @transform_6(%arg0: i32, %arg1: i32) -> (i32, i32, i32) {
    %c0_i32 = arith.constant 0 : i32
    %c0_i32_0 = arith.constant 0 : i32
    %c0_i32_1 = arith.constant 0 : i32
    %c0_i32_2 = arith.constant 0 : i32
    return %c0_i32, %c0_i32_0, %c0_i32_1 : i32, i32, i32
  }
  func.func @transform_7(%arg0: i32, %arg1: i32) -> (i32, i32, i32) {
    %c0_i32 = arith.constant 0 : i32
    %c0_i32_0 = arith.constant 0 : i32
    %c0_i32_1 = arith.constant 0 : i32
    %c0_i32_2 = arith.constant 0 : i32
    return %c0_i32, %c0_i32_0, %c0_i32_1 : i32, i32, i32
  }
  func.func @transform_8(%arg0: i32, %arg1: i32) -> (i32, i32, i32) {
    %c0_i32 = arith.constant 0 : i32
    %c0_i32_0 = arith.constant 0 : i32
    %c0_i32_1 = arith.constant 0 : i32
    %c0_i32_2 = arith.constant 0 : i32
    return %c0_i32, %c0_i32_0, %c0_i32_1 : i32, i32, i32
  }
  func.func @transform_9(%arg0: i32, %arg1: i32) -> (i32, i32, i32) {
    %c0_i32 = arith.constant 0 : i32
    %c0_i32_0 = arith.constant 0 : i32
    %c0_i32_1 = arith.constant 0 : i32
    %c0_i32_2 = arith.constant 0 : i32
    return %c0_i32, %c0_i32_0, %c0_i32_1 : i32, i32, i32
  }
  func.func @transform_10(%arg0: i32, %arg1: i32) -> (i32, i32, i32) {
    %c0_i32 = arith.constant 0 : i32
    %c0_i32_0 = arith.constant 0 : i32
    %c0_i32_1 = arith.constant 0 : i32
    %c0_i32_2 = arith.constant 0 : i32
    return %c0_i32, %c0_i32_0, %c0_i32_1 : i32, i32, i32
  }
  func.func @transform_11(%arg0: i32, %arg1: i32) -> (i32, i32, i32) {
    %c0_i32 = arith.constant 0 : i32
    %c0_i32_0 = arith.constant 0 : i32
    %c0_i32_1 = arith.constant 0 : i32
    %c0_i32_2 = arith.constant 0 : i32
    return %c0_i32, %c0_i32_0, %c0_i32_1 : i32, i32, i32
  }
  func.func @transform_12(%arg0: i32, %arg1: i32) -> (i32, i32, i32) {
    %c0_i32 = arith.constant 0 : i32
    %c0_i32_0 = arith.constant 0 : i32
    %c0_i32_1 = arith.constant 0 : i32
    return %arg0, %c0_i32, %c0_i32_0 : i32, i32, i32
  }
}

</mosaic_0001>

<llo_original>
// kernel: tpu_custom_call.1
$region0: #{tpu_custom_call.1}
  #allocation0 [shape = 'u32[]', space=smem, size = 0x4, offset = 0x4, fixed_abs, tag = 'smem constant byte address 0x4 - core index']
  #allocation1 [shape = 'u32[144,128]{1,0:T(1,128)}', space=vmem, size = 0x12000, scoped, tag = 'internal scratch']
  #allocation2 [shape = 'f32[128,32]{1,0:T(8,128)}', space=vmem, size = 0x10000, scoped, tag = 'scratch operand']
  %s0 = inlined_call_operand.hbm [shape: f32[2,4,64], index: 0, kind: input, shape index: {}]
  %s1 = inlined_call_operand.vmem [shape: bf16[4,32], index: 1, kind: input, shape index: {}]
  %s2 = inlined_call_operand.vmem [shape: f32[1,32], index: 2, kind: input, shape index: {}]
  %s3 = inlined_call_operand.hbm [shape: f32[1,32], index: 3, kind: input, shape index: {}]
  %s4 = inlined_call_operand.hbm [shape: bf16[32,32], index: 4, kind: input, shape index: {}]
  %s5 = inlined_call_operand.hbm [shape: f32[1,32], index: 5, kind: input, shape index: {}]
  %s6 = inlined_call_operand.hbm [shape: bf16[2,32,96], index: 6, kind: input, shape index: {}]
  %s7 = inlined_call_operand.vmem [shape: f32[2,1,96], index: 7, kind: input, shape index: {}]
  %s8 = inlined_call_operand.hbm [shape: bf16[2,32,32], index: 8, kind: input, shape index: {}]
  %s9 = inlined_call_operand.hbm [shape: f32[2,1,32], index: 9, kind: input, shape index: {}]
  %s10 = inlined_call_operand.vmem [shape: bf16[2,32,32], index: 10, kind: input, shape index: {}]
  %s11 = inlined_call_operand.hbm [shape: bf16[2,32,32], index: 11, kind: input, shape index: {}]
  %s12 = inlined_call_operand.hbm [shape: f32[2,32,64], index: 12, kind: output, shape index: {}]
  %s13 = sld [smem:[#allocation0]]
  $region121: #{tpu_custom_call.1} parent=0
    _
  %s15 = ssub.s32 1, %s13
  %s16 = scalar_select 0, %s15, %s13
  $region1: #{tpu_custom_call.1} parent=0
    #allocation3 [shape = 'u8[4096]{0}', space=vmem, size = 0x1000, scoped, tag = 'input window, operand 0, single buffered']
    #allocation4 [shape = 's32[2]{0}', space=sflag, size = 0x8, scoped, tag = 'scoped memory for tpu_custom_call.1']
    #allocation5 [shape = 's32[2]{0}', space=sflag, size = 0x8, scoped, tag = 'scoped memory for tpu_custom_call.1']
    #allocation6 [shape = 'u8[512]{0}', space=vmem, size = 0x400, scoped, tag = 'input window, operand 3, single buffered']
    #allocation7 [shape = 's32[1]{0}', space=sflag, size = 0x4, scoped, tag = 'scoped memory for tpu_custom_call.1']
    #allocation8 [shape = 'u8[8192]{0}', space=vmem, size = 0x2000, scoped, tag = 'input window, operand 4, single buffered']
    #allocation9 [shape = 'u8[512]{0}', space=vmem, size = 0x400, scoped, tag = 'input window, operand 5, single buffered']
    #allocation10 [shape = 's32[1]{0}', space=sflag, size = 0x4, scoped, tag = 'scoped memory for tpu_custom_call.1']
    #allocation11 [shape = 'u8[16384]{0}', space=vmem, size = 0x4000, scoped, tag = 'input window, operand 6, single buffered']
    #allocation12 [shape = 'u8[16384]{0}', space=vmem, size = 0x4000, scoped, tag = 'input window, operand 8, single buffered']
    #allocation13 [shape = 's32[1]{0}', space=sflag, size = 0x4, scoped, tag = 'scoped memory for tpu_custom_call.1']
    #allocation14 [shape = 'u8[1024]{0}', space=vmem, size = 0x400, scoped, tag = 'input window, operand 9, single buffered']
    #allocation15 [shape = 'u8[16384]{0}', space=vmem, size = 0x4000, scoped, tag = 'input window, operand 11, single buffered']
    #allocation16 [shape = 's32[1]{0}', space=sflag, size = 0x4, scoped, tag = 'scoped memory for tpu_custom_call.1']
    #allocation17 [shape = 'u8[32768]{0}', space=vmem, size = 0x8000, scoped, tag = 'output window, operand 0, single buffered']
    %17 = vsyncpa [#allocation4], 0
    %18 = vsyncpa [#allocation7], 0
    %19 = vsyncpa [#allocation10], 0
    %20 = vsyncpa [#allocation13], 0
    %21 = vsyncpa [#allocation16], 0
    %22 = vsyncpa [#allocation5], 0
    loop: start=0, step=1, limit=4
    $region2: #{tpu_custom_call.1} parent=1 // loop_pre_header
      _
    $region3: #{tpu_custom_call.1} parent=1 // loop_header
      %s24 = sphi 0, %s28
      %p25 = scmp.ge.s32.totalorder %s24, 4
      %s31 = sphi 0, %s43
      %s32 = sphi 0, %s39
      %s33 = sphi 0, %s31
      %s34 = sphi 0, %s32
      %s35 = sphi 0, %s33
      %s36 = sphi 0, %s34
      %s46 = sphi 0, %s48
      %s49 = sphi 0, %s46
      %s50 = sphi 0, %s49
      %s66 = sphi 0, %s50
      %s70 = sphi 0, %s70
      %s72 = sphi 0, %s70
      %s73 = sphi 0, %s72
      %s87 = sphi 0, %s73
      %s91 = sphi 0, %s91
      %s93 = sphi 0, %s91
      %s94 = sphi 0, %s93
      %s108 = sphi 0, %s94
      %s112 = sphi 0, %s112
      %s114 = sphi 0, %s112
      %s115 = sphi 0, %s114
      %s129 = sphi 0, %s115
      %s133 = sphi 0, %s133
      %s135 = sphi 0, %s133
      %s136 = sphi 0, %s135
      %s150 = sphi 0, %s136
      %s154 = sphi 0, %s154
      %s156 = sphi 0, %s154
      %s157 = sphi 0, %s156
      %s171 = sphi 0, %s157
      %s175 = sphi 0, %s175
      %s177 = sphi 0, %s175
      %s178 = sphi 0, %s177
      %s192 = sphi 0, %s178
      %s196 = sphi 0, %s196
      %s198 = sphi 0, %s196
      %s199 = sphi 0, %s198
      %s213 = sphi 0, %s199
      %s217 = sphi 0, %s217
      %s219 = sphi 0, %s217
      %s220 = sphi 0, %s219
      %s234 = sphi 0, %s220
      %s238 = sphi 0, %s238
      %s240 = sphi 0, %s238
      %s241 = sphi 0, %s240
      %s255 = sphi 0, %s241
      %s259 = sphi 0, %s259
      %s261 = sphi 0, %s259
      %s262 = sphi 0, %s261
      %s276 = sphi 0, %s262
      %s280 = sphi 0, %s280
      %s282 = sphi 0, %s280
      %s283 = sphi 0, %s282
      %s297 = sphi 0, %s283
      %s303 = sphi 0, %s305
      %s306 = sphi 0, %s303
      %s307 = sphi 0, %s306
      %s323 = sphi 0, %s307
    $region4: #{tpu_custom_call.1} parent=1 // loop_header_branch
      %27 = sbr.rel (%p25) target = $region8
    $region5: #{tpu_custom_call.1} parent=1 // loop_body
      %s29 = ssub.s32 %s24, 1
      %s30 = ssub.s32 %s24, 2
      %s37 = sadd.s32 1, %s32
      %p38 = scmp.ge.s32.totalorder %s37, 2
      %s39 = scalar_select %p38, 0, %s37
      %s40 = sadd.s32 1, %s31
      %s41 = scalar_select %p38, %s40, %s31
      %p42 = scmp.ge.s32.totalorder %s41, 1
      %s43 = scalar_select %p42, 0, %s41
      %s44 = ssub.s32 %s31, %s43
      %p45 = scmp.eq.s32.totalorder %s44, 0
      %s47 = sadd.s32 %s46, 1
      %s48 = scalar_select %p45, %s46, %s47
      %p51 = pneg %p45
      %p52 = scmp.eq.s32.totalorder %s24, 1
      %p53 = por %p51, %p52
      %p54 = scmp.ne.s32.totalorder %s46, %s49
      %p55 = scmp.eq.s32.totalorder %s24, 0
      %p56 = por %p54, %p55
      %p57 = scmp.ne.s32.totalorder %s46, %s49
      %p58 = scmp.eq.s32.totalorder %s29, 1
      %p59 = por %p57, %p58
      %p60 = scmp.ne.s32.totalorder %s49, %s50
      %p61 = scmp.eq.s32.totalorder %s29, 0
      %p62 = por %p60, %p61
      %p63 = scmp.ne.s32.totalorder %s49, %s50
      %p64 = scmp.eq.s32.totalorder %s30, 1
      %p65 = por %p63, %p64
      %p67 = scmp.ne.s32.totalorder %s50, %s66
      %p68 = scmp.eq.s32.totalorder %s30, 0
      %p69 = por %p67, %p68
      %s71 = sadd.s32 %s70, 1
      %p74 = scmp.eq.s32.totalorder %s24, 1
      %p75 = scmp.ne.s32.totalorder %s70, %s72
      %p76 = scmp.eq.s32.totalorder %s24, 0
      %p77 = por %p75, %p76
      %p78 = scmp.ne.s32.totalorder %s70, %s72
      %p79 = scmp.eq.s32.totalorder %s29, 1
      %p80 = por %p78, %p79
      %p81 = scmp.ne.s32.totalorder %s72, %s73
      %p82 = scmp.eq.s32.totalorder %s29, 0
      %p83 = por %p81, %p82
      %p84 = scmp.ne.s32.totalorder %s72, %s73
      %p85 = scmp.eq.s32.totalorder %s30, 1
      %p86 = por %p84, %p85
      %p88 = scmp.ne.s32.totalorder %s73, %s87
      %p89 = scmp.eq.s32.totalorder %s30, 0
      %p90 = por %p88, %p89
      %s92 = sadd.s32 %s91, 1
      %p95 = scmp.eq.s32.totalorder %s24, 1
      %p96 = scmp.ne.s32.totalorder %s91, %s93
      %p97 = scmp.eq.s32.totalorder %s24, 0
      %p98 = por %p96, %p97
      %p99 = scmp.ne.s32.totalorder %s91, %s93
      %p100 = scmp.eq.s32.totalorder %s29, 1
      %p101 = por %p99, %p100
      %p102 = scmp.ne.s32.totalorder %s93, %s94
      %p103 = scmp.eq.s32.totalorder %s29, 0
      %p104 = por %p102, %p103
      %p105 = scmp.ne.s32.totalorder %s93, %s94
      %p106 = scmp.eq.s32.totalorder %s30, 1
      %p107 = por %p105, %p106
      %p109 = scmp.ne.s32.totalorder %s94, %s108
      %p110 = scmp.eq.s32.totalorder %s30, 0
      %p111 = por %p109, %p110
      %s113 = sadd.s32 %s112, 1
      %p116 = scmp.eq.s32.totalorder %s24, 1
      %p117 = scmp.ne.s32.totalorder %s112, %s114
      %p118 = scmp.eq.s32.totalorder %s24, 0
      %p119 = por %p117, %p118
      %p120 = scmp.ne.s32.totalorder %s112, %s114
      %p121 = scmp.eq.s32.totalorder %s29, 1
      %p122 = por %p120, %p121
      %p123 = scmp.ne.s32.totalorder %s114, %s115
      %p124 = scmp.eq.s32.totalorder %s29, 0
      %p125 = por %p123, %p124
      %p126 = scmp.ne.s32.totalorder %s114, %s115
      %p127 = scmp.eq.s32.totalorder %s30, 1
      %p128 = por %p126, %p127
      %p130 = scmp.ne.s32.totalorder %s115, %s129
      %p131 = scmp.eq.s32.totalorder %s30, 0
      %p132 = por %p130, %p131
      %s134 = sadd.s32 %s133, 1
      %p137 = scmp.eq.s32.totalorder %s24, 1
      %p138 = scmp.ne.s32.totalorder %s133, %s135
      %p139 = scmp.eq.s32.totalorder %s24, 0
      %p140 = por %p138, %p139
      %p141 = scmp.ne.s32.totalorder %s133, %s135
      %p142 = scmp.eq.s32.totalorder %s29, 1
      %p143 = por %p141, %p142
      %p144 = scmp.ne.s32.totalorder %s135, %s136
      %p145 = scmp.eq.s32.totalorder %s29, 0
      %p146 = por %p144, %p145
      %p147 = scmp.ne.s32.totalorder %s135, %s136
      %p148 = scmp.eq.s32.totalorder %s30, 1
      %p149 = por %p147, %p148
      %p151 = scmp.ne.s32.totalorder %s136, %s150
      %p152 = scmp.eq.s32.totalorder %s30, 0
      %p153 = por %p151, %p152
      %s155 = sadd.s32 %s154, 1
      %p158 = scmp.eq.s32.totalorder %s24, 1
      %p159 = scmp.ne.s32.totalorder %s154, %s156
      %p160 = scmp.eq.s32.totalorder %s24, 0
      %p161 = por %p159, %p160
      %p162 = scmp.ne.s32.totalorder %s154, %s156
      %p163 = scmp.eq.s32.totalorder %s29, 1
      %p164 = por %p162, %p163
      %p165 = scmp.ne.s32.totalorder %s156, %s157
      %p166 = scmp.eq.s32.totalorder %s29, 0
      %p167 = por %p165, %p166
      %p168 = scmp.ne.s32.totalorder %s156, %s157
      %p169 = scmp.eq.s32.totalorder %s30, 1
      %p170 = por %p168, %p169
      %p172 = scmp.ne.s32.totalorder %s157, %s171
      %p173 = scmp.eq.s32.totalorder %s30, 0
      %p174 = por %p172, %p173
      %s176 = sadd.s32 %s175, 1
      %p179 = scmp.eq.s32.totalorder %s24, 1
      %p180 = scmp.ne.s32.totalorder %s175, %s177
      %p181 = scmp.eq.s32.totalorder %s24, 0
      %p182 = por %p180, %p181
      %p183 = scmp.ne.s32.totalorder %s175, %s177
      %p184 = scmp.eq.s32.totalorder %s29, 1
      %p185 = por %p183, %p184
      %p186 = scmp.ne.s32.totalorder %s177, %s178
      %p187 = scmp.eq.s32.totalorder %s29, 0
      %p188 = por %p186, %p187
      %p189 = scmp.ne.s32.totalorder %s177, %s178
      %p190 = scmp.eq.s32.totalorder %s30, 1
      %p191 = por %p189, %p190
      %p193 = scmp.ne.s32.totalorder %s178, %s192
      %p194 = scmp.eq.s32.totalorder %s30, 0
      %p195 = por %p193, %p194
      %s197 = sadd.s32 %s196, 1
      %p200 = scmp.eq.s32.totalorder %s24, 1
      %p201 = scmp.ne.s32.totalorder %s196, %s198
      %p202 = scmp.eq.s32.totalorder %s24, 0
      %p203 = por %p201, %p202
      %p204 = scmp.ne.s32.totalorder %s196, %s198
      %p205 = scmp.eq.s32.totalorder %s29, 1
      %p206 = por %p204, %p205
      %p207 = scmp.ne.s32.totalorder %s198, %s199
      %p208 = scmp.eq.s32.totalorder %s29, 0
      %p209 = por %p207, %p208
      %p210 = scmp.ne.s32.totalorder %s198, %s199
      %p211 = scmp.eq.s32.totalorder %s30, 1
      %p212 = por %p210, %p211
      %p214 = scmp.ne.s32.totalorder %s199, %s213
      %p215 = scmp.eq.s32.totalorder %s30, 0
      %p216 = por %p214, %p215
      %s218 = sadd.s32 %s217, 1
      %p221 = scmp.eq.s32.totalorder %s24, 1
      %p222 = scmp.ne.s32.totalorder %s217, %s219
      %p223 = scmp.eq.s32.totalorder %s24, 0
      %p224 = por %p222, %p223
      %p225 = scmp.ne.s32.totalorder %s217, %s219
      %p226 = scmp.eq.s32.totalorder %s29, 1
      %p227 = por %p225, %p226
      %p228 = scmp.ne.s32.totalorder %s219, %s220
      %p229 = scmp.eq.s32.totalorder %s29, 0
      %p230 = por %p228, %p229
      %p231 = scmp.ne.s32.totalorder %s219, %s220
      %p232 = scmp.eq.s32.totalorder %s30, 1
      %p233 = por %p231, %p232
      %p235 = scmp.ne.s32.totalorder %s220, %s234
      %p236 = scmp.eq.s32.totalorder %s30, 0
      %p237 = por %p235, %p236
      %s239 = sadd.s32 %s238, 1
      %p242 = scmp.eq.s32.totalorder %s24, 1
      %p243 = scmp.ne.s32.totalorder %s238, %s240
      %p244 = scmp.eq.s32.totalorder %s24, 0
      %p245 = por %p243, %p244
      %p246 = scmp.ne.s32.totalorder %s238, %s240
      %p247 = scmp.eq.s32.totalorder %s29, 1
      %p248 = por %p246, %p247
      %p249 = scmp.ne.s32.totalorder %s240, %s241
      %p250 = scmp.eq.s32.totalorder %s29, 0
      %p251 = por %p249, %p250
      %p252 = scmp.ne.s32.totalorder %s240, %s241
      %p253 = scmp.eq.s32.totalorder %s30, 1
      %p254 = por %p252, %p253
      %p256 = scmp.ne.s32.totalorder %s241, %s255
      %p257 = scmp.eq.s32.totalorder %s30, 0
      %p258 = por %p256, %p257
      %s260 = sadd.s32 %s259, 1
      %p263 = scmp.eq.s32.totalorder %s24, 1
      %p264 = scmp.ne.s32.totalorder %s259, %s261
      %p265 = scmp.eq.s32.totalorder %s24, 0
      %p266 = por %p264, %p265
      %p267 = scmp.ne.s32.totalorder %s259, %s261
      %p268 = scmp.eq.s32.totalorder %s29, 1
      %p269 = por %p267, %p268
      %p270 = scmp.ne.s32.totalorder %s261, %s262
      %p271 = scmp.eq.s32.totalorder %s29, 0
      %p272 = por %p270, %p271
      %p273 = scmp.ne.s32.totalorder %s261, %s262
      %p274 = scmp.eq.s32.totalorder %s30, 1
      %p275 = por %p273, %p274
      %p277 = scmp.ne.s32.totalorder %s262, %s276
      %p278 = scmp.eq.s32.totalorder %s30, 0
      %p279 = por %p277, %p278
      %s281 = sadd.s32 %s280, 1
      %p284 = scmp.eq.s32.totalorder %s24, 1
      %p285 = scmp.ne.s32.totalorder %s280, %s282
      %p286 = scmp.eq.s32.totalorder %s24, 0
      %p287 = por %p285, %p286
      %p288 = scmp.ne.s32.totalorder %s280, %s282
      %p289 = scmp.eq.s32.totalorder %s29, 1
      %p290 = por %p288, %p289
      %p291 = scmp.ne.s32.totalorder %s282, %s283
      %p292 = scmp.eq.s32.totalorder %s29, 0
      %p293 = por %p291, %p292
      %p294 = scmp.ne.s32.totalorder %s282, %s283
      %p295 = scmp.eq.s32.totalorder %s30, 1
      %p296 = por %p294, %p295
      %p298 = scmp.ne.s32.totalorder %s283, %s297
      %p299 = scmp.eq.s32.totalorder %s30, 0
      %p300 = por %p298, %p299
      %s301 = ssub.s32 %s31, %s43
      %p302 = scmp.eq.s32.totalorder %s301, 0
      %s304 = sadd.s32 %s303, 1
      %s305 = scalar_select %p302, %s303, %s304
      %p308 = pneg %p302
      %p309 = scmp.eq.s32.totalorder %s24, 1
      %p310 = por %p308, %p309
      %p311 = scmp.ne.s32.totalorder %s303, %s306
      %p312 = scmp.eq.s32.totalorder %s24, 0
      %p313 = por %p311, %p312
      %p314 = scmp.ne.s32.totalorder %s303, %s306
      %p315 = scmp.eq.s32.totalorder %s29, 1
      %p316 = por %p314, %p315
      %p317 = scmp.ne.s32.totalorder %s306, %s307
      %p318 = scmp.eq.s32.totalorder %s29, 0
      %p319 = por %p317, %p318
      %p320 = scmp.ne.s32.totalorder %s306, %s307
      %p321 = scmp.eq.s32.totalorder %s30, 1
      %p322 = por %p320, %p321
      %p324 = scmp.ne.s32.totalorder %s307, %s323
      %p325 = scmp.eq.s32.totalorder %s30, 0
      %p326 = por %p324, %p325
      %p327 = scmp.le.s32.totalorder 1, %s24
      %p328 = scmp.lt.s32.totalorder %s24, 3
      %p329 = pnand %p327, %p328
      %p330 = pneg %p329
      // Predicated region
      $region9: #{tpu_custom_call.1} parent=5 // pred_check
        _
      $region10: #{tpu_custom_call.1} parent=5 // pred_check_branch
        %332 = sbr.rel (%p329) target = $region12
      $region11: #{tpu_custom_call.1} parent=5 // pred_region
        %s333 = ssub.s32 %s24, 1
        // Predicated region
        $region13: #{tpu_custom_call.1} parent=11 // pred_check
          %p334 = pneg %p62
        $region14: #{tpu_custom_call.1} parent=11 // pred_check_branch
          %336 = sbr.rel (%p334) target = $region16
        $region15: #{tpu_custom_call.1} parent=11 // pred_region
          %s337 = smul.u32 2, %s33
          %s339 = ssub.s32 128, 128
          %340 = vsyncadd [#allocation4], %s339
          %s341 = smul.addr %s337, 64
          %s342 = scalar_lea.hbm %s0, %s341
          %s343 = sshll.u32 [#allocation3], 4
          %s344 = int_to_ptr.vmem [resolvable:$true] %s343
          %349 = dma.hbm_to_vmem [thread:$0]  %s342, 128, %s344, [#allocation4], 64, 64, 4
        $region16: #{tpu_custom_call.1} parent=11 // pred_fallthru
          _
        // Predicated region
        $region17: #{tpu_custom_call.1} parent=11 // pred_check
          %p350 = pneg %p83
        $region18: #{tpu_custom_call.1} parent=11 // pred_check_branch
          %352 = sbr.rel (%p350) target = $region20
        $region19: #{tpu_custom_call.1} parent=11 // pred_region
          _
        $region20: #{tpu_custom_call.1} parent=11 // pred_fallthru
          _
        // Predicated region
        $region21: #{tpu_custom_call.1} parent=11 // pred_check
          %p353 = pneg %p104
        $region22: #{tpu_custom_call.1} parent=11 // pred_check_branch
          %355 = sbr.rel (%p353) target = $region24
        $region23: #{tpu_custom_call.1} parent=11 // pred_region
          _
        $region24: #{tpu_custom_call.1} parent=11 // pred_fallthru
          _
        // Predicated region
        $region25: #{tpu_custom_call.1} parent=11 // pred_check
          %p356 = pneg %p125
        $region26: #{tpu_custom_call.1} parent=11 // pred_check_branch
          %358 = sbr.rel (%p356) target = $region28
        $region27: #{tpu_custom_call.1} parent=11 // pred_region
          %s360 = ssub.s32 16, 16
          %361 = vsyncadd [#allocation7], %s360
          %s363 = sshll.u32 [#allocation6], 4
          %s364 = int_to_ptr.vmem [resolvable:$true] %s363
          %366 = dma.hbm_to_vmem [thread:$0]  %s3, 16, %s364, [#allocation7]
        $region28: #{tpu_custom_call.1} parent=11 // pred_fallthru
          _
        // Predicated region
        $region29: #{tpu_custom_call.1} parent=11 // pred_check
          %p367 = pneg %p146
        $region30: #{tpu_custom_call.1} parent=11 // pred_check_branch
          %369 = sbr.rel (%p367) target = $region32
        $region31: #{tpu_custom_call.1} parent=11 // pred_region
          %s371 = ssub.s32 256, 256
          %372 = vsyncadd [#allocation7], %s371
          %s373 = sshll.u32 [#allocation8], 4
          %s374 = int_to_ptr.vmem [resolvable:$true] %s373
          %379 = dma.hbm_to_vmem [thread:$0]  %s4, 256, %s374, [#allocation7], 64, 64, 4
        $region32: #{tpu_custom_call.1} parent=11 // pred_fallthru
          _
        // Predicated region
        $region33: #{tpu_custom_call.1} parent=11 // pred_check
          %p380 = pneg %p167
        $region34: #{tpu_custom_call.1} parent=11 // pred_check_branch
          %382 = sbr.rel (%p380) target = $region36
        $region35: #{tpu_custom_call.1} parent=11 // pred_region
          %s384 = ssub.s32 16, 16
          %385 = vsyncadd [#allocation10], %s384
          %s387 = sshll.u32 [#allocation9], 4
          %s388 = int_to_ptr.vmem [resolvable:$true] %s387
          %390 = dma.hbm_to_vmem [thread:$0]  %s5, 16, %s388, [#allocation10]
        $region36: #{tpu_custom_call.1} parent=11 // pred_fallthru
          _
        // Predicated region
        $region37: #{tpu_custom_call.1} parent=11 // pred_check
          %p391 = pneg %p188
        $region38: #{tpu_custom_call.1} parent=11 // pred_check_branch
          %393 = sbr.rel (%p391) target = $region40
        $region39: #{tpu_custom_call.1} parent=11 // pred_region
          %s395 = ssub.s32 512, 512
          %396 = vsyncadd [#allocation10], %s395
          %s397 = sshll.u32 [#allocation11], 4
          %s398 = int_to_ptr.vmem [resolvable:$true] %s397
          %403 = dma.hbm_to_vmem [thread:$0]  %s6, 512, %s398, [#allocation10], 64, 64, 4
        $region40: #{tpu_custom_call.1} parent=11 // pred_fallthru
          _
        // Predicated region
        $region41: #{tpu_custom_call.1} parent=11 // pred_check
          %p404 = pneg %p209
        $region42: #{tpu_custom_call.1} parent=11 // pred_check_branch
          %406 = sbr.rel (%p404) target = $region44
        $region43: #{tpu_custom_call.1} parent=11 // pred_region
          _
        $region44: #{tpu_custom_call.1} parent=11 // pred_fallthru
          _
        // Predicated region
        $region45: #{tpu_custom_call.1} parent=11 // pred_check
          %p407 = pneg %p230
        $region46: #{tpu_custom_call.1} parent=11 // pred_check_branch
          %409 = sbr.rel (%p407) target = $region48
        $region47: #{tpu_custom_call.1} parent=11 // pred_region
          %s411 = ssub.s32 512, 512
          %412 = vsyncadd [#allocation13], %s411
          %s413 = sshll.u32 [#allocation12], 4
          %s414 = int_to_ptr.vmem [resolvable:$true] %s413
          %419 = dma.hbm_to_vmem [thread:$0]  %s8, 512, %s414, [#allocation13], 64, 64, 4
        $region48: #{tpu_custom_call.1} parent=11 // pred_fallthru
          _
        // Predicated region
        $region49: #{tpu_custom_call.1} parent=11 // pred_check
          %p420 = pneg %p251
        $region50: #{tpu_custom_call.1} parent=11 // pred_check_branch
          %422 = sbr.rel (%p420) target = $region52
        $region51: #{tpu_custom_call.1} parent=11 // pred_region
          %s424 = ssub.s32 32, 32
          %425 = vsyncadd [#allocation13], %s424
          %s426 = sshll.u32 [#allocation14], 4
          %s427 = int_to_ptr.vmem [resolvable:$true] %s426
          %432 = dma.hbm_to_vmem [thread:$0]  %s9, 32, %s427, [#allocation13], 16, 16, 1
        $region52: #{tpu_custom_call.1} parent=11 // pred_fallthru
          _
        // Predicated region
        $region53: #{tpu_custom_call.1} parent=11 // pred_check
          %p433 = pneg %p272
        $region54: #{tpu_custom_call.1} parent=11 // pred_check_branch
          %435 = sbr.rel (%p433) target = $region56
        $region55: #{tpu_custom_call.1} parent=11 // pred_region
          _
        $region56: #{tpu_custom_call.1} parent=11 // pred_fallthru
          _
        // Predicated region
        $region57: #{tpu_custom_call.1} parent=11 // pred_check
          %p436 = pneg %p293
        $region58: #{tpu_custom_call.1} parent=11 // pred_check_branch
          %438 = sbr.rel (%p436) target = $region60
        $region59: #{tpu_custom_call.1} parent=11 // pred_region
          %s440 = ssub.s32 512, 512
          %441 = vsyncadd [#allocation16], %s440
          %s442 = sshll.u32 [#allocation15], 4
          %s443 = int_to_ptr.vmem [resolvable:$true] %s442
          %448 = dma.hbm_to_vmem [thread:$0]  %s11, 512, %s443, [#allocation16], 64, 64, 4
        $region60: #{tpu_custom_call.1} parent=11 // pred_fallthru
          _
      $region12: #{tpu_custom_call.1} parent=5 // pred_fallthru
        _
      %p449 = scmp.lt.s32.totalorder %s24, 2
      // Predicated region
      $region61: #{tpu_custom_call.1} parent=5 // pred_check
        %p450 = pneg %p449
      $region62: #{tpu_custom_call.1} parent=5 // pred_check_branch
        %452 = sbr.rel (%p450) target = $region64
      $region63: #{tpu_custom_call.1} parent=5 // pred_region
        _
      $region64: #{tpu_custom_call.1} parent=5 // pred_fallthru
        _
      %p453 = scmp.le.s32.totalorder 1, %s24
      %p454 = scmp.lt.s32.totalorder %s24, 3
      %p455 = pnand %p453, %p454
      %p456 = pneg %p455
      // Predicated region
      $region65: #{tpu_custom_call.1} parent=5 // pred_check
        _
      $region66: #{tpu_custom_call.1} parent=5 // pred_check_branch
        %458 = sbr.rel (%p455) target = $region68
      $region67: #{tpu_custom_call.1} parent=5 // pred_region
        %s459 = ssub.s32 %s24, 1
        // Predicated region
        $region69: #{tpu_custom_call.1} parent=67 // pred_check
          %p460 = pneg %p62
        $region70: #{tpu_custom_call.1} parent=67 // pred_check_branch
          %462 = sbr.rel (%p460) target = $region72
        $region71: #{tpu_custom_call.1} parent=67 // pred_region
          %463 = dma.done [#allocation4], 128
        $region72: #{tpu_custom_call.1} parent=67 // pred_fallthru
          _
        // Predicated region
        $region73: #{tpu_custom_call.1} parent=67 // pred_check
          %p464 = pneg %p125
        $region74: #{tpu_custom_call.1} parent=67 // pred_check_branch
          %466 = sbr.rel (%p464) target = $region76
        $region75: #{tpu_custom_call.1} parent=67 // pred_region
          %467 = dma.done [#allocation7], 16
        $region76: #{tpu_custom_call.1} parent=67 // pred_fallthru
          _
        // Predicated region
        $region77: #{tpu_custom_call.1} parent=67 // pred_check
          %p468 = pneg %p146
        $region78: #{tpu_custom_call.1} parent=67 // pred_check_branch
          %470 = sbr.rel (%p468) target = $region80
        $region79: #{tpu_custom_call.1} parent=67 // pred_region
          %471 = dma.done [#allocation7], 256
        $region80: #{tpu_custom_call.1} parent=67 // pred_fallthru
          _
        // Predicated region
        $region81: #{tpu_custom_call.1} parent=67 // pred_check
          %p472 = pneg %p167
        $region82: #{tpu_custom_call.1} parent=67 // pred_check_branch
          %474 = sbr.rel (%p472) target = $region84
        $region83: #{tpu_custom_call.1} parent=67 // pred_region
          %475 = dma.done [#allocation10], 16
        $region84: #{tpu_custom_call.1} parent=67 // pred_fallthru
          _
        // Predicated region
        $region85: #{tpu_custom_call.1} parent=67 // pred_check
          %p476 = pneg %p188
        $region86: #{tpu_custom_call.1} parent=67 // pred_check_branch
          %478 = sbr.rel (%p476) target = $region88
        $region87: #{tpu_custom_call.1} parent=67 // pred_region
          %479 = dma.done [#allocation10], 512
        $region88: #{tpu_custom_call.1} parent=67 // pred_fallthru
          _
        // Predicated region
        $region89: #{tpu_custom_call.1} parent=67 // pred_check
          %p480 = pneg %p230
        $region90: #{tpu_custom_call.1} parent=67 // pred_check_branch
          %482 = sbr.rel (%p480) target = $region92
        $region91: #{tpu_custom_call.1} parent=67 // pred_region
          %483 = dma.done [#allocation13], 512
        $region92: #{tpu_custom_call.1} parent=67 // pred_fallthru
          _
        // Predicated region
        $region93: #{tpu_custom_call.1} parent=67 // pred_check
          %p484 = pneg %p251
        $region94: #{tpu_custom_call.1} parent=67 // pred_check_branch
          %486 = sbr.rel (%p484) target = $region96
        $region95: #{tpu_custom_call.1} parent=67 // pred_region
          %487 = dma.done [#allocation13], 32
        $region96: #{tpu_custom_call.1} parent=67 // pred_fallthru
          _
        // Predicated region
        $region97: #{tpu_custom_call.1} parent=67 // pred_check
          %p488 = pneg %p293
        $region98: #{tpu_custom_call.1} parent=67 // pred_check_branch
          %490 = sbr.rel (%p488) target = $region100
        $region99: #{tpu_custom_call.1} parent=67 // pred_region
          %491 = dma.done [#allocation16], 512
        $region100: #{tpu_custom_call.1} parent=67 // pred_fallthru
          _
        %p492 = pneg %p62
        %p493 = pneg %p59
        %p494 = pneg %p83
        %p495 = pneg %p80
        %p496 = pneg %p104
        %p497 = pneg %p101
        %p498 = pneg %p125
        %p499 = pneg %p122
        %p500 = pneg %p146
        %p501 = pneg %p143
        %p502 = pneg %p167
        %p503 = pneg %p164
        %p504 = pneg %p188
        %p505 = pneg %p185
        %p506 = pneg %p209
        %p507 = pneg %p206
        %p508 = pneg %p230
        %p509 = pneg %p227
        %p510 = pneg %p251
        %p511 = pneg %p248
        %p512 = pneg %p272
        %p513 = pneg %p269
        %p514 = pneg %p293
        %p515 = pneg %p290
        %p516 = pneg %p319
        %p517 = pneg %p316
        %s518 = smul.u32 2, %s33
        %s519 = smul.u32 2, %s33
        %p520 = scmp.eq.s32.totalorder %s34, 0
        // Predicated region
        $region101: #{tpu_custom_call.1} parent=67 // pred_check
          %p521 = pneg %p520
        $region102: #{tpu_custom_call.1} parent=67 // pred_check_branch
          %523 = sbr.rel (%p521) target = $region104
        $region103: #{tpu_custom_call.1} parent=67 // pred_region
          %v524 = vld [vmem:[#allocation3] sm:$0xf]
          %525 = vxpose.xlu0.b32.start [1/16] %v524, 128
          %526 = vxpose.xlu0.b32.cont [2/16] 0.0, 128
          %527 = vxpose.xlu0.b32.cont [3/16] 0.0, 128
          %528 = vxpose.xlu0.b32.cont [4/16] 0.0, 128
          %529 = vxpose.xlu0.b32.cont [5/16] 0.0, 128
          %530 = vxpose.xlu0.b32.cont [6/16] 0.0, 128
          %531 = vxpose.xlu0.b32.cont [7/16] 0.0, 128
          %532 = vxpose.xlu0.b32.cont [8/16] 0.0, 128
          %533 = vxpose.xlu0.b32.cont [9/16] 0.0, 128
          %534 = vxpose.xlu0.b32.cont [10/16] 0.0, 128
          %535 = vxpose.xlu0.b32.cont [11/16] 0.0, 128
          %536 = vxpose.xlu0.b32.cont [12/16] 0.0, 128
          %537 = vxpose.xlu0.b32.cont [13/16] 0.0, 128
          %538 = vxpose.xlu0.b32.cont [14/16] 0.0, 128
          %539 = vxpose.xlu0.b32.cont [15/16] 0.0, 128
          %540 = vxpose.xlu0.b32.end [16/16] 0.0, 128
          %v541 = vpop.trf.xlu0
          %v542 = vpop.trf.xlu0
          %v543 = vpop.trf.xlu0
          %v544 = vpop.trf.xlu0
          %v545 = vpop.trf.xlu0
          %v546 = vpop.trf.xlu0
          %v547 = vpop.trf.xlu0
          %v548 = vpop.trf.xlu0
          %v549 = vpop.trf.xlu0
          %v550 = vpop.trf.xlu0
          %v551 = vpop.trf.xlu0
          %v552 = vpop.trf.xlu0
          %v553 = vpop.trf.xlu0
          %v554 = vpop.trf.xlu0
          %v555 = vpop.trf.xlu0
          %v556 = vpop.trf.xlu0
          %v557 = vld [vmem:[%s1] sm:$0x3]
          %v558 = vunpack.c.l.bf16 %v557
          %vm559 = vcmask 31744
          %v561 = vsel %vm559, %v541, 0
          %v564 = vsel %vm559, %v542, 0
          %v567 = vsel %vm559, %v543, 0
          %v570 = vsel %vm559, %v544, 0
          %v573 = vsel %vm559, %v545, 0
          %v576 = vsel %vm559, %v546, 0
          %v579 = vsel %vm559, %v547, 0
          %v582 = vsel %vm559, %v548, 0
          %vm584 = vcmask 1043456
          %v586 = vsel %vm584, %v558, 0
          %588 = vmatprep.subr.mxu0 0.0
          %589 = vmatpush1.msra.mxu0 %v586
          %590 = vmatprep.subr.mxu0 0.0
          %591 = vmatpush1.msra.mxu0 0.0
          %592 = vmatprep.subr.mxu0 0.0
          %593 = vmatpush1.msra.mxu0 0.0
          %594 = vmatprep.subr.mxu0 0.0
          %595 = vmatpush1.msra.mxu0 0.0
          %596 = vmatprep.subr.mxu0 0.0
          %597 = vmatpush1.msra.mxu0 0.0
          %598 = vmatprep.subr.mxu0 0.0
          %599 = vmatpush1.msra.mxu0 0.0
          %600 = vmatprep.subr.mxu0 0.0
          %601 = vmatpush1.msra.mxu0 0.0
          %602 = vmatprep.subr.mxu0 0.0
          %603 = vmatpush1.msra.mxu0 0.0
          %604 = vmatprep.subr.mxu0 0.0
          %605 = vmatpush1.msra.mxu0 0.0
          %606 = vmatprep.subr.mxu0 0.0
          %607 = vmatpush1.msra.mxu0 0.0
          %608 = vmatprep.subr.mxu0 0.0
          %609 = vmatpush1.msra.mxu0 0.0
          %610 = vmatprep.subr.mxu0 0.0
          %611 = vmatpush1.msra.mxu0 0.0
          %612 = vmatprep.subr.mxu0 0.0
          %613 = vmatpush1.msra.mxu0 0.0
          %614 = vmatprep.subr.mxu0 0.0
          %615 = vmatpush1.msra.mxu0 0.0
          %616 = vmatprep.subr.mxu0 0.0
          %617 = vmatpush1.msra.mxu0 0.0
          %618 = vmatprep.subr.mxu0 0.0
          %619 = vmatpush1.msra.mxu0 0.0
          %620 = vmatprep.subr.mxu0 0.0
          %621 = vmatpush1.msra.mxu0 0.0
          %622 = vmatprep.subr.mxu0 0.0
          %623 = vmatpush1.msra.mxu0 0.0
          %624 = vmatprep.subr.mxu0 0.0
          %625 = vmatpush1.msra.mxu0 0.0
          %626 = vmatprep.subr.mxu0 0.0
          %627 = vmatpush1.msra.mxu0 0.0
          %628 = vmatprep.subr.mxu0 0.0
          %629 = vmatpush1.msra.mxu0 0.0
          %630 = vmatprep.subr.mxu0 0.0
          %631 = vmatpush1.msra.mxu0 0.0
          %632 = vmatprep.subr.mxu0 0.0
          %633 = vmatpush1.msra.mxu0 0.0
          %634 = vmatprep.subr.mxu0 0.0
          %635 = vmatpush1.msra.mxu0 0.0
          %636 = vmatprep.subr.mxu0 0.0
          %637 = vmatpush1.msra.mxu0 0.0
          %638 = vmatprep.subr.mxu0 0.0
          %639 = vmatpush1.msra.mxu0 0.0
          %640 = vmatprep.subr.mxu0 0.0
          %641 = vmatpush1.msra.mxu0 0.0
          %642 = vmatprep.subr.mxu0 0.0
          %643 = vmatpush1.msra.mxu0 0.0
          %644 = vmatprep.subr.mxu0 0.0
          %645 = vmatpush1.msra.mxu0 0.0
          %646 = vmatprep.subr.mxu0 0.0
          %647 = vmatpush1.msra.mxu0 0.0
          %648 = vmatprep.subr.mxu0 0.0
          %649 = vmatpush1.msra.mxu0 0.0
          %650 = vmatprep.subr.mxu0 0.0
          %651 = vmatpush1.msra.mxu0 0.0
          %652 = vmatprep.mubr.f32.mxu0 0.0
          %653 = vmatmul.mubr.f32.gmra.mrb[0].mxu0 %v561
          %v654 = vpop.f32.mrb[0].mxu0
          %v655 = vadd.f32 0.0, %v654
          %v656 = vpop.f32.mrb[0].mxu0
          %657 = vmatprep.mubr.f32.mxu0 0.0
          %658 = vmatmul.mubr.f32.gmra.mrb[0].mxu0 %v564
          %v659 = vpop.f32.mrb[0].mxu0
          %v660 = vadd.f32 0.0, %v659
          %v661 = vpop.f32.mrb[0].mxu0
          %662 = vmatprep.mubr.f32.mxu0 0.0
          %663 = vmatmul.mubr.f32.gmra.mrb[0].mxu0 %v567
          %v664 = vpop.f32.mrb[0].mxu0
          %v665 = vadd.f32 0.0, %v664
          %v666 = vpop.f32.mrb[0].mxu0
          %667 = vmatprep.mubr.f32.mxu0 0.0
          %668 = vmatmul.mubr.f32.gmra.mrb[0].mxu0 %v570
          %v669 = vpop.f32.mrb[0].mxu0
          %v670 = vadd.f32 0.0, %v669
          %v671 = vpop.f32.mrb[0].mxu0
          %672 = vmatprep.mubr.f32.mxu0 0.0
          %673 = vmatmul.mubr.f32.gmra.mrb[0].mxu0 %v573
          %v674 = vpop.f32.mrb[0].mxu0
          %v675 = vadd.f32 0.0, %v674
          %v676 = vpop.f32.mrb[0].mxu0
          %677 = vmatprep.mubr.f32.mxu0 0.0
          %678 = vmatmul.mubr.f32.gmra.mrb[0].mxu0 %v576
          %v679 = vpop.f32.mrb[0].mxu0
          %v680 = vadd.f32 0.0, %v679
          %v681 = vpop.f32.mrb[0].mxu0
          %682 = vmatprep.mubr.f32.mxu0 0.0
          %683 = vmatmul.mubr.f32.gmra.mrb[0].mxu0 %v579
          %v684 = vpop.f32.mrb[0].mxu0
          %v685 = vadd.f32 0.0, %v684
          %v686 = vpop.f32.mrb[0].mxu0
          %687 = vmatprep.mubr.f32.mxu0 0.0
          %688 = vmatmul.mubr.f32.gmra.mrb[0].mxu0 %v582
          %v689 = vpop.f32.mrb[0].mxu0
          %v690 = vadd.f32 0.0, %v689
          %v691 = vpop.f32.mrb[0].mxu0
          %692 = vdwg.mxu0
          %v693 = vld [vmem:[%s2] sm:$0x1]
          %v695 = vlaneseq
          %v696 = vshrl.u32 %v695, 7
          %v697 = vsub.s32 0, %v696
          %v698 = vrot.slane %v693, %v697
          %v700 = vmul.f32 %v655, %v698
          %v701 = vmul.f32 %v660, %v698
          %v702 = vmul.f32 %v665, %v698
          %v703 = vmul.f32 %v670, %v698
          %v704 = vmul.f32 %v675, %v698
          %v705 = vmul.f32 %v680, %v698
          %v706 = vmul.f32 %v685, %v698
          %v707 = vmul.f32 %v690, %v698
          %v708 = vld [vmem:[#allocation6] sm:$0x1]
          %v710 = vlaneseq
          %v711 = vshrl.u32 %v710, 7
          %v712 = vsub.s32 0, %v711
          %v713 = vrot.slane %v708, %v712
          %v715 = vadd.f32 %v700, %v713
          %v716 = vadd.f32 %v701, %v713
          %v717 = vadd.f32 %v702, %v713
          %v718 = vadd.f32 %v703, %v713
          %v719 = vadd.f32 %v704, %v713
          %v720 = vadd.f32 %v705, %v713
          %v721 = vadd.f32 %v706, %v713
          %v722 = vadd.f32 %v707, %v713
          %v723 = vxor.u32 %v715, 2147483648
          %v724 = vxor.u32 %v716, 2147483648
          %v725 = vxor.u32 %v717, 2147483648
          %v726 = vxor.u32 %v718, 2147483648
          %v727 = vxor.u32 %v719, 2147483648
          %v728 = vxor.u32 %v720, 2147483648
          %v729 = vxor.u32 %v721, 2147483648
          %v730 = vxor.u32 %v722, 2147483648
          %v731 = vmul.f32 %v723, 1.442695
          %v732 = vpow.pop %v731
          %v733 = vmul.f32 %v724, 1.442695
          %v734 = vpow.pop %v733
          %v735 = vmul.f32 %v725, 1.442695
          %v736 = vpow.pop %v735
          %v737 = vmul.f32 %v726, 1.442695
          %v738 = vpow.pop %v737
          %v739 = vmul.f32 %v727, 1.442695
          %v740 = vpow.pop %v739
          %v741 = vmul.f32 %v728, 1.442695
          %v742 = vpow.pop %v741
          %v743 = vmul.f32 %v729, 1.442695
          %v744 = vpow.pop %v743
          %v745 = vmul.f32 %v730, 1.442695
          %v746 = vpow.pop %v745
          %v747 = vadd.f32 %v732, 1.0
          %v748 = vadd.f32 %v734, 1.0
          %v749 = vadd.f32 %v736, 1.0
          %v750 = vadd.f32 %v738, 1.0
          %v751 = vadd.f32 %v740, 1.0
          %v752 = vadd.f32 %v742, 1.0
          %v753 = vadd.f32 %v744, 1.0
          %v754 = vadd.f32 %v746, 1.0
          %v755 = vrcp.pop %v747
          %v756 = vmul.f32 1.0, %v755
          %v757 = vrcp.pop %v748
          %v758 = vmul.f32 1.0, %v757
          %v759 = vrcp.pop %v749
          %v760 = vmul.f32 1.0, %v759
          %v761 = vrcp.pop %v750
          %v762 = vmul.f32 1.0, %v761
          %v763 = vrcp.pop %v751
          %v764 = vmul.f32 1.0, %v763
          %v765 = vrcp.pop %v752
          %v766 = vmul.f32 1.0, %v765
          %v767 = vrcp.pop %v753
          %v768 = vmul.f32 1.0, %v767
          %v769 = vrcp.pop %v754
          %v770 = vmul.f32 1.0, %v769
          %v771 = vmul.f32 %v715, %v756
          %v772 = vmul.f32 %v716, %v758
          %v773 = vmul.f32 %v717, %v760
          %v774 = vmul.f32 %v718, %v762
          %v775 = vmul.f32 %v719, %v764
          %v776 = vmul.f32 %v720, %v766
          %v777 = vmul.f32 %v721, %v768
          %v778 = vmul.f32 %v722, %v770
          %vm779 = vcmask 261120
          %780 = vst.msk [vmem:[#allocation2] sm:$0xff] %vm779, %v771
          %781 = vst.msk [vmem:[#allocation2 + $0x8] sm:$0xff] %vm779, %v772
          %782 = vst.msk [vmem:[#allocation2 + $0x10] sm:$0xff] %vm779, %v773
          %783 = vst.msk [vmem:[#allocation2 + $0x18] sm:$0xff] %vm779, %v774
          %784 = vst.msk [vmem:[#allocation2 + $0x20] sm:$0xff] %vm779, %v775
          %785 = vst.msk [vmem:[#allocation2 + $0x28] sm:$0xff] %vm779, %v776
          %786 = vst.msk [vmem:[#allocation2 + $0x30] sm:$0xff] %vm779, %v777
          %787 = vst.msk [vmem:[#allocation2 + $0x38] sm:$0xff] %vm779, %v778
          %s788 = scalar_lea.vmem [#allocation3], 4
          %v789 = vld [vmem:[%s788] sm:$0xf]
          %790 = vxpose.xlu0.b32.start [1/16] %v789, 128
          %791 = vxpose.xlu0.b32.cont [2/16] 0.0, 128
          %792 = vxpose.xlu0.b32.cont [3/16] 0.0, 128
          %793 = vxpose.xlu0.b32.cont [4/16] 0.0, 128
          %794 = vxpose.xlu0.b32.cont [5/16] 0.0, 128
          %795 = vxpose.xlu0.b32.cont [6/16] 0.0, 128
          %796 = vxpose.xlu0.b32.cont [7/16] 0.0, 128
          %797 = vxpose.xlu0.b32.cont [8/16] 0.0, 128
          %798 = vxpose.xlu0.b32.cont [9/16] 0.0, 128
          %799 = vxpose.xlu0.b32.cont [10/16] 0.0, 128
          %800 = vxpose.xlu0.b32.cont [11/16] 0.0, 128
          %801 = vxpose.xlu0.b32.cont [12/16] 0.0, 128
          %802 = vxpose.xlu0.b32.cont [13/16] 0.0, 128
          %803 = vxpose.xlu0.b32.cont [14/16] 0.0, 128
          %804 = vxpose.xlu0.b32.cont [15/16] 0.0, 128
          %805 = vxpose.xlu0.b32.end [16/16] 0.0, 128
          %v806 = vpop.trf.xlu0
          %v807 = vpop.trf.xlu0
          %v808 = vpop.trf.xlu0
          %v809 = vpop.trf.xlu0
          %v810 = vpop.trf.xlu0
          %v811 = vpop.trf.xlu0
          %v812 = vpop.trf.xlu0
          %v813 = vpop.trf.xlu0
          %v814 = vpop.trf.xlu0
          %v815 = vpop.trf.xlu0
          %v816 = vpop.trf.xlu0
          %v817 = vpop.trf.xlu0
          %v818 = vpop.trf.xlu0
          %v819 = vpop.trf.xlu0
          %v820 = vpop.trf.xlu0
          %v821 = vpop.trf.xlu0
          %v822 = vld [vmem:[%s1] sm:$0x3]
          %v823 = vunpack.c.l.bf16 %v822
          %v825 = vsel %vm559, %v806, 0
          %v828 = vsel %vm559, %v807, 0
          %v831 = vsel %vm559, %v808, 0
          %v834 = vsel %vm559, %v809, 0
          %v837 = vsel %vm559, %v810, 0
          %v840 = vsel %vm559, %v811, 0
          %v843 = vsel %vm559, %v812, 0
          %v846 = vsel %vm559, %v813, 0
          %v849 = vsel %vm584, %v823, 0
          %851 = vmatprep.subr.mxu0 0.0
          %852 = vmatpush1.msra.mxu0 %v849
          %853 = vmatprep.subr.mxu0 0.0
          %854 = vmatpush1.msra.mxu0 0.0
          %855 = vmatprep.subr.mxu0 0.0
          %856 = vmatpush1.msra.mxu0 0.0
          %857 = vmatprep.subr.mxu0 0.0
          %858 = vmatpush1.msra.mxu0 0.0
          %859 = vmatprep.subr.mxu0 0.0
          %860 = vmatpush1.msra.mxu0 0.0
          %861 = vmatprep.subr.mxu0 0.0
          %862 = vmatpush1.msra.mxu0 0.0
          %863 = vmatprep.subr.mxu0 0.0
          %864 = vmatpush1.msra.mxu0 0.0
          %865 = vmatprep.subr.mxu0 0.0
          %866 = vmatpush1.msra.mxu0 0.0
          %867 = vmatprep.subr.mxu0 0.0
          %868 = vmatpush1.msra.mxu0 0.0
          %869 = vmatprep.subr.mxu0 0.0
          %870 = vmatpush1.msra.mxu0 0.0
          %871 = vmatprep.subr.mxu0 0.0
          %872 = vmatpush1.msra.mxu0 0.0
          %873 = vmatprep.subr.mxu0 0.0
          %874 = vmatpush1.msra.mxu0 0.0
          %875 = vmatprep.subr.mxu0 0.0
          %876 = vmatpush1.msra.mxu0 0.0
          %877 = vmatprep.subr.mxu0 0.0
          %878 = vmatpush1.msra.mxu0 0.0
          %879 = vmatprep.subr.mxu0 0.0
          %880 = vmatpush1.msra.mxu0 0.0
          %881 = vmatprep.subr.mxu0 0.0
          %882 = vmatpush1.msra.mxu0 0.0
          %883 = vmatprep.subr.mxu0 0.0
          %884 = vmatpush1.msra.mxu0 0.0
          %885 = vmatprep.subr.mxu0 0.0
          %886 = vmatpush1.msra.mxu0 0.0
          %887 = vmatprep.subr.mxu0 0.0
          %888 = vmatpush1.msra.mxu0 0.0
          %889 = vmatprep.subr.mxu0 0.0
          %890 = vmatpush1.msra.mxu0 0.0
          %891 = vmatprep.subr.mxu0 0.0
          %892 = vmatpush1.msra.mxu0 0.0
          %893 = vmatprep.subr.mxu0 0.0
          %894 = vmatpush1.msra.mxu0 0.0
          %895 = vmatprep.subr.mxu0 0.0
          %896 = vmatpush1.msra.mxu0 0.0
          %897 = vmatprep.subr.mxu0 0.0
          %898 = vmatpush1.msra.mxu0 0.0
          %899 = vmatprep.subr.mxu0 0.0
          %900 = vmatpush1.msra.mxu0 0.0
          %901 = vmatprep.subr.mxu0 0.0
          %902 = vmatpush1.msra.mxu0 0.0
          %903 = vmatprep.subr.mxu0 0.0
          %904 = vmatpush1.msra.mxu0 0.0
          %905 = vmatprep.subr.mxu0 0.0
          %906 = vmatpush1.msra.mxu0 0.0
          %907 = vmatprep.subr.mxu0 0.0
          %908 = vmatpush1.msra.mxu0 0.0
          %909 = vmatprep.subr.mxu0 0.0
          %910 = vmatpush1.msra.mxu0 0.0
          %911 = vmatprep.subr.mxu0 0.0
          %912 = vmatpush1.msra.mxu0 0.0
          %913 = vmatprep.subr.mxu0 0.0
          %914 = vmatpush1.msra.mxu0 0.0
          %915 = vmatprep.mubr.f32.mxu0 0.0
          %916 = vmatmul.mubr.f32.gmra.mrb[0].mxu0 %v825
          %v917 = vpop.f32.mrb[0].mxu0
          %v918 = vadd.f32 0.0, %v917
          %v919 = vpop.f32.mrb[0].mxu0
          %920 = vmatprep.mubr.f32.mxu0 0.0
          %921 = vmatmul.mubr.f32.gmra.mrb[0].mxu0 %v828
          %v922 = vpop.f32.mrb[0].mxu0
          %v923 = vadd.f32 0.0, %v922
          %v924 = vpop.f32.mrb[0].mxu0
          %925 = vmatprep.mubr.f32.mxu0 0.0
          %926 = vmatmul.mubr.f32.gmra.mrb[0].mxu0 %v831
          %v927 = vpop.f32.mrb[0].mxu0
          %v928 = vadd.f32 0.0, %v927
          %v929 = vpop.f32.mrb[0].mxu0
          %930 = vmatprep.mubr.f32.mxu0 0.0
          %931 = vmatmul.mubr.f32.gmra.mrb[0].mxu0 %v834
          %v932 = vpop.f32.mrb[0].mxu0
          %v933 = vadd.f32 0.0, %v932
          %v934 = vpop.f32.mrb[0].mxu0
          %935 = vmatprep.mubr.f32.mxu0 0.0
          %936 = vmatmul.mubr.f32.gmra.mrb[0].mxu0 %v837
          %v937 = vpop.f32.mrb[0].mxu0
          %v938 = vadd.f32 0.0, %v937
          %v939 = vpop.f32.mrb[0].mxu0
          %940 = vmatprep.mubr.f32.mxu0 0.0
          %941 = vmatmul.mubr.f32.gmra.mrb[0].mxu0 %v840
          %v942 = vpop.f32.mrb[0].mxu0
          %v943 = vadd.f32 0.0, %v942
          %v944 = vpop.f32.mrb[0].mxu0
          %945 = vmatprep.mubr.f32.mxu0 0.0
          %946 = vmatmul.mubr.f32.gmra.mrb[0].mxu0 %v843
          %v947 = vpop.f32.mrb[0].mxu0
          %v948 = vadd.f32 0.0, %v947
          %v949 = vpop.f32.mrb[0].mxu0
          %950 = vmatprep.mubr.f32.mxu0 0.0
          %951 = vmatmul.mubr.f32.gmra.mrb[0].mxu0 %v846
          %v952 = vpop.f32.mrb[0].mxu0
          %v953 = vadd.f32 0.0, %v952
          %v954 = vpop.f32.mrb[0].mxu0
          %955 = vdwg.mxu0
          %v956 = vld [vmem:[%s2] sm:$0x1]
          %v958 = vlaneseq
          %v959 = vshrl.u32 %v958, 7
          %v960 = vsub.s32 0, %v959
          %v961 = vrot.slane %v956, %v960
          %v963 = vmul.f32 %v918, %v961
          %v964 = vmul.f32 %v923, %v961
          %v965 = vmul.f32 %v928, %v961
          %v966 = vmul.f32 %v933, %v961
          %v967 = vmul.f32 %v938, %v961
          %v968 = vmul.f32 %v943, %v961
          %v969 = vmul.f32 %v948, %v961
          %v970 = vmul.f32 %v953, %v961
          %v971 = vld [vmem:[#allocation6] sm:$0x1]
          %v973 = vlaneseq
          %v974 = vshrl.u32 %v973, 7
          %v975 = vsub.s32 0, %v974
          %v976 = vrot.slane %v971, %v975
          %v978 = vadd.f32 %v963, %v976
          %v979 = vadd.f32 %v964, %v976
          %v980 = vadd.f32 %v965, %v976
          %v981 = vadd.f32 %v966, %v976
          %v982 = vadd.f32 %v967, %v976
          %v983 = vadd.f32 %v968, %v976
          %v984 = vadd.f32 %v969, %v976
          %v985 = vadd.f32 %v970, %v976
          %v986 = vxor.u32 %v978, 2147483648
          %v987 = vxor.u32 %v979, 2147483648
          %v988 = vxor.u32 %v980, 2147483648
          %v989 = vxor.u32 %v981, 2147483648
          %v990 = vxor.u32 %v982, 2147483648
          %v991 = vxor.u32 %v983, 2147483648
          %v992 = vxor.u32 %v984, 2147483648
          %v993 = vxor.u32 %v985, 2147483648
          %v994 = vmul.f32 %v986, 1.442695
          %v995 = vpow.pop %v994
          %v996 = vmul.f32 %v987, 1.442695
          %v997 = vpow.pop %v996
          %v998 = vmul.f32 %v988, 1.442695
          %v999 = vpow.pop %v998
          %v1000 = vmul.f32 %v989, 1.442695
          %v1001 = vpow.pop %v1000
          %v1002 = vmul.f32 %v990, 1.442695
          %v1003 = vpow.pop %v1002
          %v1004 = vmul.f32 %v991, 1.442695
          %v1005 = vpow.pop %v1004
          %v1006 = vmul.f32 %v992, 1.442695
          %v1007 = vpow.pop %v1006
          %v1008 = vmul.f32 %v993, 1.442695
          %v1009 = vpow.pop %v1008
          %v1010 = vadd.f32 %v995, 1.0
          %v1011 = vadd.f32 %v997, 1.0
          %v1012 = vadd.f32 %v999, 1.0
          %v1013 = vadd.f32 %v1001, 1.0
          %v1014 = vadd.f32 %v1003, 1.0
          %v1015 = vadd.f32 %v1005, 1.0
          %v1016 = vadd.f32 %v1007, 1.0
          %v1017 = vadd.f32 %v1009, 1.0
          %v1018 = vrcp.pop %v1010
          %v1019 = vmul.f32 1.0, %v1018
          %v1020 = vrcp.pop %v1011
          %v1021 = vmul.f32 1.0, %v1020
          %v1022 = vrcp.pop %v1012
          %v1023 = vmul.f32 1.0, %v1022
          %v1024 = vrcp.pop %v1013
          %v1025 = vmul.f32 1.0, %v1024
          %v1026 = vrcp.pop %v1014
          %v1027 = vmul.f32 1.0, %v1026
          %v1028 = vrcp.pop %v1015
          %v1029 = vmul.f32 1.0, %v1028
          %v1030 = vrcp.pop %v1016
          %v1031 = vmul.f32 1.0, %v1030
          %v1032 = vrcp.pop %v1017
          %v1033 = vmul.f32 1.0, %v1032
          %v1034 = vmul.f32 %v978, %v1019
          %v1035 = vmul.f32 %v979, %v1021
          %v1036 = vmul.f32 %v980, %v1023
          %v1037 = vmul.f32 %v981, %v1025
          %v1038 = vmul.f32 %v982, %v1027
          %v1039 = vmul.f32 %v983, %v1029
          %v1040 = vmul.f32 %v984, %v1031
          %v1041 = vmul.f32 %v985, %v1033
          %1042 = vst.msk [vmem:[#allocation2 + $0x40] sm:$0xff] %vm779, %v1034
          %1043 = vst.msk [vmem:[#allocation2 + $0x48] sm:$0xff] %vm779, %v1035
          %1044 = vst.msk [vmem:[#allocation2 + $0x50] sm:$0xff] %vm779, %v1036
          %1045 = vst.msk [vmem:[#allocation2 + $0x58] sm:$0xff] %vm779, %v1037
          %1046 = vst.msk [vmem:[#allocation2 + $0x60] sm:$0xff] %vm779, %v1038
          %1047 = vst.msk [vmem:[#allocation2 + $0x68] sm:$0xff] %vm779, %v1039
          %1048 = vst.msk [vmem:[#allocation2 + $0x70] sm:$0xff] %vm779, %v1040
          %1049 = vst.msk [vmem:[#allocation2 + $0x78] sm:$0xff] %vm779, %v1041
          %v1050 = vld [vmem:[#allocation2] sm:$0xff]
          %v1051 = vld [vmem:[#allocation2 + $0x8] sm:$0xff]
          %v1052 = vld [vmem:[#allocation2 + $0x10] sm:$0xff]
          %v1053 = vld [vmem:[#allocation2 + $0x18] sm:$0xff]
          %v1054 = vld [vmem:[#allocation2 + $0x20] sm:$0xff]
          %v1055 = vld [vmem:[#allocation2 + $0x28] sm:$0xff]
          %v1056 = vld [vmem:[#allocation2 + $0x30] sm:$0xff]
          %v1057 = vld [vmem:[#allocation2 + $0x38] sm:$0xff]
          %v1058 = vld [vmem:[#allocation2 + $0x40] sm:$0xff]
          %v1059 = vld [vmem:[#allocation2 + $0x48] sm:$0xff]
          %v1060 = vld [vmem:[#allocation2 + $0x50] sm:$0xff]
          %v1061 = vld [vmem:[#allocation2 + $0x58] sm:$0xff]
          %v1062 = vld [vmem:[#allocation2 + $0x60] sm:$0xff]
          %v1063 = vld [vmem:[#allocation2 + $0x68] sm:$0xff]
          %v1064 = vld [vmem:[#allocation2 + $0x70] sm:$0xff]
          %v1065 = vld [vmem:[#allocation2 + $0x78] sm:$0xff]
          %v1066 = vld [vmem:[#allocation8] sm:$0xf]
          %v1067 = vld [vmem:[#allocation8 + $0x4] sm:$0xf]
          %v1068 = vld [vmem:[#allocation8 + $0x8] sm:$0xf]
          %v1069 = vld [vmem:[#allocation8 + $0xc] sm:$0xf]
          %v1070 = vunpack.c.l.bf16 %v1066
          %v1071 = vunpack.c.l.bf16 %v1067
          %v1072 = vunpack.c.l.bf16 %v1068
          %v1073 = vunpack.c.l.bf16 %v1069
          %v1075 = vsel %vm779, %v1050, 0
          %v1078 = vsel %vm779, %v1051, 0
          %v1081 = vsel %vm779, %v1052, 0
          %v1084 = vsel %vm779, %v1053, 0
          %v1087 = vsel %vm779, %v1054, 0
          %v1090 = vsel %vm779, %v1055, 0
          %v1093 = vsel %vm779, %v1056, 0
          %v1096 = vsel %vm779, %v1057, 0
          %v1099 = vsel %vm779, %v1058, 0
          %v1102 = vsel %vm779, %v1059, 0
          %v1105 = vsel %vm779, %v1060, 0
          %v1108 = vsel %vm779, %v1061, 0
          %v1111 = vsel %vm779, %v1062, 0
          %v1114 = vsel %vm779, %v1063, 0
          %v1117 = vsel %vm779, %v1064, 0
          %v1120 = vsel %vm779, %v1065, 0
          %1122 = vmatprep.subr.mxu0 0.0
          %1123 = vmatpush1.msra.mxu0 %v1070
          %1124 = vmatprep.subr.mxu0 0.0
          %1125 = vmatpush1.msra.mxu0 %v1071
          %1126 = vmatprep.subr.mxu0 0.0
          %1127 = vmatpush1.msra.mxu0 %v1072
          %1128 = vmatprep.subr.mxu0 0.0
          %1129 = vmatpush1.msra.mxu0 %v1073
          %1130 = vmatprep.subr.mxu0 0.0
          %1131 = vmatpush1.msra.mxu0 0.0
          %1132 = vmatprep.subr.mxu0 0.0
          %1133 = vmatpush1.msra.mxu0 0.0
          %1134 = vmatprep.subr.mxu0 0.0
          %1135 = vmatpush1.msra.mxu0 0.0
          %1136 = vmatprep.subr.mxu0 0.0
          %1137 = vmatpush1.msra.mxu0 0.0
          %1138 = vmatprep.subr.mxu0 0.0
          %1139 = vmatpush1.msra.mxu0 0.0
          %1140 = vmatprep.subr.mxu0 0.0
          %1141 = vmatpush1.msra.mxu0 0.0
          %1142 = vmatprep.subr.mxu0 0.0
          %1143 = vmatpush1.msra.mxu0 0.0
          %1144 = vmatprep.subr.mxu0 0.0
          %1145 = vmatpush1.msra.mxu0 0.0
          %1146 = vmatprep.subr.mxu0 0.0
          %1147 = vmatpush1.msra.mxu0 0.0
          %1148 = vmatprep.subr.mxu0 0.0
          %1149 = vmatpush1.msra.mxu0 0.0
          %1150 = vmatprep.subr.mxu0 0.0
          %1151 = vmatpush1.msra.mxu0 0.0
          %1152 = vmatprep.subr.mxu0 0.0
          %1153 = vmatpush1.msra.mxu0 0.0
          %1154 = vmatprep.subr.mxu0 0.0
          %1155 = vmatpush1.msra.mxu0 0.0
          %1156 = vmatprep.subr.mxu0 0.0
          %1157 = vmatpush1.msra.mxu0 0.0
          %1158 = vmatprep.subr.mxu0 0.0
          %1159 = vmatpush1.msra.mxu0 0.0
          %1160 = vmatprep.subr.mxu0 0.0
          %1161 = vmatpush1.msra.mxu0 0.0
          %1162 = vmatprep.subr.mxu0 0.0
          %1163 = vmatpush1.msra.mxu0 0.0
          %1164 = vmatprep.subr.mxu0 0.0
          %1165 = vmatpush1.msra.mxu0 0.0
          %1166 = vmatprep.subr.mxu0 0.0
          %1167 = vmatpush1.msra.mxu0 0.0
          %1168 = vmatprep.subr.mxu0 0.0
          %1169 = vmatpush1.msra.mxu0 0.0
          %1170 = vmatprep.subr.mxu0 0.0
          %1171 = vmatpush1.msra.mxu0 0.0
          %1172 = vmatprep.subr.mxu0 0.0
          %1173 = vmatpush1.msra.mxu0 0.0
          %1174 = vmatprep.subr.mxu0 0.0
          %1175 = vmatpush1.msra.mxu0 0.0
          %1176 = vmatprep.subr.mxu0 0.0
          %1177 = vmatpush1.msra.mxu0 0.0
          %1178 = vmatprep.subr.mxu0 0.0
          %1179 = vmatpush1.msra.mxu0 0.0
          %1180 = vmatprep.subr.mxu0 0.0
          %1181 = vmatpush1.msra.mxu0 0.0
          %1182 = vmatprep.subr.mxu0 0.0
          %1183 = vmatpush1.msra.mxu0 0.0
          %1184 = vmatprep.subr.mxu0 0.0
          %1185 = vmatpush1.msra.mxu0 0.0
          %1186 = vmatprep.mubr.f32.mxu0 0.0
          %1187 = vmatmul.mubr.f32.gmra.mrb[0].mxu0 %v1075
          %v1188 = vpop.f32.mrb[0].mxu0
          %v1189 = vadd.f32 0.0, %v1188
          %v1190 = vpop.f32.mrb[0].mxu0
          %1191 = vmatprep.mubr.f32.mxu0 0.0
          %1192 = vmatmul.mubr.f32.gmra.mrb[0].mxu0 %v1078
          %v1193 = vpop.f32.mrb[0].mxu0
          %v1194 = vadd.f32 0.0, %v1193
          %v1195 = vpop.f32.mrb[0].mxu0
          %1196 = vmatprep.mubr.f32.mxu0 0.0
          %1197 = vmatmul.mubr.f32.gmra.mrb[0].mxu0 %v1081
          %v1198 = vpop.f32.mrb[0].mxu0
          %v1199 = vadd.f32 0.0, %v1198
          %v1200 = vpop.f32.mrb[0].mxu0
          %1201 = vmatprep.mubr.f32.mxu0 0.0
          %1202 = vmatmul.mubr.f32.gmra.mrb[0].mxu0 %v1084
          %v1203 = vpop.f32.mrb[0].mxu0
          %v1204 = vadd.f32 0.0, %v1203
          %v1205 = vpop.f32.mrb[0].mxu0
          %1206 = vmatprep.mubr.f32.mxu0 0.0
          %1207 = vmatmul.mubr.f32.gmra.mrb[0].mxu0 %v1087
          %v1208 = vpop.f32.mrb[0].mxu0
          %v1209 = vadd.f32 0.0, %v1208
          %v1210 = vpop.f32.mrb[0].mxu0
          %1211 = vmatprep.mubr.f32.mxu0 0.0
          %1212 = vmatmul.mubr.f32.gmra.mrb[0].mxu0 %v1090
          %v1213 = vpop.f32.mrb[0].mxu0
          %v1214 = vadd.f32 0.0, %v1213
          %v1215 = vpop.f32.mrb[0].mxu0
          %1216 = vmatprep.mubr.f32.mxu0 0.0
          %1217 = vmatmul.mubr.f32.gmra.mrb[0].mxu0 %v1093
          %v1218 = vpop.f32.mrb[0].mxu0
          %v1219 = vadd.f32 0.0, %v1218
          %v1220 = vpop.f32.mrb[0].mxu0
          %1221 = vmatprep.mubr.f32.mxu0 0.0
          %1222 = vmatmul.mubr.f32.gmra.mrb[0].mxu0 %v1096
          %v1223 = vpop.f32.mrb[0].mxu0
          %v1224 = vadd.f32 0.0, %v1223
          %v1225 = vpop.f32.mrb[0].mxu0
          %1226 = vmatprep.mubr.f32.mxu0 0.0
          %1227 = vmatmul.mubr.f32.gmra.mrb[0].mxu0 %v1099
          %v1228 = vpop.f32.mrb[0].mxu0
          %v1229 = vadd.f32 0.0, %v1228
          %v1230 = vpop.f32.mrb[0].mxu0
          %1231 = vmatprep.mubr.f32.mxu0 0.0
          %1232 = vmatmul.mubr.f32.gmra.mrb[0].mxu0 %v1102
          %v1233 = vpop.f32.mrb[0].mxu0
          %v1234 = vadd.f32 0.0, %v1233
          %v1235 = vpop.f32.mrb[0].mxu0
          %1236 = vmatprep.mubr.f32.mxu0 0.0
          %1237 = vmatmul.mubr.f32.gmra.mrb[0].mxu0 %v1105
          %v1238 = vpop.f32.mrb[0].mxu0
          %v1239 = vadd.f32 0.0, %v1238
          %v1240 = vpop.f32.mrb[0].mxu0
          %1241 = vmatprep.mubr.f32.mxu0 0.0
          %1242 = vmatmul.mubr.f32.gmra.mrb[0].mxu0 %v1108
          %v1243 = vpop.f32.mrb[0].mxu0
          %v1244 = vadd.f32 0.0, %v1243
          %v1245 = vpop.f32.mrb[0].mxu0
          %1246 = vmatprep.mubr.f32.mxu0 0.0
          %1247 = vmatmul.mubr.f32.gmra.mrb[0].mxu0 %v1111
          %v1248 = vpop.f32.mrb[0].mxu0
          %v1249 = vadd.f32 0.0, %v1248
          %v1250 = vpop.f32.mrb[0].mxu0
          %1251 = vmatprep.mubr.f32.mxu0 0.0
          %1252 = vmatmul.mubr.f32.gmra.mrb[0].mxu0 %v1114
          %v1253 = vpop.f32.mrb[0].mxu0
          %v1254 = vadd.f32 0.0, %v1253
          %v1255 = vpop.f32.mrb[0].mxu0
          %1256 = vmatprep.mubr.f32.mxu0 0.0
          %1257 = vmatmul.mubr.f32.gmra.mrb[0].mxu0 %v1117
          %v1258 = vpop.f32.mrb[0].mxu0
          %v1259 = vadd.f32 0.0, %v1258
          %v1260 = vpop.f32.mrb[0].mxu0
          %1261 = vmatprep.mubr.f32.mxu0 0.0
          %1262 = vmatmul.mubr.f32.gmra.mrb[0].mxu0 %v1120
          %v1263 = vpop.f32.mrb[0].mxu0
          %v1264 = vadd.f32 0.0, %v1263
          %v1265 = vpop.f32.mrb[0].mxu0
          %1266 = vdwg.mxu0
          %v1267 = vadd.f32 %v1050, %v1189
          %v1268 = vadd.f32 %v1051, %v1194
          %v1269 = vadd.f32 %v1052, %v1199
          %v1270 = vadd.f32 %v1053, %v1204
          %v1271 = vadd.f32 %v1054, %v1209
          %v1272 = vadd.f32 %v1055, %v1214
          %v1273 = vadd.f32 %v1056, %v1219
          %v1274 = vadd.f32 %v1057, %v1224
          %v1275 = vadd.f32 %v1058, %v1229
          %v1276 = vadd.f32 %v1059, %v1234
          %v1277 = vadd.f32 %v1060, %v1239
          %v1278 = vadd.f32 %v1061, %v1244
          %v1279 = vadd.f32 %v1062, %v1249
          %v1280 = vadd.f32 %v1063, %v1254
          %v1281 = vadd.f32 %v1064, %v1259
          %v1282 = vadd.f32 %v1065, %v1264
          %v1283 = vld [vmem:[#allocation9] sm:$0x1]
          %v1285 = vlaneseq
          %v1286 = vshrl.u32 %v1285, 7
          %v1287 = vsub.s32 0, %v1286
          %v1288 = vrot.slane %v1283, %v1287
          %v1290 = vadd.f32 %v1267, %v1288
          %v1291 = vadd.f32 %v1268, %v1288
          %v1292 = vadd.f32 %v1269, %v1288
          %v1293 = vadd.f32 %v1270, %v1288
          %v1294 = vadd.f32 %v1271, %v1288
          %v1295 = vadd.f32 %v1272, %v1288
          %v1296 = vadd.f32 %v1273, %v1288
          %v1297 = vadd.f32 %v1274, %v1288
          %v1298 = vadd.f32 %v1275, %v1288
          %v1299 = vadd.f32 %v1276, %v1288
          %v1300 = vadd.f32 %v1277, %v1288
          %v1301 = vadd.f32 %v1278, %v1288
          %v1302 = vadd.f32 %v1279, %v1288
          %v1303 = vadd.f32 %v1280, %v1288
          %v1304 = vadd.f32 %v1281, %v1288
          %v1305 = vadd.f32 %v1282, %v1288
          %1306 = vst.msk [vmem:[#allocation2] sm:$0xff] %vm779, %v1290
          %1307 = vst.msk [vmem:[#allocation2 + $0x8] sm:$0xff] %vm779, %v1291
          %1308 = vst.msk [vmem:[#allocation2 + $0x10] sm:$0xff] %vm779, %v1292
          %1309 = vst.msk [vmem:[#allocation2 + $0x18] sm:$0xff] %vm779, %v1293
          %1310 = vst.msk [vmem:[#allocation2 + $0x20] sm:$0xff] %vm779, %v1294
          %1311 = vst.msk [vmem:[#allocation2 + $0x28] sm:$0xff] %vm779, %v1295
          %1312 = vst.msk [vmem:[#allocation2 + $0x30] sm:$0xff] %vm779, %v1296
          %1313 = vst.msk [vmem:[#allocation2 + $0x38] sm:$0xff] %vm779, %v1297
          %1314 = vst.msk [vmem:[#allocation2 + $0x40] sm:$0xff] %vm779, %v1298
          %1315 = vst.msk [vmem:[#allocation2 + $0x48] sm:$0xff] %vm779, %v1299
          %1316 = vst.msk [vmem:[#allocation2 + $0x50] sm:$0xff] %vm779, %v1300
          %1317 = vst.msk [vmem:[#allocation2 + $0x58] sm:$0xff] %vm779, %v1301
          %1318 = vst.msk [vmem:[#allocation2 + $0x60] sm:$0xff] %vm779, %v1302
          %1319 = vst.msk [vmem:[#allocation2 + $0x68] sm:$0xff] %vm779, %v1303
          %1320 = vst.msk [vmem:[#allocation2 + $0x70] sm:$0xff] %vm779, %v1304
          %1321 = vst.msk [vmem:[#allocation2 + $0x78] sm:$0xff] %vm779, %v1305
        $region104: #{tpu_custom_call.1} parent=67 // pred_fallthru
          _
        %v1322 = vld [vmem:[#allocation2] sm:$0xff]
        %v1323 = vld [vmem:[#allocation2 + $0x8] sm:$0xff]
        %v1324 = vld [vmem:[#allocation2 + $0x10] sm:$0xff]
        %v1325 = vld [vmem:[#allocation2 + $0x18] sm:$0xff]
        %v1326 = vld [vmem:[#allocation2 + $0x20] sm:$0xff]
        %v1327 = vld [vmem:[#allocation2 + $0x28] sm:$0xff]
        %v1328 = vld [vmem:[#allocation2 + $0x30] sm:$0xff]
        %v1329 = vld [vmem:[#allocation2 + $0x38] sm:$0xff]
        %v1330 = vld [vmem:[#allocation2 + $0x40] sm:$0xff]
        %v1331 = vld [vmem:[#allocation2 + $0x48] sm:$0xff]
        %v1332 = vld [vmem:[#allocation2 + $0x50] sm:$0xff]
        %v1333 = vld [vmem:[#allocation2 + $0x58] sm:$0xff]
        %v1334 = vld [vmem:[#allocation2 + $0x60] sm:$0xff]
        %v1335 = vld [vmem:[#allocation2 + $0x68] sm:$0xff]
        %v1336 = vld [vmem:[#allocation2 + $0x70] sm:$0xff]
        %v1337 = vld [vmem:[#allocation2 + $0x78] sm:$0xff]
        %s1338 = smul.u32 %s34, 4
        %s1339 = smul.addr %s1338, 4
        %s1340 = scalar_lea.vmem [#allocation11], %s1339
        %v1341 = vld [vmem:[%s1340] sm:$0xf]
        %v1342 = vld [vmem:[%s1340 + $0x4] sm:$0xf]
        %v1343 = vld [vmem:[%s1340 + $0x8] sm:$0xf]
        %v1344 = vld [vmem:[%s1340 + $0xc] sm:$0xf]
        %v1345 = vunpack.c.l.bf16 %v1341
        %v1346 = vunpack.c.l.bf16 %v1342
        %v1347 = vunpack.c.l.bf16 %v1343
        %v1348 = vunpack.c.l.bf16 %v1344
        %s1349 = scalar_lea.vmem %s7, %s34
        %v1350 = vld [vmem:[%s1349] sm:$0x1]
        %v1352 = vlaneseq
        %v1353 = vshrl.u32 %v1352, 7
        %v1354 = vsub.s32 0, %v1353
        %v1355 = vrot.slane %v1350, %v1354
        %vm1357 = vcmask 261120
        %v1359 = vsel %vm1357, %v1322, 0
        %v1362 = vsel %vm1357, %v1323, 0
        %v1365 = vsel %vm1357, %v1324, 0
        %v1368 = vsel %vm1357, %v1325, 0
        %v1371 = vsel %vm1357, %v1326, 0
        %v1374 = vsel %vm1357, %v1327, 0
        %v1377 = vsel %vm1357, %v1328, 0
        %v1380 = vsel %vm1357, %v1329, 0
        %v1383 = vsel %vm1357, %v1330, 0
        %v1386 = vsel %vm1357, %v1331, 0
        %v1389 = vsel %vm1357, %v1332, 0
        %v1392 = vsel %vm1357, %v1333, 0
        %v1395 = vsel %vm1357, %v1334, 0
        %v1398 = vsel %vm1357, %v1335, 0
        %v1401 = vsel %vm1357, %v1336, 0
        %v1404 = vsel %vm1357, %v1337, 0
        %1406 = vmatprep.subr.mxu0 0.0
        %1407 = vmatpush1.msra.mxu0 %v1345
        %1408 = vmatprep.subr.mxu0 0.0
        %1409 = vmatpush1.msra.mxu0 %v1346
        %1410 = vmatprep.subr.mxu0 0.0
        %1411 = vmatpush1.msra.mxu0 %v1347
        %1412 = vmatprep.subr.mxu0 0.0
        %1413 = vmatpush1.msra.mxu0 %v1348
        %1414 = vmatprep.subr.mxu0 0.0
        %1415 = vmatpush1.msra.mxu0 0.0
        %1416 = vmatprep.subr.mxu0 0.0
        %1417 = vmatpush1.msra.mxu0 0.0
        %1418 = vmatprep.subr.mxu0 0.0
        %1419 = vmatpush1.msra.mxu0 0.0
        %1420 = vmatprep.subr.mxu0 0.0
        %1421 = vmatpush1.msra.mxu0 0.0
        %1422 = vmatprep.subr.mxu0 0.0
        %1423 = vmatpush1.msra.mxu0 0.0
        %1424 = vmatprep.subr.mxu0 0.0
        %1425 = vmatpush1.msra.mxu0 0.0
        %1426 = vmatprep.subr.mxu0 0.0
        %1427 = vmatpush1.msra.mxu0 0.0
        %1428 = vmatprep.subr.mxu0 0.0
        %1429 = vmatpush1.msra.mxu0 0.0
        %1430 = vmatprep.subr.mxu0 0.0
        %1431 = vmatpush1.msra.mxu0 0.0
        %1432 = vmatprep.subr.mxu0 0.0
        %1433 = vmatpush1.msra.mxu0 0.0
        %1434 = vmatprep.subr.mxu0 0.0
        %1435 = vmatpush1.msra.mxu0 0.0
        %1436 = vmatprep.subr.mxu0 0.0
        %1437 = vmatpush1.msra.mxu0 0.0
        %1438 = vmatprep.subr.mxu0 0.0
        %1439 = vmatpush1.msra.mxu0 0.0
        %1440 = vmatprep.subr.mxu0 0.0
        %1441 = vmatpush1.msra.mxu0 0.0
        %1442 = vmatprep.subr.mxu0 0.0
        %1443 = vmatpush1.msra.mxu0 0.0
        %1444 = vmatprep.subr.mxu0 0.0
        %1445 = vmatpush1.msra.mxu0 0.0
        %1446 = vmatprep.subr.mxu0 0.0
        %1447 = vmatpush1.msra.mxu0 0.0
        %1448 = vmatprep.subr.mxu0 0.0
        %1449 = vmatpush1.msra.mxu0 0.0
        %1450 = vmatprep.subr.mxu0 0.0
        %1451 = vmatpush1.msra.mxu0 0.0
        %1452 = vmatprep.subr.mxu0 0.0
        %1453 = vmatpush1.msra.mxu0 0.0
        %1454 = vmatprep.subr.mxu0 0.0
        %1455 = vmatpush1.msra.mxu0 0.0
        %1456 = vmatprep.subr.mxu0 0.0
        %1457 = vmatpush1.msra.mxu0 0.0
        %1458 = vmatprep.subr.mxu0 0.0
        %1459 = vmatpush1.msra.mxu0 0.0
        %1460 = vmatprep.subr.mxu0 0.0
        %1461 = vmatpush1.msra.mxu0 0.0
        %1462 = vmatprep.subr.mxu0 0.0
        %1463 = vmatpush1.msra.mxu0 0.0
        %1464 = vmatprep.subr.mxu0 0.0
        %1465 = vmatpush1.msra.mxu0 0.0
        %1466 = vmatprep.subr.mxu0 0.0
        %1467 = vmatpush1.msra.mxu0 0.0
        %1468 = vmatprep.subr.mxu0 0.0
        %1469 = vmatpush1.msra.mxu0 0.0
        %1470 = vmatprep.mubr.f32.mxu0 0.0
        %1471 = vmatmul.mubr.f32.gmra.mrb[0].mxu0 %v1359
        %v1472 = vpop.f32.mrb[0].mxu0
        %v1473 = vadd.f32 %v1355, %v1472
        %v1474 = vpop.f32.mrb[0].mxu0
        %1475 = vmatprep.mubr.f32.mxu0 0.0
        %1476 = vmatmul.mubr.f32.gmra.mrb[0].mxu0 %v1362
        %v1477 = vpop.f32.mrb[0].mxu0
        %v1478 = vadd.f32 %v1355, %v1477
        %v1479 = vpop.f32.mrb[0].mxu0
        %1480 = vmatprep.mubr.f32.mxu0 0.0
        %1481 = vmatmul.mubr.f32.gmra.mrb[0].mxu0 %v1365
        %v1482 = vpop.f32.mrb[0].mxu0
        %v1483 = vadd.f32 %v1355, %v1482
        %v1484 = vpop.f32.mrb[0].mxu0
        %1485 = vmatprep.mubr.f32.mxu0 0.0
        %1486 = vmatmul.mubr.f32.gmra.mrb[0].mxu0 %v1368
        %v1487 = vpop.f32.mrb[0].mxu0
        %v1488 = vadd.f32 %v1355, %v1487
        %v1489 = vpop.f32.mrb[0].mxu0
        %1490 = vmatprep.mubr.f32.mxu0 0.0
        %1491 = vmatmul.mubr.f32.gmra.mrb[0].mxu0 %v1371
        %v1492 = vpop.f32.mrb[0].mxu0
        %v1493 = vadd.f32 %v1355, %v1492
        %v1494 = vpop.f32.mrb[0].mxu0
        %1495 = vmatprep.mubr.f32.mxu0 0.0
        %1496 = vmatmul.mubr.f32.gmra.mrb[0].mxu0 %v1374
        %v1497 = vpop.f32.mrb[0].mxu0
        %v1498 = vadd.f32 %v1355, %v1497
        %v1499 = vpop.f32.mrb[0].mxu0
        %1500 = vmatprep.mubr.f32.mxu0 0.0
        %1501 = vmatmul.mubr.f32.gmra.mrb[0].mxu0 %v1377
        %v1502 = vpop.f32.mrb[0].mxu0
        %v1503 = vadd.f32 %v1355, %v1502
        %v1504 = vpop.f32.mrb[0].mxu0
        %1505 = vmatprep.mubr.f32.mxu0 0.0
        %1506 = vmatmul.mubr.f32.gmra.mrb[0].mxu0 %v1380
        %v1507 = vpop.f32.mrb[0].mxu0
        %v1508 = vadd.f32 %v1355, %v1507
        %v1509 = vpop.f32.mrb[0].mxu0
        %1510 = vmatprep.mubr.f32.mxu0 0.0
        %1511 = vmatmul.mubr.f32.gmra.mrb[0].mxu0 %v1383
        %v1512 = vpop.f32.mrb[0].mxu0
        %v1513 = vadd.f32 %v1355, %v1512
        %v1514 = vpop.f32.mrb[0].mxu0
        %1515 = vmatprep.mubr.f32.mxu0 0.0
        %1516 = vmatmul.mubr.f32.gmra.mrb[0].mxu0 %v1386
        %v1517 = vpop.f32.mrb[0].mxu0
        %v1518 = vadd.f32 %v1355, %v1517
        %v1519 = vpop.f32.mrb[0].mxu0
        %1520 = vmatprep.mubr.f32.mxu0 0.0
        %1521 = vmatmul.mubr.f32.gmra.mrb[0].mxu0 %v1389
        %v1522 = vpop.f32.mrb[0].mxu0
        %v1523 = vadd.f32 %v1355, %v1522
        %v1524 = vpop.f32.mrb[0].mxu0
        %1525 = vmatprep.mubr.f32.mxu0 0.0
        %1526 = vmatmul.mubr.f32.gmra.mrb[0].mxu0 %v1392
        %v1527 = vpop.f32.mrb[0].mxu0
        %v1528 = vadd.f32 %v1355, %v1527
        %v1529 = vpop.f32.mrb[0].mxu0
        %1530 = vmatprep.mubr.f32.mxu0 0.0
        %1531 = vmatmul.mubr.f32.gmra.mrb[0].mxu0 %v1395
        %v1532 = vpop.f32.mrb[0].mxu0
        %v1533 = vadd.f32 %v1355, %v1532
        %v1534 = vpop.f32.mrb[0].mxu0
        %1535 = vmatprep.mubr.f32.mxu0 0.0
        %1536 = vmatmul.mubr.f32.gmra.mrb[0].mxu0 %v1398
        %v1537 = vpop.f32.mrb[0].mxu0
        %v1538 = vadd.f32 %v1355, %v1537
        %v1539 = vpop.f32.mrb[0].mxu0
        %1540 = vmatprep.mubr.f32.mxu0 0.0
        %1541 = vmatmul.mubr.f32.gmra.mrb[0].mxu0 %v1401
        %v1542 = vpop.f32.mrb[0].mxu0
        %v1543 = vadd.f32 %v1355, %v1542
        %v1544 = vpop.f32.mrb[0].mxu0
        %1545 = vmatprep.mubr.f32.mxu0 0.0
        %1546 = vmatmul.mubr.f32.gmra.mrb[0].mxu0 %v1404
        %v1547 = vpop.f32.mrb[0].mxu0
        %v1548 = vadd.f32 %v1355, %v1547
        %v1549 = vpop.f32.mrb[0].mxu0
        %1550 = vdwg.mxu0
        %s1551 = smul.addr %s1338, 4
        %s1552 = scalar_lea.vmem [#allocation12], %s1551
        %v1553 = vld [vmem:[%s1552] sm:$0xf]
        %v1554 = vld [vmem:[%s1552 + $0x4] sm:$0xf]
        %v1555 = vld [vmem:[%s1552 + $0x8] sm:$0xf]
        %v1556 = vld [vmem:[%s1552 + $0xc] sm:$0xf]
        %v1557 = vunpack.c.l.bf16 %v1553
        %v1558 = vunpack.c.l.bf16 %v1554
        %v1559 = vunpack.c.l.bf16 %v1555
        %v1560 = vunpack.c.l.bf16 %v1556
        %1569 = vrot.lane.b32.xlu0 %v1473, 96
        %v1570 = vpop.permute.xlu0 %1569
        %1571 = vrot.lane.b32.xlu0 %v1478, 96
        %v1572 = vpop.permute.xlu0 %1571
        %1573 = vrot.lane.b32.xlu0 %v1483, 96
        %v1574 = vpop.permute.xlu0 %1573
        %1575 = vrot.lane.b32.xlu0 %v1488, 96
        %v1576 = vpop.permute.xlu0 %1575
        %1577 = vrot.lane.b32.xlu0 %v1493, 96
        %v1578 = vpop.permute.xlu0 %1577
        %1579 = vrot.lane.b32.xlu0 %v1498, 96
        %v1580 = vpop.permute.xlu0 %1579
        %1581 = vrot.lane.b32.xlu0 %v1503, 96
        %v1582 = vpop.permute.xlu0 %1581
        %1583 = vrot.lane.b32.xlu0 %v1508, 96
        %v1584 = vpop.permute.xlu0 %1583
        %vm1585 = vcmask 64512
        %v1586 = vsel %vm1585, %v1473, 0
        %v1588 = vsel %vm1585, %v1478, 0
        %v1590 = vsel %vm1585, %v1483, 0
        %v1592 = vsel %vm1585, %v1488, 0
        %v1594 = vsel %vm1585, %v1493, 0
        %v1596 = vsel %vm1585, %v1498, 0
        %v1598 = vsel %vm1585, %v1503, 0
        %v1600 = vsel %vm1585, %v1508, 0
        %v1602 = vsel %vm1585, %v1570, 0
        %v1604 = vsel %vm1585, %v1572, 0
        %v1606 = vsel %vm1585, %v1574, 0
        %v1608 = vsel %vm1585, %v1576, 0
        %v1610 = vsel %vm1585, %v1578, 0
        %v1612 = vsel %vm1585, %v1580, 0
        %v1614 = vsel %vm1585, %v1582, 0
        %v1616 = vsel %vm1585, %v1584, 0
        %1618 = vmatprep.subr.mxu0 0.0
        %1619 = vmatpush1.xpose.msra.mxu0 %v1602
        %1620 = vmatprep.subr.mxu0 0.0
        %1621 = vmatpush1.xpose.msra.mxu0 %v1604
        %1622 = vmatprep.subr.mxu0 0.0
        %1623 = vmatpush1.xpose.msra.mxu0 %v1606
        %1624 = vmatprep.subr.mxu0 0.0
        %1625 = vmatpush1.xpose.msra.mxu0 %v1608
        %1626 = vmatprep.subr.mxu0 0.0
        %1627 = vmatpush1.xpose.msra.mxu0 %v1610
        %1628 = vmatprep.subr.mxu0 0.0
        %1629 = vmatpush1.xpose.msra.mxu0 %v1612
        %1630 = vmatprep.subr.mxu0 0.0
        %1631 = vmatpush1.xpose.msra.mxu0 %v1614
        %1632 = vmatprep.subr.mxu0 0.0
        %1633 = vmatpush1.xpose.msra.mxu0 %v1616
        %1634 = vmatprep.subr.mxu0 0.0
        %1635 = vmatpush1.xpose.msra.mxu0 0.0
        %1636 = vmatprep.subr.mxu0 0.0
        %1637 = vmatpush1.xpose.msra.mxu0 0.0
        %1638 = vmatprep.subr.mxu0 0.0
        %1639 = vmatpush1.xpose.msra.mxu0 0.0
        %1640 = vmatprep.subr.mxu0 0.0
        %1641 = vmatpush1.xpose.msra.mxu0 0.0
        %1642 = vmatprep.subr.mxu0 0.0
        %1643 = vmatpush1.xpose.msra.mxu0 0.0
        %1644 = vmatprep.subr.mxu0 0.0
        %1645 = vmatpush1.xpose.msra.mxu0 0.0
        %1646 = vmatprep.subr.mxu0 0.0
        %1647 = vmatpush1.xpose.msra.mxu0 0.0
        %1648 = vmatprep.subr.mxu0 0.0
        %1649 = vmatpush1.xpose.msra.mxu0 0.0
        %1650 = vmatprep.subr.mxu0 0.0
        %1651 = vmatpush1.xpose.msra.mxu0 0.0
        %1652 = vmatprep.subr.mxu0 0.0
        %1653 = vmatpush1.xpose.msra.mxu0 0.0
        %1654 = vmatprep.subr.mxu0 0.0
        %1655 = vmatpush1.xpose.msra.mxu0 0.0
        %1656 = vmatprep.subr.mxu0 0.0
        %1657 = vmatpush1.xpose.msra.mxu0 0.0
        %1658 = vmatprep.subr.mxu0 0.0
        %1659 = vmatpush1.xpose.msra.mxu0 0.0
        %1660 = vmatprep.subr.mxu0 0.0
        %1661 = vmatpush1.xpose.msra.mxu0 0.0
        %1662 = vmatprep.subr.mxu0 0.0
        %1663 = vmatpush1.xpose.msra.mxu0 0.0
        %1664 = vmatprep.subr.mxu0 0.0
        %1665 = vmatpush1.xpose.msra.mxu0 0.0
        %1666 = vmatprep.subr.mxu0 0.0
        %1667 = vmatpush1.xpose.msra.mxu0 0.0
        %1668 = vmatprep.subr.mxu0 0.0
        %1669 = vmatpush1.xpose.msra.mxu0 0.0
        %1670 = vmatprep.subr.mxu0 0.0
        %1671 = vmatpush1.xpose.msra.mxu0 0.0
        %1672 = vmatprep.subr.mxu0 0.0
        %1673 = vmatpush1.xpose.msra.mxu0 0.0
        %1674 = vmatprep.subr.mxu0 0.0
        %1675 = vmatpush1.xpose.msra.mxu0 0.0
        %1676 = vmatprep.subr.mxu0 0.0
        %1677 = vmatpush1.xpose.msra.mxu0 0.0
        %1678 = vmatprep.subr.mxu0 0.0
        %1679 = vmatpush1.xpose.msra.mxu0 0.0
        %1680 = vmatprep.subr.mxu0 0.0
        %1681 = vmatpush1.xpose.msra.mxu0 0.0
        %1682 = vmatprep.mubr.f32.mxu0 0.0
        %1683 = vmatmul.mubr.f32.gmra.mrb[0].mxu0 %v1586
        %v1684 = vpop.f32.mrb[0].mxu0
        %v1685 = vadd.f32 0.0, %v1684
        %v1686 = vpop.f32.mrb[0].mxu0
        %1687 = vmatprep.mubr.f32.mxu0 0.0
        %1688 = vmatmul.mubr.f32.gmra.mrb[0].mxu0 %v1588
        %v1689 = vpop.f32.mrb[0].mxu0
        %v1690 = vadd.f32 0.0, %v1689
        %v1691 = vpop.f32.mrb[0].mxu0
        %1692 = vmatprep.mubr.f32.mxu0 0.0
        %1693 = vmatmul.mubr.f32.gmra.mrb[0].mxu0 %v1590
        %v1694 = vpop.f32.mrb[0].mxu0
        %v1695 = vadd.f32 0.0, %v1694
        %v1696 = vpop.f32.mrb[0].mxu0
        %1697 = vmatprep.mubr.f32.mxu0 0.0
        %1698 = vmatmul.mubr.f32.gmra.mrb[0].mxu0 %v1592
        %v1699 = vpop.f32.mrb[0].mxu0
        %v1700 = vadd.f32 0.0, %v1699
        %v1701 = vpop.f32.mrb[0].mxu0
        %1702 = vmatprep.mubr.f32.mxu0 0.0
        %1703 = vmatmul.mubr.f32.gmra.mrb[0].mxu0 %v1594
        %v1704 = vpop.f32.mrb[0].mxu0
        %v1705 = vadd.f32 0.0, %v1704
        %v1706 = vpop.f32.mrb[0].mxu0
        %1707 = vmatprep.mubr.f32.mxu0 0.0
        %1708 = vmatmul.mubr.f32.gmra.mrb[0].mxu0 %v1596
        %v1709 = vpop.f32.mrb[0].mxu0
        %v1710 = vadd.f32 0.0, %v1709
        %v1711 = vpop.f32.mrb[0].mxu0
        %1712 = vmatprep.mubr.f32.mxu0 0.0
        %1713 = vmatmul.mubr.f32.gmra.mrb[0].mxu0 %v1598
        %v1714 = vpop.f32.mrb[0].mxu0
        %v1715 = vadd.f32 0.0, %v1714
        %v1716 = vpop.f32.mrb[0].mxu0
        %1717 = vmatprep.mubr.f32.mxu0 0.0
        %1718 = vmatmul.mubr.f32.gmra.mrb[0].mxu0 %v1600
        %v1719 = vpop.f32.mrb[0].mxu0
        %v1720 = vadd.f32 0.0, %v1719
        %v1721 = vpop.f32.mrb[0].mxu0
        %1722 = vdwg.mxu0
        %vm1723 = vcmask 523264
        %v1724 = vsel %vm1723, %v1685, -inf
        %1725 = vmax.xlane.f32.xlu0 %v1724
        %v1726 = vpop.xlane.xlu0 %1725
        %v1727 = vsel %vm1723, %v1690, -inf
        %1728 = vmax.xlane.f32.xlu0 %v1727
        %v1729 = vpop.xlane.xlu0 %1728
        %v1730 = vsel %vm1723, %v1695, -inf
        %1731 = vmax.xlane.f32.xlu0 %v1730
        %v1732 = vpop.xlane.xlu0 %1731
        %v1733 = vsel %vm1723, %v1700, -inf
        %1734 = vmax.xlane.f32.xlu0 %v1733
        %v1735 = vpop.xlane.xlu0 %1734
        %v1736 = vsel %vm1723, %v1705, -inf
        %1737 = vmax.xlane.f32.xlu0 %v1736
        %v1738 = vpop.xlane.xlu0 %1737
        %v1739 = vsel %vm1723, %v1710, -inf
        %1740 = vmax.xlane.f32.xlu0 %v1739
        %v1741 = vpop.xlane.xlu0 %1740
        %v1742 = vsel %vm1723, %v1715, -inf
        %1743 = vmax.xlane.f32.xlu0 %v1742
        %v1744 = vpop.xlane.xlu0 %1743
        %v1745 = vsel %vm1723, %v1720, -inf
        %1746 = vmax.xlane.f32.xlu0 %v1745
        %v1747 = vpop.xlane.xlu0 %1746
        %v1748 = vsub.f32 %v1685, %v1726
        %v1749 = vsub.f32 %v1690, %v1729
        %v1750 = vsub.f32 %v1695, %v1732
        %v1751 = vsub.f32 %v1700, %v1735
        %v1752 = vsub.f32 %v1705, %v1738
        %v1753 = vsub.f32 %v1710, %v1741
        %v1754 = vsub.f32 %v1715, %v1744
        %v1755 = vsub.f32 %v1720, %v1747
        %v1756 = vmul.f32 %v1748, 1.442695
        %v1757 = vpow.pop %v1756
        %v1758 = vmul.f32 %v1749, 1.442695
        %v1759 = vpow.pop %v1758
        %v1760 = vmul.f32 %v1750, 1.442695
        %v1761 = vpow.pop %v1760
        %v1762 = vmul.f32 %v1751, 1.442695
        %v1763 = vpow.pop %v1762
        %v1764 = vmul.f32 %v1752, 1.442695
        %v1765 = vpow.pop %v1764
        %v1766 = vmul.f32 %v1753, 1.442695
        %v1767 = vpow.pop %v1766
        %v1768 = vmul.f32 %v1754, 1.442695
        %v1769 = vpow.pop %v1768
        %v1770 = vmul.f32 %v1755, 1.442695
        %v1771 = vpow.pop %v1770
        %v1772 = vsel %vm1723, %v1757, 0.0
        %1773 = vadd.xlane.f32.xlu0 %v1772
        %v1774 = vpop.xlane.xlu0 %1773
        %v1775 = vsel %vm1723, %v1759, 0.0
        %1776 = vadd.xlane.f32.xlu0 %v1775
        %v1777 = vpop.xlane.xlu0 %1776
        %v1778 = vsel %vm1723, %v1761, 0.0
        %1779 = vadd.xlane.f32.xlu0 %v1778
        %v1780 = vpop.xlane.xlu0 %1779
        %v1781 = vsel %vm1723, %v1763, 0.0
        %1782 = vadd.xlane.f32.xlu0 %v1781
        %v1783 = vpop.xlane.xlu0 %1782
        %v1784 = vsel %vm1723, %v1765, 0.0
        %1785 = vadd.xlane.f32.xlu0 %v1784
        %v1786 = vpop.xlane.xlu0 %1785
        %v1787 = vsel %vm1723, %v1767, 0.0
        %1788 = vadd.xlane.f32.xlu0 %v1787
        %v1789 = vpop.xlane.xlu0 %1788
        %v1790 = vsel %vm1723, %v1769, 0.0
        %1791 = vadd.xlane.f32.xlu0 %v1790
        %v1792 = vpop.xlane.xlu0 %1791
        %v1793 = vsel %vm1723, %v1771, 0.0
        %1794 = vadd.xlane.f32.xlu0 %v1793
        %v1795 = vpop.xlane.xlu0 %1794
        %v1796 = vrcp.pop %v1774
        %v1797 = vrcp.pop %v1777
        %v1798 = vrcp.pop %v1780
        %v1799 = vrcp.pop %v1783
        %v1800 = vrcp.pop %v1786
        %v1801 = vrcp.pop %v1789
        %v1802 = vrcp.pop %v1792
        %v1803 = vrcp.pop %v1795
        %v1804 = vmul.f32 %v1757, %v1796
        %v1805 = vmul.f32 %v1759, %v1797
        %v1806 = vmul.f32 %v1761, %v1798
        %v1807 = vmul.f32 %v1763, %v1799
        %v1808 = vmul.f32 %v1765, %v1800
        %v1809 = vmul.f32 %v1767, %v1801
        %v1810 = vmul.f32 %v1769, %v1802
        %v1811 = vmul.f32 %v1771, %v1803
        %1812 = vrot.lane.b32.xlu0 %v1473, 64
        %v1813 = vpop.permute.xlu0 %1812
        %1814 = vrot.lane.b32.xlu0 %v1478, 64
        %v1815 = vpop.permute.xlu0 %1814
        %1816 = vrot.lane.b32.xlu0 %v1483, 64
        %v1817 = vpop.permute.xlu0 %1816
        %1818 = vrot.lane.b32.xlu0 %v1488, 64
        %v1819 = vpop.permute.xlu0 %1818
        %1820 = vrot.lane.b32.xlu0 %v1493, 64
        %v1821 = vpop.permute.xlu0 %1820
        %1822 = vrot.lane.b32.xlu0 %v1498, 64
        %v1823 = vpop.permute.xlu0 %1822
        %1824 = vrot.lane.b32.xlu0 %v1503, 64
        %v1825 = vpop.permute.xlu0 %1824
        %1826 = vrot.lane.b32.xlu0 %v1508, 64
        %v1827 = vpop.permute.xlu0 %1826
        %v1837 = vsel %vm1723, %v1804, 0
        %v1840 = vsel %vm1723, %v1805, 0
        %v1843 = vsel %vm1723, %v1806, 0
        %v1846 = vsel %vm1723, %v1807, 0
        %v1849 = vsel %vm1723, %v1808, 0
        %v1852 = vsel %vm1723, %v1809, 0
        %v1855 = vsel %vm1723, %v1810, 0
        %v1858 = vsel %vm1723, %v1811, 0
        %1860 = vmatprep.subr.mxu0 0.0
        %1861 = vmatpush1.msra.mxu0 %v1813
        %1862 = vmatprep.subr.mxu0 0.0
        %1863 = vmatpush1.msra.mxu0 %v1815
        %1864 = vmatprep.subr.mxu0 0.0
        %1865 = vmatpush1.msra.mxu0 %v1817
        %1866 = vmatprep.subr.mxu0 0.0
        %1867 = vmatpush1.msra.mxu0 %v1819
        %1868 = vmatprep.subr.mxu0 0.0
        %1869 = vmatpush1.msra.mxu0 %v1821
        %1870 = vmatprep.subr.mxu0 0.0
        %1871 = vmatpush1.msra.mxu0 %v1823
        %1872 = vmatprep.subr.mxu0 0.0
        %1873 = vmatpush1.msra.mxu0 %v1825
        %1874 = vmatprep.subr.mxu0 0.0
        %1875 = vmatpush1.msra.mxu0 %v1827
        %1876 = vmatprep.subr.mxu0 0.0
        %1877 = vmatpush1.msra.mxu0 0.0
        %1878 = vmatprep.subr.mxu0 0.0
        %1879 = vmatpush1.msra.mxu0 0.0
        %1880 = vmatprep.subr.mxu0 0.0
        %1881 = vmatpush1.msra.mxu0 0.0
        %1882 = vmatprep.subr.mxu0 0.0
        %1883 = vmatpush1.msra.mxu0 0.0
        %1884 = vmatprep.subr.mxu0 0.0
        %1885 = vmatpush1.msra.mxu0 0.0
        %1886 = vmatprep.subr.mxu0 0.0
        %1887 = vmatpush1.msra.mxu0 0.0
        %1888 = vmatprep.subr.mxu0 0.0
        %1889 = vmatpush1.msra.mxu0 0.0
        %1890 = vmatprep.subr.mxu0 0.0
        %1891 = vmatpush1.msra.mxu0 0.0
        %1892 = vmatprep.subr.mxu0 0.0
        %1893 = vmatpush1.msra.mxu0 0.0
        %1894 = vmatprep.subr.mxu0 0.0
        %1895 = vmatpush1.msra.mxu0 0.0
        %1896 = vmatprep.subr.mxu0 0.0
        %1897 = vmatpush1.msra.mxu0 0.0
        %1898 = vmatprep.subr.mxu0 0.0
        %1899 = vmatpush1.msra.mxu0 0.0
        %1900 = vmatprep.subr.mxu0 0.0
        %1901 = vmatpush1.msra.mxu0 0.0
        %1902 = vmatprep.subr.mxu0 0.0
        %1903 = vmatpush1.msra.mxu0 0.0
        %1904 = vmatprep.subr.mxu0 0.0
        %1905 = vmatpush1.msra.mxu0 0.0
        %1906 = vmatprep.subr.mxu0 0.0
        %1907 = vmatpush1.msra.mxu0 0.0
        %1908 = vmatprep.subr.mxu0 0.0
        %1909 = vmatpush1.msra.mxu0 0.0
        %1910 = vmatprep.subr.mxu0 0.0
        %1911 = vmatpush1.msra.mxu0 0.0
        %1912 = vmatprep.subr.mxu0 0.0
        %1913 = vmatpush1.msra.mxu0 0.0
        %1914 = vmatprep.subr.mxu0 0.0
        %1915 = vmatpush1.msra.mxu0 0.0
        %1916 = vmatprep.subr.mxu0 0.0
        %1917 = vmatpush1.msra.mxu0 0.0
        %1918 = vmatprep.subr.mxu0 0.0
        %1919 = vmatpush1.msra.mxu0 0.0
        %1920 = vmatprep.subr.mxu0 0.0
        %1921 = vmatpush1.msra.mxu0 0.0
        %1922 = vmatprep.subr.mxu0 0.0
        %1923 = vmatpush1.msra.mxu0 0.0
        %1924 = vmatprep.mubr.f32.mxu0 0.0
        %1925 = vmatmul.mubr.f32.gmra.mrb[0].mxu0 %v1837
        %v1926 = vpop.f32.mrb[0].mxu0
        %v1927 = vadd.f32 0.0, %v1926
        %v1928 = vpop.f32.mrb[0].mxu0
        %1929 = vmatprep.mubr.f32.mxu0 0.0
        %1930 = vmatmul.mubr.f32.gmra.mrb[0].mxu0 %v1840
        %v1931 = vpop.f32.mrb[0].mxu0
        %v1932 = vadd.f32 0.0, %v1931
        %v1933 = vpop.f32.mrb[0].mxu0
        %1934 = vmatprep.mubr.f32.mxu0 0.0
        %1935 = vmatmul.mubr.f32.gmra.mrb[0].mxu0 %v1843
        %v1936 = vpop.f32.mrb[0].mxu0
        %v1937 = vadd.f32 0.0, %v1936
        %v1938 = vpop.f32.mrb[0].mxu0
        %1939 = vmatprep.mubr.f32.mxu0 0.0
        %1940 = vmatmul.mubr.f32.gmra.mrb[0].mxu0 %v1846
        %v1941 = vpop.f32.mrb[0].mxu0
        %v1942 = vadd.f32 0.0, %v1941
        %v1943 = vpop.f32.mrb[0].mxu0
        %1944 = vmatprep.mubr.f32.mxu0 0.0
        %1945 = vmatmul.mubr.f32.gmra.mrb[0].mxu0 %v1849
        %v1946 = vpop.f32.mrb[0].mxu0
        %v1947 = vadd.f32 0.0, %v1946
        %v1948 = vpop.f32.mrb[0].mxu0
        %1949 = vmatprep.mubr.f32.mxu0 0.0
        %1950 = vmatmul.mubr.f32.gmra.mrb[0].mxu0 %v1852
        %v1951 = vpop.f32.mrb[0].mxu0
        %v1952 = vadd.f32 0.0, %v1951
        %v1953 = vpop.f32.mrb[0].mxu0
        %1954 = vmatprep.mubr.f32.mxu0 0.0
        %1955 = vmatmul.mubr.f32.gmra.mrb[0].mxu0 %v1855
        %v1956 = vpop.f32.mrb[0].mxu0
        %v1957 = vadd.f32 0.0, %v1956
        %v1958 = vpop.f32.mrb[0].mxu0
        %1959 = vmatprep.mubr.f32.mxu0 0.0
        %1960 = vmatmul.mubr.f32.gmra.mrb[0].mxu0 %v1858
        %v1961 = vpop.f32.mrb[0].mxu0
        %v1962 = vadd.f32 0.0, %v1961
        %v1963 = vpop.f32.mrb[0].mxu0
        %1964 = vdwg.mxu0
        %1965 = vrot.lane.b32.xlu0 %v1473, 120
        %v1966 = vpop.permute.xlu0 %1965
        %1967 = vrot.lane.b32.xlu0 %v1478, 120
        %v1968 = vpop.permute.xlu0 %1967
        %1969 = vrot.lane.b32.xlu0 %v1483, 120
        %v1970 = vpop.permute.xlu0 %1969
        %1971 = vrot.lane.b32.xlu0 %v1488, 120
        %v1972 = vpop.permute.xlu0 %1971
        %1973 = vrot.lane.b32.xlu0 %v1493, 120
        %v1974 = vpop.permute.xlu0 %1973
        %1975 = vrot.lane.b32.xlu0 %v1498, 120
        %v1976 = vpop.permute.xlu0 %1975
        %1977 = vrot.lane.b32.xlu0 %v1503, 120
        %v1978 = vpop.permute.xlu0 %1977
        %1979 = vrot.lane.b32.xlu0 %v1508, 120
        %v1980 = vpop.permute.xlu0 %1979
        %1981 = vrot.lane.b32.xlu0 %v1473, 88
        %v1982 = vpop.permute.xlu0 %1981
        %1983 = vrot.lane.b32.xlu0 %v1478, 88
        %v1984 = vpop.permute.xlu0 %1983
        %1985 = vrot.lane.b32.xlu0 %v1483, 88
        %v1986 = vpop.permute.xlu0 %1985
        %1987 = vrot.lane.b32.xlu0 %v1488, 88
        %v1988 = vpop.permute.xlu0 %1987
        %1989 = vrot.lane.b32.xlu0 %v1493, 88
        %v1990 = vpop.permute.xlu0 %1989
        %1991 = vrot.lane.b32.xlu0 %v1498, 88
        %v1992 = vpop.permute.xlu0 %1991
        %1993 = vrot.lane.b32.xlu0 %v1503, 88
        %v1994 = vpop.permute.xlu0 %1993
        %1995 = vrot.lane.b32.xlu0 %v1508, 88
        %v1996 = vpop.permute.xlu0 %1995
        %v1997 = vsel %vm1585, %v1966, 0
        %v1999 = vsel %vm1585, %v1968, 0
        %v2001 = vsel %vm1585, %v1970, 0
        %v2003 = vsel %vm1585, %v1972, 0
        %v2005 = vsel %vm1585, %v1974, 0
        %v2007 = vsel %vm1585, %v1976, 0
        %v2009 = vsel %vm1585, %v1978, 0
        %v2011 = vsel %vm1585, %v1980, 0
        %v2013 = vsel %vm1585, %v1982, 0
        %v2015 = vsel %vm1585, %v1984, 0
        %v2017 = vsel %vm1585, %v1986, 0
        %v2019 = vsel %vm1585, %v1988, 0
        %v2021 = vsel %vm1585, %v1990, 0
        %v2023 = vsel %vm1585, %v1992, 0
        %v2025 = vsel %vm1585, %v1994, 0
        %v2027 = vsel %vm1585, %v1996, 0
        %2029 = vmatprep.subr.mxu0 0.0
        %2030 = vmatpush1.xpose.msra.mxu0 %v2013
        %2031 = vmatprep.subr.mxu0 0.0
        %2032 = vmatpush1.xpose.msra.mxu0 %v2015
        %2033 = vmatprep.subr.mxu0 0.0
        %2034 = vmatpush1.xpose.msra.mxu0 %v2017
        %2035 = vmatprep.subr.mxu0 0.0
        %2036 = vmatpush1.xpose.msra.mxu0 %v2019
        %2037 = vmatprep.subr.mxu0 0.0
        %2038 = vmatpush1.xpose.msra.mxu0 %v2021
        %2039 = vmatprep.subr.mxu0 0.0
        %2040 = vmatpush1.xpose.msra.mxu0 %v2023
        %2041 = vmatprep.subr.mxu0 0.0
        %2042 = vmatpush1.xpose.msra.mxu0 %v2025
        %2043 = vmatprep.subr.mxu0 0.0
        %2044 = vmatpush1.xpose.msra.mxu0 %v2027
        %2045 = vmatprep.subr.mxu0 0.0
        %2046 = vmatpush1.xpose.msra.mxu0 0.0
        %2047 = vmatprep.subr.mxu0 0.0
        %2048 = vmatpush1.xpose.msra.mxu0 0.0
        %2049 = vmatprep.subr.mxu0 0.0
        %2050 = vmatpush1.xpose.msra.mxu0 0.0
        %2051 = vmatprep.subr.mxu0 0.0
        %2052 = vmatpush1.xpose.msra.mxu0 0.0
        %2053 = vmatprep.subr.mxu0 0.0
        %2054 = vmatpush1.xpose.msra.mxu0 0.0
        %2055 = vmatprep.subr.mxu0 0.0
        %2056 = vmatpush1.xpose.msra.mxu0 0.0
        %2057 = vmatprep.subr.mxu0 0.0
        %2058 = vmatpush1.xpose.msra.mxu0 0.0
        %2059 = vmatprep.subr.mxu0 0.0
        %2060 = vmatpush1.xpose.msra.mxu0 0.0
        %2061 = vmatprep.subr.mxu0 0.0
        %2062 = vmatpush1.xpose.msra.mxu0 0.0
        %2063 = vmatprep.subr.mxu0 0.0
        %2064 = vmatpush1.xpose.msra.mxu0 0.0
        %2065 = vmatprep.subr.mxu0 0.0
        %2066 = vmatpush1.xpose.msra.mxu0 0.0
        %2067 = vmatprep.subr.mxu0 0.0
        %2068 = vmatpush1.xpose.msra.mxu0 0.0
        %2069 = vmatprep.subr.mxu0 0.0
        %2070 = vmatpush1.xpose.msra.mxu0 0.0
        %2071 = vmatprep.subr.mxu0 0.0
        %2072 = vmatpush1.xpose.msra.mxu0 0.0
        %2073 = vmatprep.subr.mxu0 0.0
        %2074 = vmatpush1.xpose.msra.mxu0 0.0
        %2075 = vmatprep.subr.mxu0 0.0
        %2076 = vmatpush1.xpose.msra.mxu0 0.0
        %2077 = vmatprep.subr.mxu0 0.0
        %2078 = vmatpush1.xpose.msra.mxu0 0.0
        %2079 = vmatprep.subr.mxu0 0.0
        %2080 = vmatpush1.xpose.msra.mxu0 0.0
        %2081 = vmatprep.subr.mxu0 0.0
        %2082 = vmatpush1.xpose.msra.mxu0 0.0
        %2083 = vmatprep.subr.mxu0 0.0
        %2084 = vmatpush1.xpose.msra.mxu0 0.0
        %2085 = vmatprep.subr.mxu0 0.0
        %2086 = vmatpush1.xpose.msra.mxu0 0.0
        %2087 = vmatprep.subr.mxu0 0.0
        %2088 = vmatpush1.xpose.msra.mxu0 0.0
        %2089 = vmatprep.subr.mxu0 0.0
        %2090 = vmatpush1.xpose.msra.mxu0 0.0
        %2091 = vmatprep.subr.mxu0 0.0
        %2092 = vmatpush1.xpose.msra.mxu0 0.0
        %2093 = vmatprep.mubr.f32.mxu0 0.0
        %2094 = vmatmul.mubr.f32.gmra.mrb[0].mxu0 %v1997
        %v2095 = vpop.f32.mrb[0].mxu0
        %v2096 = vadd.f32 0.0, %v2095
        %v2097 = vpop.f32.mrb[0].mxu0
        %2098 = vmatprep.mubr.f32.mxu0 0.0
        %2099 = vmatmul.mubr.f32.gmra.mrb[0].mxu0 %v1999
        %v2100 = vpop.f32.mrb[0].mxu0
        %v2101 = vadd.f32 0.0, %v2100
        %v2102 = vpop.f32.mrb[0].mxu0
        %2103 = vmatprep.mubr.f32.mxu0 0.0
        %2104 = vmatmul.mubr.f32.gmra.mrb[0].mxu0 %v2001
        %v2105 = vpop.f32.mrb[0].mxu0
        %v2106 = vadd.f32 0.0, %v2105
        %v2107 = vpop.f32.mrb[0].mxu0
        %2108 = vmatprep.mubr.f32.mxu0 0.0
        %2109 = vmatmul.mubr.f32.gmra.mrb[0].mxu0 %v2003
        %v2110 = vpop.f32.mrb[0].mxu0
        %v2111 = vadd.f32 0.0, %v2110
        %v2112 = vpop.f32.mrb[0].mxu0
        %2113 = vmatprep.mubr.f32.mxu0 0.0
        %2114 = vmatmul.mubr.f32.gmra.mrb[0].mxu0 %v2005
        %v2115 = vpop.f32.mrb[0].mxu0
        %v2116 = vadd.f32 0.0, %v2115
        %v2117 = vpop.f32.mrb[0].mxu0
        %2118 = vmatprep.mubr.f32.mxu0 0.0
        %2119 = vmatmul.mubr.f32.gmra.mrb[0].mxu0 %v2007
        %v2120 = vpop.f32.mrb[0].mxu0
        %v2121 = vadd.f32 0.0, %v2120
        %v2122 = vpop.f32.mrb[0].mxu0
        %2123 = vmatprep.mubr.f32.mxu0 0.0
        %2124 = vmatmul.mubr.f32.gmra.mrb[0].mxu0 %v2009
        %v2125 = vpop.f32.mrb[0].mxu0
        %v2126 = vadd.f32 0.0, %v2125
        %v2127 = vpop.f32.mrb[0].mxu0
        %2128 = vmatprep.mubr.f32.mxu0 0.0
        %2129 = vmatmul.mubr.f32.gmra.mrb[0].mxu0 %v2011
        %v2130 = vpop.f32.mrb[0].mxu0
        %v2131 = vadd.f32 0.0, %v2130
        %v2132 = vpop.f32.mrb[0].mxu0
        %2133 = vdwg.mxu0
        %v2134 = vsel %vm1723, %v2096, -inf
        %2135 = vmax.xlane.f32.xlu0 %v2134
        %v2136 = vpop.xlane.xlu0 %2135
        %v2137 = vsel %vm1723, %v2101, -inf
        %2138 = vmax.xlane.f32.xlu0 %v2137
        %v2139 = vpop.xlane.xlu0 %2138
        %v2140 = vsel %vm1723, %v2106, -inf
        %2141 = vmax.xlane.f32.xlu0 %v2140
        %v2142 = vpop.xlane.xlu0 %2141
        %v2143 = vsel %vm1723, %v2111, -inf
        %2144 = vmax.xlane.f32.xlu0 %v2143
        %v2145 = vpop.xlane.xlu0 %2144
        %v2146 = vsel %vm1723, %v2116, -inf
        %2147 = vmax.xlane.f32.xlu0 %v2146
        %v2148 = vpop.xlane.xlu0 %2147
        %v2149 = vsel %vm1723, %v2121, -inf
        %2150 = vmax.xlane.f32.xlu0 %v2149
        %v2151 = vpop.xlane.xlu0 %2150
        %v2152 = vsel %vm1723, %v2126, -inf
        %2153 = vmax.xlane.f32.xlu0 %v2152
        %v2154 = vpop.xlane.xlu0 %2153
        %v2155 = vsel %vm1723, %v2131, -inf
        %2156 = vmax.xlane.f32.xlu0 %v2155
        %v2157 = vpop.xlane.xlu0 %2156
        %v2158 = vsub.f32 %v2096, %v2136
        %v2159 = vsub.f32 %v2101, %v2139
        %v2160 = vsub.f32 %v2106, %v2142
        %v2161 = vsub.f32 %v2111, %v2145
        %v2162 = vsub.f32 %v2116, %v2148
        %v2163 = vsub.f32 %v2121, %v2151
        %v2164 = vsub.f32 %v2126, %v2154
        %v2165 = vsub.f32 %v2131, %v2157
        %v2166 = vmul.f32 %v2158, 1.442695
        %v2167 = vpow.pop %v2166
        %v2168 = vmul.f32 %v2159, 1.442695
        %v2169 = vpow.pop %v2168
        %v2170 = vmul.f32 %v2160, 1.442695
        %v2171 = vpow.pop %v2170
        %v2172 = vmul.f32 %v2161, 1.442695
        %v2173 = vpow.pop %v2172
        %v2174 = vmul.f32 %v2162, 1.442695
        %v2175 = vpow.pop %v2174
        %v2176 = vmul.f32 %v2163, 1.442695
        %v2177 = vpow.pop %v2176
        %v2178 = vmul.f32 %v2164, 1.442695
        %v2179 = vpow.pop %v2178
        %v2180 = vmul.f32 %v2165, 1.442695
        %v2181 = vpow.pop %v2180
        %v2182 = vsel %vm1723, %v2167, 0.0
        %2183 = vadd.xlane.f32.xlu0 %v2182
        %v2184 = vpop.xlane.xlu0 %2183
        %v2185 = vsel %vm1723, %v2169, 0.0
        %2186 = vadd.xlane.f32.xlu0 %v2185
        %v2187 = vpop.xlane.xlu0 %2186
        %v2188 = vsel %vm1723, %v2171, 0.0
        %2189 = vadd.xlane.f32.xlu0 %v2188
        %v2190 = vpop.xlane.xlu0 %2189
        %v2191 = vsel %vm1723, %v2173, 0.0
        %2192 = vadd.xlane.f32.xlu0 %v2191
        %v2193 = vpop.xlane.xlu0 %2192
        %v2194 = vsel %vm1723, %v2175, 0.0
        %2195 = vadd.xlane.f32.xlu0 %v2194
        %v2196 = vpop.xlane.xlu0 %2195
        %v2197 = vsel %vm1723, %v2177, 0.0
        %2198 = vadd.xlane.f32.xlu0 %v2197
        %v2199 = vpop.xlane.xlu0 %2198
        %v2200 = vsel %vm1723, %v2179, 0.0
        %2201 = vadd.xlane.f32.xlu0 %v2200
        %v2202 = vpop.xlane.xlu0 %2201
        %v2203 = vsel %vm1723, %v2181, 0.0
        %2204 = vadd.xlane.f32.xlu0 %v2203
        %v2205 = vpop.xlane.xlu0 %2204
        %v2206 = vrcp.pop %v2184
        %v2207 = vrcp.pop %v2187
        %v2208 = vrcp.pop %v2190
        %v2209 = vrcp.pop %v2193
        %v2210 = vrcp.pop %v2196
        %v2211 = vrcp.pop %v2199
        %v2212 = vrcp.pop %v2202
        %v2213 = vrcp.pop %v2205
        %v2214 = vmul.f32 %v2167, %v2206
        %v2215 = vmul.f32 %v2169, %v2207
        %v2216 = vmul.f32 %v2171, %v2208
        %v2217 = vmul.f32 %v2173, %v2209
        %v2218 = vmul.f32 %v2175, %v2210
        %v2219 = vmul.f32 %v2177, %v2211
        %v2220 = vmul.f32 %v2179, %v2212
        %v2221 = vmul.f32 %v2181, %v2213
        %2222 = vrot.lane.b32.xlu0 %v1473, 56
        %v2223 = vpop.permute.xlu0 %2222
        %2224 = vrot.lane.b32.xlu0 %v1478, 56
        %v2225 = vpop.permute.xlu0 %2224
        %2226 = vrot.lane.b32.xlu0 %v1483, 56
        %v2227 = vpop.permute.xlu0 %2226
        %2228 = vrot.lane.b32.xlu0 %v1488, 56
        %v2229 = vpop.permute.xlu0 %2228
        %2230 = vrot.lane.b32.xlu0 %v1493, 56
        %v2231 = vpop.permute.xlu0 %2230
        %2232 = vrot.lane.b32.xlu0 %v1498, 56
        %v2233 = vpop.permute.xlu0 %2232
        %2234 = vrot.lane.b32.xlu0 %v1503, 56
        %v2235 = vpop.permute.xlu0 %2234
        %2236 = vrot.lane.b32.xlu0 %v1508, 56
        %v2237 = vpop.permute.xlu0 %2236
        %v2247 = vsel %vm1723, %v2214, 0
        %v2250 = vsel %vm1723, %v2215, 0
        %v2253 = vsel %vm1723, %v2216, 0
        %v2256 = vsel %vm1723, %v2217, 0
        %v2259 = vsel %vm1723, %v2218, 0
        %v2262 = vsel %vm1723, %v2219, 0
        %v2265 = vsel %vm1723, %v2220, 0
        %v2268 = vsel %vm1723, %v2221, 0
        %2270 = vmatprep.subr.mxu0 0.0
        %2271 = vmatpush1.msra.mxu0 %v2223
        %2272 = vmatprep.subr.mxu0 0.0
        %2273 = vmatpush1.msra.mxu0 %v2225
        %2274 = vmatprep.subr.mxu0 0.0
        %2275 = vmatpush1.msra.mxu0 %v2227
        %2276 = vmatprep.subr.mxu0 0.0
        %2277 = vmatpush1.msra.mxu0 %v2229
        %2278 = vmatprep.subr.mxu0 0.0
        %2279 = vmatpush1.msra.mxu0 %v2231
        %2280 = vmatprep.subr.mxu0 0.0
        %2281 = vmatpush1.msra.mxu0 %v2233
        %2282 = vmatprep.subr.mxu0 0.0
        %2283 = vmatpush1.msra.mxu0 %v2235
        %2284 = vmatprep.subr.mxu0 0.0
        %2285 = vmatpush1.msra.mxu0 %v2237
        %2286 = vmatprep.subr.mxu0 0.0
        %2287 = vmatpush1.msra.mxu0 0.0
        %2288 = vmatprep.subr.mxu0 0.0
        %2289 = vmatpush1.msra.mxu0 0.0
        %2290 = vmatprep.subr.mxu0 0.0
        %2291 = vmatpush1.msra.mxu0 0.0
        %2292 = vmatprep.subr.mxu0 0.0
        %2293 = vmatpush1.msra.mxu0 0.0
        %2294 = vmatprep.subr.mxu0 0.0
        %2295 = vmatpush1.msra.mxu0 0.0
        %2296 = vmatprep.subr.mxu0 0.0
        %2297 = vmatpush1.msra.mxu0 0.0
        %2298 = vmatprep.subr.mxu0 0.0
        %2299 = vmatpush1.msra.mxu0 0.0
        %2300 = vmatprep.subr.mxu0 0.0
        %2301 = vmatpush1.msra.mxu0 0.0
        %2302 = vmatprep.subr.mxu0 0.0
        %2303 = vmatpush1.msra.mxu0 0.0
        %2304 = vmatprep.subr.mxu0 0.0
        %2305 = vmatpush1.msra.mxu0 0.0
        %2306 = vmatprep.subr.mxu0 0.0
        %2307 = vmatpush1.msra.mxu0 0.0
        %2308 = vmatprep.subr.mxu0 0.0
        %2309 = vmatpush1.msra.mxu0 0.0
        %2310 = vmatprep.subr.mxu0 0.0
        %2311 = vmatpush1.msra.mxu0 0.0
        %2312 = vmatprep.subr.mxu0 0.0
        %2313 = vmatpush1.msra.mxu0 0.0
        %2314 = vmatprep.subr.mxu0 0.0
        %2315 = vmatpush1.msra.mxu0 0.0
        %2316 = vmatprep.subr.mxu0 0.0
        %2317 = vmatpush1.msra.mxu0 0.0
        %2318 = vmatprep.subr.mxu0 0.0
        %2319 = vmatpush1.msra.mxu0 0.0
        %2320 = vmatprep.subr.mxu0 0.0
        %2321 = vmatpush1.msra.mxu0 0.0
        %2322 = vmatprep.subr.mxu0 0.0
        %2323 = vmatpush1.msra.mxu0 0.0
        %2324 = vmatprep.subr.mxu0 0.0
        %2325 = vmatpush1.msra.mxu0 0.0
        %2326 = vmatprep.subr.mxu0 0.0
        %2327 = vmatpush1.msra.mxu0 0.0
        %2328 = vmatprep.subr.mxu0 0.0
        %2329 = vmatpush1.msra.mxu0 0.0
        %2330 = vmatprep.subr.mxu0 0.0
        %2331 = vmatpush1.msra.mxu0 0.0
        %2332 = vmatprep.subr.mxu0 0.0
        %2333 = vmatpush1.msra.mxu0 0.0
        %2334 = vmatprep.mubr.f32.mxu0 0.0
        %2335 = vmatmul.mubr.f32.gmra.mrb[0].mxu0 %v2247
        %v2336 = vpop.f32.mrb[0].mxu0
        %v2337 = vadd.f32 0.0, %v2336
        %v2338 = vpop.f32.mrb[0].mxu0
        %2339 = vmatprep.mubr.f32.mxu0 0.0
        %2340 = vmatmul.mubr.f32.gmra.mrb[0].mxu0 %v2250
        %v2341 = vpop.f32.mrb[0].mxu0
        %v2342 = vadd.f32 0.0, %v2341
        %v2343 = vpop.f32.mrb[0].mxu0
        %2344 = vmatprep.mubr.f32.mxu0 0.0
        %2345 = vmatmul.mubr.f32.gmra.mrb[0].mxu0 %v2253
        %v2346 = vpop.f32.mrb[0].mxu0
        %v2347 = vadd.f32 0.0, %v2346
        %v2348 = vpop.f32.mrb[0].mxu0
        %2349 = vmatprep.mubr.f32.mxu0 0.0
        %2350 = vmatmul.mubr.f32.gmra.mrb[0].mxu0 %v2256
        %v2351 = vpop.f32.mrb[0].mxu0
        %v2352 = vadd.f32 0.0, %v2351
        %v2353 = vpop.f32.mrb[0].mxu0
        %2354 = vmatprep.mubr.f32.mxu0 0.0
        %2355 = vmatmul.mubr.f32.gmra.mrb[0].mxu0 %v2259
        %v2356 = vpop.f32.mrb[0].mxu0
        %v2357 = vadd.f32 0.0, %v2356
        %v2358 = vpop.f32.mrb[0].mxu0
        %2359 = vmatprep.mubr.f32.mxu0 0.0
        %2360 = vmatmul.mubr.f32.gmra.mrb[0].mxu0 %v2262
        %v2361 = vpop.f32.mrb[0].mxu0
        %v2362 = vadd.f32 0.0, %v2361
        %v2363 = vpop.f32.mrb[0].mxu0
        %2364 = vmatprep.mubr.f32.mxu0 0.0
        %2365 = vmatmul.mubr.f32.gmra.mrb[0].mxu0 %v2265
        %v2366 = vpop.f32.mrb[0].mxu0
        %v2367 = vadd.f32 0.0, %v2366
        %v2368 = vpop.f32.mrb[0].mxu0
        %2369 = vmatprep.mubr.f32.mxu0 0.0
        %2370 = vmatmul.mubr.f32.gmra.mrb[0].mxu0 %v2268
        %v2371 = vpop.f32.mrb[0].mxu0
        %v2372 = vadd.f32 0.0, %v2371
        %v2373 = vpop.f32.mrb[0].mxu0
        %2374 = vdwg.mxu0
        %v2376 = vsel %vm1585, %v2337, 0
        %v2379 = vsel %vm1585, %v2342, 0
        %v2382 = vsel %vm1585, %v2347, 0
        %v2385 = vsel %vm1585, %v2352, 0
        %v2388 = vsel %vm1585, %v2357, 0
        %v2391 = vsel %vm1585, %v2362, 0
        %v2394 = vsel %vm1585, %v2367, 0
        %v2397 = vsel %vm1585, %v2372, 0
        %2399 = vmatprep.subr.mxu0 0.0
        %2400 = vmatpush1.msra.mxu0 %v1558
        %2401 = vmatprep.subr.mxu0 0.0
        %2402 = vmatpush1.msra.mxu0 0.0
        %2403 = vmatprep.subr.mxu0 0.0
        %2404 = vmatpush1.msra.mxu0 0.0
        %2405 = vmatprep.subr.mxu0 0.0
        %2406 = vmatpush1.msra.mxu0 0.0
        %2407 = vmatprep.subr.mxu0 0.0
        %2408 = vmatpush1.msra.mxu0 0.0
        %2409 = vmatprep.subr.mxu0 0.0
        %2410 = vmatpush1.msra.mxu0 0.0
        %2411 = vmatprep.subr.mxu0 0.0
        %2412 = vmatpush1.msra.mxu0 0.0
        %2413 = vmatprep.subr.mxu0 0.0
        %2414 = vmatpush1.msra.mxu0 0.0
        %2415 = vmatprep.subr.mxu0 0.0
        %2416 = vmatpush1.msra.mxu0 0.0
        %2417 = vmatprep.subr.mxu0 0.0
        %2418 = vmatpush1.msra.mxu0 0.0
        %2419 = vmatprep.subr.mxu0 0.0
        %2420 = vmatpush1.msra.mxu0 0.0
        %2421 = vmatprep.subr.mxu0 0.0
        %2422 = vmatpush1.msra.mxu0 0.0
        %2423 = vmatprep.subr.mxu0 0.0
        %2424 = vmatpush1.msra.mxu0 0.0
        %2425 = vmatprep.subr.mxu0 0.0
        %2426 = vmatpush1.msra.mxu0 0.0
        %2427 = vmatprep.subr.mxu0 0.0
        %2428 = vmatpush1.msra.mxu0 0.0
        %2429 = vmatprep.subr.mxu0 0.0
        %2430 = vmatpush1.msra.mxu0 0.0
        %2431 = vmatprep.subr.mxu0 0.0
        %2432 = vmatpush1.msra.mxu0 0.0
        %2433 = vmatprep.subr.mxu0 0.0
        %2434 = vmatpush1.msra.mxu0 0.0
        %2435 = vmatprep.subr.mxu0 0.0
        %2436 = vmatpush1.msra.mxu0 0.0
        %2437 = vmatprep.subr.mxu0 0.0
        %2438 = vmatpush1.msra.mxu0 0.0
        %2439 = vmatprep.subr.mxu0 0.0
        %2440 = vmatpush1.msra.mxu0 0.0
        %2441 = vmatprep.subr.mxu0 0.0
        %2442 = vmatpush1.msra.mxu0 0.0
        %2443 = vmatprep.subr.mxu0 0.0
        %2444 = vmatpush1.msra.mxu0 0.0
        %2445 = vmatprep.subr.mxu0 0.0
        %2446 = vmatpush1.msra.mxu0 0.0
        %2447 = vmatprep.subr.mxu0 0.0
        %2448 = vmatpush1.msra.mxu0 0.0
        %2449 = vmatprep.subr.mxu0 0.0
        %2450 = vmatpush1.msra.mxu0 0.0
        %2451 = vmatprep.subr.mxu0 0.0
        %2452 = vmatpush1.msra.mxu0 0.0
        %2453 = vmatprep.subr.mxu0 0.0
        %2454 = vmatpush1.msra.mxu0 0.0
        %2455 = vmatprep.subr.mxu0 0.0
        %2456 = vmatpush1.msra.mxu0 0.0
        %2457 = vmatprep.subr.mxu0 0.0
        %2458 = vmatpush1.msra.mxu0 0.0
        %2459 = vmatprep.subr.mxu0 0.0
        %2460 = vmatpush1.msra.mxu0 0.0
        %2461 = vmatprep.subr.mxu0 0.0
        %2462 = vmatpush1.msra.mxu0 0.0
        %2463 = vmatprep.mubr.f32.mxu0 0.0
        %2464 = vmatmul.mubr.f32.gmra.mrb[0].mxu0 %v2376
        %v2465 = vpop.f32.mrb[0].mxu0
        %v2466 = vadd.f32 0.0, %v2465
        %v2467 = vpop.f32.mrb[0].mxu0
        %2468 = vmatprep.mubr.f32.mxu0 0.0
        %2469 = vmatmul.mubr.f32.gmra.mrb[0].mxu0 %v2379
        %v2470 = vpop.f32.mrb[0].mxu0
        %v2471 = vadd.f32 0.0, %v2470
        %v2472 = vpop.f32.mrb[0].mxu0
        %2473 = vmatprep.mubr.f32.mxu0 0.0
        %2474 = vmatmul.mubr.f32.gmra.mrb[0].mxu0 %v2382
        %v2475 = vpop.f32.mrb[0].mxu0
        %v2476 = vadd.f32 0.0, %v2475
        %v2477 = vpop.f32.mrb[0].mxu0
        %2478 = vmatprep.mubr.f32.mxu0 0.0
        %2479 = vmatmul.mubr.f32.gmra.mrb[0].mxu0 %v2385
        %v2480 = vpop.f32.mrb[0].mxu0
        %v2481 = vadd.f32 0.0, %v2480
        %v2482 = vpop.f32.mrb[0].mxu0
        %2483 = vmatprep.mubr.f32.mxu0 0.0
        %2484 = vmatmul.mubr.f32.gmra.mrb[0].mxu0 %v2388
        %v2485 = vpop.f32.mrb[0].mxu0
        %v2486 = vadd.f32 0.0, %v2485
        %v2487 = vpop.f32.mrb[0].mxu0
        %2488 = vmatprep.mubr.f32.mxu0 0.0
        %2489 = vmatmul.mubr.f32.gmra.mrb[0].mxu0 %v2391
        %v2490 = vpop.f32.mrb[0].mxu0
        %v2491 = vadd.f32 0.0, %v2490
        %v2492 = vpop.f32.mrb[0].mxu0
        %2493 = vmatprep.mubr.f32.mxu0 0.0
        %2494 = vmatmul.mubr.f32.gmra.mrb[0].mxu0 %v2394
        %v2495 = vpop.f32.mrb[0].mxu0
        %v2496 = vadd.f32 0.0, %v2495
        %v2497 = vpop.f32.mrb[0].mxu0
        %2498 = vmatprep.mubr.f32.mxu0 0.0
        %2499 = vmatmul.mubr.f32.gmra.mrb[0].mxu0 %v2397
        %v2500 = vpop.f32.mrb[0].mxu0
        %v2501 = vadd.f32 0.0, %v2500
        %v2502 = vpop.f32.mrb[0].mxu0
        %2503 = vdwg.mxu0
        %v2505 = vsel %vm1585, %v1927, 0
        %v2508 = vsel %vm1585, %v1932, 0
        %v2511 = vsel %vm1585, %v1937, 0
        %v2514 = vsel %vm1585, %v1942, 0
        %v2517 = vsel %vm1585, %v1947, 0
        %v2520 = vsel %vm1585, %v1952, 0
        %v2523 = vsel %vm1585, %v1957, 0
        %v2526 = vsel %vm1585, %v1962, 0
        %2528 = vmatprep.subr.mxu0 0.0
        %2529 = vmatpush1.msra.mxu0 %v1557
        %2530 = vmatprep.subr.mxu0 0.0
        %2531 = vmatpush1.msra.mxu0 0.0
        %2532 = vmatprep.subr.mxu0 0.0
        %2533 = vmatpush1.msra.mxu0 0.0
        %2534 = vmatprep.subr.mxu0 0.0
        %2535 = vmatpush1.msra.mxu0 0.0
        %2536 = vmatprep.subr.mxu0 0.0
        %2537 = vmatpush1.msra.mxu0 0.0
        %2538 = vmatprep.subr.mxu0 0.0
        %2539 = vmatpush1.msra.mxu0 0.0
        %2540 = vmatprep.subr.mxu0 0.0
        %2541 = vmatpush1.msra.mxu0 0.0
        %2542 = vmatprep.subr.mxu0 0.0
        %2543 = vmatpush1.msra.mxu0 0.0
        %2544 = vmatprep.subr.mxu0 0.0
        %2545 = vmatpush1.msra.mxu0 0.0
        %2546 = vmatprep.subr.mxu0 0.0
        %2547 = vmatpush1.msra.mxu0 0.0
        %2548 = vmatprep.subr.mxu0 0.0
        %2549 = vmatpush1.msra.mxu0 0.0
        %2550 = vmatprep.subr.mxu0 0.0
        %2551 = vmatpush1.msra.mxu0 0.0
        %2552 = vmatprep.subr.mxu0 0.0
        %2553 = vmatpush1.msra.mxu0 0.0
        %2554 = vmatprep.subr.mxu0 0.0
        %2555 = vmatpush1.msra.mxu0 0.0
        %2556 = vmatprep.subr.mxu0 0.0
        %2557 = vmatpush1.msra.mxu0 0.0
        %2558 = vmatprep.subr.mxu0 0.0
        %2559 = vmatpush1.msra.mxu0 0.0
        %2560 = vmatprep.subr.mxu0 0.0
        %2561 = vmatpush1.msra.mxu0 0.0
        %2562 = vmatprep.subr.mxu0 0.0
        %2563 = vmatpush1.msra.mxu0 0.0
        %2564 = vmatprep.subr.mxu0 0.0
        %2565 = vmatpush1.msra.mxu0 0.0
        %2566 = vmatprep.subr.mxu0 0.0
        %2567 = vmatpush1.msra.mxu0 0.0
        %2568 = vmatprep.subr.mxu0 0.0
        %2569 = vmatpush1.msra.mxu0 0.0
        %2570 = vmatprep.subr.mxu0 0.0
        %2571 = vmatpush1.msra.mxu0 0.0
        %2572 = vmatprep.subr.mxu0 0.0
        %2573 = vmatpush1.msra.mxu0 0.0
        %2574 = vmatprep.subr.mxu0 0.0
        %2575 = vmatpush1.msra.mxu0 0.0
        %2576 = vmatprep.subr.mxu0 0.0
        %2577 = vmatpush1.msra.mxu0 0.0
        %2578 = vmatprep.subr.mxu0 0.0
        %2579 = vmatpush1.msra.mxu0 0.0
        %2580 = vmatprep.subr.mxu0 0.0
        %2581 = vmatpush1.msra.mxu0 0.0
        %2582 = vmatprep.subr.mxu0 0.0
        %2583 = vmatpush1.msra.mxu0 0.0
        %2584 = vmatprep.subr.mxu0 0.0
        %2585 = vmatpush1.msra.mxu0 0.0
        %2586 = vmatprep.subr.mxu0 0.0
        %2587 = vmatpush1.msra.mxu0 0.0
        %2588 = vmatprep.subr.mxu0 0.0
        %2589 = vmatpush1.msra.mxu0 0.0
        %2590 = vmatprep.subr.mxu0 0.0
        %2591 = vmatpush1.msra.mxu0 0.0
        %2592 = vmatprep.mubr.f32.mxu0 0.0
        %2593 = vmatmul.mubr.f32.gmra.mrb[0].mxu0 %v2505
        %v2594 = vpop.f32.mrb[0].mxu0
        %v2595 = vadd.f32 %v2466, %v2594
        %v2596 = vpop.f32.mrb[0].mxu0
        %2597 = vmatprep.mubr.f32.mxu0 0.0
        %2598 = vmatmul.mubr.f32.gmra.mrb[0].mxu0 %v2508
        %v2599 = vpop.f32.mrb[0].mxu0
        %v2600 = vadd.f32 %v2471, %v2599
        %v2601 = vpop.f32.mrb[0].mxu0
        %2602 = vmatprep.mubr.f32.mxu0 0.0
        %2603 = vmatmul.mubr.f32.gmra.mrb[0].mxu0 %v2511
        %v2604 = vpop.f32.mrb[0].mxu0
        %v2605 = vadd.f32 %v2476, %v2604
        %v2606 = vpop.f32.mrb[0].mxu0
        %2607 = vmatprep.mubr.f32.mxu0 0.0
        %2608 = vmatmul.mubr.f32.gmra.mrb[0].mxu0 %v2514
        %v2609 = vpop.f32.mrb[0].mxu0
        %v2610 = vadd.f32 %v2481, %v2609
        %v2611 = vpop.f32.mrb[0].mxu0
        %2612 = vmatprep.mubr.f32.mxu0 0.0
        %2613 = vmatmul.mubr.f32.gmra.mrb[0].mxu0 %v2517
        %v2614 = vpop.f32.mrb[0].mxu0
        %v2615 = vadd.f32 %v2486, %v2614
        %v2616 = vpop.f32.mrb[0].mxu0
        %2617 = vmatprep.mubr.f32.mxu0 0.0
        %2618 = vmatmul.mubr.f32.gmra.mrb[0].mxu0 %v2520
        %v2619 = vpop.f32.mrb[0].mxu0
        %v2620 = vadd.f32 %v2491, %v2619
        %v2621 = vpop.f32.mrb[0].mxu0
        %2622 = vmatprep.mubr.f32.mxu0 0.0
        %2623 = vmatmul.mubr.f32.gmra.mrb[0].mxu0 %v2523
        %v2624 = vpop.f32.mrb[0].mxu0
        %v2625 = vadd.f32 %v2496, %v2624
        %v2626 = vpop.f32.mrb[0].mxu0
        %2627 = vmatprep.mubr.f32.mxu0 0.0
        %2628 = vmatmul.mubr.f32.gmra.mrb[0].mxu0 %v2526
        %v2629 = vpop.f32.mrb[0].mxu0
        %v2630 = vadd.f32 %v2501, %v2629
        %v2631 = vpop.f32.mrb[0].mxu0
        %2632 = vdwg.mxu0
        %2633 = vrot.lane.b32.xlu0 %v1473, 112
        %v2634 = vpop.permute.xlu0 %2633
        %2635 = vrot.lane.b32.xlu0 %v1478, 112
        %v2636 = vpop.permute.xlu0 %2635
        %2637 = vrot.lane.b32.xlu0 %v1483, 112
        %v2638 = vpop.permute.xlu0 %2637
        %2639 = vrot.lane.b32.xlu0 %v1488, 112
        %v2640 = vpop.permute.xlu0 %2639
        %2641 = vrot.lane.b32.xlu0 %v1493, 112
        %v2642 = vpop.permute.xlu0 %2641
        %2643 = vrot.lane.b32.xlu0 %v1498, 112
        %v2644 = vpop.permute.xlu0 %2643
        %2645 = vrot.lane.b32.xlu0 %v1503, 112
        %v2646 = vpop.permute.xlu0 %2645
        %2647 = vrot.lane.b32.xlu0 %v1508, 112
        %v2648 = vpop.permute.xlu0 %2647
        %2649 = vrot.lane.b32.xlu0 %v1473, 80
        %v2650 = vpop.permute.xlu0 %2649
        %2651 = vrot.lane.b32.xlu0 %v1478, 80
        %v2652 = vpop.permute.xlu0 %2651
        %2653 = vrot.lane.b32.xlu0 %v1483, 80
        %v2654 = vpop.permute.xlu0 %2653
        %2655 = vrot.lane.b32.xlu0 %v1488, 80
        %v2656 = vpop.permute.xlu0 %2655
        %2657 = vrot.lane.b32.xlu0 %v1493, 80
        %v2658 = vpop.permute.xlu0 %2657
        %2659 = vrot.lane.b32.xlu0 %v1498, 80
        %v2660 = vpop.permute.xlu0 %2659
        %2661 = vrot.lane.b32.xlu0 %v1503, 80
        %v2662 = vpop.permute.xlu0 %2661
        %2663 = vrot.lane.b32.xlu0 %v1508, 80
        %v2664 = vpop.permute.xlu0 %2663
        %v2665 = vsel %vm1585, %v2634, 0
        %v2667 = vsel %vm1585, %v2636, 0
        %v2669 = vsel %vm1585, %v2638, 0
        %v2671 = vsel %vm1585, %v2640, 0
        %v2673 = vsel %vm1585, %v2642, 0
        %v2675 = vsel %vm1585, %v2644, 0
        %v2677 = vsel %vm1585, %v2646, 0
        %v2679 = vsel %vm1585, %v2648, 0
        %v2681 = vsel %vm1585, %v2650, 0
        %v2683 = vsel %vm1585, %v2652, 0
        %v2685 = vsel %vm1585, %v2654, 0
        %v2687 = vsel %vm1585, %v2656, 0
        %v2689 = vsel %vm1585, %v2658, 0
        %v2691 = vsel %vm1585, %v2660, 0
        %v2693 = vsel %vm1585, %v2662, 0
        %v2695 = vsel %vm1585, %v2664, 0
        %2697 = vmatprep.subr.mxu0 0.0
        %2698 = vmatpush1.xpose.msra.mxu0 %v2681
        %2699 = vmatprep.subr.mxu0 0.0
        %2700 = vmatpush1.xpose.msra.mxu0 %v2683
        %2701 = vmatprep.subr.mxu0 0.0
        %2702 = vmatpush1.xpose.msra.mxu0 %v2685
        %2703 = vmatprep.subr.mxu0 0.0
        %2704 = vmatpush1.xpose.msra.mxu0 %v2687
        %2705 = vmatprep.subr.mxu0 0.0
        %2706 = vmatpush1.xpose.msra.mxu0 %v2689
        %2707 = vmatprep.subr.mxu0 0.0
        %2708 = vmatpush1.xpose.msra.mxu0 %v2691
        %2709 = vmatprep.subr.mxu0 0.0
        %2710 = vmatpush1.xpose.msra.mxu0 %v2693
        %2711 = vmatprep.subr.mxu0 0.0
        %2712 = vmatpush1.xpose.msra.mxu0 %v2695
        %2713 = vmatprep.subr.mxu0 0.0
        %2714 = vmatpush1.xpose.msra.mxu0 0.0
        %2715 = vmatprep.subr.mxu0 0.0
        %2716 = vmatpush1.xpose.msra.mxu0 0.0
        %2717 = vmatprep.subr.mxu0 0.0
        %2718 = vmatpush1.xpose.msra.mxu0 0.0
        %2719 = vmatprep.subr.mxu0 0.0
        %2720 = vmatpush1.xpose.msra.mxu0 0.0
        %2721 = vmatprep.subr.mxu0 0.0
        %2722 = vmatpush1.xpose.msra.mxu0 0.0
        %2723 = vmatprep.subr.mxu0 0.0
        %2724 = vmatpush1.xpose.msra.mxu0 0.0
        %2725 = vmatprep.subr.mxu0 0.0
        %2726 = vmatpush1.xpose.msra.mxu0 0.0
        %2727 = vmatprep.subr.mxu0 0.0
        %2728 = vmatpush1.xpose.msra.mxu0 0.0
        %2729 = vmatprep.subr.mxu0 0.0
        %2730 = vmatpush1.xpose.msra.mxu0 0.0
        %2731 = vmatprep.subr.mxu0 0.0
        %2732 = vmatpush1.xpose.msra.mxu0 0.0
        %2733 = vmatprep.subr.mxu0 0.0
        %2734 = vmatpush1.xpose.msra.mxu0 0.0
        %2735 = vmatprep.subr.mxu0 0.0
        %2736 = vmatpush1.xpose.msra.mxu0 0.0
        %2737 = vmatprep.subr.mxu0 0.0
        %2738 = vmatpush1.xpose.msra.mxu0 0.0
        %2739 = vmatprep.subr.mxu0 0.0
        %2740 = vmatpush1.xpose.msra.mxu0 0.0
        %2741 = vmatprep.subr.mxu0 0.0
        %2742 = vmatpush1.xpose.msra.mxu0 0.0
        %2743 = vmatprep.subr.mxu0 0.0
        %2744 = vmatpush1.xpose.msra.mxu0 0.0
        %2745 = vmatprep.subr.mxu0 0.0
        %2746 = vmatpush1.xpose.msra.mxu0 0.0
        %2747 = vmatprep.subr.mxu0 0.0
        %2748 = vmatpush1.xpose.msra.mxu0 0.0
        %2749 = vmatprep.subr.mxu0 0.0
        %2750 = vmatpush1.xpose.msra.mxu0 0.0
        %2751 = vmatprep.subr.mxu0 0.0
        %2752 = vmatpush1.xpose.msra.mxu0 0.0
        %2753 = vmatprep.subr.mxu0 0.0
        %2754 = vmatpush1.xpose.msra.mxu0 0.0
        %2755 = vmatprep.subr.mxu0 0.0
        %2756 = vmatpush1.xpose.msra.mxu0 0.0
        %2757 = vmatprep.subr.mxu0 0.0
        %2758 = vmatpush1.xpose.msra.mxu0 0.0
        %2759 = vmatprep.subr.mxu0 0.0
        %2760 = vmatpush1.xpose.msra.mxu0 0.0
        %2761 = vmatprep.mubr.f32.mxu0 0.0
        %2762 = vmatmul.mubr.f32.gmra.mrb[0].mxu0 %v2665
        %v2763 = vpop.f32.mrb[0].mxu0
        %v2764 = vadd.f32 0.0, %v2763
        %v2765 = vpop.f32.mrb[0].mxu0
        %2766 = vmatprep.mubr.f32.mxu0 0.0
        %2767 = vmatmul.mubr.f32.gmra.mrb[0].mxu0 %v2667
        %v2768 = vpop.f32.mrb[0].mxu0
        %v2769 = vadd.f32 0.0, %v2768
        %v2770 = vpop.f32.mrb[0].mxu0
        %2771 = vmatprep.mubr.f32.mxu0 0.0
        %2772 = vmatmul.mubr.f32.gmra.mrb[0].mxu0 %v2669
        %v2773 = vpop.f32.mrb[0].mxu0
        %v2774 = vadd.f32 0.0, %v2773
        %v2775 = vpop.f32.mrb[0].mxu0
        %2776 = vmatprep.mubr.f32.mxu0 0.0
        %2777 = vmatmul.mubr.f32.gmra.mrb[0].mxu0 %v2671
        %v2778 = vpop.f32.mrb[0].mxu0
        %v2779 = vadd.f32 0.0, %v2778
        %v2780 = vpop.f32.mrb[0].mxu0
        %2781 = vmatprep.mubr.f32.mxu0 0.0
        %2782 = vmatmul.mubr.f32.gmra.mrb[0].mxu0 %v2673
        %v2783 = vpop.f32.mrb[0].mxu0
        %v2784 = vadd.f32 0.0, %v2783
        %v2785 = vpop.f32.mrb[0].mxu0
        %2786 = vmatprep.mubr.f32.mxu0 0.0
        %2787 = vmatmul.mubr.f32.gmra.mrb[0].mxu0 %v2675
        %v2788 = vpop.f32.mrb[0].mxu0
        %v2789 = vadd.f32 0.0, %v2788
        %v2790 = vpop.f32.mrb[0].mxu0
        %2791 = vmatprep.mubr.f32.mxu0 0.0
        %2792 = vmatmul.mubr.f32.gmra.mrb[0].mxu0 %v2677
        %v2793 = vpop.f32.mrb[0].mxu0
        %v2794 = vadd.f32 0.0, %v2793
        %v2795 = vpop.f32.mrb[0].mxu0
        %2796 = vmatprep.mubr.f32.mxu0 0.0
        %2797 = vmatmul.mubr.f32.gmra.mrb[0].mxu0 %v2679
        %v2798 = vpop.f32.mrb[0].mxu0
        %v2799 = vadd.f32 0.0, %v2798
        %v2800 = vpop.f32.mrb[0].mxu0
        %2801 = vdwg.mxu0
        %v2802 = vsel %vm1723, %v2764, -inf
        %2803 = vmax.xlane.f32.xlu0 %v2802
        %v2804 = vpop.xlane.xlu0 %2803
        %v2805 = vsel %vm1723, %v2769, -inf
        %2806 = vmax.xlane.f32.xlu0 %v2805
        %v2807 = vpop.xlane.xlu0 %2806
        %v2808 = vsel %vm1723, %v2774, -inf
        %2809 = vmax.xlane.f32.xlu0 %v2808
        %v2810 = vpop.xlane.xlu0 %2809
        %v2811 = vsel %vm1723, %v2779, -inf
        %2812 = vmax.xlane.f32.xlu0 %v2811
        %v2813 = vpop.xlane.xlu0 %2812
        %v2814 = vsel %vm1723, %v2784, -inf
        %2815 = vmax.xlane.f32.xlu0 %v2814
        %v2816 = vpop.xlane.xlu0 %2815
        %v2817 = vsel %vm1723, %v2789, -inf
        %2818 = vmax.xlane.f32.xlu0 %v2817
        %v2819 = vpop.xlane.xlu0 %2818
        %v2820 = vsel %vm1723, %v2794, -inf
        %2821 = vmax.xlane.f32.xlu0 %v2820
        %v2822 = vpop.xlane.xlu0 %2821
        %v2823 = vsel %vm1723, %v2799, -inf
        %2824 = vmax.xlane.f32.xlu0 %v2823
        %v2825 = vpop.xlane.xlu0 %2824
        %v2826 = vsub.f32 %v2764, %v2804
        %v2827 = vsub.f32 %v2769, %v2807
        %v2828 = vsub.f32 %v2774, %v2810
        %v2829 = vsub.f32 %v2779, %v2813
        %v2830 = vsub.f32 %v2784, %v2816
        %v2831 = vsub.f32 %v2789, %v2819
        %v2832 = vsub.f32 %v2794, %v2822
        %v2833 = vsub.f32 %v2799, %v2825
        %v2834 = vmul.f32 %v2826, 1.442695
        %v2835 = vpow.pop %v2834
        %v2836 = vmul.f32 %v2827, 1.442695
        %v2837 = vpow.pop %v2836
        %v2838 = vmul.f32 %v2828, 1.442695
        %v2839 = vpow.pop %v2838
        %v2840 = vmul.f32 %v2829, 1.442695
        %v2841 = vpow.pop %v2840
        %v2842 = vmul.f32 %v2830, 1.442695
        %v2843 = vpow.pop %v2842
        %v2844 = vmul.f32 %v2831, 1.442695
        %v2845 = vpow.pop %v2844
        %v2846 = vmul.f32 %v2832, 1.442695
        %v2847 = vpow.pop %v2846
        %v2848 = vmul.f32 %v2833, 1.442695
        %v2849 = vpow.pop %v2848
        %v2850 = vsel %vm1723, %v2835, 0.0
        %2851 = vadd.xlane.f32.xlu0 %v2850
        %v2852 = vpop.xlane.xlu0 %2851
        %v2853 = vsel %vm1723, %v2837, 0.0
        %2854 = vadd.xlane.f32.xlu0 %v2853
        %v2855 = vpop.xlane.xlu0 %2854
        %v2856 = vsel %vm1723, %v2839, 0.0
        %2857 = vadd.xlane.f32.xlu0 %v2856
        %v2858 = vpop.xlane.xlu0 %2857
        %v2859 = vsel %vm1723, %v2841, 0.0
        %2860 = vadd.xlane.f32.xlu0 %v2859
        %v2861 = vpop.xlane.xlu0 %2860
        %v2862 = vsel %vm1723, %v2843, 0.0
        %2863 = vadd.xlane.f32.xlu0 %v2862
        %v2864 = vpop.xlane.xlu0 %2863
        %v2865 = vsel %vm1723, %v2845, 0.0
        %2866 = vadd.xlane.f32.xlu0 %v2865
        %v2867 = vpop.xlane.xlu0 %2866
        %v2868 = vsel %vm1723, %v2847, 0.0
        %2869 = vadd.xlane.f32.xlu0 %v2868
        %v2870 = vpop.xlane.xlu0 %2869
        %v2871 = vsel %vm1723, %v2849, 0.0
        %2872 = vadd.xlane.f32.xlu0 %v2871
        %v2873 = vpop.xlane.xlu0 %2872
        %v2874 = vrcp.pop %v2852
        %v2875 = vrcp.pop %v2855
        %v2876 = vrcp.pop %v2858
        %v2877 = vrcp.pop %v2861
        %v2878 = vrcp.pop %v2864
        %v2879 = vrcp.pop %v2867
        %v2880 = vrcp.pop %v2870
        %v2881 = vrcp.pop %v2873
        %v2882 = vmul.f32 %v2835, %v2874
        %v2883 = vmul.f32 %v2837, %v2875
        %v2884 = vmul.f32 %v2839, %v2876
        %v2885 = vmul.f32 %v2841, %v2877
        %v2886 = vmul.f32 %v2843, %v2878
        %v2887 = vmul.f32 %v2845, %v2879
        %v2888 = vmul.f32 %v2847, %v2880
        %v2889 = vmul.f32 %v2849, %v2881
        %2890 = vrot.lane.b32.xlu0 %v1473, 48
        %v2891 = vpop.permute.xlu0 %2890
        %2892 = vrot.lane.b32.xlu0 %v1478, 48
        %v2893 = vpop.permute.xlu0 %2892
        %2894 = vrot.lane.b32.xlu0 %v1483, 48
        %v2895 = vpop.permute.xlu0 %2894
        %2896 = vrot.lane.b32.xlu0 %v1488, 48
        %v2897 = vpop.permute.xlu0 %2896
        %2898 = vrot.lane.b32.xlu0 %v1493, 48
        %v2899 = vpop.permute.xlu0 %2898
        %2900 = vrot.lane.b32.xlu0 %v1498, 48
        %v2901 = vpop.permute.xlu0 %2900
        %2902 = vrot.lane.b32.xlu0 %v1503, 48
        %v2903 = vpop.permute.xlu0 %2902
        %2904 = vrot.lane.b32.xlu0 %v1508, 48
        %v2905 = vpop.permute.xlu0 %2904
        %v2915 = vsel %vm1723, %v2882, 0
        %v2918 = vsel %vm1723, %v2883, 0
        %v2921 = vsel %vm1723, %v2884, 0
        %v2924 = vsel %vm1723, %v2885, 0
        %v2927 = vsel %vm1723, %v2886, 0
        %v2930 = vsel %vm1723, %v2887, 0
        %v2933 = vsel %vm1723, %v2888, 0
        %v2936 = vsel %vm1723, %v2889, 0
        %2938 = vmatprep.subr.mxu0 0.0
        %2939 = vmatpush1.msra.mxu0 %v2891
        %2940 = vmatprep.subr.mxu0 0.0
        %2941 = vmatpush1.msra.mxu0 %v2893
        %2942 = vmatprep.subr.mxu0 0.0
        %2943 = vmatpush1.msra.mxu0 %v2895
        %2944 = vmatprep.subr.mxu0 0.0
        %2945 = vmatpush1.msra.mxu0 %v2897
        %2946 = vmatprep.subr.mxu0 0.0
        %2947 = vmatpush1.msra.mxu0 %v2899
        %2948 = vmatprep.subr.mxu0 0.0
        %2949 = vmatpush1.msra.mxu0 %v2901
        %2950 = vmatprep.subr.mxu0 0.0
        %2951 = vmatpush1.msra.mxu0 %v2903
        %2952 = vmatprep.subr.mxu0 0.0
        %2953 = vmatpush1.msra.mxu0 %v2905
        %2954 = vmatprep.subr.mxu0 0.0
        %2955 = vmatpush1.msra.mxu0 0.0
        %2956 = vmatprep.subr.mxu0 0.0
        %2957 = vmatpush1.msra.mxu0 0.0
        %2958 = vmatprep.subr.mxu0 0.0
        %2959 = vmatpush1.msra.mxu0 0.0
        %2960 = vmatprep.subr.mxu0 0.0
        %2961 = vmatpush1.msra.mxu0 0.0
        %2962 = vmatprep.subr.mxu0 0.0
        %2963 = vmatpush1.msra.mxu0 0.0
        %2964 = vmatprep.subr.mxu0 0.0
        %2965 = vmatpush1.msra.mxu0 0.0
        %2966 = vmatprep.subr.mxu0 0.0
        %2967 = vmatpush1.msra.mxu0 0.0
        %2968 = vmatprep.subr.mxu0 0.0
        %2969 = vmatpush1.msra.mxu0 0.0
        %2970 = vmatprep.subr.mxu0 0.0
        %2971 = vmatpush1.msra.mxu0 0.0
        %2972 = vmatprep.subr.mxu0 0.0
        %2973 = vmatpush1.msra.mxu0 0.0
        %2974 = vmatprep.subr.mxu0 0.0
        %2975 = vmatpush1.msra.mxu0 0.0
        %2976 = vmatprep.subr.mxu0 0.0
        %2977 = vmatpush1.msra.mxu0 0.0
        %2978 = vmatprep.subr.mxu0 0.0
        %2979 = vmatpush1.msra.mxu0 0.0
        %2980 = vmatprep.subr.mxu0 0.0
        %2981 = vmatpush1.msra.mxu0 0.0
        %2982 = vmatprep.subr.mxu0 0.0
        %2983 = vmatpush1.msra.mxu0 0.0
        %2984 = vmatprep.subr.mxu0 0.0
        %2985 = vmatpush1.msra.mxu0 0.0
        %2986 = vmatprep.subr.mxu0 0.0
        %2987 = vmatpush1.msra.mxu0 0.0
        %2988 = vmatprep.subr.mxu0 0.0
        %2989 = vmatpush1.msra.mxu0 0.0
        %2990 = vmatprep.subr.mxu0 0.0
        %2991 = vmatpush1.msra.mxu0 0.0
        %2992 = vmatprep.subr.mxu0 0.0
        %2993 = vmatpush1.msra.mxu0 0.0
        %2994 = vmatprep.subr.mxu0 0.0
        %2995 = vmatpush1.msra.mxu0 0.0
        %2996 = vmatprep.subr.mxu0 0.0
        %2997 = vmatpush1.msra.mxu0 0.0
        %2998 = vmatprep.subr.mxu0 0.0
        %2999 = vmatpush1.msra.mxu0 0.0
        %3000 = vmatprep.subr.mxu0 0.0
        %3001 = vmatpush1.msra.mxu0 0.0
        %3002 = vmatprep.mubr.f32.mxu0 0.0
        %3003 = vmatmul.mubr.f32.gmra.mrb[0].mxu0 %v2915
        %v3004 = vpop.f32.mrb[0].mxu0
        %v3005 = vadd.f32 0.0, %v3004
        %v3006 = vpop.f32.mrb[0].mxu0
        %3007 = vmatprep.mubr.f32.mxu0 0.0
        %3008 = vmatmul.mubr.f32.gmra.mrb[0].mxu0 %v2918
        %v3009 = vpop.f32.mrb[0].mxu0
        %v3010 = vadd.f32 0.0, %v3009
        %v3011 = vpop.f32.mrb[0].mxu0
        %3012 = vmatprep.mubr.f32.mxu0 0.0
        %3013 = vmatmul.mubr.f32.gmra.mrb[0].mxu0 %v2921
        %v3014 = vpop.f32.mrb[0].mxu0
        %v3015 = vadd.f32 0.0, %v3014
        %v3016 = vpop.f32.mrb[0].mxu0
        %3017 = vmatprep.mubr.f32.mxu0 0.0
        %3018 = vmatmul.mubr.f32.gmra.mrb[0].mxu0 %v2924
        %v3019 = vpop.f32.mrb[0].mxu0
        %v3020 = vadd.f32 0.0, %v3019
        %v3021 = vpop.f32.mrb[0].mxu0
        %3022 = vmatprep.mubr.f32.mxu0 0.0
        %3023 = vmatmul.mubr.f32.gmra.mrb[0].mxu0 %v2927
        %v3024 = vpop.f32.mrb[0].mxu0
        %v3025 = vadd.f32 0.0, %v3024
        %v3026 = vpop.f32.mrb[0].mxu0
        %3027 = vmatprep.mubr.f32.mxu0 0.0
        %3028 = vmatmul.mubr.f32.gmra.mrb[0].mxu0 %v2930
        %v3029 = vpop.f32.mrb[0].mxu0
        %v3030 = vadd.f32 0.0, %v3029
        %v3031 = vpop.f32.mrb[0].mxu0
        %3032 = vmatprep.mubr.f32.mxu0 0.0
        %3033 = vmatmul.mubr.f32.gmra.mrb[0].mxu0 %v2933
        %v3034 = vpop.f32.mrb[0].mxu0
        %v3035 = vadd.f32 0.0, %v3034
        %v3036 = vpop.f32.mrb[0].mxu0
        %3037 = vmatprep.mubr.f32.mxu0 0.0
        %3038 = vmatmul.mubr.f32.gmra.mrb[0].mxu0 %v2936
        %v3039 = vpop.f32.mrb[0].mxu0
        %v3040 = vadd.f32 0.0, %v3039
        %v3041 = vpop.f32.mrb[0].mxu0
        %3042 = vdwg.mxu0
        %v3044 = vsel %vm1585, %v3005, 0
        %v3047 = vsel %vm1585, %v3010, 0
        %v3050 = vsel %vm1585, %v3015, 0
        %v3053 = vsel %vm1585, %v3020, 0
        %v3056 = vsel %vm1585, %v3025, 0
        %v3059 = vsel %vm1585, %v3030, 0
        %v3062 = vsel %vm1585, %v3035, 0
        %v3065 = vsel %vm1585, %v3040, 0
        %3067 = vmatprep.subr.mxu0 0.0
        %3068 = vmatpush1.msra.mxu0 %v1559
        %3069 = vmatprep.subr.mxu0 0.0
        %3070 = vmatpush1.msra.mxu0 0.0
        %3071 = vmatprep.subr.mxu0 0.0
        %3072 = vmatpush1.msra.mxu0 0.0
        %3073 = vmatprep.subr.mxu0 0.0
        %3074 = vmatpush1.msra.mxu0 0.0
        %3075 = vmatprep.subr.mxu0 0.0
        %3076 = vmatpush1.msra.mxu0 0.0
        %3077 = vmatprep.subr.mxu0 0.0
        %3078 = vmatpush1.msra.mxu0 0.0
        %3079 = vmatprep.subr.mxu0 0.0
        %3080 = vmatpush1.msra.mxu0 0.0
        %3081 = vmatprep.subr.mxu0 0.0
        %3082 = vmatpush1.msra.mxu0 0.0
        %3083 = vmatprep.subr.mxu0 0.0
        %3084 = vmatpush1.msra.mxu0 0.0
        %3085 = vmatprep.subr.mxu0 0.0
        %3086 = vmatpush1.msra.mxu0 0.0
        %3087 = vmatprep.subr.mxu0 0.0
        %3088 = vmatpush1.msra.mxu0 0.0
        %3089 = vmatprep.subr.mxu0 0.0
        %3090 = vmatpush1.msra.mxu0 0.0
        %3091 = vmatprep.subr.mxu0 0.0
        %3092 = vmatpush1.msra.mxu0 0.0
        %3093 = vmatprep.subr.mxu0 0.0
        %3094 = vmatpush1.msra.mxu0 0.0
        %3095 = vmatprep.subr.mxu0 0.0
        %3096 = vmatpush1.msra.mxu0 0.0
        %3097 = vmatprep.subr.mxu0 0.0
        %3098 = vmatpush1.msra.mxu0 0.0
        %3099 = vmatprep.subr.mxu0 0.0
        %3100 = vmatpush1.msra.mxu0 0.0
        %3101 = vmatprep.subr.mxu0 0.0
        %3102 = vmatpush1.msra.mxu0 0.0
        %3103 = vmatprep.subr.mxu0 0.0
        %3104 = vmatpush1.msra.mxu0 0.0
        %3105 = vmatprep.subr.mxu0 0.0
        %3106 = vmatpush1.msra.mxu0 0.0
        %3107 = vmatprep.subr.mxu0 0.0
        %3108 = vmatpush1.msra.mxu0 0.0
        %3109 = vmatprep.subr.mxu0 0.0
        %3110 = vmatpush1.msra.mxu0 0.0
        %3111 = vmatprep.subr.mxu0 0.0
        %3112 = vmatpush1.msra.mxu0 0.0
        %3113 = vmatprep.subr.mxu0 0.0
        %3114 = vmatpush1.msra.mxu0 0.0
        %3115 = vmatprep.subr.mxu0 0.0
        %3116 = vmatpush1.msra.mxu0 0.0
        %3117 = vmatprep.subr.mxu0 0.0
        %3118 = vmatpush1.msra.mxu0 0.0
        %3119 = vmatprep.subr.mxu0 0.0
        %3120 = vmatpush1.msra.mxu0 0.0
        %3121 = vmatprep.subr.mxu0 0.0
        %3122 = vmatpush1.msra.mxu0 0.0
        %3123 = vmatprep.subr.mxu0 0.0
        %3124 = vmatpush1.msra.mxu0 0.0
        %3125 = vmatprep.subr.mxu0 0.0
        %3126 = vmatpush1.msra.mxu0 0.0
        %3127 = vmatprep.subr.mxu0 0.0
        %3128 = vmatpush1.msra.mxu0 0.0
        %3129 = vmatprep.subr.mxu0 0.0
        %3130 = vmatpush1.msra.mxu0 0.0
        %3131 = vmatprep.mubr.f32.mxu0 0.0
        %3132 = vmatmul.mubr.f32.gmra.mrb[0].mxu0 %v3044
        %v3133 = vpop.f32.mrb[0].mxu0
        %v3134 = vadd.f32 0.0, %v3133
        %v3135 = vpop.f32.mrb[0].mxu0
        %3136 = vmatprep.mubr.f32.mxu0 0.0
        %3137 = vmatmul.mubr.f32.gmra.mrb[0].mxu0 %v3047
        %v3138 = vpop.f32.mrb[0].mxu0
        %v3139 = vadd.f32 0.0, %v3138
        %v3140 = vpop.f32.mrb[0].mxu0
        %3141 = vmatprep.mubr.f32.mxu0 0.0
        %3142 = vmatmul.mubr.f32.gmra.mrb[0].mxu0 %v3050
        %v3143 = vpop.f32.mrb[0].mxu0
        %v3144 = vadd.f32 0.0, %v3143
        %v3145 = vpop.f32.mrb[0].mxu0
        %3146 = vmatprep.mubr.f32.mxu0 0.0
        %3147 = vmatmul.mubr.f32.gmra.mrb[0].mxu0 %v3053
        %v3148 = vpop.f32.mrb[0].mxu0
        %v3149 = vadd.f32 0.0, %v3148
        %v3150 = vpop.f32.mrb[0].mxu0
        %3151 = vmatprep.mubr.f32.mxu0 0.0
        %3152 = vmatmul.mubr.f32.gmra.mrb[0].mxu0 %v3056
        %v3153 = vpop.f32.mrb[0].mxu0
        %v3154 = vadd.f32 0.0, %v3153
        %v3155 = vpop.f32.mrb[0].mxu0
        %3156 = vmatprep.mubr.f32.mxu0 0.0
        %3157 = vmatmul.mubr.f32.gmra.mrb[0].mxu0 %v3059
        %v3158 = vpop.f32.mrb[0].mxu0
        %v3159 = vadd.f32 0.0, %v3158
        %v3160 = vpop.f32.mrb[0].mxu0
        %3161 = vmatprep.mubr.f32.mxu0 0.0
        %3162 = vmatmul.mubr.f32.gmra.mrb[0].mxu0 %v3062
        %v3163 = vpop.f32.mrb[0].mxu0
        %v3164 = vadd.f32 0.0, %v3163
        %v3165 = vpop.f32.mrb[0].mxu0
        %3166 = vmatprep.mubr.f32.mxu0 0.0
        %3167 = vmatmul.mubr.f32.gmra.mrb[0].mxu0 %v3065
        %v3168 = vpop.f32.mrb[0].mxu0
        %v3169 = vadd.f32 0.0, %v3168
        %v3170 = vpop.f32.mrb[0].mxu0
        %3171 = vdwg.mxu0
        %v3172 = vadd.f32 %v2595, %v3134
        %v3173 = vadd.f32 %v2600, %v3139
        %v3174 = vadd.f32 %v2605, %v3144
        %v3175 = vadd.f32 %v2610, %v3149
        %v3176 = vadd.f32 %v2615, %v3154
        %v3177 = vadd.f32 %v2620, %v3159
        %v3178 = vadd.f32 %v2625, %v3164
        %v3179 = vadd.f32 %v2630, %v3169
        %3180 = vrot.lane.b32.xlu0 %v1473, 104
        %v3181 = vpop.permute.xlu0 %3180
        %3182 = vrot.lane.b32.xlu0 %v1478, 104
        %v3183 = vpop.permute.xlu0 %3182
        %3184 = vrot.lane.b32.xlu0 %v1483, 104
        %v3185 = vpop.permute.xlu0 %3184
        %3186 = vrot.lane.b32.xlu0 %v1488, 104
        %v3187 = vpop.permute.xlu0 %3186
        %3188 = vrot.lane.b32.xlu0 %v1493, 104
        %v3189 = vpop.permute.xlu0 %3188
        %3190 = vrot.lane.b32.xlu0 %v1498, 104
        %v3191 = vpop.permute.xlu0 %3190
        %3192 = vrot.lane.b32.xlu0 %v1503, 104
        %v3193 = vpop.permute.xlu0 %3192
        %3194 = vrot.lane.b32.xlu0 %v1508, 104
        %v3195 = vpop.permute.xlu0 %3194
        %3196 = vrot.lane.b32.xlu0 %v1473, 72
        %v3197 = vpop.permute.xlu0 %3196
        %3198 = vrot.lane.b32.xlu0 %v1478, 72
        %v3199 = vpop.permute.xlu0 %3198
        %3200 = vrot.lane.b32.xlu0 %v1483, 72
        %v3201 = vpop.permute.xlu0 %3200
        %3202 = vrot.lane.b32.xlu0 %v1488, 72
        %v3203 = vpop.permute.xlu0 %3202
        %3204 = vrot.lane.b32.xlu0 %v1493, 72
        %v3205 = vpop.permute.xlu0 %3204
        %3206 = vrot.lane.b32.xlu0 %v1498, 72
        %v3207 = vpop.permute.xlu0 %3206
        %3208 = vrot.lane.b32.xlu0 %v1503, 72
        %v3209 = vpop.permute.xlu0 %3208
        %3210 = vrot.lane.b32.xlu0 %v1508, 72
        %v3211 = vpop.permute.xlu0 %3210
        %v3212 = vsel %vm1585, %v3181, 0
        %v3214 = vsel %vm1585, %v3183, 0
        %v3216 = vsel %vm1585, %v3185, 0
        %v3218 = vsel %vm1585, %v3187, 0
        %v3220 = vsel %vm1585, %v3189, 0
        %v3222 = vsel %vm1585, %v3191, 0
        %v3224 = vsel %vm1585, %v3193, 0
        %v3226 = vsel %vm1585, %v3195, 0
        %v3228 = vsel %vm1585, %v3197, 0
        %v3230 = vsel %vm1585, %v3199, 0
        %v3232 = vsel %vm1585, %v3201, 0
        %v3234 = vsel %vm1585, %v3203, 0
        %v3236 = vsel %vm1585, %v3205, 0
        %v3238 = vsel %vm1585, %v3207, 0
        %v3240 = vsel %vm1585, %v3209, 0
        %v3242 = vsel %vm1585, %v3211, 0
        %3244 = vmatprep.subr.mxu0 0.0
        %3245 = vmatpush1.xpose.msra.mxu0 %v3228
        %3246 = vmatprep.subr.mxu0 0.0
        %3247 = vmatpush1.xpose.msra.mxu0 %v3230
        %3248 = vmatprep.subr.mxu0 0.0
        %3249 = vmatpush1.xpose.msra.mxu0 %v3232
        %3250 = vmatprep.subr.mxu0 0.0
        %3251 = vmatpush1.xpose.msra.mxu0 %v3234
        %3252 = vmatprep.subr.mxu0 0.0
        %3253 = vmatpush1.xpose.msra.mxu0 %v3236
        %3254 = vmatprep.subr.mxu0 0.0
        %3255 = vmatpush1.xpose.msra.mxu0 %v3238
        %3256 = vmatprep.subr.mxu0 0.0
        %3257 = vmatpush1.xpose.msra.mxu0 %v3240
        %3258 = vmatprep.subr.mxu0 0.0
        %3259 = vmatpush1.xpose.msra.mxu0 %v3242
        %3260 = vmatprep.subr.mxu0 0.0
        %3261 = vmatpush1.xpose.msra.mxu0 0.0
        %3262 = vmatprep.subr.mxu0 0.0
        %3263 = vmatpush1.xpose.msra.mxu0 0.0
        %3264 = vmatprep.subr.mxu0 0.0
        %3265 = vmatpush1.xpose.msra.mxu0 0.0
        %3266 = vmatprep.subr.mxu0 0.0
        %3267 = vmatpush1.xpose.msra.mxu0 0.0
        %3268 = vmatprep.subr.mxu0 0.0
        %3269 = vmatpush1.xpose.msra.mxu0 0.0
        %3270 = vmatprep.subr.mxu0 0.0
        %3271 = vmatpush1.xpose.msra.mxu0 0.0
        %3272 = vmatprep.subr.mxu0 0.0
        %3273 = vmatpush1.xpose.msra.mxu0 0.0
        %3274 = vmatprep.subr.mxu0 0.0
        %3275 = vmatpush1.xpose.msra.mxu0 0.0
        %3276 = vmatprep.subr.mxu0 0.0
        %3277 = vmatpush1.xpose.msra.mxu0 0.0
        %3278 = vmatprep.subr.mxu0 0.0
        %3279 = vmatpush1.xpose.msra.mxu0 0.0
        %3280 = vmatprep.subr.mxu0 0.0
        %3281 = vmatpush1.xpose.msra.mxu0 0.0
        %3282 = vmatprep.subr.mxu0 0.0
        %3283 = vmatpush1.xpose.msra.mxu0 0.0
        %3284 = vmatprep.subr.mxu0 0.0
        %3285 = vmatpush1.xpose.msra.mxu0 0.0
        %3286 = vmatprep.subr.mxu0 0.0
        %3287 = vmatpush1.xpose.msra.mxu0 0.0
        %3288 = vmatprep.subr.mxu0 0.0
        %3289 = vmatpush1.xpose.msra.mxu0 0.0
        %3290 = vmatprep.subr.mxu0 0.0
        %3291 = vmatpush1.xpose.msra.mxu0 0.0
        %3292 = vmatprep.subr.mxu0 0.0
        %3293 = vmatpush1.xpose.msra.mxu0 0.0
        %3294 = vmatprep.subr.mxu0 0.0
        %3295 = vmatpush1.xpose.msra.mxu0 0.0
        %3296 = vmatprep.subr.mxu0 0.0
        %3297 = vmatpush1.xpose.msra.mxu0 0.0
        %3298 = vmatprep.subr.mxu0 0.0
        %3299 = vmatpush1.xpose.msra.mxu0 0.0
        %3300 = vmatprep.subr.mxu0 0.0
        %3301 = vmatpush1.xpose.msra.mxu0 0.0
        %3302 = vmatprep.subr.mxu0 0.0
        %3303 = vmatpush1.xpose.msra.mxu0 0.0
        %3304 = vmatprep.subr.mxu0 0.0
        %3305 = vmatpush1.xpose.msra.mxu0 0.0
        %3306 = vmatprep.subr.mxu0 0.0
        %3307 = vmatpush1.xpose.msra.mxu0 0.0
        %3308 = vmatprep.mubr.f32.mxu0 0.0
        %3309 = vmatmul.mubr.f32.gmra.mrb[0].mxu0 %v3212
        %v3310 = vpop.f32.mrb[0].mxu0
        %v3311 = vadd.f32 0.0, %v3310
        %v3312 = vpop.f32.mrb[0].mxu0
        %3313 = vmatprep.mubr.f32.mxu0 0.0
        %3314 = vmatmul.mubr.f32.gmra.mrb[0].mxu0 %v3214
        %v3315 = vpop.f32.mrb[0].mxu0
        %v3316 = vadd.f32 0.0, %v3315
        %v3317 = vpop.f32.mrb[0].mxu0
        %3318 = vmatprep.mubr.f32.mxu0 0.0
        %3319 = vmatmul.mubr.f32.gmra.mrb[0].mxu0 %v3216
        %v3320 = vpop.f32.mrb[0].mxu0
        %v3321 = vadd.f32 0.0, %v3320
        %v3322 = vpop.f32.mrb[0].mxu0
        %3323 = vmatprep.mubr.f32.mxu0 0.0
        %3324 = vmatmul.mubr.f32.gmra.mrb[0].mxu0 %v3218
        %v3325 = vpop.f32.mrb[0].mxu0
        %v3326 = vadd.f32 0.0, %v3325
        %v3327 = vpop.f32.mrb[0].mxu0
        %3328 = vmatprep.mubr.f32.mxu0 0.0
        %3329 = vmatmul.mubr.f32.gmra.mrb[0].mxu0 %v3220
        %v3330 = vpop.f32.mrb[0].mxu0
        %v3331 = vadd.f32 0.0, %v3330
        %v3332 = vpop.f32.mrb[0].mxu0
        %3333 = vmatprep.mubr.f32.mxu0 0.0
        %3334 = vmatmul.mubr.f32.gmra.mrb[0].mxu0 %v3222
        %v3335 = vpop.f32.mrb[0].mxu0
        %v3336 = vadd.f32 0.0, %v3335
        %v3337 = vpop.f32.mrb[0].mxu0
        %3338 = vmatprep.mubr.f32.mxu0 0.0
        %3339 = vmatmul.mubr.f32.gmra.mrb[0].mxu0 %v3224
        %v3340 = vpop.f32.mrb[0].mxu0
        %v3341 = vadd.f32 0.0, %v3340
        %v3342 = vpop.f32.mrb[0].mxu0
        %3343 = vmatprep.mubr.f32.mxu0 0.0
        %3344 = vmatmul.mubr.f32.gmra.mrb[0].mxu0 %v3226
        %v3345 = vpop.f32.mrb[0].mxu0
        %v3346 = vadd.f32 0.0, %v3345
        %v3347 = vpop.f32.mrb[0].mxu0
        %3348 = vdwg.mxu0
        %v3349 = vsel %vm1723, %v3311, -inf
        %3350 = vmax.xlane.f32.xlu0 %v3349
        %v3351 = vpop.xlane.xlu0 %3350
        %v3352 = vsel %vm1723, %v3316, -inf
        %3353 = vmax.xlane.f32.xlu0 %v3352
        %v3354 = vpop.xlane.xlu0 %3353
        %v3355 = vsel %vm1723, %v3321, -inf
        %3356 = vmax.xlane.f32.xlu0 %v3355
        %v3357 = vpop.xlane.xlu0 %3356
        %v3358 = vsel %vm1723, %v3326, -inf
        %3359 = vmax.xlane.f32.xlu0 %v3358
        %v3360 = vpop.xlane.xlu0 %3359
        %v3361 = vsel %vm1723, %v3331, -inf
        %3362 = vmax.xlane.f32.xlu0 %v3361
        %v3363 = vpop.xlane.xlu0 %3362
        %v3364 = vsel %vm1723, %v3336, -inf
        %3365 = vmax.xlane.f32.xlu0 %v3364
        %v3366 = vpop.xlane.xlu0 %3365
        %v3367 = vsel %vm1723, %v3341, -inf
        %3368 = vmax.xlane.f32.xlu0 %v3367
        %v3369 = vpop.xlane.xlu0 %3368
        %v3370 = vsel %vm1723, %v3346, -inf
        %3371 = vmax.xlane.f32.xlu0 %v3370
        %v3372 = vpop.xlane.xlu0 %3371
        %v3373 = vsub.f32 %v3311, %v3351
        %v3374 = vsub.f32 %v3316, %v3354
        %v3375 = vsub.f32 %v3321, %v3357
        %v3376 = vsub.f32 %v3326, %v3360
        %v3377 = vsub.f32 %v3331, %v3363
        %v3378 = vsub.f32 %v3336, %v3366
        %v3379 = vsub.f32 %v3341, %v3369
        %v3380 = vsub.f32 %v3346, %v3372
        %v3381 = vmul.f32 %v3373, 1.442695
        %v3382 = vpow.pop %v3381
        %v3383 = vmul.f32 %v3374, 1.442695
        %v3384 = vpow.pop %v3383
        %v3385 = vmul.f32 %v3375, 1.442695
        %v3386 = vpow.pop %v3385
        %v3387 = vmul.f32 %v3376, 1.442695
        %v3388 = vpow.pop %v3387
        %v3389 = vmul.f32 %v3377, 1.442695
        %v3390 = vpow.pop %v3389
        %v3391 = vmul.f32 %v3378, 1.442695
        %v3392 = vpow.pop %v3391
        %v3393 = vmul.f32 %v3379, 1.442695
        %v3394 = vpow.pop %v3393
        %v3395 = vmul.f32 %v3380, 1.442695
        %v3396 = vpow.pop %v3395
        %v3397 = vsel %vm1723, %v3382, 0.0
        %3398 = vadd.xlane.f32.xlu0 %v3397
        %v3399 = vpop.xlane.xlu0 %3398
        %v3400 = vsel %vm1723, %v3384, 0.0
        %3401 = vadd.xlane.f32.xlu0 %v3400
        %v3402 = vpop.xlane.xlu0 %3401
        %v3403 = vsel %vm1723, %v3386, 0.0
        %3404 = vadd.xlane.f32.xlu0 %v3403
        %v3405 = vpop.xlane.xlu0 %3404
        %v3406 = vsel %vm1723, %v3388, 0.0
        %3407 = vadd.xlane.f32.xlu0 %v3406
        %v3408 = vpop.xlane.xlu0 %3407
        %v3409 = vsel %vm1723, %v3390, 0.0
        %3410 = vadd.xlane.f32.xlu0 %v3409
        %v3411 = vpop.xlane.xlu0 %3410
        %v3412 = vsel %vm1723, %v3392, 0.0
        %3413 = vadd.xlane.f32.xlu0 %v3412
        %v3414 = vpop.xlane.xlu0 %3413
        %v3415 = vsel %vm1723, %v3394, 0.0
        %3416 = vadd.xlane.f32.xlu0 %v3415
        %v3417 = vpop.xlane.xlu0 %3416
        %v3418 = vsel %vm1723, %v3396, 0.0
        %3419 = vadd.xlane.f32.xlu0 %v3418
        %v3420 = vpop.xlane.xlu0 %3419
        %v3421 = vrcp.pop %v3399
        %v3422 = vrcp.pop %v3402
        %v3423 = vrcp.pop %v3405
        %v3424 = vrcp.pop %v3408
        %v3425 = vrcp.pop %v3411
        %v3426 = vrcp.pop %v3414
        %v3427 = vrcp.pop %v3417
        %v3428 = vrcp.pop %v3420
        %v3429 = vmul.f32 %v3382, %v3421
        %v3430 = vmul.f32 %v3384, %v3422
        %v3431 = vmul.f32 %v3386, %v3423
        %v3432 = vmul.f32 %v3388, %v3424
        %v3433 = vmul.f32 %v3390, %v3425
        %v3434 = vmul.f32 %v3392, %v3426
        %v3435 = vmul.f32 %v3394, %v3427
        %v3436 = vmul.f32 %v3396, %v3428
        %3437 = vrot.lane.b32.xlu0 %v1473, 40
        %v3438 = vpop.permute.xlu0 %3437
        %3439 = vrot.lane.b32.xlu0 %v1478, 40
        %v3440 = vpop.permute.xlu0 %3439
        %3441 = vrot.lane.b32.xlu0 %v1483, 40
        %v3442 = vpop.permute.xlu0 %3441
        %3443 = vrot.lane.b32.xlu0 %v1488, 40
        %v3444 = vpop.permute.xlu0 %3443
        %3445 = vrot.lane.b32.xlu0 %v1493, 40
        %v3446 = vpop.permute.xlu0 %3445
        %3447 = vrot.lane.b32.xlu0 %v1498, 40
        %v3448 = vpop.permute.xlu0 %3447
        %3449 = vrot.lane.b32.xlu0 %v1503, 40
        %v3450 = vpop.permute.xlu0 %3449
        %3451 = vrot.lane.b32.xlu0 %v1508, 40
        %v3452 = vpop.permute.xlu0 %3451
        %v3462 = vsel %vm1723, %v3429, 0
        %v3465 = vsel %vm1723, %v3430, 0
        %v3468 = vsel %vm1723, %v3431, 0
        %v3471 = vsel %vm1723, %v3432, 0
        %v3474 = vsel %vm1723, %v3433, 0
        %v3477 = vsel %vm1723, %v3434, 0
        %v3480 = vsel %vm1723, %v3435, 0
        %v3483 = vsel %vm1723, %v3436, 0
        %3485 = vmatprep.subr.mxu0 0.0
        %3486 = vmatpush1.msra.mxu0 %v3438
        %3487 = vmatprep.subr.mxu0 0.0
        %3488 = vmatpush1.msra.mxu0 %v3440
        %3489 = vmatprep.subr.mxu0 0.0
        %3490 = vmatpush1.msra.mxu0 %v3442
        %3491 = vmatprep.subr.mxu0 0.0
        %3492 = vmatpush1.msra.mxu0 %v3444
        %3493 = vmatprep.subr.mxu0 0.0
        %3494 = vmatpush1.msra.mxu0 %v3446
        %3495 = vmatprep.subr.mxu0 0.0
        %3496 = vmatpush1.msra.mxu0 %v3448
        %3497 = vmatprep.subr.mxu0 0.0
        %3498 = vmatpush1.msra.mxu0 %v3450
        %3499 = vmatprep.subr.mxu0 0.0
        %3500 = vmatpush1.msra.mxu0 %v3452
        %3501 = vmatprep.subr.mxu0 0.0
        %3502 = vmatpush1.msra.mxu0 0.0
        %3503 = vmatprep.subr.mxu0 0.0
        %3504 = vmatpush1.msra.mxu0 0.0
        %3505 = vmatprep.subr.mxu0 0.0
        %3506 = vmatpush1.msra.mxu0 0.0
        %3507 = vmatprep.subr.mxu0 0.0
        %3508 = vmatpush1.msra.mxu0 0.0
        %3509 = vmatprep.subr.mxu0 0.0
        %3510 = vmatpush1.msra.mxu0 0.0
        %3511 = vmatprep.subr.mxu0 0.0
        %3512 = vmatpush1.msra.mxu0 0.0
        %3513 = vmatprep.subr.mxu0 0.0
        %3514 = vmatpush1.msra.mxu0 0.0
        %3515 = vmatprep.subr.mxu0 0.0
        %3516 = vmatpush1.msra.mxu0 0.0
        %3517 = vmatprep.subr.mxu0 0.0
        %3518 = vmatpush1.msra.mxu0 0.0
        %3519 = vmatprep.subr.mxu0 0.0
        %3520 = vmatpush1.msra.mxu0 0.0
        %3521 = vmatprep.subr.mxu0 0.0
        %3522 = vmatpush1.msra.mxu0 0.0
        %3523 = vmatprep.subr.mxu0 0.0
        %3524 = vmatpush1.msra.mxu0 0.0
        %3525 = vmatprep.subr.mxu0 0.0
        %3526 = vmatpush1.msra.mxu0 0.0
        %3527 = vmatprep.subr.mxu0 0.0
        %3528 = vmatpush1.msra.mxu0 0.0
        %3529 = vmatprep.subr.mxu0 0.0
        %3530 = vmatpush1.msra.mxu0 0.0
        %3531 = vmatprep.subr.mxu0 0.0
        %3532 = vmatpush1.msra.mxu0 0.0
        %3533 = vmatprep.subr.mxu0 0.0
        %3534 = vmatpush1.msra.mxu0 0.0
        %3535 = vmatprep.subr.mxu0 0.0
        %3536 = vmatpush1.msra.mxu0 0.0
        %3537 = vmatprep.subr.mxu0 0.0
        %3538 = vmatpush1.msra.mxu0 0.0
        %3539 = vmatprep.subr.mxu0 0.0
        %3540 = vmatpush1.msra.mxu0 0.0
        %3541 = vmatprep.subr.mxu0 0.0
        %3542 = vmatpush1.msra.mxu0 0.0
        %3543 = vmatprep.subr.mxu0 0.0
        %3544 = vmatpush1.msra.mxu0 0.0
        %3545 = vmatprep.subr.mxu0 0.0
        %3546 = vmatpush1.msra.mxu0 0.0
        %3547 = vmatprep.subr.mxu0 0.0
        %3548 = vmatpush1.msra.mxu0 0.0
        %3549 = vmatprep.mubr.f32.mxu0 0.0
        %3550 = vmatmul.mubr.f32.gmra.mrb[0].mxu0 %v3462
        %v3551 = vpop.f32.mrb[0].mxu0
        %v3552 = vadd.f32 0.0, %v3551
        %v3553 = vpop.f32.mrb[0].mxu0
        %3554 = vmatprep.mubr.f32.mxu0 0.0
        %3555 = vmatmul.mubr.f32.gmra.mrb[0].mxu0 %v3465
        %v3556 = vpop.f32.mrb[0].mxu0
        %v3557 = vadd.f32 0.0, %v3556
        %v3558 = vpop.f32.mrb[0].mxu0
        %3559 = vmatprep.mubr.f32.mxu0 0.0
        %3560 = vmatmul.mubr.f32.gmra.mrb[0].mxu0 %v3468
        %v3561 = vpop.f32.mrb[0].mxu0
        %v3562 = vadd.f32 0.0, %v3561
        %v3563 = vpop.f32.mrb[0].mxu0
        %3564 = vmatprep.mubr.f32.mxu0 0.0
        %3565 = vmatmul.mubr.f32.gmra.mrb[0].mxu0 %v3471
        %v3566 = vpop.f32.mrb[0].mxu0
        %v3567 = vadd.f32 0.0, %v3566
        %v3568 = vpop.f32.mrb[0].mxu0
        %3569 = vmatprep.mubr.f32.mxu0 0.0
        %3570 = vmatmul.mubr.f32.gmra.mrb[0].mxu0 %v3474
        %v3571 = vpop.f32.mrb[0].mxu0
        %v3572 = vadd.f32 0.0, %v3571
        %v3573 = vpop.f32.mrb[0].mxu0
        %3574 = vmatprep.mubr.f32.mxu0 0.0
        %3575 = vmatmul.mubr.f32.gmra.mrb[0].mxu0 %v3477
        %v3576 = vpop.f32.mrb[0].mxu0
        %v3577 = vadd.f32 0.0, %v3576
        %v3578 = vpop.f32.mrb[0].mxu0
        %3579 = vmatprep.mubr.f32.mxu0 0.0
        %3580 = vmatmul.mubr.f32.gmra.mrb[0].mxu0 %v3480
        %v3581 = vpop.f32.mrb[0].mxu0
        %v3582 = vadd.f32 0.0, %v3581
        %v3583 = vpop.f32.mrb[0].mxu0
        %3584 = vmatprep.mubr.f32.mxu0 0.0
        %3585 = vmatmul.mubr.f32.gmra.mrb[0].mxu0 %v3483
        %v3586 = vpop.f32.mrb[0].mxu0
        %v3587 = vadd.f32 0.0, %v3586
        %v3588 = vpop.f32.mrb[0].mxu0
        %3589 = vdwg.mxu0
        %v3591 = vsel %vm1585, %v3552, 0
        %v3594 = vsel %vm1585, %v3557, 0
        %v3597 = vsel %vm1585, %v3562, 0
        %v3600 = vsel %vm1585, %v3567, 0
        %v3603 = vsel %vm1585, %v3572, 0
        %v3606 = vsel %vm1585, %v3577, 0
        %v3609 = vsel %vm1585, %v3582, 0
        %v3612 = vsel %vm1585, %v3587, 0
        %3614 = vmatprep.subr.mxu0 0.0
        %3615 = vmatpush1.msra.mxu0 %v1560
        %3616 = vmatprep.subr.mxu0 0.0
        %3617 = vmatpush1.msra.mxu0 0.0
        %3618 = vmatprep.subr.mxu0 0.0
        %3619 = vmatpush1.msra.mxu0 0.0
        %3620 = vmatprep.subr.mxu0 0.0
        %3621 = vmatpush1.msra.mxu0 0.0
        %3622 = vmatprep.subr.mxu0 0.0
        %3623 = vmatpush1.msra.mxu0 0.0
        %3624 = vmatprep.subr.mxu0 0.0
        %3625 = vmatpush1.msra.mxu0 0.0
        %3626 = vmatprep.subr.mxu0 0.0
        %3627 = vmatpush1.msra.mxu0 0.0
        %3628 = vmatprep.subr.mxu0 0.0
        %3629 = vmatpush1.msra.mxu0 0.0
        %3630 = vmatprep.subr.mxu0 0.0
        %3631 = vmatpush1.msra.mxu0 0.0
        %3632 = vmatprep.subr.mxu0 0.0
        %3633 = vmatpush1.msra.mxu0 0.0
        %3634 = vmatprep.subr.mxu0 0.0
        %3635 = vmatpush1.msra.mxu0 0.0
        %3636 = vmatprep.subr.mxu0 0.0
        %3637 = vmatpush1.msra.mxu0 0.0
        %3638 = vmatprep.subr.mxu0 0.0
        %3639 = vmatpush1.msra.mxu0 0.0
        %3640 = vmatprep.subr.mxu0 0.0
        %3641 = vmatpush1.msra.mxu0 0.0
        %3642 = vmatprep.subr.mxu0 0.0
        %3643 = vmatpush1.msra.mxu0 0.0
        %3644 = vmatprep.subr.mxu0 0.0
        %3645 = vmatpush1.msra.mxu0 0.0
        %3646 = vmatprep.subr.mxu0 0.0
        %3647 = vmatpush1.msra.mxu0 0.0
        %3648 = vmatprep.subr.mxu0 0.0
        %3649 = vmatpush1.msra.mxu0 0.0
        %3650 = vmatprep.subr.mxu0 0.0
        %3651 = vmatpush1.msra.mxu0 0.0
        %3652 = vmatprep.subr.mxu0 0.0
        %3653 = vmatpush1.msra.mxu0 0.0
        %3654 = vmatprep.subr.mxu0 0.0
        %3655 = vmatpush1.msra.mxu0 0.0
        %3656 = vmatprep.subr.mxu0 0.0
        %3657 = vmatpush1.msra.mxu0 0.0
        %3658 = vmatprep.subr.mxu0 0.0
        %3659 = vmatpush1.msra.mxu0 0.0
        %3660 = vmatprep.subr.mxu0 0.0
        %3661 = vmatpush1.msra.mxu0 0.0
        %3662 = vmatprep.subr.mxu0 0.0
        %3663 = vmatpush1.msra.mxu0 0.0
        %3664 = vmatprep.subr.mxu0 0.0
        %3665 = vmatpush1.msra.mxu0 0.0
        %3666 = vmatprep.subr.mxu0 0.0
        %3667 = vmatpush1.msra.mxu0 0.0
        %3668 = vmatprep.subr.mxu0 0.0
        %3669 = vmatpush1.msra.mxu0 0.0
        %3670 = vmatprep.subr.mxu0 0.0
        %3671 = vmatpush1.msra.mxu0 0.0
        %3672 = vmatprep.subr.mxu0 0.0
        %3673 = vmatpush1.msra.mxu0 0.0
        %3674 = vmatprep.subr.mxu0 0.0
        %3675 = vmatpush1.msra.mxu0 0.0
        %3676 = vmatprep.subr.mxu0 0.0
        %3677 = vmatpush1.msra.mxu0 0.0
        %3678 = vmatprep.mubr.f32.mxu0 0.0
        %3679 = vmatmul.mubr.f32.gmra.mrb[0].mxu0 %v3591
        %v3680 = vpop.f32.mrb[0].mxu0
        %v3681 = vadd.f32 0.0, %v3680
        %v3682 = vpop.f32.mrb[0].mxu0
        %3683 = vmatprep.mubr.f32.mxu0 0.0
        %3684 = vmatmul.mubr.f32.gmra.mrb[0].mxu0 %v3594
        %v3685 = vpop.f32.mrb[0].mxu0
        %v3686 = vadd.f32 0.0, %v3685
        %v3687 = vpop.f32.mrb[0].mxu0
        %3688 = vmatprep.mubr.f32.mxu0 0.0
        %3689 = vmatmul.mubr.f32.gmra.mrb[0].mxu0 %v3597
        %v3690 = vpop.f32.mrb[0].mxu0
        %v3691 = vadd.f32 0.0, %v3690
        %v3692 = vpop.f32.mrb[0].mxu0
        %3693 = vmatprep.mubr.f32.mxu0 0.0
        %3694 = vmatmul.mubr.f32.gmra.mrb[0].mxu0 %v3600
        %v3695 = vpop.f32.mrb[0].mxu0
        %v3696 = vadd.f32 0.0, %v3695
        %v3697 = vpop.f32.mrb[0].mxu0
        %3698 = vmatprep.mubr.f32.mxu0 0.0
        %3699 = vmatmul.mubr.f32.gmra.mrb[0].mxu0 %v3603
        %v3700 = vpop.f32.mrb[0].mxu0
        %v3701 = vadd.f32 0.0, %v3700
        %v3702 = vpop.f32.mrb[0].mxu0
        %3703 = vmatprep.mubr.f32.mxu0 0.0
        %3704 = vmatmul.mubr.f32.gmra.mrb[0].mxu0 %v3606
        %v3705 = vpop.f32.mrb[0].mxu0
        %v3706 = vadd.f32 0.0, %v3705
        %v3707 = vpop.f32.mrb[0].mxu0
        %3708 = vmatprep.mubr.f32.mxu0 0.0
        %3709 = vmatmul.mubr.f32.gmra.mrb[0].mxu0 %v3609
        %v3710 = vpop.f32.mrb[0].mxu0
        %v3711 = vadd.f32 0.0, %v3710
        %v3712 = vpop.f32.mrb[0].mxu0
        %3713 = vmatprep.mubr.f32.mxu0 0.0
        %3714 = vmatmul.mubr.f32.gmra.mrb[0].mxu0 %v3612
        %v3715 = vpop.f32.mrb[0].mxu0
        %v3716 = vadd.f32 0.0, %v3715
        %v3717 = vpop.f32.mrb[0].mxu0
        %3718 = vdwg.mxu0
        %v3719 = vadd.f32 %v3172, %v3681
        %v3720 = vadd.f32 %v3173, %v3686
        %v3721 = vadd.f32 %v3174, %v3691
        %v3722 = vadd.f32 %v3175, %v3696
        %v3723 = vadd.f32 %v3176, %v3701
        %v3724 = vadd.f32 %v3177, %v3706
        %v3725 = vadd.f32 %v3178, %v3711
        %v3726 = vadd.f32 %v3179, %v3716
        %3735 = vrot.lane.b32.xlu0 %v1513, 96
        %v3736 = vpop.permute.xlu0 %3735
        %3737 = vrot.lane.b32.xlu0 %v1518, 96
        %v3738 = vpop.permute.xlu0 %3737
        %3739 = vrot.lane.b32.xlu0 %v1523, 96
        %v3740 = vpop.permute.xlu0 %3739
        %3741 = vrot.lane.b32.xlu0 %v1528, 96
        %v3742 = vpop.permute.xlu0 %3741
        %3743 = vrot.lane.b32.xlu0 %v1533, 96
        %v3744 = vpop.permute.xlu0 %3743
        %3745 = vrot.lane.b32.xlu0 %v1538, 96
        %v3746 = vpop.permute.xlu0 %3745
        %3747 = vrot.lane.b32.xlu0 %v1543, 96
        %v3748 = vpop.permute.xlu0 %3747
        %3749 = vrot.lane.b32.xlu0 %v1548, 96
        %v3750 = vpop.permute.xlu0 %3749
        %v3751 = vsel %vm1585, %v1513, 0
        %v3753 = vsel %vm1585, %v1518, 0
        %v3755 = vsel %vm1585, %v1523, 0
        %v3757 = vsel %vm1585, %v1528, 0
        %v3759 = vsel %vm1585, %v1533, 0
        %v3761 = vsel %vm1585, %v1538, 0
        %v3763 = vsel %vm1585, %v1543, 0
        %v3765 = vsel %vm1585, %v1548, 0
        %v3767 = vsel %vm1585, %v3736, 0
        %v3769 = vsel %vm1585, %v3738, 0
        %v3771 = vsel %vm1585, %v3740, 0
        %v3773 = vsel %vm1585, %v3742, 0
        %v3775 = vsel %vm1585, %v3744, 0
        %v3777 = vsel %vm1585, %v3746, 0
        %v3779 = vsel %vm1585, %v3748, 0
        %v3781 = vsel %vm1585, %v3750, 0
        %3783 = vmatprep.subr.mxu0 0.0
        %3784 = vmatpush1.xpose.msra.mxu0 %v3767
        %3785 = vmatprep.subr.mxu0 0.0
        %3786 = vmatpush1.xpose.msra.mxu0 %v3769
        %3787 = vmatprep.subr.mxu0 0.0
        %3788 = vmatpush1.xpose.msra.mxu0 %v3771
        %3789 = vmatprep.subr.mxu0 0.0
        %3790 = vmatpush1.xpose.msra.mxu0 %v3773
        %3791 = vmatprep.subr.mxu0 0.0
        %3792 = vmatpush1.xpose.msra.mxu0 %v3775
        %3793 = vmatprep.subr.mxu0 0.0
        %3794 = vmatpush1.xpose.msra.mxu0 %v3777
        %3795 = vmatprep.subr.mxu0 0.0
        %3796 = vmatpush1.xpose.msra.mxu0 %v3779
        %3797 = vmatprep.subr.mxu0 0.0
        %3798 = vmatpush1.xpose.msra.mxu0 %v3781
        %3799 = vmatprep.subr.mxu0 0.0
        %3800 = vmatpush1.xpose.msra.mxu0 0.0
        %3801 = vmatprep.subr.mxu0 0.0
        %3802 = vmatpush1.xpose.msra.mxu0 0.0
        %3803 = vmatprep.subr.mxu0 0.0
        %3804 = vmatpush1.xpose.msra.mxu0 0.0
        %3805 = vmatprep.subr.mxu0 0.0
        %3806 = vmatpush1.xpose.msra.mxu0 0.0
        %3807 = vmatprep.subr.mxu0 0.0
        %3808 = vmatpush1.xpose.msra.mxu0 0.0
        %3809 = vmatprep.subr.mxu0 0.0
        %3810 = vmatpush1.xpose.msra.mxu0 0.0
        %3811 = vmatprep.subr.mxu0 0.0
        %3812 = vmatpush1.xpose.msra.mxu0 0.0
        %3813 = vmatprep.subr.mxu0 0.0
        %3814 = vmatpush1.xpose.msra.mxu0 0.0
        %3815 = vmatprep.subr.mxu0 0.0
        %3816 = vmatpush1.xpose.msra.mxu0 0.0
        %3817 = vmatprep.subr.mxu0 0.0
        %3818 = vmatpush1.xpose.msra.mxu0 0.0
        %3819 = vmatprep.subr.mxu0 0.0
        %3820 = vmatpush1.xpose.msra.mxu0 0.0
        %3821 = vmatprep.subr.mxu0 0.0
        %3822 = vmatpush1.xpose.msra.mxu0 0.0
        %3823 = vmatprep.subr.mxu0 0.0
        %3824 = vmatpush1.xpose.msra.mxu0 0.0
        %3825 = vmatprep.subr.mxu0 0.0
        %3826 = vmatpush1.xpose.msra.mxu0 0.0
        %3827 = vmatprep.subr.mxu0 0.0
        %3828 = vmatpush1.xpose.msra.mxu0 0.0
        %3829 = vmatprep.subr.mxu0 0.0
        %3830 = vmatpush1.xpose.msra.mxu0 0.0
        %3831 = vmatprep.subr.mxu0 0.0
        %3832 = vmatpush1.xpose.msra.mxu0 0.0
        %3833 = vmatprep.subr.mxu0 0.0
        %3834 = vmatpush1.xpose.msra.mxu0 0.0
        %3835 = vmatprep.subr.mxu0 0.0
        %3836 = vmatpush1.xpose.msra.mxu0 0.0
        %3837 = vmatprep.subr.mxu0 0.0
        %3838 = vmatpush1.xpose.msra.mxu0 0.0
        %3839 = vmatprep.subr.mxu0 0.0
        %3840 = vmatpush1.xpose.msra.mxu0 0.0
        %3841 = vmatprep.subr.mxu0 0.0
        %3842 = vmatpush1.xpose.msra.mxu0 0.0
        %3843 = vmatprep.subr.mxu0 0.0
        %3844 = vmatpush1.xpose.msra.mxu0 0.0
        %3845 = vmatprep.subr.mxu0 0.0
        %3846 = vmatpush1.xpose.msra.mxu0 0.0
        %3847 = vmatprep.mubr.f32.mxu0 0.0
        %3848 = vmatmul.mubr.f32.gmra.mrb[0].mxu0 %v3751
        %v3849 = vpop.f32.mrb[0].mxu0
        %v3850 = vadd.f32 0.0, %v3849
        %v3851 = vpop.f32.mrb[0].mxu0
        %3852 = vmatprep.mubr.f32.mxu0 0.0
        %3853 = vmatmul.mubr.f32.gmra.mrb[0].mxu0 %v3753
        %v3854 = vpop.f32.mrb[0].mxu0
        %v3855 = vadd.f32 0.0, %v3854
        %v3856 = vpop.f32.mrb[0].mxu0
        %3857 = vmatprep.mubr.f32.mxu0 0.0
        %3858 = vmatmul.mubr.f32.gmra.mrb[0].mxu0 %v3755
        %v3859 = vpop.f32.mrb[0].mxu0
        %v3860 = vadd.f32 0.0, %v3859
        %v3861 = vpop.f32.mrb[0].mxu0
        %3862 = vmatprep.mubr.f32.mxu0 0.0
        %3863 = vmatmul.mubr.f32.gmra.mrb[0].mxu0 %v3757
        %v3864 = vpop.f32.mrb[0].mxu0
        %v3865 = vadd.f32 0.0, %v3864
        %v3866 = vpop.f32.mrb[0].mxu0
        %3867 = vmatprep.mubr.f32.mxu0 0.0
        %3868 = vmatmul.mubr.f32.gmra.mrb[0].mxu0 %v3759
        %v3869 = vpop.f32.mrb[0].mxu0
        %v3870 = vadd.f32 0.0, %v3869
        %v3871 = vpop.f32.mrb[0].mxu0
        %3872 = vmatprep.mubr.f32.mxu0 0.0
        %3873 = vmatmul.mubr.f32.gmra.mrb[0].mxu0 %v3761
        %v3874 = vpop.f32.mrb[0].mxu0
        %v3875 = vadd.f32 0.0, %v3874
        %v3876 = vpop.f32.mrb[0].mxu0
        %3877 = vmatprep.mubr.f32.mxu0 0.0
        %3878 = vmatmul.mubr.f32.gmra.mrb[0].mxu0 %v3763
        %v3879 = vpop.f32.mrb[0].mxu0
        %v3880 = vadd.f32 0.0, %v3879
        %v3881 = vpop.f32.mrb[0].mxu0
        %3882 = vmatprep.mubr.f32.mxu0 0.0
        %3883 = vmatmul.mubr.f32.gmra.mrb[0].mxu0 %v3765
        %v3884 = vpop.f32.mrb[0].mxu0
        %v3885 = vadd.f32 0.0, %v3884
        %v3886 = vpop.f32.mrb[0].mxu0
        %3887 = vdwg.mxu0
        %v3888 = vsel %vm1723, %v3850, -inf
        %3889 = vmax.xlane.f32.xlu0 %v3888
        %v3890 = vpop.xlane.xlu0 %3889
        %v3891 = vsel %vm1723, %v3855, -inf
        %3892 = vmax.xlane.f32.xlu0 %v3891
        %v3893 = vpop.xlane.xlu0 %3892
        %v3894 = vsel %vm1723, %v3860, -inf
        %3895 = vmax.xlane.f32.xlu0 %v3894
        %v3896 = vpop.xlane.xlu0 %3895
        %v3897 = vsel %vm1723, %v3865, -inf
        %3898 = vmax.xlane.f32.xlu0 %v3897
        %v3899 = vpop.xlane.xlu0 %3898
        %v3900 = vsel %vm1723, %v3870, -inf
        %3901 = vmax.xlane.f32.xlu0 %v3900
        %v3902 = vpop.xlane.xlu0 %3901
        %v3903 = vsel %vm1723, %v3875, -inf
        %3904 = vmax.xlane.f32.xlu0 %v3903
        %v3905 = vpop.xlane.xlu0 %3904
        %v3906 = vsel %vm1723, %v3880, -inf
        %3907 = vmax.xlane.f32.xlu0 %v3906
        %v3908 = vpop.xlane.xlu0 %3907
        %v3909 = vsel %vm1723, %v3885, -inf
        %3910 = vmax.xlane.f32.xlu0 %v3909
        %v3911 = vpop.xlane.xlu0 %3910
        %v3912 = vsub.f32 %v3850, %v3890
        %v3913 = vsub.f32 %v3855, %v3893
        %v3914 = vsub.f32 %v3860, %v3896
        %v3915 = vsub.f32 %v3865, %v3899
        %v3916 = vsub.f32 %v3870, %v3902
        %v3917 = vsub.f32 %v3875, %v3905
        %v3918 = vsub.f32 %v3880, %v3908
        %v3919 = vsub.f32 %v3885, %v3911
        %v3920 = vmul.f32 %v3912, 1.442695
        %v3921 = vpow.pop %v3920
        %v3922 = vmul.f32 %v3913, 1.442695
        %v3923 = vpow.pop %v3922
        %v3924 = vmul.f32 %v3914, 1.442695
        %v3925 = vpow.pop %v3924
        %v3926 = vmul.f32 %v3915, 1.442695
        %v3927 = vpow.pop %v3926
        %v3928 = vmul.f32 %v3916, 1.442695
        %v3929 = vpow.pop %v3928
        %v3930 = vmul.f32 %v3917, 1.442695
        %v3931 = vpow.pop %v3930
        %v3932 = vmul.f32 %v3918, 1.442695
        %v3933 = vpow.pop %v3932
        %v3934 = vmul.f32 %v3919, 1.442695
        %v3935 = vpow.pop %v3934
        %v3936 = vsel %vm1723, %v3921, 0.0
        %3937 = vadd.xlane.f32.xlu0 %v3936
        %v3938 = vpop.xlane.xlu0 %3937
        %v3939 = vsel %vm1723, %v3923, 0.0
        %3940 = vadd.xlane.f32.xlu0 %v3939
        %v3941 = vpop.xlane.xlu0 %3940
        %v3942 = vsel %vm1723, %v3925, 0.0
        %3943 = vadd.xlane.f32.xlu0 %v3942
        %v3944 = vpop.xlane.xlu0 %3943
        %v3945 = vsel %vm1723, %v3927, 0.0
        %3946 = vadd.xlane.f32.xlu0 %v3945
        %v3947 = vpop.xlane.xlu0 %3946
        %v3948 = vsel %vm1723, %v3929, 0.0
        %3949 = vadd.xlane.f32.xlu0 %v3948
        %v3950 = vpop.xlane.xlu0 %3949
        %v3951 = vsel %vm1723, %v3931, 0.0
        %3952 = vadd.xlane.f32.xlu0 %v3951
        %v3953 = vpop.xlane.xlu0 %3952
        %v3954 = vsel %vm1723, %v3933, 0.0
        %3955 = vadd.xlane.f32.xlu0 %v3954
        %v3956 = vpop.xlane.xlu0 %3955
        %v3957 = vsel %vm1723, %v3935, 0.0
        %3958 = vadd.xlane.f32.xlu0 %v3957
        %v3959 = vpop.xlane.xlu0 %3958
        %v3960 = vrcp.pop %v3938
        %v3961 = vrcp.pop %v3941
        %v3962 = vrcp.pop %v3944
        %v3963 = vrcp.pop %v3947
        %v3964 = vrcp.pop %v3950
        %v3965 = vrcp.pop %v3953
        %v3966 = vrcp.pop %v3956
        %v3967 = vrcp.pop %v3959
        %v3968 = vmul.f32 %v3921, %v3960
        %v3969 = vmul.f32 %v3923, %v3961
        %v3970 = vmul.f32 %v3925, %v3962
        %v3971 = vmul.f32 %v3927, %v3963
        %v3972 = vmul.f32 %v3929, %v3964
        %v3973 = vmul.f32 %v3931, %v3965
        %v3974 = vmul.f32 %v3933, %v3966
        %v3975 = vmul.f32 %v3935, %v3967
        %3976 = vrot.lane.b32.xlu0 %v1513, 64
        %v3977 = vpop.permute.xlu0 %3976
        %3978 = vrot.lane.b32.xlu0 %v1518, 64
        %v3979 = vpop.permute.xlu0 %3978
        %3980 = vrot.lane.b32.xlu0 %v1523, 64
        %v3981 = vpop.permute.xlu0 %3980
        %3982 = vrot.lane.b32.xlu0 %v1528, 64
        %v3983 = vpop.permute.xlu0 %3982
        %3984 = vrot.lane.b32.xlu0 %v1533, 64
        %v3985 = vpop.permute.xlu0 %3984
        %3986 = vrot.lane.b32.xlu0 %v1538, 64
        %v3987 = vpop.permute.xlu0 %3986
        %3988 = vrot.lane.b32.xlu0 %v1543, 64
        %v3989 = vpop.permute.xlu0 %3988
        %3990 = vrot.lane.b32.xlu0 %v1548, 64
        %v3991 = vpop.permute.xlu0 %3990
        %v4001 = vsel %vm1723, %v3968, 0
        %v4004 = vsel %vm1723, %v3969, 0
        %v4007 = vsel %vm1723, %v3970, 0
        %v4010 = vsel %vm1723, %v3971, 0
        %v4013 = vsel %vm1723, %v3972, 0
        %v4016 = vsel %vm1723, %v3973, 0
        %v4019 = vsel %vm1723, %v3974, 0
        %v4022 = vsel %vm1723, %v3975, 0
        %4024 = vmatprep.subr.mxu0 0.0
        %4025 = vmatpush1.msra.mxu0 %v3977
        %4026 = vmatprep.subr.mxu0 0.0
        %4027 = vmatpush1.msra.mxu0 %v3979
        %4028 = vmatprep.subr.mxu0 0.0
        %4029 = vmatpush1.msra.mxu0 %v3981
        %4030 = vmatprep.subr.mxu0 0.0
        %4031 = vmatpush1.msra.mxu0 %v3983
        %4032 = vmatprep.subr.mxu0 0.0
        %4033 = vmatpush1.msra.mxu0 %v3985
        %4034 = vmatprep.subr.mxu0 0.0
        %4035 = vmatpush1.msra.mxu0 %v3987
        %4036 = vmatprep.subr.mxu0 0.0
        %4037 = vmatpush1.msra.mxu0 %v3989
        %4038 = vmatprep.subr.mxu0 0.0
        %4039 = vmatpush1.msra.mxu0 %v3991
        %4040 = vmatprep.subr.mxu0 0.0
        %4041 = vmatpush1.msra.mxu0 0.0
        %4042 = vmatprep.subr.mxu0 0.0
        %4043 = vmatpush1.msra.mxu0 0.0
        %4044 = vmatprep.subr.mxu0 0.0
        %4045 = vmatpush1.msra.mxu0 0.0
        %4046 = vmatprep.subr.mxu0 0.0
        %4047 = vmatpush1.msra.mxu0 0.0
        %4048 = vmatprep.subr.mxu0 0.0
        %4049 = vmatpush1.msra.mxu0 0.0
        %4050 = vmatprep.subr.mxu0 0.0
        %4051 = vmatpush1.msra.mxu0 0.0
        %4052 = vmatprep.subr.mxu0 0.0
        %4053 = vmatpush1.msra.mxu0 0.0
        %4054 = vmatprep.subr.mxu0 0.0
        %4055 = vmatpush1.msra.mxu0 0.0
        %4056 = vmatprep.subr.mxu0 0.0
        %4057 = vmatpush1.msra.mxu0 0.0
        %4058 = vmatprep.subr.mxu0 0.0
        %4059 = vmatpush1.msra.mxu0 0.0
        %4060 = vmatprep.subr.mxu0 0.0
        %4061 = vmatpush1.msra.mxu0 0.0
        %4062 = vmatprep.subr.mxu0 0.0
        %4063 = vmatpush1.msra.mxu0 0.0
        %4064 = vmatprep.subr.mxu0 0.0
        %4065 = vmatpush1.msra.mxu0 0.0
        %4066 = vmatprep.subr.mxu0 0.0
        %4067 = vmatpush1.msra.mxu0 0.0
        %4068 = vmatprep.subr.mxu0 0.0
        %4069 = vmatpush1.msra.mxu0 0.0
        %4070 = vmatprep.subr.mxu0 0.0
        %4071 = vmatpush1.msra.mxu0 0.0
        %4072 = vmatprep.subr.mxu0 0.0
        %4073 = vmatpush1.msra.mxu0 0.0
        %4074 = vmatprep.subr.mxu0 0.0
        %4075 = vmatpush1.msra.mxu0 0.0
        %4076 = vmatprep.subr.mxu0 0.0
        %4077 = vmatpush1.msra.mxu0 0.0
        %4078 = vmatprep.subr.mxu0 0.0
        %4079 = vmatpush1.msra.mxu0 0.0
        %4080 = vmatprep.subr.mxu0 0.0
        %4081 = vmatpush1.msra.mxu0 0.0
        %4082 = vmatprep.subr.mxu0 0.0
        %4083 = vmatpush1.msra.mxu0 0.0
        %4084 = vmatprep.subr.mxu0 0.0
        %4085 = vmatpush1.msra.mxu0 0.0
        %4086 = vmatprep.subr.mxu0 0.0
        %4087 = vmatpush1.msra.mxu0 0.0
        %4088 = vmatprep.mubr.f32.mxu0 0.0
        %4089 = vmatmul.mubr.f32.gmra.mrb[0].mxu0 %v4001
        %v4090 = vpop.f32.mrb[0].mxu0
        %v4091 = vadd.f32 0.0, %v4090
        %v4092 = vpop.f32.mrb[0].mxu0
        %4093 = vmatprep.mubr.f32.mxu0 0.0
        %4094 = vmatmul.mubr.f32.gmra.mrb[0].mxu0 %v4004
        %v4095 = vpop.f32.mrb[0].mxu0
        %v4096 = vadd.f32 0.0, %v4095
        %v4097 = vpop.f32.mrb[0].mxu0
        %4098 = vmatprep.mubr.f32.mxu0 0.0
        %4099 = vmatmul.mubr.f32.gmra.mrb[0].mxu0 %v4007
        %v4100 = vpop.f32.mrb[0].mxu0
        %v4101 = vadd.f32 0.0, %v4100
        %v4102 = vpop.f32.mrb[0].mxu0
        %4103 = vmatprep.mubr.f32.mxu0 0.0
        %4104 = vmatmul.mubr.f32.gmra.mrb[0].mxu0 %v4010
        %v4105 = vpop.f32.mrb[0].mxu0
        %v4106 = vadd.f32 0.0, %v4105
        %v4107 = vpop.f32.mrb[0].mxu0
        %4108 = vmatprep.mubr.f32.mxu0 0.0
        %4109 = vmatmul.mubr.f32.gmra.mrb[0].mxu0 %v4013
        %v4110 = vpop.f32.mrb[0].mxu0
        %v4111 = vadd.f32 0.0, %v4110
        %v4112 = vpop.f32.mrb[0].mxu0
        %4113 = vmatprep.mubr.f32.mxu0 0.0
        %4114 = vmatmul.mubr.f32.gmra.mrb[0].mxu0 %v4016
        %v4115 = vpop.f32.mrb[0].mxu0
        %v4116 = vadd.f32 0.0, %v4115
        %v4117 = vpop.f32.mrb[0].mxu0
        %4118 = vmatprep.mubr.f32.mxu0 0.0
        %4119 = vmatmul.mubr.f32.gmra.mrb[0].mxu0 %v4019
        %v4120 = vpop.f32.mrb[0].mxu0
        %v4121 = vadd.f32 0.0, %v4120
        %v4122 = vpop.f32.mrb[0].mxu0
        %4123 = vmatprep.mubr.f32.mxu0 0.0
        %4124 = vmatmul.mubr.f32.gmra.mrb[0].mxu0 %v4022
        %v4125 = vpop.f32.mrb[0].mxu0
        %v4126 = vadd.f32 0.0, %v4125
        %v4127 = vpop.f32.mrb[0].mxu0
        %4128 = vdwg.mxu0
        %4129 = vrot.lane.b32.xlu0 %v1513, 120
        %v4130 = vpop.permute.xlu0 %4129
        %4131 = vrot.lane.b32.xlu0 %v1518, 120
        %v4132 = vpop.permute.xlu0 %4131
        %4133 = vrot.lane.b32.xlu0 %v1523, 120
        %v4134 = vpop.permute.xlu0 %4133
        %4135 = vrot.lane.b32.xlu0 %v1528, 120
        %v4136 = vpop.permute.xlu0 %4135
        %4137 = vrot.lane.b32.xlu0 %v1533, 120
        %v4138 = vpop.permute.xlu0 %4137
        %4139 = vrot.lane.b32.xlu0 %v1538, 120
        %v4140 = vpop.permute.xlu0 %4139
        %4141 = vrot.lane.b32.xlu0 %v1543, 120
        %v4142 = vpop.permute.xlu0 %4141
        %4143 = vrot.lane.b32.xlu0 %v1548, 120
        %v4144 = vpop.permute.xlu0 %4143
        %4145 = vrot.lane.b32.xlu0 %v1513, 88
        %v4146 = vpop.permute.xlu0 %4145
        %4147 = vrot.lane.b32.xlu0 %v1518, 88
        %v4148 = vpop.permute.xlu0 %4147
        %4149 = vrot.lane.b32.xlu0 %v1523, 88
        %v4150 = vpop.permute.xlu0 %4149
        %4151 = vrot.lane.b32.xlu0 %v1528, 88
        %v4152 = vpop.permute.xlu0 %4151
        %4153 = vrot.lane.b32.xlu0 %v1533, 88
        %v4154 = vpop.permute.xlu0 %4153
        %4155 = vrot.lane.b32.xlu0 %v1538, 88
        %v4156 = vpop.permute.xlu0 %4155
        %4157 = vrot.lane.b32.xlu0 %v1543, 88
        %v4158 = vpop.permute.xlu0 %4157
        %4159 = vrot.lane.b32.xlu0 %v1548, 88
        %v4160 = vpop.permute.xlu0 %4159
        %v4161 = vsel %vm1585, %v4130, 0
        %v4163 = vsel %vm1585, %v4132, 0
        %v4165 = vsel %vm1585, %v4134, 0
        %v4167 = vsel %vm1585, %v4136, 0
        %v4169 = vsel %vm1585, %v4138, 0
        %v4171 = vsel %vm1585, %v4140, 0
        %v4173 = vsel %vm1585, %v4142, 0
        %v4175 = vsel %vm1585, %v4144, 0
        %v4177 = vsel %vm1585, %v4146, 0
        %v4179 = vsel %vm1585, %v4148, 0
        %v4181 = vsel %vm1585, %v4150, 0
        %v4183 = vsel %vm1585, %v4152, 0
        %v4185 = vsel %vm1585, %v4154, 0
        %v4187 = vsel %vm1585, %v4156, 0
        %v4189 = vsel %vm1585, %v4158, 0
        %v4191 = vsel %vm1585, %v4160, 0
        %4193 = vmatprep.subr.mxu0 0.0
        %4194 = vmatpush1.xpose.msra.mxu0 %v4177
        %4195 = vmatprep.subr.mxu0 0.0
        %4196 = vmatpush1.xpose.msra.mxu0 %v4179
        %4197 = vmatprep.subr.mxu0 0.0
        %4198 = vmatpush1.xpose.msra.mxu0 %v4181
        %4199 = vmatprep.subr.mxu0 0.0
        %4200 = vmatpush1.xpose.msra.mxu0 %v4183
        %4201 = vmatprep.subr.mxu0 0.0
        %4202 = vmatpush1.xpose.msra.mxu0 %v4185
        %4203 = vmatprep.subr.mxu0 0.0
        %4204 = vmatpush1.xpose.msra.mxu0 %v4187
        %4205 = vmatprep.subr.mxu0 0.0
        %4206 = vmatpush1.xpose.msra.mxu0 %v4189
        %4207 = vmatprep.subr.mxu0 0.0
        %4208 = vmatpush1.xpose.msra.mxu0 %v4191
        %4209 = vmatprep.subr.mxu0 0.0
        %4210 = vmatpush1.xpose.msra.mxu0 0.0
        %4211 = vmatprep.subr.mxu0 0.0
        %4212 = vmatpush1.xpose.msra.mxu0 0.0
        %4213 = vmatprep.subr.mxu0 0.0
        %4214 = vmatpush1.xpose.msra.mxu0 0.0
        %4215 = vmatprep.subr.mxu0 0.0
        %4216 = vmatpush1.xpose.msra.mxu0 0.0
        %4217 = vmatprep.subr.mxu0 0.0
        %4218 = vmatpush1.xpose.msra.mxu0 0.0
        %4219 = vmatprep.subr.mxu0 0.0
        %4220 = vmatpush1.xpose.msra.mxu0 0.0
        %4221 = vmatprep.subr.mxu0 0.0
        %4222 = vmatpush1.xpose.msra.mxu0 0.0
        %4223 = vmatprep.subr.mxu0 0.0
        %4224 = vmatpush1.xpose.msra.mxu0 0.0
        %4225 = vmatprep.subr.mxu0 0.0
        %4226 = vmatpush1.xpose.msra.mxu0 0.0
        %4227 = vmatprep.subr.mxu0 0.0
        %4228 = vmatpush1.xpose.msra.mxu0 0.0
        %4229 = vmatprep.subr.mxu0 0.0
        %4230 = vmatpush1.xpose.msra.mxu0 0.0
        %4231 = vmatprep.subr.mxu0 0.0
        %4232 = vmatpush1.xpose.msra.mxu0 0.0
        %4233 = vmatprep.subr.mxu0 0.0
        %4234 = vmatpush1.xpose.msra.mxu0 0.0
        %4235 = vmatprep.subr.mxu0 0.0
        %4236 = vmatpush1.xpose.msra.mxu0 0.0
        %4237 = vmatprep.subr.mxu0 0.0
        %4238 = vmatpush1.xpose.msra.mxu0 0.0
        %4239 = vmatprep.subr.mxu0 0.0
        %4240 = vmatpush1.xpose.msra.mxu0 0.0
        %4241 = vmatprep.subr.mxu0 0.0
        %4242 = vmatpush1.xpose.msra.mxu0 0.0
        %4243 = vmatprep.subr.mxu0 0.0
        %4244 = vmatpush1.xpose.msra.mxu0 0.0
        %4245 = vmatprep.subr.mxu0 0.0
        %4246 = vmatpush1.xpose.msra.mxu0 0.0
        %4247 = vmatprep.subr.mxu0 0.0
        %4248 = vmatpush1.xpose.msra.mxu0 0.0
        %4249 = vmatprep.subr.mxu0 0.0
        %4250 = vmatpush1.xpose.msra.mxu0 0.0
        %4251 = vmatprep.subr.mxu0 0.0
        %4252 = vmatpush1.xpose.msra.mxu0 0.0
        %4253 = vmatprep.subr.mxu0 0.0
        %4254 = vmatpush1.xpose.msra.mxu0 0.0
        %4255 = vmatprep.subr.mxu0 0.0
        %4256 = vmatpush1.xpose.msra.mxu0 0.0
        %4257 = vmatprep.mubr.f32.mxu0 0.0
        %4258 = vmatmul.mubr.f32.gmra.mrb[0].mxu0 %v4161
        %v4259 = vpop.f32.mrb[0].mxu0
        %v4260 = vadd.f32 0.0, %v4259
        %v4261 = vpop.f32.mrb[0].mxu0
        %4262 = vmatprep.mubr.f32.mxu0 0.0
        %4263 = vmatmul.mubr.f32.gmra.mrb[0].mxu0 %v4163
        %v4264 = vpop.f32.mrb[0].mxu0
        %v4265 = vadd.f32 0.0, %v4264
        %v4266 = vpop.f32.mrb[0].mxu0
        %4267 = vmatprep.mubr.f32.mxu0 0.0
        %4268 = vmatmul.mubr.f32.gmra.mrb[0].mxu0 %v4165
        %v4269 = vpop.f32.mrb[0].mxu0
        %v4270 = vadd.f32 0.0, %v4269
        %v4271 = vpop.f32.mrb[0].mxu0
        %4272 = vmatprep.mubr.f32.mxu0 0.0
        %4273 = vmatmul.mubr.f32.gmra.mrb[0].mxu0 %v4167
        %v4274 = vpop.f32.mrb[0].mxu0
        %v4275 = vadd.f32 0.0, %v4274
        %v4276 = vpop.f32.mrb[0].mxu0
        %4277 = vmatprep.mubr.f32.mxu0 0.0
        %4278 = vmatmul.mubr.f32.gmra.mrb[0].mxu0 %v4169
        %v4279 = vpop.f32.mrb[0].mxu0
        %v4280 = vadd.f32 0.0, %v4279
        %v4281 = vpop.f32.mrb[0].mxu0
        %4282 = vmatprep.mubr.f32.mxu0 0.0
        %4283 = vmatmul.mubr.f32.gmra.mrb[0].mxu0 %v4171
        %v4284 = vpop.f32.mrb[0].mxu0
        %v4285 = vadd.f32 0.0, %v4284
        %v4286 = vpop.f32.mrb[0].mxu0
        %4287 = vmatprep.mubr.f32.mxu0 0.0
        %4288 = vmatmul.mubr.f32.gmra.mrb[0].mxu0 %v4173
        %v4289 = vpop.f32.mrb[0].mxu0
        %v4290 = vadd.f32 0.0, %v4289
        %v4291 = vpop.f32.mrb[0].mxu0
        %4292 = vmatprep.mubr.f32.mxu0 0.0
        %4293 = vmatmul.mubr.f32.gmra.mrb[0].mxu0 %v4175
        %v4294 = vpop.f32.mrb[0].mxu0
        %v4295 = vadd.f32 0.0, %v4294
        %v4296 = vpop.f32.mrb[0].mxu0
        %4297 = vdwg.mxu0
        %v4298 = vsel %vm1723, %v4260, -inf
        %4299 = vmax.xlane.f32.xlu0 %v4298
        %v4300 = vpop.xlane.xlu0 %4299
        %v4301 = vsel %vm1723, %v4265, -inf
        %4302 = vmax.xlane.f32.xlu0 %v4301
        %v4303 = vpop.xlane.xlu0 %4302
        %v4304 = vsel %vm1723, %v4270, -inf
        %4305 = vmax.xlane.f32.xlu0 %v4304
        %v4306 = vpop.xlane.xlu0 %4305
        %v4307 = vsel %vm1723, %v4275, -inf
        %4308 = vmax.xlane.f32.xlu0 %v4307
        %v4309 = vpop.xlane.xlu0 %4308
        %v4310 = vsel %vm1723, %v4280, -inf
        %4311 = vmax.xlane.f32.xlu0 %v4310
        %v4312 = vpop.xlane.xlu0 %4311
        %v4313 = vsel %vm1723, %v4285, -inf
        %4314 = vmax.xlane.f32.xlu0 %v4313
        %v4315 = vpop.xlane.xlu0 %4314
        %v4316 = vsel %vm1723, %v4290, -inf
        %4317 = vmax.xlane.f32.xlu0 %v4316
        %v4318 = vpop.xlane.xlu0 %4317
        %v4319 = vsel %vm1723, %v4295, -inf
        %4320 = vmax.xlane.f32.xlu0 %v4319
        %v4321 = vpop.xlane.xlu0 %4320
        %v4322 = vsub.f32 %v4260, %v4300
        %v4323 = vsub.f32 %v4265, %v4303
        %v4324 = vsub.f32 %v4270, %v4306
        %v4325 = vsub.f32 %v4275, %v4309
        %v4326 = vsub.f32 %v4280, %v4312
        %v4327 = vsub.f32 %v4285, %v4315
        %v4328 = vsub.f32 %v4290, %v4318
        %v4329 = vsub.f32 %v4295, %v4321
        %v4330 = vmul.f32 %v4322, 1.442695
        %v4331 = vpow.pop %v4330
        %v4332 = vmul.f32 %v4323, 1.442695
        %v4333 = vpow.pop %v4332
        %v4334 = vmul.f32 %v4324, 1.442695
        %v4335 = vpow.pop %v4334
        %v4336 = vmul.f32 %v4325, 1.442695
        %v4337 = vpow.pop %v4336
        %v4338 = vmul.f32 %v4326, 1.442695
        %v4339 = vpow.pop %v4338
        %v4340 = vmul.f32 %v4327, 1.442695
        %v4341 = vpow.pop %v4340
        %v4342 = vmul.f32 %v4328, 1.442695
        %v4343 = vpow.pop %v4342
        %v4344 = vmul.f32 %v4329, 1.442695
        %v4345 = vpow.pop %v4344
        %v4346 = vsel %vm1723, %v4331, 0.0
        %4347 = vadd.xlane.f32.xlu0 %v4346
        %v4348 = vpop.xlane.xlu0 %4347
        %v4349 = vsel %vm1723, %v4333, 0.0
        %4350 = vadd.xlane.f32.xlu0 %v4349
        %v4351 = vpop.xlane.xlu0 %4350
        %v4352 = vsel %vm1723, %v4335, 0.0
        %4353 = vadd.xlane.f32.xlu0 %v4352
        %v4354 = vpop.xlane.xlu0 %4353
        %v4355 = vsel %vm1723, %v4337, 0.0
        %4356 = vadd.xlane.f32.xlu0 %v4355
        %v4357 = vpop.xlane.xlu0 %4356
        %v4358 = vsel %vm1723, %v4339, 0.0
        %4359 = vadd.xlane.f32.xlu0 %v4358
        %v4360 = vpop.xlane.xlu0 %4359
        %v4361 = vsel %vm1723, %v4341, 0.0
        %4362 = vadd.xlane.f32.xlu0 %v4361
        %v4363 = vpop.xlane.xlu0 %4362
        %v4364 = vsel %vm1723, %v4343, 0.0
        %4365 = vadd.xlane.f32.xlu0 %v4364
        %v4366 = vpop.xlane.xlu0 %4365
        %v4367 = vsel %vm1723, %v4345, 0.0
        %4368 = vadd.xlane.f32.xlu0 %v4367
        %v4369 = vpop.xlane.xlu0 %4368
        %v4370 = vrcp.pop %v4348
        %v4371 = vrcp.pop %v4351
        %v4372 = vrcp.pop %v4354
        %v4373 = vrcp.pop %v4357
        %v4374 = vrcp.pop %v4360
        %v4375 = vrcp.pop %v4363
        %v4376 = vrcp.pop %v4366
        %v4377 = vrcp.pop %v4369
        %v4378 = vmul.f32 %v4331, %v4370
        %v4379 = vmul.f32 %v4333, %v4371
        %v4380 = vmul.f32 %v4335, %v4372
        %v4381 = vmul.f32 %v4337, %v4373
        %v4382 = vmul.f32 %v4339, %v4374
        %v4383 = vmul.f32 %v4341, %v4375
        %v4384 = vmul.f32 %v4343, %v4376
        %v4385 = vmul.f32 %v4345, %v4377
        %4386 = vrot.lane.b32.xlu0 %v1513, 56
        %v4387 = vpop.permute.xlu0 %4386
        %4388 = vrot.lane.b32.xlu0 %v1518, 56
        %v4389 = vpop.permute.xlu0 %4388
        %4390 = vrot.lane.b32.xlu0 %v1523, 56
        %v4391 = vpop.permute.xlu0 %4390
        %4392 = vrot.lane.b32.xlu0 %v1528, 56
        %v4393 = vpop.permute.xlu0 %4392
        %4394 = vrot.lane.b32.xlu0 %v1533, 56
        %v4395 = vpop.permute.xlu0 %4394
        %4396 = vrot.lane.b32.xlu0 %v1538, 56
        %v4397 = vpop.permute.xlu0 %4396
        %4398 = vrot.lane.b32.xlu0 %v1543, 56
        %v4399 = vpop.permute.xlu0 %4398
        %4400 = vrot.lane.b32.xlu0 %v1548, 56
        %v4401 = vpop.permute.xlu0 %4400
        %v4411 = vsel %vm1723, %v4378, 0
        %v4414 = vsel %vm1723, %v4379, 0
        %v4417 = vsel %vm1723, %v4380, 0
        %v4420 = vsel %vm1723, %v4381, 0
        %v4423 = vsel %vm1723, %v4382, 0
        %v4426 = vsel %vm1723, %v4383, 0
        %v4429 = vsel %vm1723, %v4384, 0
        %v4432 = vsel %vm1723, %v4385, 0
        %4434 = vmatprep.subr.mxu0 0.0
        %4435 = vmatpush1.msra.mxu0 %v4387
        %4436 = vmatprep.subr.mxu0 0.0
        %4437 = vmatpush1.msra.mxu0 %v4389
        %4438 = vmatprep.subr.mxu0 0.0
        %4439 = vmatpush1.msra.mxu0 %v4391
        %4440 = vmatprep.subr.mxu0 0.0
        %4441 = vmatpush1.msra.mxu0 %v4393
        %4442 = vmatprep.subr.mxu0 0.0
        %4443 = vmatpush1.msra.mxu0 %v4395
        %4444 = vmatprep.subr.mxu0 0.0
        %4445 = vmatpush1.msra.mxu0 %v4397
        %4446 = vmatprep.subr.mxu0 0.0
        %4447 = vmatpush1.msra.mxu0 %v4399
        %4448 = vmatprep.subr.mxu0 0.0
        %4449 = vmatpush1.msra.mxu0 %v4401
        %4450 = vmatprep.subr.mxu0 0.0
        %4451 = vmatpush1.msra.mxu0 0.0
        %4452 = vmatprep.subr.mxu0 0.0
        %4453 = vmatpush1.msra.mxu0 0.0
        %4454 = vmatprep.subr.mxu0 0.0
        %4455 = vmatpush1.msra.mxu0 0.0
        %4456 = vmatprep.subr.mxu0 0.0
        %4457 = vmatpush1.msra.mxu0 0.0
        %4458 = vmatprep.subr.mxu0 0.0
        %4459 = vmatpush1.msra.mxu0 0.0
        %4460 = vmatprep.subr.mxu0 0.0
        %4461 = vmatpush1.msra.mxu0 0.0
        %4462 = vmatprep.subr.mxu0 0.0
        %4463 = vmatpush1.msra.mxu0 0.0
        %4464 = vmatprep.subr.mxu0 0.0
        %4465 = vmatpush1.msra.mxu0 0.0
        %4466 = vmatprep.subr.mxu0 0.0
        %4467 = vmatpush1.msra.mxu0 0.0
        %4468 = vmatprep.subr.mxu0 0.0
        %4469 = vmatpush1.msra.mxu0 0.0
        %4470 = vmatprep.subr.mxu0 0.0
        %4471 = vmatpush1.msra.mxu0 0.0
        %4472 = vmatprep.subr.mxu0 0.0
        %4473 = vmatpush1.msra.mxu0 0.0
        %4474 = vmatprep.subr.mxu0 0.0
        %4475 = vmatpush1.msra.mxu0 0.0
        %4476 = vmatprep.subr.mxu0 0.0
        %4477 = vmatpush1.msra.mxu0 0.0
        %4478 = vmatprep.subr.mxu0 0.0
        %4479 = vmatpush1.msra.mxu0 0.0
        %4480 = vmatprep.subr.mxu0 0.0
        %4481 = vmatpush1.msra.mxu0 0.0
        %4482 = vmatprep.subr.mxu0 0.0
        %4483 = vmatpush1.msra.mxu0 0.0
        %4484 = vmatprep.subr.mxu0 0.0
        %4485 = vmatpush1.msra.mxu0 0.0
        %4486 = vmatprep.subr.mxu0 0.0
        %4487 = vmatpush1.msra.mxu0 0.0
        %4488 = vmatprep.subr.mxu0 0.0
        %4489 = vmatpush1.msra.mxu0 0.0
        %4490 = vmatprep.subr.mxu0 0.0
        %4491 = vmatpush1.msra.mxu0 0.0
        %4492 = vmatprep.subr.mxu0 0.0
        %4493 = vmatpush1.msra.mxu0 0.0
        %4494 = vmatprep.subr.mxu0 0.0
        %4495 = vmatpush1.msra.mxu0 0.0
        %4496 = vmatprep.subr.mxu0 0.0
        %4497 = vmatpush1.msra.mxu0 0.0
        %4498 = vmatprep.mubr.f32.mxu0 0.0
        %4499 = vmatmul.mubr.f32.gmra.mrb[0].mxu0 %v4411
        %v4500 = vpop.f32.mrb[0].mxu0
        %v4501 = vadd.f32 0.0, %v4500
        %v4502 = vpop.f32.mrb[0].mxu0
        %4503 = vmatprep.mubr.f32.mxu0 0.0
        %4504 = vmatmul.mubr.f32.gmra.mrb[0].mxu0 %v4414
        %v4505 = vpop.f32.mrb[0].mxu0
        %v4506 = vadd.f32 0.0, %v4505
        %v4507 = vpop.f32.mrb[0].mxu0
        %4508 = vmatprep.mubr.f32.mxu0 0.0
        %4509 = vmatmul.mubr.f32.gmra.mrb[0].mxu0 %v4417
        %v4510 = vpop.f32.mrb[0].mxu0
        %v4511 = vadd.f32 0.0, %v4510
        %v4512 = vpop.f32.mrb[0].mxu0
        %4513 = vmatprep.mubr.f32.mxu0 0.0
        %4514 = vmatmul.mubr.f32.gmra.mrb[0].mxu0 %v4420
        %v4515 = vpop.f32.mrb[0].mxu0
        %v4516 = vadd.f32 0.0, %v4515
        %v4517 = vpop.f32.mrb[0].mxu0
        %4518 = vmatprep.mubr.f32.mxu0 0.0
        %4519 = vmatmul.mubr.f32.gmra.mrb[0].mxu0 %v4423
        %v4520 = vpop.f32.mrb[0].mxu0
        %v4521 = vadd.f32 0.0, %v4520
        %v4522 = vpop.f32.mrb[0].mxu0
        %4523 = vmatprep.mubr.f32.mxu0 0.0
        %4524 = vmatmul.mubr.f32.gmra.mrb[0].mxu0 %v4426
        %v4525 = vpop.f32.mrb[0].mxu0
        %v4526 = vadd.f32 0.0, %v4525
        %v4527 = vpop.f32.mrb[0].mxu0
        %4528 = vmatprep.mubr.f32.mxu0 0.0
        %4529 = vmatmul.mubr.f32.gmra.mrb[0].mxu0 %v4429
        %v4530 = vpop.f32.mrb[0].mxu0
        %v4531 = vadd.f32 0.0, %v4530
        %v4532 = vpop.f32.mrb[0].mxu0
        %4533 = vmatprep.mubr.f32.mxu0 0.0
        %4534 = vmatmul.mubr.f32.gmra.mrb[0].mxu0 %v4432
        %v4535 = vpop.f32.mrb[0].mxu0
        %v4536 = vadd.f32 0.0, %v4535
        %v4537 = vpop.f32.mrb[0].mxu0
        %4538 = vdwg.mxu0
        %v4540 = vsel %vm1585, %v4501, 0
        %v4543 = vsel %vm1585, %v4506, 0
        %v4546 = vsel %vm1585, %v4511, 0
        %v4549 = vsel %vm1585, %v4516, 0
        %v4552 = vsel %vm1585, %v4521, 0
        %v4555 = vsel %vm1585, %v4526, 0
        %v4558 = vsel %vm1585, %v4531, 0
        %v4561 = vsel %vm1585, %v4536, 0
        %4563 = vmatprep.subr.mxu0 0.0
        %4564 = vmatpush1.msra.mxu0 %v1558
        %4565 = vmatprep.subr.mxu0 0.0
        %4566 = vmatpush1.msra.mxu0 0.0
        %4567 = vmatprep.subr.mxu0 0.0
        %4568 = vmatpush1.msra.mxu0 0.0
        %4569 = vmatprep.subr.mxu0 0.0
        %4570 = vmatpush1.msra.mxu0 0.0
        %4571 = vmatprep.subr.mxu0 0.0
        %4572 = vmatpush1.msra.mxu0 0.0
        %4573 = vmatprep.subr.mxu0 0.0
        %4574 = vmatpush1.msra.mxu0 0.0
        %4575 = vmatprep.subr.mxu0 0.0
        %4576 = vmatpush1.msra.mxu0 0.0
        %4577 = vmatprep.subr.mxu0 0.0
        %4578 = vmatpush1.msra.mxu0 0.0
        %4579 = vmatprep.subr.mxu0 0.0
        %4580 = vmatpush1.msra.mxu0 0.0
        %4581 = vmatprep.subr.mxu0 0.0
        %4582 = vmatpush1.msra.mxu0 0.0
        %4583 = vmatprep.subr.mxu0 0.0
        %4584 = vmatpush1.msra.mxu0 0.0
        %4585 = vmatprep.subr.mxu0 0.0
        %4586 = vmatpush1.msra.mxu0 0.0
        %4587 = vmatprep.subr.mxu0 0.0
        %4588 = vmatpush1.msra.mxu0 0.0
        %4589 = vmatprep.subr.mxu0 0.0
        %4590 = vmatpush1.msra.mxu0 0.0
        %4591 = vmatprep.subr.mxu0 0.0
        %4592 = vmatpush1.msra.mxu0 0.0
        %4593 = vmatprep.subr.mxu0 0.0
        %4594 = vmatpush1.msra.mxu0 0.0
        %4595 = vmatprep.subr.mxu0 0.0
        %4596 = vmatpush1.msra.mxu0 0.0
        %4597 = vmatprep.subr.mxu0 0.0
        %4598 = vmatpush1.msra.mxu0 0.0
        %4599 = vmatprep.subr.mxu0 0.0
        %4600 = vmatpush1.msra.mxu0 0.0
        %4601 = vmatprep.subr.mxu0 0.0
        %4602 = vmatpush1.msra.mxu0 0.0
        %4603 = vmatprep.subr.mxu0 0.0
        %4604 = vmatpush1.msra.mxu0 0.0
        %4605 = vmatprep.subr.mxu0 0.0
        %4606 = vmatpush1.msra.mxu0 0.0
        %4607 = vmatprep.subr.mxu0 0.0
        %4608 = vmatpush1.msra.mxu0 0.0
        %4609 = vmatprep.subr.mxu0 0.0
        %4610 = vmatpush1.msra.mxu0 0.0
        %4611 = vmatprep.subr.mxu0 0.0
        %4612 = vmatpush1.msra.mxu0 0.0
        %4613 = vmatprep.subr.mxu0 0.0
        %4614 = vmatpush1.msra.mxu0 0.0
        %4615 = vmatprep.subr.mxu0 0.0
        %4616 = vmatpush1.msra.mxu0 0.0
        %4617 = vmatprep.subr.mxu0 0.0
        %4618 = vmatpush1.msra.mxu0 0.0
        %4619 = vmatprep.subr.mxu0 0.0
        %4620 = vmatpush1.msra.mxu0 0.0
        %4621 = vmatprep.subr.mxu0 0.0
        %4622 = vmatpush1.msra.mxu0 0.0
        %4623 = vmatprep.subr.mxu0 0.0
        %4624 = vmatpush1.msra.mxu0 0.0
        %4625 = vmatprep.subr.mxu0 0.0
        %4626 = vmatpush1.msra.mxu0 0.0
        %4627 = vmatprep.mubr.f32.mxu0 0.0
        %4628 = vmatmul.mubr.f32.gmra.mrb[0].mxu0 %v4540
        %v4629 = vpop.f32.mrb[0].mxu0
        %v4630 = vadd.f32 0.0, %v4629
        %v4631 = vpop.f32.mrb[0].mxu0
        %4632 = vmatprep.mubr.f32.mxu0 0.0
        %4633 = vmatmul.mubr.f32.gmra.mrb[0].mxu0 %v4543
        %v4634 = vpop.f32.mrb[0].mxu0
        %v4635 = vadd.f32 0.0, %v4634
        %v4636 = vpop.f32.mrb[0].mxu0
        %4637 = vmatprep.mubr.f32.mxu0 0.0
        %4638 = vmatmul.mubr.f32.gmra.mrb[0].mxu0 %v4546
        %v4639 = vpop.f32.mrb[0].mxu0
        %v4640 = vadd.f32 0.0, %v4639
        %v4641 = vpop.f32.mrb[0].mxu0
        %4642 = vmatprep.mubr.f32.mxu0 0.0
        %4643 = vmatmul.mubr.f32.gmra.mrb[0].mxu0 %v4549
        %v4644 = vpop.f32.mrb[0].mxu0
        %v4645 = vadd.f32 0.0, %v4644
        %v4646 = vpop.f32.mrb[0].mxu0
        %4647 = vmatprep.mubr.f32.mxu0 0.0
        %4648 = vmatmul.mubr.f32.gmra.mrb[0].mxu0 %v4552
        %v4649 = vpop.f32.mrb[0].mxu0
        %v4650 = vadd.f32 0.0, %v4649
        %v4651 = vpop.f32.mrb[0].mxu0
        %4652 = vmatprep.mubr.f32.mxu0 0.0
        %4653 = vmatmul.mubr.f32.gmra.mrb[0].mxu0 %v4555
        %v4654 = vpop.f32.mrb[0].mxu0
        %v4655 = vadd.f32 0.0, %v4654
        %v4656 = vpop.f32.mrb[0].mxu0
        %4657 = vmatprep.mubr.f32.mxu0 0.0
        %4658 = vmatmul.mubr.f32.gmra.mrb[0].mxu0 %v4558
        %v4659 = vpop.f32.mrb[0].mxu0
        %v4660 = vadd.f32 0.0, %v4659
        %v4661 = vpop.f32.mrb[0].mxu0
        %4662 = vmatprep.mubr.f32.mxu0 0.0
        %4663 = vmatmul.mubr.f32.gmra.mrb[0].mxu0 %v4561
        %v4664 = vpop.f32.mrb[0].mxu0
        %v4665 = vadd.f32 0.0, %v4664
        %v4666 = vpop.f32.mrb[0].mxu0
        %4667 = vdwg.mxu0
        %v4669 = vsel %vm1585, %v4091, 0
        %v4672 = vsel %vm1585, %v4096, 0
        %v4675 = vsel %vm1585, %v4101, 0
        %v4678 = vsel %vm1585, %v4106, 0
        %v4681 = vsel %vm1585, %v4111, 0
        %v4684 = vsel %vm1585, %v4116, 0
        %v4687 = vsel %vm1585, %v4121, 0
        %v4690 = vsel %vm1585, %v4126, 0
        %4692 = vmatprep.subr.mxu0 0.0
        %4693 = vmatpush1.msra.mxu0 %v1557
        %4694 = vmatprep.subr.mxu0 0.0
        %4695 = vmatpush1.msra.mxu0 0.0
        %4696 = vmatprep.subr.mxu0 0.0
        %4697 = vmatpush1.msra.mxu0 0.0
        %4698 = vmatprep.subr.mxu0 0.0
        %4699 = vmatpush1.msra.mxu0 0.0
        %4700 = vmatprep.subr.mxu0 0.0
        %4701 = vmatpush1.msra.mxu0 0.0
        %4702 = vmatprep.subr.mxu0 0.0
        %4703 = vmatpush1.msra.mxu0 0.0
        %4704 = vmatprep.subr.mxu0 0.0
        %4705 = vmatpush1.msra.mxu0 0.0
        %4706 = vmatprep.subr.mxu0 0.0
        %4707 = vmatpush1.msra.mxu0 0.0
        %4708 = vmatprep.subr.mxu0 0.0
        %4709 = vmatpush1.msra.mxu0 0.0
        %4710 = vmatprep.subr.mxu0 0.0
        %4711 = vmatpush1.msra.mxu0 0.0
        %4712 = vmatprep.subr.mxu0 0.0
        %4713 = vmatpush1.msra.mxu0 0.0
        %4714 = vmatprep.subr.mxu0 0.0
        %4715 = vmatpush1.msra.mxu0 0.0
        %4716 = vmatprep.subr.mxu0 0.0
        %4717 = vmatpush1.msra.mxu0 0.0
        %4718 = vmatprep.subr.mxu0 0.0
        %4719 = vmatpush1.msra.mxu0 0.0
        %4720 = vmatprep.subr.mxu0 0.0
        %4721 = vmatpush1.msra.mxu0 0.0
        %4722 = vmatprep.subr.mxu0 0.0
        %4723 = vmatpush1.msra.mxu0 0.0
        %4724 = vmatprep.subr.mxu0 0.0
        %4725 = vmatpush1.msra.mxu0 0.0
        %4726 = vmatprep.subr.mxu0 0.0
        %4727 = vmatpush1.msra.mxu0 0.0
        %4728 = vmatprep.subr.mxu0 0.0
        %4729 = vmatpush1.msra.mxu0 0.0
        %4730 = vmatprep.subr.mxu0 0.0
        %4731 = vmatpush1.msra.mxu0 0.0
        %4732 = vmatprep.subr.mxu0 0.0
        %4733 = vmatpush1.msra.mxu0 0.0
        %4734 = vmatprep.subr.mxu0 0.0
        %4735 = vmatpush1.msra.mxu0 0.0
        %4736 = vmatprep.subr.mxu0 0.0
        %4737 = vmatpush1.msra.mxu0 0.0
        %4738 = vmatprep.subr.mxu0 0.0
        %4739 = vmatpush1.msra.mxu0 0.0
        %4740 = vmatprep.subr.mxu0 0.0
        %4741 = vmatpush1.msra.mxu0 0.0
        %4742 = vmatprep.subr.mxu0 0.0
        %4743 = vmatpush1.msra.mxu0 0.0
        %4744 = vmatprep.subr.mxu0 0.0
        %4745 = vmatpush1.msra.mxu0 0.0
        %4746 = vmatprep.subr.mxu0 0.0
        %4747 = vmatpush1.msra.mxu0 0.0
        %4748 = vmatprep.subr.mxu0 0.0
        %4749 = vmatpush1.msra.mxu0 0.0
        %4750 = vmatprep.subr.mxu0 0.0
        %4751 = vmatpush1.msra.mxu0 0.0
        %4752 = vmatprep.subr.mxu0 0.0
        %4753 = vmatpush1.msra.mxu0 0.0
        %4754 = vmatprep.subr.mxu0 0.0
        %4755 = vmatpush1.msra.mxu0 0.0
        %4756 = vmatprep.mubr.f32.mxu0 0.0
        %4757 = vmatmul.mubr.f32.gmra.mrb[0].mxu0 %v4669
        %v4758 = vpop.f32.mrb[0].mxu0
        %v4759 = vadd.f32 %v4630, %v4758
        %v4760 = vpop.f32.mrb[0].mxu0
        %4761 = vmatprep.mubr.f32.mxu0 0.0
        %4762 = vmatmul.mubr.f32.gmra.mrb[0].mxu0 %v4672
        %v4763 = vpop.f32.mrb[0].mxu0
        %v4764 = vadd.f32 %v4635, %v4763
        %v4765 = vpop.f32.mrb[0].mxu0
        %4766 = vmatprep.mubr.f32.mxu0 0.0
        %4767 = vmatmul.mubr.f32.gmra.mrb[0].mxu0 %v4675
        %v4768 = vpop.f32.mrb[0].mxu0
        %v4769 = vadd.f32 %v4640, %v4768
        %v4770 = vpop.f32.mrb[0].mxu0
        %4771 = vmatprep.mubr.f32.mxu0 0.0
        %4772 = vmatmul.mubr.f32.gmra.mrb[0].mxu0 %v4678
        %v4773 = vpop.f32.mrb[0].mxu0
        %v4774 = vadd.f32 %v4645, %v4773
        %v4775 = vpop.f32.mrb[0].mxu0
        %4776 = vmatprep.mubr.f32.mxu0 0.0
        %4777 = vmatmul.mubr.f32.gmra.mrb[0].mxu0 %v4681
        %v4778 = vpop.f32.mrb[0].mxu0
        %v4779 = vadd.f32 %v4650, %v4778
        %v4780 = vpop.f32.mrb[0].mxu0
        %4781 = vmatprep.mubr.f32.mxu0 0.0
        %4782 = vmatmul.mubr.f32.gmra.mrb[0].mxu0 %v4684
        %v4783 = vpop.f32.mrb[0].mxu0
        %v4784 = vadd.f32 %v4655, %v4783
        %v4785 = vpop.f32.mrb[0].mxu0
        %4786 = vmatprep.mubr.f32.mxu0 0.0
        %4787 = vmatmul.mubr.f32.gmra.mrb[0].mxu0 %v4687
        %v4788 = vpop.f32.mrb[0].mxu0
        %v4789 = vadd.f32 %v4660, %v4788
        %v4790 = vpop.f32.mrb[0].mxu0
        %4791 = vmatprep.mubr.f32.mxu0 0.0
        %4792 = vmatmul.mubr.f32.gmra.mrb[0].mxu0 %v4690
        %v4793 = vpop.f32.mrb[0].mxu0
        %v4794 = vadd.f32 %v4665, %v4793
        %v4795 = vpop.f32.mrb[0].mxu0
        %4796 = vdwg.mxu0
        %4797 = vrot.lane.b32.xlu0 %v1513, 112
        %v4798 = vpop.permute.xlu0 %4797
        %4799 = vrot.lane.b32.xlu0 %v1518, 112
        %v4800 = vpop.permute.xlu0 %4799
        %4801 = vrot.lane.b32.xlu0 %v1523, 112
        %v4802 = vpop.permute.xlu0 %4801
        %4803 = vrot.lane.b32.xlu0 %v1528, 112
        %v4804 = vpop.permute.xlu0 %4803
        %4805 = vrot.lane.b32.xlu0 %v1533, 112
        %v4806 = vpop.permute.xlu0 %4805
        %4807 = vrot.lane.b32.xlu0 %v1538, 112
        %v4808 = vpop.permute.xlu0 %4807
        %4809 = vrot.lane.b32.xlu0 %v1543, 112
        %v4810 = vpop.permute.xlu0 %4809
        %4811 = vrot.lane.b32.xlu0 %v1548, 112
        %v4812 = vpop.permute.xlu0 %4811
        %4813 = vrot.lane.b32.xlu0 %v1513, 80
        %v4814 = vpop.permute.xlu0 %4813
        %4815 = vrot.lane.b32.xlu0 %v1518, 80
        %v4816 = vpop.permute.xlu0 %4815
        %4817 = vrot.lane.b32.xlu0 %v1523, 80
        %v4818 = vpop.permute.xlu0 %4817
        %4819 = vrot.lane.b32.xlu0 %v1528, 80
        %v4820 = vpop.permute.xlu0 %4819
        %4821 = vrot.lane.b32.xlu0 %v1533, 80
        %v4822 = vpop.permute.xlu0 %4821
        %4823 = vrot.lane.b32.xlu0 %v1538, 80
        %v4824 = vpop.permute.xlu0 %4823
        %4825 = vrot.lane.b32.xlu0 %v1543, 80
        %v4826 = vpop.permute.xlu0 %4825
        %4827 = vrot.lane.b32.xlu0 %v1548, 80
        %v4828 = vpop.permute.xlu0 %4827
        %v4829 = vsel %vm1585, %v4798, 0
        %v4831 = vsel %vm1585, %v4800, 0
        %v4833 = vsel %vm1585, %v4802, 0
        %v4835 = vsel %vm1585, %v4804, 0
        %v4837 = vsel %vm1585, %v4806, 0
        %v4839 = vsel %vm1585, %v4808, 0
        %v4841 = vsel %vm1585, %v4810, 0
        %v4843 = vsel %vm1585, %v4812, 0
        %v4845 = vsel %vm1585, %v4814, 0
        %v4847 = vsel %vm1585, %v4816, 0
        %v4849 = vsel %vm1585, %v4818, 0
        %v4851 = vsel %vm1585, %v4820, 0
        %v4853 = vsel %vm1585, %v4822, 0
        %v4855 = vsel %vm1585, %v4824, 0
        %v4857 = vsel %vm1585, %v4826, 0
        %v4859 = vsel %vm1585, %v4828, 0
        %4861 = vmatprep.subr.mxu0 0.0
        %4862 = vmatpush1.xpose.msra.mxu0 %v4845
        %4863 = vmatprep.subr.mxu0 0.0
        %4864 = vmatpush1.xpose.msra.mxu0 %v4847
        %4865 = vmatprep.subr.mxu0 0.0
        %4866 = vmatpush1.xpose.msra.mxu0 %v4849
        %4867 = vmatprep.subr.mxu0 0.0
        %4868 = vmatpush1.xpose.msra.mxu0 %v4851
        %4869 = vmatprep.subr.mxu0 0.0
        %4870 = vmatpush1.xpose.msra.mxu0 %v4853
        %4871 = vmatprep.subr.mxu0 0.0
        %4872 = vmatpush1.xpose.msra.mxu0 %v4855
        %4873 = vmatprep.subr.mxu0 0.0
        %4874 = vmatpush1.xpose.msra.mxu0 %v4857
        %4875 = vmatprep.subr.mxu0 0.0
        %4876 = vmatpush1.xpose.msra.mxu0 %v4859
        %4877 = vmatprep.subr.mxu0 0.0
        %4878 = vmatpush1.xpose.msra.mxu0 0.0
        %4879 = vmatprep.subr.mxu0 0.0
        %4880 = vmatpush1.xpose.msra.mxu0 0.0
        %4881 = vmatprep.subr.mxu0 0.0
        %4882 = vmatpush1.xpose.msra.mxu0 0.0
        %4883 = vmatprep.subr.mxu0 0.0
        %4884 = vmatpush1.xpose.msra.mxu0 0.0
        %4885 = vmatprep.subr.mxu0 0.0
        %4886 = vmatpush1.xpose.msra.mxu0 0.0
        %4887 = vmatprep.subr.mxu0 0.0
        %4888 = vmatpush1.xpose.msra.mxu0 0.0
        %4889 = vmatprep.subr.mxu0 0.0
        %4890 = vmatpush1.xpose.msra.mxu0 0.0
        %4891 = vmatprep.subr.mxu0 0.0
        %4892 = vmatpush1.xpose.msra.mxu0 0.0
        %4893 = vmatprep.subr.mxu0 0.0
        %4894 = vmatpush1.xpose.msra.mxu0 0.0
        %4895 = vmatprep.subr.mxu0 0.0
        %4896 = vmatpush1.xpose.msra.mxu0 0.0
        %4897 = vmatprep.subr.mxu0 0.0
        %4898 = vmatpush1.xpose.msra.mxu0 0.0
        %4899 = vmatprep.subr.mxu0 0.0
        %4900 = vmatpush1.xpose.msra.mxu0 0.0
        %4901 = vmatprep.subr.mxu0 0.0
        %4902 = vmatpush1.xpose.msra.mxu0 0.0
        %4903 = vmatprep.subr.mxu0 0.0
        %4904 = vmatpush1.xpose.msra.mxu0 0.0
        %4905 = vmatprep.subr.mxu0 0.0
        %4906 = vmatpush1.xpose.msra.mxu0 0.0
        %4907 = vmatprep.subr.mxu0 0.0
        %4908 = vmatpush1.xpose.msra.mxu0 0.0
        %4909 = vmatprep.subr.mxu0 0.0
        %4910 = vmatpush1.xpose.msra.mxu0 0.0
        %4911 = vmatprep.subr.mxu0 0.0
        %4912 = vmatpush1.xpose.msra.mxu0 0.0
        %4913 = vmatprep.subr.mxu0 0.0
        %4914 = vmatpush1.xpose.msra.mxu0 0.0
        %4915 = vmatprep.subr.mxu0 0.0
        %4916 = vmatpush1.xpose.msra.mxu0 0.0
        %4917 = vmatprep.subr.mxu0 0.0
        %4918 = vmatpush1.xpose.msra.mxu0 0.0
        %4919 = vmatprep.subr.mxu0 0.0
        %4920 = vmatpush1.xpose.msra.mxu0 0.0
        %4921 = vmatprep.subr.mxu0 0.0
        %4922 = vmatpush1.xpose.msra.mxu0 0.0
        %4923 = vmatprep.subr.mxu0 0.0
        %4924 = vmatpush1.xpose.msra.mxu0 0.0
        %4925 = vmatprep.mubr.f32.mxu0 0.0
        %4926 = vmatmul.mubr.f32.gmra.mrb[0].mxu0 %v4829
        %v4927 = vpop.f32.mrb[0].mxu0
        %v4928 = vadd.f32 0.0, %v4927
        %v4929 = vpop.f32.mrb[0].mxu0
        %4930 = vmatprep.mubr.f32.mxu0 0.0
        %4931 = vmatmul.mubr.f32.gmra.mrb[0].mxu0 %v4831
        %v4932 = vpop.f32.mrb[0].mxu0
        %v4933 = vadd.f32 0.0, %v4932
        %v4934 = vpop.f32.mrb[0].mxu0
        %4935 = vmatprep.mubr.f32.mxu0 0.0
        %4936 = vmatmul.mubr.f32.gmra.mrb[0].mxu0 %v4833
        %v4937 = vpop.f32.mrb[0].mxu0
        %v4938 = vadd.f32 0.0, %v4937
        %v4939 = vpop.f32.mrb[0].mxu0
        %4940 = vmatprep.mubr.f32.mxu0 0.0
        %4941 = vmatmul.mubr.f32.gmra.mrb[0].mxu0 %v4835
        %v4942 = vpop.f32.mrb[0].mxu0
        %v4943 = vadd.f32 0.0, %v4942
        %v4944 = vpop.f32.mrb[0].mxu0
        %4945 = vmatprep.mubr.f32.mxu0 0.0
        %4946 = vmatmul.mubr.f32.gmra.mrb[0].mxu0 %v4837
        %v4947 = vpop.f32.mrb[0].mxu0
        %v4948 = vadd.f32 0.0, %v4947
        %v4949 = vpop.f32.mrb[0].mxu0
        %4950 = vmatprep.mubr.f32.mxu0 0.0
        %4951 = vmatmul.mubr.f32.gmra.mrb[0].mxu0 %v4839
        %v4952 = vpop.f32.mrb[0].mxu0
        %v4953 = vadd.f32 0.0, %v4952
        %v4954 = vpop.f32.mrb[0].mxu0
        %4955 = vmatprep.mubr.f32.mxu0 0.0
        %4956 = vmatmul.mubr.f32.gmra.mrb[0].mxu0 %v4841
        %v4957 = vpop.f32.mrb[0].mxu0
        %v4958 = vadd.f32 0.0, %v4957
        %v4959 = vpop.f32.mrb[0].mxu0
        %4960 = vmatprep.mubr.f32.mxu0 0.0
        %4961 = vmatmul.mubr.f32.gmra.mrb[0].mxu0 %v4843
        %v4962 = vpop.f32.mrb[0].mxu0
        %v4963 = vadd.f32 0.0, %v4962
        %v4964 = vpop.f32.mrb[0].mxu0
        %4965 = vdwg.mxu0
        %v4966 = vsel %vm1723, %v4928, -inf
        %4967 = vmax.xlane.f32.xlu0 %v4966
        %v4968 = vpop.xlane.xlu0 %4967
        %v4969 = vsel %vm1723, %v4933, -inf
        %4970 = vmax.xlane.f32.xlu0 %v4969
        %v4971 = vpop.xlane.xlu0 %4970
        %v4972 = vsel %vm1723, %v4938, -inf
        %4973 = vmax.xlane.f32.xlu0 %v4972
        %v4974 = vpop.xlane.xlu0 %4973
        %v4975 = vsel %vm1723, %v4943, -inf
        %4976 = vmax.xlane.f32.xlu0 %v4975
        %v4977 = vpop.xlane.xlu0 %4976
        %v4978 = vsel %vm1723, %v4948, -inf
        %4979 = vmax.xlane.f32.xlu0 %v4978
        %v4980 = vpop.xlane.xlu0 %4979
        %v4981 = vsel %vm1723, %v4953, -inf
        %4982 = vmax.xlane.f32.xlu0 %v4981
        %v4983 = vpop.xlane.xlu0 %4982
        %v4984 = vsel %vm1723, %v4958, -inf
        %4985 = vmax.xlane.f32.xlu0 %v4984
        %v4986 = vpop.xlane.xlu0 %4985
        %v4987 = vsel %vm1723, %v4963, -inf
        %4988 = vmax.xlane.f32.xlu0 %v4987
        %v4989 = vpop.xlane.xlu0 %4988
        %v4990 = vsub.f32 %v4928, %v4968
        %v4991 = vsub.f32 %v4933, %v4971
        %v4992 = vsub.f32 %v4938, %v4974
        %v4993 = vsub.f32 %v4943, %v4977
        %v4994 = vsub.f32 %v4948, %v4980
        %v4995 = vsub.f32 %v4953, %v4983
        %v4996 = vsub.f32 %v4958, %v4986
        %v4997 = vsub.f32 %v4963, %v4989
        %v4998 = vmul.f32 %v4990, 1.442695
        %v4999 = vpow.pop %v4998
        %v5000 = vmul.f32 %v4991, 1.442695
        %v5001 = vpow.pop %v5000
        %v5002 = vmul.f32 %v4992, 1.442695
        %v5003 = vpow.pop %v5002
        %v5004 = vmul.f32 %v4993, 1.442695
        %v5005 = vpow.pop %v5004
        %v5006 = vmul.f32 %v4994, 1.442695
        %v5007 = vpow.pop %v5006
        %v5008 = vmul.f32 %v4995, 1.442695
        %v5009 = vpow.pop %v5008
        %v5010 = vmul.f32 %v4996, 1.442695
        %v5011 = vpow.pop %v5010
        %v5012 = vmul.f32 %v4997, 1.442695
        %v5013 = vpow.pop %v5012
        %v5014 = vsel %vm1723, %v4999, 0.0
        %5015 = vadd.xlane.f32.xlu0 %v5014
        %v5016 = vpop.xlane.xlu0 %5015
        %v5017 = vsel %vm1723, %v5001, 0.0
        %5018 = vadd.xlane.f32.xlu0 %v5017
        %v5019 = vpop.xlane.xlu0 %5018
        %v5020 = vsel %vm1723, %v5003, 0.0
        %5021 = vadd.xlane.f32.xlu0 %v5020
        %v5022 = vpop.xlane.xlu0 %5021
        %v5023 = vsel %vm1723, %v5005, 0.0
        %5024 = vadd.xlane.f32.xlu0 %v5023
        %v5025 = vpop.xlane.xlu0 %5024
        %v5026 = vsel %vm1723, %v5007, 0.0
        %5027 = vadd.xlane.f32.xlu0 %v5026
        %v5028 = vpop.xlane.xlu0 %5027
        %v5029 = vsel %vm1723, %v5009, 0.0
        %5030 = vadd.xlane.f32.xlu0 %v5029
        %v5031 = vpop.xlane.xlu0 %5030
        %v5032 = vsel %vm1723, %v5011, 0.0
        %5033 = vadd.xlane.f32.xlu0 %v5032
        %v5034 = vpop.xlane.xlu0 %5033
        %v5035 = vsel %vm1723, %v5013, 0.0
        %5036 = vadd.xlane.f32.xlu0 %v5035
        %v5037 = vpop.xlane.xlu0 %5036
        %v5038 = vrcp.pop %v5016
        %v5039 = vrcp.pop %v5019
        %v5040 = vrcp.pop %v5022
        %v5041 = vrcp.pop %v5025
        %v5042 = vrcp.pop %v5028
        %v5043 = vrcp.pop %v5031
        %v5044 = vrcp.pop %v5034
        %v5045 = vrcp.pop %v5037
        %v5046 = vmul.f32 %v4999, %v5038
        %v5047 = vmul.f32 %v5001, %v5039
        %v5048 = vmul.f32 %v5003, %v5040
        %v5049 = vmul.f32 %v5005, %v5041
        %v5050 = vmul.f32 %v5007, %v5042
        %v5051 = vmul.f32 %v5009, %v5043
        %v5052 = vmul.f32 %v5011, %v5044
        %v5053 = vmul.f32 %v5013, %v5045
        %5054 = vrot.lane.b32.xlu0 %v1513, 48
        %v5055 = vpop.permute.xlu0 %5054
        %5056 = vrot.lane.b32.xlu0 %v1518, 48
        %v5057 = vpop.permute.xlu0 %5056
        %5058 = vrot.lane.b32.xlu0 %v1523, 48
        %v5059 = vpop.permute.xlu0 %5058
        %5060 = vrot.lane.b32.xlu0 %v1528, 48
        %v5061 = vpop.permute.xlu0 %5060
        %5062 = vrot.lane.b32.xlu0 %v1533, 48
        %v5063 = vpop.permute.xlu0 %5062
        %5064 = vrot.lane.b32.xlu0 %v1538, 48
        %v5065 = vpop.permute.xlu0 %5064
        %5066 = vrot.lane.b32.xlu0 %v1543, 48
        %v5067 = vpop.permute.xlu0 %5066
        %5068 = vrot.lane.b32.xlu0 %v1548, 48
        %v5069 = vpop.permute.xlu0 %5068
        %v5079 = vsel %vm1723, %v5046, 0
        %v5082 = vsel %vm1723, %v5047, 0
        %v5085 = vsel %vm1723, %v5048, 0
        %v5088 = vsel %vm1723, %v5049, 0
        %v5091 = vsel %vm1723, %v5050, 0
        %v5094 = vsel %vm1723, %v5051, 0
        %v5097 = vsel %vm1723, %v5052, 0
        %v5100 = vsel %vm1723, %v5053, 0
        %5102 = vmatprep.subr.mxu0 0.0
        %5103 = vmatpush1.msra.mxu0 %v5055
        %5104 = vmatprep.subr.mxu0 0.0
        %5105 = vmatpush1.msra.mxu0 %v5057
        %5106 = vmatprep.subr.mxu0 0.0
        %5107 = vmatpush1.msra.mxu0 %v5059
        %5108 = vmatprep.subr.mxu0 0.0
        %5109 = vmatpush1.msra.mxu0 %v5061
        %5110 = vmatprep.subr.mxu0 0.0
        %5111 = vmatpush1.msra.mxu0 %v5063
        %5112 = vmatprep.subr.mxu0 0.0
        %5113 = vmatpush1.msra.mxu0 %v5065
        %5114 = vmatprep.subr.mxu0 0.0
        %5115 = vmatpush1.msra.mxu0 %v5067
        %5116 = vmatprep.subr.mxu0 0.0
        %5117 = vmatpush1.msra.mxu0 %v5069
        %5118 = vmatprep.subr.mxu0 0.0
        %5119 = vmatpush1.msra.mxu0 0.0
        %5120 = vmatprep.subr.mxu0 0.0
        %5121 = vmatpush1.msra.mxu0 0.0
        %5122 = vmatprep.subr.mxu0 0.0
        %5123 = vmatpush1.msra.mxu0 0.0
        %5124 = vmatprep.subr.mxu0 0.0
        %5125 = vmatpush1.msra.mxu0 0.0
        %5126 = vmatprep.subr.mxu0 0.0
        %5127 = vmatpush1.msra.mxu0 0.0
        %5128 = vmatprep.subr.mxu0 0.0
        %5129 = vmatpush1.msra.mxu0 0.0
        %5130 = vmatprep.subr.mxu0 0.0
        %5131 = vmatpush1.msra.mxu0 0.0
        %5132 = vmatprep.subr.mxu0 0.0
        %5133 = vmatpush1.msra.mxu0 0.0
        %5134 = vmatprep.subr.mxu0 0.0
        %5135 = vmatpush1.msra.mxu0 0.0
        %5136 = vmatprep.subr.mxu0 0.0
        %5137 = vmatpush1.msra.mxu0 0.0
        %5138 = vmatprep.subr.mxu0 0.0
        %5139 = vmatpush1.msra.mxu0 0.0
        %5140 = vmatprep.subr.mxu0 0.0
        %5141 = vmatpush1.msra.mxu0 0.0
        %5142 = vmatprep.subr.mxu0 0.0
        %5143 = vmatpush1.msra.mxu0 0.0
        %5144 = vmatprep.subr.mxu0 0.0
        %5145 = vmatpush1.msra.mxu0 0.0
        %5146 = vmatprep.subr.mxu0 0.0
        %5147 = vmatpush1.msra.mxu0 0.0
        %5148 = vmatprep.subr.mxu0 0.0
        %5149 = vmatpush1.msra.mxu0 0.0
        %5150 = vmatprep.subr.mxu0 0.0
        %5151 = vmatpush1.msra.mxu0 0.0
        %5152 = vmatprep.subr.mxu0 0.0
        %5153 = vmatpush1.msra.mxu0 0.0
        %5154 = vmatprep.subr.mxu0 0.0
        %5155 = vmatpush1.msra.mxu0 0.0
        %5156 = vmatprep.subr.mxu0 0.0
        %5157 = vmatpush1.msra.mxu0 0.0
        %5158 = vmatprep.subr.mxu0 0.0
        %5159 = vmatpush1.msra.mxu0 0.0
        %5160 = vmatprep.subr.mxu0 0.0
        %5161 = vmatpush1.msra.mxu0 0.0
        %5162 = vmatprep.subr.mxu0 0.0
        %5163 = vmatpush1.msra.mxu0 0.0
        %5164 = vmatprep.subr.mxu0 0.0
        %5165 = vmatpush1.msra.mxu0 0.0
        %5166 = vmatprep.mubr.f32.mxu0 0.0
        %5167 = vmatmul.mubr.f32.gmra.mrb[0].mxu0 %v5079
        %v5168 = vpop.f32.mrb[0].mxu0
        %v5169 = vadd.f32 0.0, %v5168
        %v5170 = vpop.f32.mrb[0].mxu0
        %5171 = vmatprep.mubr.f32.mxu0 0.0
        %5172 = vmatmul.mubr.f32.gmra.mrb[0].mxu0 %v5082
        %v5173 = vpop.f32.mrb[0].mxu0
        %v5174 = vadd.f32 0.0, %v5173
        %v5175 = vpop.f32.mrb[0].mxu0
        %5176 = vmatprep.mubr.f32.mxu0 0.0
        %5177 = vmatmul.mubr.f32.gmra.mrb[0].mxu0 %v5085
        %v5178 = vpop.f32.mrb[0].mxu0
        %v5179 = vadd.f32 0.0, %v5178
        %v5180 = vpop.f32.mrb[0].mxu0
        %5181 = vmatprep.mubr.f32.mxu0 0.0
        %5182 = vmatmul.mubr.f32.gmra.mrb[0].mxu0 %v5088
        %v5183 = vpop.f32.mrb[0].mxu0
        %v5184 = vadd.f32 0.0, %v5183
        %v5185 = vpop.f32.mrb[0].mxu0
        %5186 = vmatprep.mubr.f32.mxu0 0.0
        %5187 = vmatmul.mubr.f32.gmra.mrb[0].mxu0 %v5091
        %v5188 = vpop.f32.mrb[0].mxu0
        %v5189 = vadd.f32 0.0, %v5188
        %v5190 = vpop.f32.mrb[0].mxu0
        %5191 = vmatprep.mubr.f32.mxu0 0.0
        %5192 = vmatmul.mubr.f32.gmra.mrb[0].mxu0 %v5094
        %v5193 = vpop.f32.mrb[0].mxu0
        %v5194 = vadd.f32 0.0, %v5193
        %v5195 = vpop.f32.mrb[0].mxu0
        %5196 = vmatprep.mubr.f32.mxu0 0.0
        %5197 = vmatmul.mubr.f32.gmra.mrb[0].mxu0 %v5097
        %v5198 = vpop.f32.mrb[0].mxu0
        %v5199 = vadd.f32 0.0, %v5198
        %v5200 = vpop.f32.mrb[0].mxu0
        %5201 = vmatprep.mubr.f32.mxu0 0.0
        %5202 = vmatmul.mubr.f32.gmra.mrb[0].mxu0 %v5100
        %v5203 = vpop.f32.mrb[0].mxu0
        %v5204 = vadd.f32 0.0, %v5203
        %v5205 = vpop.f32.mrb[0].mxu0
        %5206 = vdwg.mxu0
        %v5208 = vsel %vm1585, %v5169, 0
        %v5211 = vsel %vm1585, %v5174, 0
        %v5214 = vsel %vm1585, %v5179, 0
        %v5217 = vsel %vm1585, %v5184, 0
        %v5220 = vsel %vm1585, %v5189, 0
        %v5223 = vsel %vm1585, %v5194, 0
        %v5226 = vsel %vm1585, %v5199, 0
        %v5229 = vsel %vm1585, %v5204, 0
        %5231 = vmatprep.subr.mxu0 0.0
        %5232 = vmatpush1.msra.mxu0 %v1559
        %5233 = vmatprep.subr.mxu0 0.0
        %5234 = vmatpush1.msra.mxu0 0.0
        %5235 = vmatprep.subr.mxu0 0.0
        %5236 = vmatpush1.msra.mxu0 0.0
        %5237 = vmatprep.subr.mxu0 0.0
        %5238 = vmatpush1.msra.mxu0 0.0
        %5239 = vmatprep.subr.mxu0 0.0
        %5240 = vmatpush1.msra.mxu0 0.0
        %5241 = vmatprep.subr.mxu0 0.0
        %5242 = vmatpush1.msra.mxu0 0.0
        %5243 = vmatprep.subr.mxu0 0.0
        %5244 = vmatpush1.msra.mxu0 0.0
        %5245 = vmatprep.subr.mxu0 0.0
        %5246 = vmatpush1.msra.mxu0 0.0
        %5247 = vmatprep.subr.mxu0 0.0
        %5248 = vmatpush1.msra.mxu0 0.0
        %5249 = vmatprep.subr.mxu0 0.0
        %5250 = vmatpush1.msra.mxu0 0.0
        %5251 = vmatprep.subr.mxu0 0.0
        %5252 = vmatpush1.msra.mxu0 0.0
        %5253 = vmatprep.subr.mxu0 0.0
        %5254 = vmatpush1.msra.mxu0 0.0
        %5255 = vmatprep.subr.mxu0 0.0
        %5256 = vmatpush1.msra.mxu0 0.0
        %5257 = vmatprep.subr.mxu0 0.0
        %5258 = vmatpush1.msra.mxu0 0.0
        %5259 = vmatprep.subr.mxu0 0.0
        %5260 = vmatpush1.msra.mxu0 0.0
        %5261 = vmatprep.subr.mxu0 0.0
        %5262 = vmatpush1.msra.mxu0 0.0
        %5263 = vmatprep.subr.mxu0 0.0
        %5264 = vmatpush1.msra.mxu0 0.0
        %5265 = vmatprep.subr.mxu0 0.0
        %5266 = vmatpush1.msra.mxu0 0.0
        %5267 = vmatprep.subr.mxu0 0.0
        %5268 = vmatpush1.msra.mxu0 0.0
        %5269 = vmatprep.subr.mxu0 0.0
        %5270 = vmatpush1.msra.mxu0 0.0
        %5271 = vmatprep.subr.mxu0 0.0
        %5272 = vmatpush1.msra.mxu0 0.0
        %5273 = vmatprep.subr.mxu0 0.0
        %5274 = vmatpush1.msra.mxu0 0.0
        %5275 = vmatprep.subr.mxu0 0.0
        %5276 = vmatpush1.msra.mxu0 0.0
        %5277 = vmatprep.subr.mxu0 0.0
        %5278 = vmatpush1.msra.mxu0 0.0
        %5279 = vmatprep.subr.mxu0 0.0
        %5280 = vmatpush1.msra.mxu0 0.0
        %5281 = vmatprep.subr.mxu0 0.0
        %5282 = vmatpush1.msra.mxu0 0.0
        %5283 = vmatprep.subr.mxu0 0.0
        %5284 = vmatpush1.msra.mxu0 0.0
        %5285 = vmatprep.subr.mxu0 0.0
        %5286 = vmatpush1.msra.mxu0 0.0
        %5287 = vmatprep.subr.mxu0 0.0
        %5288 = vmatpush1.msra.mxu0 0.0
        %5289 = vmatprep.subr.mxu0 0.0
        %5290 = vmatpush1.msra.mxu0 0.0
        %5291 = vmatprep.subr.mxu0 0.0
        %5292 = vmatpush1.msra.mxu0 0.0
        %5293 = vmatprep.subr.mxu0 0.0
        %5294 = vmatpush1.msra.mxu0 0.0
        %5295 = vmatprep.mubr.f32.mxu0 0.0
        %5296 = vmatmul.mubr.f32.gmra.mrb[0].mxu0 %v5208
        %v5297 = vpop.f32.mrb[0].mxu0
        %v5298 = vadd.f32 0.0, %v5297
        %v5299 = vpop.f32.mrb[0].mxu0
        %5300 = vmatprep.mubr.f32.mxu0 0.0
        %5301 = vmatmul.mubr.f32.gmra.mrb[0].mxu0 %v5211
        %v5302 = vpop.f32.mrb[0].mxu0
        %v5303 = vadd.f32 0.0, %v5302
        %v5304 = vpop.f32.mrb[0].mxu0
        %5305 = vmatprep.mubr.f32.mxu0 0.0
        %5306 = vmatmul.mubr.f32.gmra.mrb[0].mxu0 %v5214
        %v5307 = vpop.f32.mrb[0].mxu0
        %v5308 = vadd.f32 0.0, %v5307
        %v5309 = vpop.f32.mrb[0].mxu0
        %5310 = vmatprep.mubr.f32.mxu0 0.0
        %5311 = vmatmul.mubr.f32.gmra.mrb[0].mxu0 %v5217
        %v5312 = vpop.f32.mrb[0].mxu0
        %v5313 = vadd.f32 0.0, %v5312
        %v5314 = vpop.f32.mrb[0].mxu0
        %5315 = vmatprep.mubr.f32.mxu0 0.0
        %5316 = vmatmul.mubr.f32.gmra.mrb[0].mxu0 %v5220
        %v5317 = vpop.f32.mrb[0].mxu0
        %v5318 = vadd.f32 0.0, %v5317
        %v5319 = vpop.f32.mrb[0].mxu0
        %5320 = vmatprep.mubr.f32.mxu0 0.0
        %5321 = vmatmul.mubr.f32.gmra.mrb[0].mxu0 %v5223
        %v5322 = vpop.f32.mrb[0].mxu0
        %v5323 = vadd.f32 0.0, %v5322
        %v5324 = vpop.f32.mrb[0].mxu0
        %5325 = vmatprep.mubr.f32.mxu0 0.0
        %5326 = vmatmul.mubr.f32.gmra.mrb[0].mxu0 %v5226
        %v5327 = vpop.f32.mrb[0].mxu0
        %v5328 = vadd.f32 0.0, %v5327
        %v5329 = vpop.f32.mrb[0].mxu0
        %5330 = vmatprep.mubr.f32.mxu0 0.0
        %5331 = vmatmul.mubr.f32.gmra.mrb[0].mxu0 %v5229
        %v5332 = vpop.f32.mrb[0].mxu0
        %v5333 = vadd.f32 0.0, %v5332
        %v5334 = vpop.f32.mrb[0].mxu0
        %5335 = vdwg.mxu0
        %v5336 = vadd.f32 %v4759, %v5298
        %v5337 = vadd.f32 %v4764, %v5303
        %v5338 = vadd.f32 %v4769, %v5308
        %v5339 = vadd.f32 %v4774, %v5313
        %v5340 = vadd.f32 %v4779, %v5318
        %v5341 = vadd.f32 %v4784, %v5323
        %v5342 = vadd.f32 %v4789, %v5328
        %v5343 = vadd.f32 %v4794, %v5333
        %5344 = vrot.lane.b32.xlu0 %v1513, 104
        %v5345 = vpop.permute.xlu0 %5344
        %5346 = vrot.lane.b32.xlu0 %v1518, 104
        %v5347 = vpop.permute.xlu0 %5346
        %5348 = vrot.lane.b32.xlu0 %v1523, 104
        %v5349 = vpop.permute.xlu0 %5348
        %5350 = vrot.lane.b32.xlu0 %v1528, 104
        %v5351 = vpop.permute.xlu0 %5350
        %5352 = vrot.lane.b32.xlu0 %v1533, 104
        %v5353 = vpop.permute.xlu0 %5352
        %5354 = vrot.lane.b32.xlu0 %v1538, 104
        %v5355 = vpop.permute.xlu0 %5354
        %5356 = vrot.lane.b32.xlu0 %v1543, 104
        %v5357 = vpop.permute.xlu0 %5356
        %5358 = vrot.lane.b32.xlu0 %v1548, 104
        %v5359 = vpop.permute.xlu0 %5358
        %5360 = vrot.lane.b32.xlu0 %v1513, 72
        %v5361 = vpop.permute.xlu0 %5360
        %5362 = vrot.lane.b32.xlu0 %v1518, 72
        %v5363 = vpop.permute.xlu0 %5362
        %5364 = vrot.lane.b32.xlu0 %v1523, 72
        %v5365 = vpop.permute.xlu0 %5364
        %5366 = vrot.lane.b32.xlu0 %v1528, 72
        %v5367 = vpop.permute.xlu0 %5366
        %5368 = vrot.lane.b32.xlu0 %v1533, 72
        %v5369 = vpop.permute.xlu0 %5368
        %5370 = vrot.lane.b32.xlu0 %v1538, 72
        %v5371 = vpop.permute.xlu0 %5370
        %5372 = vrot.lane.b32.xlu0 %v1543, 72
        %v5373 = vpop.permute.xlu0 %5372
        %5374 = vrot.lane.b32.xlu0 %v1548, 72
        %v5375 = vpop.permute.xlu0 %5374
        %v5376 = vsel %vm1585, %v5345, 0
        %v5378 = vsel %vm1585, %v5347, 0
        %v5380 = vsel %vm1585, %v5349, 0
        %v5382 = vsel %vm1585, %v5351, 0
        %v5384 = vsel %vm1585, %v5353, 0
        %v5386 = vsel %vm1585, %v5355, 0
        %v5388 = vsel %vm1585, %v5357, 0
        %v5390 = vsel %vm1585, %v5359, 0
        %v5392 = vsel %vm1585, %v5361, 0
        %v5394 = vsel %vm1585, %v5363, 0
        %v5396 = vsel %vm1585, %v5365, 0
        %v5398 = vsel %vm1585, %v5367, 0
        %v5400 = vsel %vm1585, %v5369, 0
        %v5402 = vsel %vm1585, %v5371, 0
        %v5404 = vsel %vm1585, %v5373, 0
        %v5406 = vsel %vm1585, %v5375, 0
        %5408 = vmatprep.subr.mxu0 0.0
        %5409 = vmatpush1.xpose.msra.mxu0 %v5392
        %5410 = vmatprep.subr.mxu0 0.0
        %5411 = vmatpush1.xpose.msra.mxu0 %v5394
        %5412 = vmatprep.subr.mxu0 0.0
        %5413 = vmatpush1.xpose.msra.mxu0 %v5396
        %5414 = vmatprep.subr.mxu0 0.0
        %5415 = vmatpush1.xpose.msra.mxu0 %v5398
        %5416 = vmatprep.subr.mxu0 0.0
        %5417 = vmatpush1.xpose.msra.mxu0 %v5400
        %5418 = vmatprep.subr.mxu0 0.0
        %5419 = vmatpush1.xpose.msra.mxu0 %v5402
        %5420 = vmatprep.subr.mxu0 0.0
        %5421 = vmatpush1.xpose.msra.mxu0 %v5404
        %5422 = vmatprep.subr.mxu0 0.0
        %5423 = vmatpush1.xpose.msra.mxu0 %v5406
        %5424 = vmatprep.subr.mxu0 0.0
        %5425 = vmatpush1.xpose.msra.mxu0 0.0
        %5426 = vmatprep.subr.mxu0 0.0
        %5427 = vmatpush1.xpose.msra.mxu0 0.0
        %5428 = vmatprep.subr.mxu0 0.0
        %5429 = vmatpush1.xpose.msra.mxu0 0.0
        %5430 = vmatprep.subr.mxu0 0.0
        %5431 = vmatpush1.xpose.msra.mxu0 0.0
        %5432 = vmatprep.subr.mxu0 0.0
        %5433 = vmatpush1.xpose.msra.mxu0 0.0
        %5434 = vmatprep.subr.mxu0 0.0
        %5435 = vmatpush1.xpose.msra.mxu0 0.0
        %5436 = vmatprep.subr.mxu0 0.0
        %5437 = vmatpush1.xpose.msra.mxu0 0.0
        %5438 = vmatprep.subr.mxu0 0.0
        %5439 = vmatpush1.xpose.msra.mxu0 0.0
        %5440 = vmatprep.subr.mxu0 0.0
        %5441 = vmatpush1.xpose.msra.mxu0 0.0
        %5442 = vmatprep.subr.mxu0 0.0
        %5443 = vmatpush1.xpose.msra.mxu0 0.0
        %5444 = vmatprep.subr.mxu0 0.0
        %5445 = vmatpush1.xpose.msra.mxu0 0.0
        %5446 = vmatprep.subr.mxu0 0.0
        %5447 = vmatpush1.xpose.msra.mxu0 0.0
        %5448 = vmatprep.subr.mxu0 0.0
        %5449 = vmatpush1.xpose.msra.mxu0 0.0
        %5450 = vmatprep.subr.mxu0 0.0
        %5451 = vmatpush1.xpose.msra.mxu0 0.0
        %5452 = vmatprep.subr.mxu0 0.0
        %5453 = vmatpush1.xpose.msra.mxu0 0.0
        %5454 = vmatprep.subr.mxu0 0.0
        %5455 = vmatpush1.xpose.msra.mxu0 0.0
        %5456 = vmatprep.subr.mxu0 0.0
        %5457 = vmatpush1.xpose.msra.mxu0 0.0
        %5458 = vmatprep.subr.mxu0 0.0
        %5459 = vmatpush1.xpose.msra.mxu0 0.0
        %5460 = vmatprep.subr.mxu0 0.0
        %5461 = vmatpush1.xpose.msra.mxu0 0.0
        %5462 = vmatprep.subr.mxu0 0.0
        %5463 = vmatpush1.xpose.msra.mxu0 0.0
        %5464 = vmatprep.subr.mxu0 0.0
        %5465 = vmatpush1.xpose.msra.mxu0 0.0
        %5466 = vmatprep.subr.mxu0 0.0
        %5467 = vmatpush1.xpose.msra.mxu0 0.0
        %5468 = vmatprep.subr.mxu0 0.0
        %5469 = vmatpush1.xpose.msra.mxu0 0.0
        %5470 = vmatprep.subr.mxu0 0.0
        %5471 = vmatpush1.xpose.msra.mxu0 0.0
        %5472 = vmatprep.mubr.f32.mxu0 0.0
        %5473 = vmatmul.mubr.f32.gmra.mrb[0].mxu0 %v5376
        %v5474 = vpop.f32.mrb[0].mxu0
        %v5475 = vadd.f32 0.0, %v5474
        %v5476 = vpop.f32.mrb[0].mxu0
        %5477 = vmatprep.mubr.f32.mxu0 0.0
        %5478 = vmatmul.mubr.f32.gmra.mrb[0].mxu0 %v5378
        %v5479 = vpop.f32.mrb[0].mxu0
        %v5480 = vadd.f32 0.0, %v5479
        %v5481 = vpop.f32.mrb[0].mxu0
        %5482 = vmatprep.mubr.f32.mxu0 0.0
        %5483 = vmatmul.mubr.f32.gmra.mrb[0].mxu0 %v5380
        %v5484 = vpop.f32.mrb[0].mxu0
        %v5485 = vadd.f32 0.0, %v5484
        %v5486 = vpop.f32.mrb[0].mxu0
        %5487 = vmatprep.mubr.f32.mxu0 0.0
        %5488 = vmatmul.mubr.f32.gmra.mrb[0].mxu0 %v5382
        %v5489 = vpop.f32.mrb[0].mxu0
        %v5490 = vadd.f32 0.0, %v5489
        %v5491 = vpop.f32.mrb[0].mxu0
        %5492 = vmatprep.mubr.f32.mxu0 0.0
        %5493 = vmatmul.mubr.f32.gmra.mrb[0].mxu0 %v5384
        %v5494 = vpop.f32.mrb[0].mxu0
        %v5495 = vadd.f32 0.0, %v5494
        %v5496 = vpop.f32.mrb[0].mxu0
        %5497 = vmatprep.mubr.f32.mxu0 0.0
        %5498 = vmatmul.mubr.f32.gmra.mrb[0].mxu0 %v5386
        %v5499 = vpop.f32.mrb[0].mxu0
        %v5500 = vadd.f32 0.0, %v5499
        %v5501 = vpop.f32.mrb[0].mxu0
        %5502 = vmatprep.mubr.f32.mxu0 0.0
        %5503 = vmatmul.mubr.f32.gmra.mrb[0].mxu0 %v5388
        %v5504 = vpop.f32.mrb[0].mxu0
        %v5505 = vadd.f32 0.0, %v5504
        %v5506 = vpop.f32.mrb[0].mxu0
        %5507 = vmatprep.mubr.f32.mxu0 0.0
        %5508 = vmatmul.mubr.f32.gmra.mrb[0].mxu0 %v5390
        %v5509 = vpop.f32.mrb[0].mxu0
        %v5510 = vadd.f32 0.0, %v5509
        %v5511 = vpop.f32.mrb[0].mxu0
        %5512 = vdwg.mxu0
        %v5513 = vsel %vm1723, %v5475, -inf
        %5514 = vmax.xlane.f32.xlu0 %v5513
        %v5515 = vpop.xlane.xlu0 %5514
        %v5516 = vsel %vm1723, %v5480, -inf
        %5517 = vmax.xlane.f32.xlu0 %v5516
        %v5518 = vpop.xlane.xlu0 %5517
        %v5519 = vsel %vm1723, %v5485, -inf
        %5520 = vmax.xlane.f32.xlu0 %v5519
        %v5521 = vpop.xlane.xlu0 %5520
        %v5522 = vsel %vm1723, %v5490, -inf
        %5523 = vmax.xlane.f32.xlu0 %v5522
        %v5524 = vpop.xlane.xlu0 %5523
        %v5525 = vsel %vm1723, %v5495, -inf
        %5526 = vmax.xlane.f32.xlu0 %v5525
        %v5527 = vpop.xlane.xlu0 %5526
        %v5528 = vsel %vm1723, %v5500, -inf
        %5529 = vmax.xlane.f32.xlu0 %v5528
        %v5530 = vpop.xlane.xlu0 %5529
        %v5531 = vsel %vm1723, %v5505, -inf
        %5532 = vmax.xlane.f32.xlu0 %v5531
        %v5533 = vpop.xlane.xlu0 %5532
        %v5534 = vsel %vm1723, %v5510, -inf
        %5535 = vmax.xlane.f32.xlu0 %v5534
        %v5536 = vpop.xlane.xlu0 %5535
        %v5537 = vsub.f32 %v5475, %v5515
        %v5538 = vsub.f32 %v5480, %v5518
        %v5539 = vsub.f32 %v5485, %v5521
        %v5540 = vsub.f32 %v5490, %v5524
        %v5541 = vsub.f32 %v5495, %v5527
        %v5542 = vsub.f32 %v5500, %v5530
        %v5543 = vsub.f32 %v5505, %v5533
        %v5544 = vsub.f32 %v5510, %v5536
        %v5545 = vmul.f32 %v5537, 1.442695
        %v5546 = vpow.pop %v5545
        %v5547 = vmul.f32 %v5538, 1.442695
        %v5548 = vpow.pop %v5547
        %v5549 = vmul.f32 %v5539, 1.442695
        %v5550 = vpow.pop %v5549
        %v5551 = vmul.f32 %v5540, 1.442695
        %v5552 = vpow.pop %v5551
        %v5553 = vmul.f32 %v5541, 1.442695
        %v5554 = vpow.pop %v5553
        %v5555 = vmul.f32 %v5542, 1.442695
        %v5556 = vpow.pop %v5555
        %v5557 = vmul.f32 %v5543, 1.442695
        %v5558 = vpow.pop %v5557
        %v5559 = vmul.f32 %v5544, 1.442695
        %v5560 = vpow.pop %v5559
        %v5561 = vsel %vm1723, %v5546, 0.0
        %5562 = vadd.xlane.f32.xlu0 %v5561
        %v5563 = vpop.xlane.xlu0 %5562
        %v5564 = vsel %vm1723, %v5548, 0.0
        %5565 = vadd.xlane.f32.xlu0 %v5564
        %v5566 = vpop.xlane.xlu0 %5565
        %v5567 = vsel %vm1723, %v5550, 0.0
        %5568 = vadd.xlane.f32.xlu0 %v5567
        %v5569 = vpop.xlane.xlu0 %5568
        %v5570 = vsel %vm1723, %v5552, 0.0
        %5571 = vadd.xlane.f32.xlu0 %v5570
        %v5572 = vpop.xlane.xlu0 %5571
        %v5573 = vsel %vm1723, %v5554, 0.0
        %5574 = vadd.xlane.f32.xlu0 %v5573
        %v5575 = vpop.xlane.xlu0 %5574
        %v5576 = vsel %vm1723, %v5556, 0.0
        %5577 = vadd.xlane.f32.xlu0 %v5576
        %v5578 = vpop.xlane.xlu0 %5577
        %v5579 = vsel %vm1723, %v5558, 0.0
        %5580 = vadd.xlane.f32.xlu0 %v5579
        %v5581 = vpop.xlane.xlu0 %5580
        %v5582 = vsel %vm1723, %v5560, 0.0
        %5583 = vadd.xlane.f32.xlu0 %v5582
        %v5584 = vpop.xlane.xlu0 %5583
        %v5585 = vrcp.pop %v5563
        %v5586 = vrcp.pop %v5566
        %v5587 = vrcp.pop %v5569
        %v5588 = vrcp.pop %v5572
        %v5589 = vrcp.pop %v5575
        %v5590 = vrcp.pop %v5578
        %v5591 = vrcp.pop %v5581
        %v5592 = vrcp.pop %v5584
        %v5593 = vmul.f32 %v5546, %v5585
        %v5594 = vmul.f32 %v5548, %v5586
        %v5595 = vmul.f32 %v5550, %v5587
        %v5596 = vmul.f32 %v5552, %v5588
        %v5597 = vmul.f32 %v5554, %v5589
        %v5598 = vmul.f32 %v5556, %v5590
        %v5599 = vmul.f32 %v5558, %v5591
        %v5600 = vmul.f32 %v5560, %v5592
        %5601 = vrot.lane.b32.xlu0 %v1513, 40
        %v5602 = vpop.permute.xlu0 %5601
        %5603 = vrot.lane.b32.xlu0 %v1518, 40
        %v5604 = vpop.permute.xlu0 %5603
        %5605 = vrot.lane.b32.xlu0 %v1523, 40
        %v5606 = vpop.permute.xlu0 %5605
        %5607 = vrot.lane.b32.xlu0 %v1528, 40
        %v5608 = vpop.permute.xlu0 %5607
        %5609 = vrot.lane.b32.xlu0 %v1533, 40
        %v5610 = vpop.permute.xlu0 %5609
        %5611 = vrot.lane.b32.xlu0 %v1538, 40
        %v5612 = vpop.permute.xlu0 %5611
        %5613 = vrot.lane.b32.xlu0 %v1543, 40
        %v5614 = vpop.permute.xlu0 %5613
        %5615 = vrot.lane.b32.xlu0 %v1548, 40
        %v5616 = vpop.permute.xlu0 %5615
        %v5626 = vsel %vm1723, %v5593, 0
        %v5629 = vsel %vm1723, %v5594, 0
        %v5632 = vsel %vm1723, %v5595, 0
        %v5635 = vsel %vm1723, %v5596, 0
        %v5638 = vsel %vm1723, %v5597, 0
        %v5641 = vsel %vm1723, %v5598, 0
        %v5644 = vsel %vm1723, %v5599, 0
        %v5647 = vsel %vm1723, %v5600, 0
        %5649 = vmatprep.subr.mxu0 0.0
        %5650 = vmatpush1.msra.mxu0 %v5602
        %5651 = vmatprep.subr.mxu0 0.0
        %5652 = vmatpush1.msra.mxu0 %v5604
        %5653 = vmatprep.subr.mxu0 0.0
        %5654 = vmatpush1.msra.mxu0 %v5606
        %5655 = vmatprep.subr.mxu0 0.0
        %5656 = vmatpush1.msra.mxu0 %v5608
        %5657 = vmatprep.subr.mxu0 0.0
        %5658 = vmatpush1.msra.mxu0 %v5610
        %5659 = vmatprep.subr.mxu0 0.0
        %5660 = vmatpush1.msra.mxu0 %v5612
        %5661 = vmatprep.subr.mxu0 0.0
        %5662 = vmatpush1.msra.mxu0 %v5614
        %5663 = vmatprep.subr.mxu0 0.0
        %5664 = vmatpush1.msra.mxu0 %v5616
        %5665 = vmatprep.subr.mxu0 0.0
        %5666 = vmatpush1.msra.mxu0 0.0
        %5667 = vmatprep.subr.mxu0 0.0
        %5668 = vmatpush1.msra.mxu0 0.0
        %5669 = vmatprep.subr.mxu0 0.0
        %5670 = vmatpush1.msra.mxu0 0.0
        %5671 = vmatprep.subr.mxu0 0.0
        %5672 = vmatpush1.msra.mxu0 0.0
        %5673 = vmatprep.subr.mxu0 0.0
        %5674 = vmatpush1.msra.mxu0 0.0
        %5675 = vmatprep.subr.mxu0 0.0
        %5676 = vmatpush1.msra.mxu0 0.0
        %5677 = vmatprep.subr.mxu0 0.0
        %5678 = vmatpush1.msra.mxu0 0.0
        %5679 = vmatprep.subr.mxu0 0.0
        %5680 = vmatpush1.msra.mxu0 0.0
        %5681 = vmatprep.subr.mxu0 0.0
        %5682 = vmatpush1.msra.mxu0 0.0
        %5683 = vmatprep.subr.mxu0 0.0
        %5684 = vmatpush1.msra.mxu0 0.0
        %5685 = vmatprep.subr.mxu0 0.0
        %5686 = vmatpush1.msra.mxu0 0.0
        %5687 = vmatprep.subr.mxu0 0.0
        %5688 = vmatpush1.msra.mxu0 0.0
        %5689 = vmatprep.subr.mxu0 0.0
        %5690 = vmatpush1.msra.mxu0 0.0
        %5691 = vmatprep.subr.mxu0 0.0
        %5692 = vmatpush1.msra.mxu0 0.0
        %5693 = vmatprep.subr.mxu0 0.0
        %5694 = vmatpush1.msra.mxu0 0.0
        %5695 = vmatprep.subr.mxu0 0.0
        %5696 = vmatpush1.msra.mxu0 0.0
        %5697 = vmatprep.subr.mxu0 0.0
        %5698 = vmatpush1.msra.mxu0 0.0
        %5699 = vmatprep.subr.mxu0 0.0
        %5700 = vmatpush1.msra.mxu0 0.0
        %5701 = vmatprep.subr.mxu0 0.0
        %5702 = vmatpush1.msra.mxu0 0.0
        %5703 = vmatprep.subr.mxu0 0.0
        %5704 = vmatpush1.msra.mxu0 0.0
        %5705 = vmatprep.subr.mxu0 0.0
        %5706 = vmatpush1.msra.mxu0 0.0
        %5707 = vmatprep.subr.mxu0 0.0
        %5708 = vmatpush1.msra.mxu0 0.0
        %5709 = vmatprep.subr.mxu0 0.0
        %5710 = vmatpush1.msra.mxu0 0.0
        %5711 = vmatprep.subr.mxu0 0.0
        %5712 = vmatpush1.msra.mxu0 0.0
        %5713 = vmatprep.mubr.f32.mxu0 0.0
        %5714 = vmatmul.mubr.f32.gmra.mrb[0].mxu0 %v5626
        %v5715 = vpop.f32.mrb[0].mxu0
        %v5716 = vadd.f32 0.0, %v5715
        %v5717 = vpop.f32.mrb[0].mxu0
        %5718 = vmatprep.mubr.f32.mxu0 0.0
        %5719 = vmatmul.mubr.f32.gmra.mrb[0].mxu0 %v5629
        %v5720 = vpop.f32.mrb[0].mxu0
        %v5721 = vadd.f32 0.0, %v5720
        %v5722 = vpop.f32.mrb[0].mxu0
        %5723 = vmatprep.mubr.f32.mxu0 0.0
        %5724 = vmatmul.mubr.f32.gmra.mrb[0].mxu0 %v5632
        %v5725 = vpop.f32.mrb[0].mxu0
        %v5726 = vadd.f32 0.0, %v5725
        %v5727 = vpop.f32.mrb[0].mxu0
        %5728 = vmatprep.mubr.f32.mxu0 0.0
        %5729 = vmatmul.mubr.f32.gmra.mrb[0].mxu0 %v5635
        %v5730 = vpop.f32.mrb[0].mxu0
        %v5731 = vadd.f32 0.0, %v5730
        %v5732 = vpop.f32.mrb[0].mxu0
        %5733 = vmatprep.mubr.f32.mxu0 0.0
        %5734 = vmatmul.mubr.f32.gmra.mrb[0].mxu0 %v5638
        %v5735 = vpop.f32.mrb[0].mxu0
        %v5736 = vadd.f32 0.0, %v5735
        %v5737 = vpop.f32.mrb[0].mxu0
        %5738 = vmatprep.mubr.f32.mxu0 0.0
        %5739 = vmatmul.mubr.f32.gmra.mrb[0].mxu0 %v5641
        %v5740 = vpop.f32.mrb[0].mxu0
        %v5741 = vadd.f32 0.0, %v5740
        %v5742 = vpop.f32.mrb[0].mxu0
        %5743 = vmatprep.mubr.f32.mxu0 0.0
        %5744 = vmatmul.mubr.f32.gmra.mrb[0].mxu0 %v5644
        %v5745 = vpop.f32.mrb[0].mxu0
        %v5746 = vadd.f32 0.0, %v5745
        %v5747 = vpop.f32.mrb[0].mxu0
        %5748 = vmatprep.mubr.f32.mxu0 0.0
        %5749 = vmatmul.mubr.f32.gmra.mrb[0].mxu0 %v5647
        %v5750 = vpop.f32.mrb[0].mxu0
        %v5751 = vadd.f32 0.0, %v5750
        %v5752 = vpop.f32.mrb[0].mxu0
        %5753 = vdwg.mxu0
        %v5755 = vsel %vm1585, %v5716, 0
        %v5758 = vsel %vm1585, %v5721, 0
        %v5761 = vsel %vm1585, %v5726, 0
        %v5764 = vsel %vm1585, %v5731, 0
        %v5767 = vsel %vm1585, %v5736, 0
        %v5770 = vsel %vm1585, %v5741, 0
        %v5773 = vsel %vm1585, %v5746, 0
        %v5776 = vsel %vm1585, %v5751, 0
        %5778 = vmatprep.subr.mxu0 0.0
        %5779 = vmatpush1.msra.mxu0 %v1560
        %5780 = vmatprep.subr.mxu0 0.0
        %5781 = vmatpush1.msra.mxu0 0.0
        %5782 = vmatprep.subr.mxu0 0.0
        %5783 = vmatpush1.msra.mxu0 0.0
        %5784 = vmatprep.subr.mxu0 0.0
        %5785 = vmatpush1.msra.mxu0 0.0
        %5786 = vmatprep.subr.mxu0 0.0
        %5787 = vmatpush1.msra.mxu0 0.0
        %5788 = vmatprep.subr.mxu0 0.0
        %5789 = vmatpush1.msra.mxu0 0.0
        %5790 = vmatprep.subr.mxu0 0.0
        %5791 = vmatpush1.msra.mxu0 0.0
        %5792 = vmatprep.subr.mxu0 0.0
        %5793 = vmatpush1.msra.mxu0 0.0
        %5794 = vmatprep.subr.mxu0 0.0
        %5795 = vmatpush1.msra.mxu0 0.0
        %5796 = vmatprep.subr.mxu0 0.0
        %5797 = vmatpush1.msra.mxu0 0.0
        %5798 = vmatprep.subr.mxu0 0.0
        %5799 = vmatpush1.msra.mxu0 0.0
        %5800 = vmatprep.subr.mxu0 0.0
        %5801 = vmatpush1.msra.mxu0 0.0
        %5802 = vmatprep.subr.mxu0 0.0
        %5803 = vmatpush1.msra.mxu0 0.0
        %5804 = vmatprep.subr.mxu0 0.0
        %5805 = vmatpush1.msra.mxu0 0.0
        %5806 = vmatprep.subr.mxu0 0.0
        %5807 = vmatpush1.msra.mxu0 0.0
        %5808 = vmatprep.subr.mxu0 0.0
        %5809 = vmatpush1.msra.mxu0 0.0
        %5810 = vmatprep.subr.mxu0 0.0
        %5811 = vmatpush1.msra.mxu0 0.0
        %5812 = vmatprep.subr.mxu0 0.0
        %5813 = vmatpush1.msra.mxu0 0.0
        %5814 = vmatprep.subr.mxu0 0.0
        %5815 = vmatpush1.msra.mxu0 0.0
        %5816 = vmatprep.subr.mxu0 0.0
        %5817 = vmatpush1.msra.mxu0 0.0
        %5818 = vmatprep.subr.mxu0 0.0
        %5819 = vmatpush1.msra.mxu0 0.0
        %5820 = vmatprep.subr.mxu0 0.0
        %5821 = vmatpush1.msra.mxu0 0.0
        %5822 = vmatprep.subr.mxu0 0.0
        %5823 = vmatpush1.msra.mxu0 0.0
        %5824 = vmatprep.subr.mxu0 0.0
        %5825 = vmatpush1.msra.mxu0 0.0
        %5826 = vmatprep.subr.mxu0 0.0
        %5827 = vmatpush1.msra.mxu0 0.0
        %5828 = vmatprep.subr.mxu0 0.0
        %5829 = vmatpush1.msra.mxu0 0.0
        %5830 = vmatprep.subr.mxu0 0.0
        %5831 = vmatpush1.msra.mxu0 0.0
        %5832 = vmatprep.subr.mxu0 0.0
        %5833 = vmatpush1.msra.mxu0 0.0
        %5834 = vmatprep.subr.mxu0 0.0
        %5835 = vmatpush1.msra.mxu0 0.0
        %5836 = vmatprep.subr.mxu0 0.0
        %5837 = vmatpush1.msra.mxu0 0.0
        %5838 = vmatprep.subr.mxu0 0.0
        %5839 = vmatpush1.msra.mxu0 0.0
        %5840 = vmatprep.subr.mxu0 0.0
        %5841 = vmatpush1.msra.mxu0 0.0
        %5842 = vmatprep.mubr.f32.mxu0 0.0
        %5843 = vmatmul.mubr.f32.gmra.mrb[0].mxu0 %v5755
        %v5844 = vpop.f32.mrb[0].mxu0
        %v5845 = vadd.f32 0.0, %v5844
        %v5846 = vpop.f32.mrb[0].mxu0
        %5847 = vmatprep.mubr.f32.mxu0 0.0
        %5848 = vmatmul.mubr.f32.gmra.mrb[0].mxu0 %v5758
        %v5849 = vpop.f32.mrb[0].mxu0
        %v5850 = vadd.f32 0.0, %v5849
        %v5851 = vpop.f32.mrb[0].mxu0
        %5852 = vmatprep.mubr.f32.mxu0 0.0
        %5853 = vmatmul.mubr.f32.gmra.mrb[0].mxu0 %v5761
        %v5854 = vpop.f32.mrb[0].mxu0
        %v5855 = vadd.f32 0.0, %v5854
        %v5856 = vpop.f32.mrb[0].mxu0
        %5857 = vmatprep.mubr.f32.mxu0 0.0
        %5858 = vmatmul.mubr.f32.gmra.mrb[0].mxu0 %v5764
        %v5859 = vpop.f32.mrb[0].mxu0
        %v5860 = vadd.f32 0.0, %v5859
        %v5861 = vpop.f32.mrb[0].mxu0
        %5862 = vmatprep.mubr.f32.mxu0 0.0
        %5863 = vmatmul.mubr.f32.gmra.mrb[0].mxu0 %v5767
        %v5864 = vpop.f32.mrb[0].mxu0
        %v5865 = vadd.f32 0.0, %v5864
        %v5866 = vpop.f32.mrb[0].mxu0
        %5867 = vmatprep.mubr.f32.mxu0 0.0
        %5868 = vmatmul.mubr.f32.gmra.mrb[0].mxu0 %v5770
        %v5869 = vpop.f32.mrb[0].mxu0
        %v5870 = vadd.f32 0.0, %v5869
        %v5871 = vpop.f32.mrb[0].mxu0
        %5872 = vmatprep.mubr.f32.mxu0 0.0
        %5873 = vmatmul.mubr.f32.gmra.mrb[0].mxu0 %v5773
        %v5874 = vpop.f32.mrb[0].mxu0
        %v5875 = vadd.f32 0.0, %v5874
        %v5876 = vpop.f32.mrb[0].mxu0
        %5877 = vmatprep.mubr.f32.mxu0 0.0
        %5878 = vmatmul.mubr.f32.gmra.mrb[0].mxu0 %v5776
        %v5879 = vpop.f32.mrb[0].mxu0
        %v5880 = vadd.f32 0.0, %v5879
        %v5881 = vpop.f32.mrb[0].mxu0
        %5882 = vdwg.mxu0
        %v5883 = vadd.f32 %v5336, %v5845
        %v5884 = vadd.f32 %v5337, %v5850
        %v5885 = vadd.f32 %v5338, %v5855
        %v5886 = vadd.f32 %v5339, %v5860
        %v5887 = vadd.f32 %v5340, %v5865
        %v5888 = vadd.f32 %v5341, %v5870
        %v5889 = vadd.f32 %v5342, %v5875
        %v5890 = vadd.f32 %v5343, %v5880
        %s5891 = scalar_lea.vmem [#allocation14], %s34
        %v5892 = vld [vmem:[%s5891] sm:$0x1]
        %v5894 = vlaneseq
        %v5895 = vshrl.u32 %v5894, 7
        %v5896 = vsub.s32 0, %v5895
        %v5897 = vrot.slane %v5892, %v5896
        %v5899 = vadd.f32 %v3719, %v5897
        %v5900 = vadd.f32 %v3720, %v5897
        %v5901 = vadd.f32 %v3721, %v5897
        %v5902 = vadd.f32 %v3722, %v5897
        %v5903 = vadd.f32 %v3723, %v5897
        %v5904 = vadd.f32 %v3724, %v5897
        %v5905 = vadd.f32 %v3725, %v5897
        %v5906 = vadd.f32 %v3726, %v5897
        %v5907 = vadd.f32 %v5883, %v5897
        %v5908 = vadd.f32 %v5884, %v5897
        %v5909 = vadd.f32 %v5885, %v5897
        %v5910 = vadd.f32 %v5886, %v5897
        %v5911 = vadd.f32 %v5887, %v5897
        %v5912 = vadd.f32 %v5888, %v5897
        %v5913 = vadd.f32 %v5889, %v5897
        %v5914 = vadd.f32 %v5890, %v5897
        %v5915 = vadd.f32 %v5899, %v1322
        %v5916 = vadd.f32 %v5900, %v1323
        %v5917 = vadd.f32 %v5901, %v1324
        %v5918 = vadd.f32 %v5902, %v1325
        %v5919 = vadd.f32 %v5903, %v1326
        %v5920 = vadd.f32 %v5904, %v1327
        %v5921 = vadd.f32 %v5905, %v1328
        %v5922 = vadd.f32 %v5906, %v1329
        %v5923 = vadd.f32 %v5907, %v1330
        %v5924 = vadd.f32 %v5908, %v1331
        %v5925 = vadd.f32 %v5909, %v1332
        %v5926 = vadd.f32 %v5910, %v1333
        %v5927 = vadd.f32 %v5911, %v1334
        %v5928 = vadd.f32 %v5912, %v1335
        %v5929 = vadd.f32 %v5913, %v1336
        %v5930 = vadd.f32 %v5914, %v1337
        %s5931 = smul.addr %s1338, 4
        %s5932 = scalar_lea.vmem %s10, %s5931
        %v5933 = vld [vmem:[%s5932] sm:$0xf]
        %v5934 = vld [vmem:[%s5932 + $0x4] sm:$0xf]
        %v5935 = vld [vmem:[%s5932 + $0x8] sm:$0xf]
        %v5936 = vld [vmem:[%s5932 + $0xc] sm:$0xf]
        %v5937 = vunpack.c.l.bf16 %v5933
        %v5938 = vunpack.c.l.bf16 %v5934
        %v5939 = vunpack.c.l.bf16 %v5935
        %v5940 = vunpack.c.l.bf16 %v5936
        %v5942 = vsel %vm1357, %v5915, 0
        %v5945 = vsel %vm1357, %v5916, 0
        %v5948 = vsel %vm1357, %v5917, 0
        %v5951 = vsel %vm1357, %v5918, 0
        %v5954 = vsel %vm1357, %v5919, 0
        %v5957 = vsel %vm1357, %v5920, 0
        %v5960 = vsel %vm1357, %v5921, 0
        %v5963 = vsel %vm1357, %v5922, 0
        %v5966 = vsel %vm1357, %v5923, 0
        %v5969 = vsel %vm1357, %v5924, 0
        %v5972 = vsel %vm1357, %v5925, 0
        %v5975 = vsel %vm1357, %v5926, 0
        %v5978 = vsel %vm1357, %v5927, 0
        %v5981 = vsel %vm1357, %v5928, 0
        %v5984 = vsel %vm1357, %v5929, 0
        %v5987 = vsel %vm1357, %v5930, 0
        %5989 = vmatprep.subr.mxu0 0.0
        %5990 = vmatpush1.msra.mxu0 %v5937
        %5991 = vmatprep.subr.mxu0 0.0
        %5992 = vmatpush1.msra.mxu0 %v5938
        %5993 = vmatprep.subr.mxu0 0.0
        %5994 = vmatpush1.msra.mxu0 %v5939
        %5995 = vmatprep.subr.mxu0 0.0
        %5996 = vmatpush1.msra.mxu0 %v5940
        %5997 = vmatprep.subr.mxu0 0.0
        %5998 = vmatpush1.msra.mxu0 0.0
        %5999 = vmatprep.subr.mxu0 0.0
        %6000 = vmatpush1.msra.mxu0 0.0
        %6001 = vmatprep.subr.mxu0 0.0
        %6002 = vmatpush1.msra.mxu0 0.0
        %6003 = vmatprep.subr.mxu0 0.0
        %6004 = vmatpush1.msra.mxu0 0.0
        %6005 = vmatprep.subr.mxu0 0.0
        %6006 = vmatpush1.msra.mxu0 0.0
        %6007 = vmatprep.subr.mxu0 0.0
        %6008 = vmatpush1.msra.mxu0 0.0
        %6009 = vmatprep.subr.mxu0 0.0
        %6010 = vmatpush1.msra.mxu0 0.0
        %6011 = vmatprep.subr.mxu0 0.0
        %6012 = vmatpush1.msra.mxu0 0.0
        %6013 = vmatprep.subr.mxu0 0.0
        %6014 = vmatpush1.msra.mxu0 0.0
        %6015 = vmatprep.subr.mxu0 0.0
        %6016 = vmatpush1.msra.mxu0 0.0
        %6017 = vmatprep.subr.mxu0 0.0
        %6018 = vmatpush1.msra.mxu0 0.0
        %6019 = vmatprep.subr.mxu0 0.0
        %6020 = vmatpush1.msra.mxu0 0.0
        %6021 = vmatprep.subr.mxu0 0.0
        %6022 = vmatpush1.msra.mxu0 0.0
        %6023 = vmatprep.subr.mxu0 0.0
        %6024 = vmatpush1.msra.mxu0 0.0
        %6025 = vmatprep.subr.mxu0 0.0
        %6026 = vmatpush1.msra.mxu0 0.0
        %6027 = vmatprep.subr.mxu0 0.0
        %6028 = vmatpush1.msra.mxu0 0.0
        %6029 = vmatprep.subr.mxu0 0.0
        %6030 = vmatpush1.msra.mxu0 0.0
        %6031 = vmatprep.subr.mxu0 0.0
        %6032 = vmatpush1.msra.mxu0 0.0
        %6033 = vmatprep.subr.mxu0 0.0
        %6034 = vmatpush1.msra.mxu0 0.0
        %6035 = vmatprep.subr.mxu0 0.0
        %6036 = vmatpush1.msra.mxu0 0.0
        %6037 = vmatprep.subr.mxu0 0.0
        %6038 = vmatpush1.msra.mxu0 0.0
        %6039 = vmatprep.subr.mxu0 0.0
        %6040 = vmatpush1.msra.mxu0 0.0
        %6041 = vmatprep.subr.mxu0 0.0
        %6042 = vmatpush1.msra.mxu0 0.0
        %6043 = vmatprep.subr.mxu0 0.0
        %6044 = vmatpush1.msra.mxu0 0.0
        %6045 = vmatprep.subr.mxu0 0.0
        %6046 = vmatpush1.msra.mxu0 0.0
        %6047 = vmatprep.subr.mxu0 0.0
        %6048 = vmatpush1.msra.mxu0 0.0
        %6049 = vmatprep.subr.mxu0 0.0
        %6050 = vmatpush1.msra.mxu0 0.0
        %6051 = vmatprep.subr.mxu0 0.0
        %6052 = vmatpush1.msra.mxu0 0.0
        %6053 = vmatprep.mubr.f32.mxu0 0.0
        %6054 = vmatmul.mubr.f32.gmra.mrb[0].mxu0 %v5942
        %v6055 = vpop.f32.mrb[0].mxu0
        %v6056 = vadd.f32 0.0, %v6055
        %v6057 = vpop.f32.mrb[0].mxu0
        %6058 = vmatprep.mubr.f32.mxu0 0.0
        %6059 = vmatmul.mubr.f32.gmra.mrb[0].mxu0 %v5945
        %v6060 = vpop.f32.mrb[0].mxu0
        %v6061 = vadd.f32 0.0, %v6060
        %v6062 = vpop.f32.mrb[0].mxu0
        %6063 = vmatprep.mubr.f32.mxu0 0.0
        %6064 = vmatmul.mubr.f32.gmra.mrb[0].mxu0 %v5948
        %v6065 = vpop.f32.mrb[0].mxu0
        %v6066 = vadd.f32 0.0, %v6065
        %v6067 = vpop.f32.mrb[0].mxu0
        %6068 = vmatprep.mubr.f32.mxu0 0.0
        %6069 = vmatmul.mubr.f32.gmra.mrb[0].mxu0 %v5951
        %v6070 = vpop.f32.mrb[0].mxu0
        %v6071 = vadd.f32 0.0, %v6070
        %v6072 = vpop.f32.mrb[0].mxu0
        %6073 = vmatprep.mubr.f32.mxu0 0.0
        %6074 = vmatmul.mubr.f32.gmra.mrb[0].mxu0 %v5954
        %v6075 = vpop.f32.mrb[0].mxu0
        %v6076 = vadd.f32 0.0, %v6075
        %v6077 = vpop.f32.mrb[0].mxu0
        %6078 = vmatprep.mubr.f32.mxu0 0.0
        %6079 = vmatmul.mubr.f32.gmra.mrb[0].mxu0 %v5957
        %v6080 = vpop.f32.mrb[0].mxu0
        %v6081 = vadd.f32 0.0, %v6080
        %v6082 = vpop.f32.mrb[0].mxu0
        %6083 = vmatprep.mubr.f32.mxu0 0.0
        %6084 = vmatmul.mubr.f32.gmra.mrb[0].mxu0 %v5960
        %v6085 = vpop.f32.mrb[0].mxu0
        %v6086 = vadd.f32 0.0, %v6085
        %v6087 = vpop.f32.mrb[0].mxu0
        %6088 = vmatprep.mubr.f32.mxu0 0.0
        %6089 = vmatmul.mubr.f32.gmra.mrb[0].mxu0 %v5963
        %v6090 = vpop.f32.mrb[0].mxu0
        %v6091 = vadd.f32 0.0, %v6090
        %v6092 = vpop.f32.mrb[0].mxu0
        %6093 = vmatprep.mubr.f32.mxu0 0.0
        %6094 = vmatmul.mubr.f32.gmra.mrb[0].mxu0 %v5966
        %v6095 = vpop.f32.mrb[0].mxu0
        %v6096 = vadd.f32 0.0, %v6095
        %v6097 = vpop.f32.mrb[0].mxu0
        %6098 = vmatprep.mubr.f32.mxu0 0.0
        %6099 = vmatmul.mubr.f32.gmra.mrb[0].mxu0 %v5969
        %v6100 = vpop.f32.mrb[0].mxu0
        %v6101 = vadd.f32 0.0, %v6100
        %v6102 = vpop.f32.mrb[0].mxu0
        %6103 = vmatprep.mubr.f32.mxu0 0.0
        %6104 = vmatmul.mubr.f32.gmra.mrb[0].mxu0 %v5972
        %v6105 = vpop.f32.mrb[0].mxu0
        %v6106 = vadd.f32 0.0, %v6105
        %v6107 = vpop.f32.mrb[0].mxu0
        %6108 = vmatprep.mubr.f32.mxu0 0.0
        %6109 = vmatmul.mubr.f32.gmra.mrb[0].mxu0 %v5975
        %v6110 = vpop.f32.mrb[0].mxu0
        %v6111 = vadd.f32 0.0, %v6110
        %v6112 = vpop.f32.mrb[0].mxu0
        %6113 = vmatprep.mubr.f32.mxu0 0.0
        %6114 = vmatmul.mubr.f32.gmra.mrb[0].mxu0 %v5978
        %v6115 = vpop.f32.mrb[0].mxu0
        %v6116 = vadd.f32 0.0, %v6115
        %v6117 = vpop.f32.mrb[0].mxu0
        %6118 = vmatprep.mubr.f32.mxu0 0.0
        %6119 = vmatmul.mubr.f32.gmra.mrb[0].mxu0 %v5981
        %v6120 = vpop.f32.mrb[0].mxu0
        %v6121 = vadd.f32 0.0, %v6120
        %v6122 = vpop.f32.mrb[0].mxu0
        %6123 = vmatprep.mubr.f32.mxu0 0.0
        %6124 = vmatmul.mubr.f32.gmra.mrb[0].mxu0 %v5984
        %v6125 = vpop.f32.mrb[0].mxu0
        %v6126 = vadd.f32 0.0, %v6125
        %v6127 = vpop.f32.mrb[0].mxu0
        %6128 = vmatprep.mubr.f32.mxu0 0.0
        %6129 = vmatmul.mubr.f32.gmra.mrb[0].mxu0 %v5987
        %v6130 = vpop.f32.mrb[0].mxu0
        %v6131 = vadd.f32 0.0, %v6130
        %v6132 = vpop.f32.mrb[0].mxu0
        %6133 = vdwg.mxu0
        %s6134 = smul.addr %s1338, 4
        %s6135 = scalar_lea.vmem [#allocation15], %s6134
        %v6136 = vld [vmem:[%s6135] sm:$0xf]
        %v6137 = vld [vmem:[%s6135 + $0x4] sm:$0xf]
        %v6138 = vld [vmem:[%s6135 + $0x8] sm:$0xf]
        %v6139 = vld [vmem:[%s6135 + $0xc] sm:$0xf]
        %v6140 = vunpack.c.l.bf16 %v6136
        %v6141 = vunpack.c.l.bf16 %v6137
        %v6142 = vunpack.c.l.bf16 %v6138
        %v6143 = vunpack.c.l.bf16 %v6139
        %v6145 = vsel %vm1357, %v6056, 0
        %v6148 = vsel %vm1357, %v6061, 0
        %v6151 = vsel %vm1357, %v6066, 0
        %v6154 = vsel %vm1357, %v6071, 0
        %v6157 = vsel %vm1357, %v6076, 0
        %v6160 = vsel %vm1357, %v6081, 0
        %v6163 = vsel %vm1357, %v6086, 0
        %v6166 = vsel %vm1357, %v6091, 0
        %v6169 = vsel %vm1357, %v6096, 0
        %v6172 = vsel %vm1357, %v6101, 0
        %v6175 = vsel %vm1357, %v6106, 0
        %v6178 = vsel %vm1357, %v6111, 0
        %v6181 = vsel %vm1357, %v6116, 0
        %v6184 = vsel %vm1357, %v6121, 0
        %v6187 = vsel %vm1357, %v6126, 0
        %v6190 = vsel %vm1357, %v6131, 0
        %6192 = vmatprep.subr.mxu0 0.0
        %6193 = vmatpush1.msra.mxu0 %v6140
        %6194 = vmatprep.subr.mxu0 0.0
        %6195 = vmatpush1.msra.mxu0 %v6141
        %6196 = vmatprep.subr.mxu0 0.0
        %6197 = vmatpush1.msra.mxu0 %v6142
        %6198 = vmatprep.subr.mxu0 0.0
        %6199 = vmatpush1.msra.mxu0 %v6143
        %6200 = vmatprep.subr.mxu0 0.0
        %6201 = vmatpush1.msra.mxu0 0.0
        %6202 = vmatprep.subr.mxu0 0.0
        %6203 = vmatpush1.msra.mxu0 0.0
        %6204 = vmatprep.subr.mxu0 0.0
        %6205 = vmatpush1.msra.mxu0 0.0
        %6206 = vmatprep.subr.mxu0 0.0
        %6207 = vmatpush1.msra.mxu0 0.0
        %6208 = vmatprep.subr.mxu0 0.0
        %6209 = vmatpush1.msra.mxu0 0.0
        %6210 = vmatprep.subr.mxu0 0.0
        %6211 = vmatpush1.msra.mxu0 0.0
        %6212 = vmatprep.subr.mxu0 0.0
        %6213 = vmatpush1.msra.mxu0 0.0
        %6214 = vmatprep.subr.mxu0 0.0
        %6215 = vmatpush1.msra.mxu0 0.0
        %6216 = vmatprep.subr.mxu0 0.0
        %6217 = vmatpush1.msra.mxu0 0.0
        %6218 = vmatprep.subr.mxu0 0.0
        %6219 = vmatpush1.msra.mxu0 0.0
        %6220 = vmatprep.subr.mxu0 0.0
        %6221 = vmatpush1.msra.mxu0 0.0
        %6222 = vmatprep.subr.mxu0 0.0
        %6223 = vmatpush1.msra.mxu0 0.0
        %6224 = vmatprep.subr.mxu0 0.0
        %6225 = vmatpush1.msra.mxu0 0.0
        %6226 = vmatprep.subr.mxu0 0.0
        %6227 = vmatpush1.msra.mxu0 0.0
        %6228 = vmatprep.subr.mxu0 0.0
        %6229 = vmatpush1.msra.mxu0 0.0
        %6230 = vmatprep.subr.mxu0 0.0
        %6231 = vmatpush1.msra.mxu0 0.0
        %6232 = vmatprep.subr.mxu0 0.0
        %6233 = vmatpush1.msra.mxu0 0.0
        %6234 = vmatprep.subr.mxu0 0.0
        %6235 = vmatpush1.msra.mxu0 0.0
        %6236 = vmatprep.subr.mxu0 0.0
        %6237 = vmatpush1.msra.mxu0 0.0
        %6238 = vmatprep.subr.mxu0 0.0
        %6239 = vmatpush1.msra.mxu0 0.0
        %6240 = vmatprep.subr.mxu0 0.0
        %6241 = vmatpush1.msra.mxu0 0.0
        %6242 = vmatprep.subr.mxu0 0.0
        %6243 = vmatpush1.msra.mxu0 0.0
        %6244 = vmatprep.subr.mxu0 0.0
        %6245 = vmatpush1.msra.mxu0 0.0
        %6246 = vmatprep.subr.mxu0 0.0
        %6247 = vmatpush1.msra.mxu0 0.0
        %6248 = vmatprep.subr.mxu0 0.0
        %6249 = vmatpush1.msra.mxu0 0.0
        %6250 = vmatprep.subr.mxu0 0.0
        %6251 = vmatpush1.msra.mxu0 0.0
        %6252 = vmatprep.subr.mxu0 0.0
        %6253 = vmatpush1.msra.mxu0 0.0
        %6254 = vmatprep.subr.mxu0 0.0
        %6255 = vmatpush1.msra.mxu0 0.0
        %6256 = vmatprep.mubr.f32.mxu0 0.0
        %6257 = vmatmul.mubr.f32.gmra.mrb[0].mxu0 %v6145
        %v6258 = vpop.f32.mrb[0].mxu0
        %v6259 = vadd.f32 %v5915, %v6258
        %v6260 = vpop.f32.mrb[0].mxu0
        %6261 = vmatprep.mubr.f32.mxu0 0.0
        %6262 = vmatmul.mubr.f32.gmra.mrb[0].mxu0 %v6148
        %v6263 = vpop.f32.mrb[0].mxu0
        %v6264 = vadd.f32 %v5916, %v6263
        %v6265 = vpop.f32.mrb[0].mxu0
        %6266 = vmatprep.mubr.f32.mxu0 0.0
        %6267 = vmatmul.mubr.f32.gmra.mrb[0].mxu0 %v6151
        %v6268 = vpop.f32.mrb[0].mxu0
        %v6269 = vadd.f32 %v5917, %v6268
        %v6270 = vpop.f32.mrb[0].mxu0
        %6271 = vmatprep.mubr.f32.mxu0 0.0
        %6272 = vmatmul.mubr.f32.gmra.mrb[0].mxu0 %v6154
        %v6273 = vpop.f32.mrb[0].mxu0
        %v6274 = vadd.f32 %v5918, %v6273
        %v6275 = vpop.f32.mrb[0].mxu0
        %6276 = vmatprep.mubr.f32.mxu0 0.0
        %6277 = vmatmul.mubr.f32.gmra.mrb[0].mxu0 %v6157
        %v6278 = vpop.f32.mrb[0].mxu0
        %v6279 = vadd.f32 %v5919, %v6278
        %v6280 = vpop.f32.mrb[0].mxu0
        %6281 = vmatprep.mubr.f32.mxu0 0.0
        %6282 = vmatmul.mubr.f32.gmra.mrb[0].mxu0 %v6160
        %v6283 = vpop.f32.mrb[0].mxu0
        %v6284 = vadd.f32 %v5920, %v6283
        %v6285 = vpop.f32.mrb[0].mxu0
        %6286 = vmatprep.mubr.f32.mxu0 0.0
        %6287 = vmatmul.mubr.f32.gmra.mrb[0].mxu0 %v6163
        %v6288 = vpop.f32.mrb[0].mxu0
        %v6289 = vadd.f32 %v5921, %v6288
        %v6290 = vpop.f32.mrb[0].mxu0
        %6291 = vmatprep.mubr.f32.mxu0 0.0
        %6292 = vmatmul.mubr.f32.gmra.mrb[0].mxu0 %v6166
        %v6293 = vpop.f32.mrb[0].mxu0
        %v6294 = vadd.f32 %v5922, %v6293
        %v6295 = vpop.f32.mrb[0].mxu0
        %6296 = vmatprep.mubr.f32.mxu0 0.0
        %6297 = vmatmul.mubr.f32.gmra.mrb[0].mxu0 %v6169
        %v6298 = vpop.f32.mrb[0].mxu0
        %v6299 = vadd.f32 %v5923, %v6298
        %v6300 = vpop.f32.mrb[0].mxu0
        %6301 = vmatprep.mubr.f32.mxu0 0.0
        %6302 = vmatmul.mubr.f32.gmra.mrb[0].mxu0 %v6172
        %v6303 = vpop.f32.mrb[0].mxu0
        %v6304 = vadd.f32 %v5924, %v6303
        %v6305 = vpop.f32.mrb[0].mxu0
        %6306 = vmatprep.mubr.f32.mxu0 0.0
        %6307 = vmatmul.mubr.f32.gmra.mrb[0].mxu0 %v6175
        %v6308 = vpop.f32.mrb[0].mxu0
        %v6309 = vadd.f32 %v5925, %v6308
        %v6310 = vpop.f32.mrb[0].mxu0
        %6311 = vmatprep.mubr.f32.mxu0 0.0
        %6312 = vmatmul.mubr.f32.gmra.mrb[0].mxu0 %v6178
        %v6313 = vpop.f32.mrb[0].mxu0
        %v6314 = vadd.f32 %v5926, %v6313
        %v6315 = vpop.f32.mrb[0].mxu0
        %6316 = vmatprep.mubr.f32.mxu0 0.0
        %6317 = vmatmul.mubr.f32.gmra.mrb[0].mxu0 %v6181
        %v6318 = vpop.f32.mrb[0].mxu0
        %v6319 = vadd.f32 %v5927, %v6318
        %v6320 = vpop.f32.mrb[0].mxu0
        %6321 = vmatprep.mubr.f32.mxu0 0.0
        %6322 = vmatmul.mubr.f32.gmra.mrb[0].mxu0 %v6184
        %v6323 = vpop.f32.mrb[0].mxu0
        %v6324 = vadd.f32 %v5928, %v6323
        %v6325 = vpop.f32.mrb[0].mxu0
        %6326 = vmatprep.mubr.f32.mxu0 0.0
        %6327 = vmatmul.mubr.f32.gmra.mrb[0].mxu0 %v6187
        %v6328 = vpop.f32.mrb[0].mxu0
        %v6329 = vadd.f32 %v5929, %v6328
        %v6330 = vpop.f32.mrb[0].mxu0
        %6331 = vmatprep.mubr.f32.mxu0 0.0
        %6332 = vmatmul.mubr.f32.gmra.mrb[0].mxu0 %v6190
        %v6333 = vpop.f32.mrb[0].mxu0
        %v6334 = vadd.f32 %v5930, %v6333
        %v6335 = vpop.f32.mrb[0].mxu0
        %6336 = vdwg.mxu0
        %6337 = vst.msk [vmem:[#allocation2] sm:$0xff] %vm1357, %v6259
        %6338 = vst.msk [vmem:[#allocation2 + $0x8] sm:$0xff] %vm1357, %v6264
        %6339 = vst.msk [vmem:[#allocation2 + $0x10] sm:$0xff] %vm1357, %v6269
        %6340 = vst.msk [vmem:[#allocation2 + $0x18] sm:$0xff] %vm1357, %v6274
        %6341 = vst.msk [vmem:[#allocation2 + $0x20] sm:$0xff] %vm1357, %v6279
        %6342 = vst.msk [vmem:[#allocation2 + $0x28] sm:$0xff] %vm1357, %v6284
        %6343 = vst.msk [vmem:[#allocation2 + $0x30] sm:$0xff] %vm1357, %v6289
        %6344 = vst.msk [vmem:[#allocation2 + $0x38] sm:$0xff] %vm1357, %v6294
        %6345 = vst.msk [vmem:[#allocation2 + $0x40] sm:$0xff] %vm1357, %v6299
        %6346 = vst.msk [vmem:[#allocation2 + $0x48] sm:$0xff] %vm1357, %v6304
        %6347 = vst.msk [vmem:[#allocation2 + $0x50] sm:$0xff] %vm1357, %v6309
        %6348 = vst.msk [vmem:[#allocation2 + $0x58] sm:$0xff] %vm1357, %v6314
        %6349 = vst.msk [vmem:[#allocation2 + $0x60] sm:$0xff] %vm1357, %v6319
        %6350 = vst.msk [vmem:[#allocation2 + $0x68] sm:$0xff] %vm1357, %v6324
        %6351 = vst.msk [vmem:[#allocation2 + $0x70] sm:$0xff] %vm1357, %v6329
        %6352 = vst.msk [vmem:[#allocation2 + $0x78] sm:$0xff] %vm1357, %v6334
        %p6353 = scmp.eq.s32.totalorder %s34, 1
        // Predicated region
        $region105: #{tpu_custom_call.1} parent=67 // pred_check
          %p6354 = pneg %p6353
        $region106: #{tpu_custom_call.1} parent=67 // pred_check_branch
          %6356 = sbr.rel (%p6354) target = $region108
        $region107: #{tpu_custom_call.1} parent=67 // pred_region
          %6357 = vxpose.xlu0.b32.start [1/16] %v6259, 128
          %6358 = vxpose.xlu0.b32.cont [2/16] %v6264, 128
          %6359 = vxpose.xlu0.b32.cont [3/16] %v6269, 128
          %6360 = vxpose.xlu0.b32.cont [4/16] %v6274, 128
          %6361 = vxpose.xlu0.b32.cont [5/16] %v6279, 128
          %6362 = vxpose.xlu0.b32.cont [6/16] %v6284, 128
          %6363 = vxpose.xlu0.b32.cont [7/16] %v6289, 128
          %6364 = vxpose.xlu0.b32.cont [8/16] %v6294, 128
          %6365 = vxpose.xlu0.b32.cont [9/16] 0.0, 128
          %6366 = vxpose.xlu0.b32.cont [10/16] 0.0, 128
          %6367 = vxpose.xlu0.b32.cont [11/16] 0.0, 128
          %6368 = vxpose.xlu0.b32.cont [12/16] 0.0, 128
          %6369 = vxpose.xlu0.b32.cont [13/16] 0.0, 128
          %6370 = vxpose.xlu0.b32.cont [14/16] 0.0, 128
          %6371 = vxpose.xlu0.b32.cont [15/16] 0.0, 128
          %6372 = vxpose.xlu0.b32.end [16/16] 0.0, 128
          %v6373 = vpop.trf.xlu0
          %v6374 = vpop.trf.xlu0
          %v6375 = vpop.trf.xlu0
          %v6376 = vpop.trf.xlu0
          %v6377 = vpop.trf.xlu0
          %v6378 = vpop.trf.xlu0
          %v6379 = vpop.trf.xlu0
          %v6380 = vpop.trf.xlu0
          %v6381 = vpop.trf.xlu0
          %v6382 = vpop.trf.xlu0
          %v6383 = vpop.trf.xlu0
          %v6384 = vpop.trf.xlu0
          %v6385 = vpop.trf.xlu0
          %v6386 = vpop.trf.xlu0
          %v6387 = vpop.trf.xlu0
          %v6388 = vpop.trf.xlu0
          %6389 = vst.msk [vmem:[#allocation17] sm:$0xff] %vm1723, %v6373
          %6390 = vst.msk [vmem:[#allocation17 + $0x8] sm:$0xff] %vm1723, %v6374
          %6391 = vst.msk [vmem:[#allocation17 + $0x10] sm:$0xff] %vm1723, %v6375
          %6392 = vst.msk [vmem:[#allocation17 + $0x18] sm:$0xff] %vm1723, %v6376
          %6393 = vxpose.xlu0.b32.start [1/16] %v6299, 128
          %6394 = vxpose.xlu0.b32.cont [2/16] %v6304, 128
          %6395 = vxpose.xlu0.b32.cont [3/16] %v6309, 128
          %6396 = vxpose.xlu0.b32.cont [4/16] %v6314, 128
          %6397 = vxpose.xlu0.b32.cont [5/16] %v6319, 128
          %6398 = vxpose.xlu0.b32.cont [6/16] %v6324, 128
          %6399 = vxpose.xlu0.b32.cont [7/16] %v6329, 128
          %6400 = vxpose.xlu0.b32.cont [8/16] %v6334, 128
          %6401 = vxpose.xlu0.b32.cont [9/16] 0.0, 128
          %6402 = vxpose.xlu0.b32.cont [10/16] 0.0, 128
          %6403 = vxpose.xlu0.b32.cont [11/16] 0.0, 128
          %6404 = vxpose.xlu0.b32.cont [12/16] 0.0, 128
          %6405 = vxpose.xlu0.b32.cont [13/16] 0.0, 128
          %6406 = vxpose.xlu0.b32.cont [14/16] 0.0, 128
          %6407 = vxpose.xlu0.b32.cont [15/16] 0.0, 128
          %6408 = vxpose.xlu0.b32.end [16/16] 0.0, 128
          %v6409 = vpop.trf.xlu0
          %v6410 = vpop.trf.xlu0
          %v6411 = vpop.trf.xlu0
          %v6412 = vpop.trf.xlu0
          %v6413 = vpop.trf.xlu0
          %v6414 = vpop.trf.xlu0
          %v6415 = vpop.trf.xlu0
          %v6416 = vpop.trf.xlu0
          %v6417 = vpop.trf.xlu0
          %v6418 = vpop.trf.xlu0
          %v6419 = vpop.trf.xlu0
          %v6420 = vpop.trf.xlu0
          %v6421 = vpop.trf.xlu0
          %v6422 = vpop.trf.xlu0
          %v6423 = vpop.trf.xlu0
          %v6424 = vpop.trf.xlu0
          %s6425 = scalar_lea.vmem [#allocation17], 32
          %6426 = vst.msk [vmem:[%s6425] sm:$0xff] %vm1723, %v6409
          %6427 = vst.msk [vmem:[%s6425 + $0x8] sm:$0xff] %vm1723, %v6410
          %6428 = vst.msk [vmem:[%s6425 + $0x10] sm:$0xff] %vm1723, %v6411
          %6429 = vst.msk [vmem:[%s6425 + $0x18] sm:$0xff] %vm1723, %v6412
        $region108: #{tpu_custom_call.1} parent=67 // pred_fallthru
          _
        // Predicated region
        $region109: #{tpu_custom_call.1} parent=67 // pred_check
          %p6430 = pneg %p316
        $region110: #{tpu_custom_call.1} parent=67 // pred_check_branch
          %6432 = sbr.rel (%p6430) target = $region112
        $region111: #{tpu_custom_call.1} parent=67 // pred_region
          %s6433 = smul.u32 2, %s33
          %s6435 = ssub.s32 1024, 1024
          %6436 = vsyncadd [#allocation5], %s6435
          %s6437 = smul.addr %s6433, 4
          %s6438 = smul.addr %s6437, 128
          %s6439 = scalar_lea.hbm %s12, %s6438
          %s6440 = sshll.u32 [#allocation17], 4
          %s6441 = int_to_ptr.vmem [resolvable:$true] %s6440
          %6446 = dma.vmem_to_hbm [thread:$0]  %s6441, 1024, %s6439, [#allocation5], 128, 128, 8
        $region112: #{tpu_custom_call.1} parent=67 // pred_fallthru
          _
        // Predicated region
        $region113: #{tpu_custom_call.1} parent=67 // pred_check
          %p6447 = pneg %p316
        $region114: #{tpu_custom_call.1} parent=67 // pred_check_branch
          %6449 = sbr.rel (%p6447) target = $region116
        $region115: #{tpu_custom_call.1} parent=67 // pred_region
          %6450 = dma.done [#allocation5], 1024
        $region116: #{tpu_custom_call.1} parent=67 // pred_fallthru
          _
      $region68: #{tpu_custom_call.1} parent=5 // pred_fallthru
        _
      %p6451 = scmp.le.s32.totalorder 2, %s24
      // Predicated region
      $region117: #{tpu_custom_call.1} parent=5 // pred_check
        %p6452 = pneg %p6451
      $region118: #{tpu_custom_call.1} parent=5 // pred_check_branch
        %6454 = sbr.rel (%p6452) target = $region120
      $region119: #{tpu_custom_call.1} parent=5 // pred_region
        %s6455 = ssub.s32 %s24, 2
      $region120: #{tpu_custom_call.1} parent=5 // pred_fallthru
        _
    $region6: #{tpu_custom_call.1} parent=1 // loop_footer
      %s28 = sadd.s32 1, %s24
    $region7: #{tpu_custom_call.1} parent=1 // loop_footer_branch
      %23 = sbr.rel target = $region3
    $region8: #{tpu_custom_call.1} parent=1 // loop_exit
      _
    %6456 = vsyncpa [#allocation4], 1
    %s6457 = scalar_lea.sflag [#allocation4], 1
    %6458 = vsyncpa %s6457, 1
    %6459 = vsyncpa [#allocation7], 1
    %6460 = vsyncpa [#allocation10], 1
    %6461 = vsyncpa [#allocation13], 1
    %6462 = vsyncpa [#allocation16], 1
    %6463 = vsyncpa [#allocation5], 1
    %s6464 = scalar_lea.sflag [#allocation5], 1
    %6465 = vsyncpa %s6464, 1

</llo_original>
